<compile_context>
chip_gen: v5e
topology: v5e:2x2
jax: 0.10.0
libtpu: 0.0.40
codegen_flags: <defaults>
</compile_context>

<pallas_src>
import functools

import jax
import jax.numpy as jnp
from jax import lax
from jax.experimental import pallas as pl
from jax.experimental.pallas import tpu as pltpu

# -- module constants (from chatbot.py) --------------------------------------
BLOCK_SIZE = 64                       # max sequence length
N_EMBD = 384
NUM_HEADS = 6
HEAD_SIZE = N_EMBD // NUM_HEADS       # 64
HHS = NUM_HEADS * HEAD_SIZE           # 384


# -----------------------------------------------------------------------------
# Fused kernel: one batch CHUNK (bc elements, bc*T rows) per grid step.
#   - single (bc*T, 384) @ (384, 1152) QKV matmul (bf16 in, f32 acc)
#   - per (batch, head): causal scores, f32 softmax, PV, distributed projection
#   - bias add, lane-dense (bc*T, 384) store
# -----------------------------------------------------------------------------
def _mha_fused_kernel(x_ref, wqkv_ref, wp_ref, bp_ref, o_ref, *, bc, T):
    C = N_EMBD
    x = x_ref[...].astype(jnp.bfloat16)                     # (bc*T, C)

    # QKV for all heads & all rows of the chunk: ONE lane-dense matmul, N=1152.
    qkv = jnp.dot(x, wqkv_ref[...], preferred_element_type=jnp.float32)
    qkv = qkv.astype(jnp.bfloat16)                          # cast once, not per-head

    scale = jnp.float32(HEAD_SIZE ** -0.5)
    row = lax.broadcasted_iota(jnp.int32, (T, T), 0)
    col = lax.broadcasted_iota(jnp.int32, (T, T), 1)
    causal = row >= col                                     # lower-triangular

    wp = wp_ref[...]                                        # (HHS, C) bf16, resident
    bias = bp_ref[...]                                      # (1, C) f32

    for b in range(bc):                                     # static unroll over chunk
        r0 = b * T
        y = jnp.zeros((T, C), jnp.float32)                  # distributed-proj accumulator
        for h in range(NUM_HEADS):                          # static unroll, H = 6
            lo = h * HEAD_SIZE
            hi = lo + HEAD_SIZE
            qh = qkv[r0:r0 + T, lo:hi]                      # (T, hs) bf16
            kh = qkv[r0:r0 + T, HHS + lo:HHS + hi]
            vh = qkv[r0:r0 + T, 2 * HHS + lo:2 * HHS + hi]

            # scores = qh @ kh^T (contract last dims; no materialized transpose)
            s = lax.dot_general(qh, kh, (((1,), (1,)), ((), ())),
                                preferred_element_type=jnp.float32)   # (T, T) f32
            s = s * scale
            s = jnp.where(causal, s, -jnp.inf)

            # softmax in f32; divide via EUP approximate reciprocal (free slot)
            m = jnp.max(s, axis=-1, keepdims=True)
            e = jnp.exp(s - m)
            denom = jnp.sum(e, axis=-1, keepdims=True)
            wei = e * pl.reciprocal(denom, approx=True)
            # (attention dropout: identity in eval mode)

            pv = jnp.dot(wei.astype(jnp.bfloat16), vh,
                         preferred_element_type=jnp.float32)          # (T, hs) f32

            # Distributed output projection (replaces concat + big matmul):
            # (T, hs) @ (hs, C) — lane-dense N = 384, accumulate in f32.
            y = y + jnp.dot(pv.astype(jnp.bfloat16), wp[lo:hi, :],
                            preferred_element_type=jnp.float32)

        y = y + bias
        # (residual dropout: identity in eval mode)
        o_ref[pl.ds(r0, T), :] = y.astype(o_ref.dtype)


def _pick_batch_chunk(B, T, target_rows=256):
    """Largest divisor of B whose chunk has at most ~target_rows matmul rows."""
    bc = 1
    for d in range(1, B + 1):
        if B % d == 0 and d * T <= max(target_rows, T):
            bc = d
    return bc


# -----------------------------------------------------------------------------
# Wrapper: matches MultiHeadAttention.forward (eval mode)
# -----------------------------------------------------------------------------
def multihead_attention_forward(x, params, *, batch_chunk=None):
    """x: (B, T, C); wq/wk/wv: (C, H*hs); w_proj: (H*hs, C); b_proj: (1, C)."""
    B, T, C = x.shape
    assert C == N_EMBD
    bc = batch_chunk if batch_chunk is not None else _pick_batch_chunk(B, T)
    assert B % bc == 0
    M = bc * T

    # Stack Wq/Wk/Wv into one (C, 3*HHS) weight; ship all weights as bf16
    # (cast once here, outside the kernel — halves the dominant HBM traffic).
    wqkv = jnp.concatenate(
        [params["wq"], params["wk"], params["wv"]], axis=1).astype(jnp.bfloat16)
    wp = params["w_proj"].astype(jnp.bfloat16)
    bp = params["b_proj"].astype(jnp.float32)

    x2 = x.reshape(B * T, C)                                 # fold batch into rows

    kernel = functools.partial(_mha_fused_kernel, bc=bc, T=T)
    out = pl.pallas_call(
        kernel,
        out_shape=jax.ShapeDtypeStruct((B * T, C), jnp.float32),
        grid_spec=pltpu.PrefetchScalarGridSpec(
            num_scalar_prefetch=0,
            grid=(B // bc,),
            in_specs=[
                pl.BlockSpec((M, C), lambda i: (i, 0)),          # x rows (chunk)
                pl.BlockSpec((C, 3 * HHS), lambda i: (0, 0)),    # Wqkv (resident)
                pl.BlockSpec((HHS, C), lambda i: (0, 0)),        # W_proj (resident)
                pl.BlockSpec((1, C), lambda i: (0, 0)),          # b_proj
            ],
            out_specs=pl.BlockSpec((M, C), lambda i: (i, 0)),
        ),
        compiler_params=pltpu.CompilerParams(
            dimension_semantics=("parallel",)),
    )(x2, wqkv, wp, bp)
    return out.reshape(B, T, C)


# -----------------------------------------------------------------------------
# Pure-JAX (f32) reference for correctness checking
# -----------------------------------------------------------------------------
def reference_forward(x, params):
    B, T, C = x.shape
    outs = []
    mask = jnp.tril(jnp.ones((T, T), dtype=bool))
    for h in range(NUM_HEADS):
        lo, hi = h * HEAD_SIZE, (h + 1) * HEAD_SIZE
        q = x @ params["wq"][:, lo:hi]
        k = x @ params["wk"][:, lo:hi]
        v = x @ params["wv"][:, lo:hi]
        wei = (q @ jnp.swapaxes(k, -1, -2)) * (HEAD_SIZE ** -0.5)
        wei = jnp.where(mask, wei, -jnp.inf)
        wei = jax.nn.softmax(wei, axis=-1)
        outs.append(wei @ v)
    cat = jnp.concatenate(outs, axis=-1)
    return cat @ params["w_proj"] + params["b_proj"][0]


if __name__ == "__main__":
    key = jax.random.PRNGKey(0)
    kx, kq, kk, kv, kw, kb = jax.random.split(key, 6)

    B, T, C = 2, BLOCK_SIZE, N_EMBD              # (2, 64, 384)
    x = jax.random.normal(kx, (B, T, C), dtype=jnp.float32)

    # PyTorch nn.Linear stores weight as (out, in); we keep (in, out) stacked
    # across heads so the kernel does x @ W directly (equivalent to x @ W_pt.T).
    params = {
        "wq": 0.02 * jax.random.normal(kq, (C, HHS), jnp.float32),
        "wk": 0.02 * jax.random.normal(kk, (C, HHS), jnp.float32),
        "wv": 0.02 * jax.random.normal(kv, (C, HHS), jnp.float32),
        "w_proj": 0.02 * jax.random.normal(kw, (HHS, C), jnp.float32),
        "b_proj": 0.02 * jax.random.normal(kb, (1, C), jnp.float32),
    }

    out = multihead_attention_forward(x, params)
    out = jax.block_until_ready(out)

    ref = reference_forward(x, params)
    assert out.shape == (B, T, C), out.shape
    # bf16 weights/MXU inputs + approx reciprocal -> loosen tolerance vs f32 ref.
    assert jnp.allclose(out, ref, atol=2e-2, rtol=2e-2), (
        "mismatch vs reference; max abs err = %e"
        % float(jnp.max(jnp.abs(out - ref))))

    print("KERNEL_OK")
</pallas_src>

<mosaic_0001>
module attributes {stable_mosaic.version = 11 : i64} {
  func.func @_mha_fused_kernel(%arg0: i32, %arg1: memref<128x384xf32, #tpu.memory_space<vmem>>, %arg2: memref<384x1152xbf16, #tpu.memory_space<vmem>>, %arg3: memref<384x384xbf16, #tpu.memory_space<vmem>>, %arg4: memref<1x384xf32, #tpu.memory_space<vmem>>, %arg5: memref<128x384xf32, #tpu.memory_space<vmem>>) attributes {dimension_semantics = [#tpu.dimension_semantics<parallel>], iteration_bounds = array<i64: 1>, scalar_prefetch = 0 : i64, scratch_operands = 0 : i64, tpu.core_type = #tpu.core_type<tc>, window_params = [{transform_indices = @transform_0, window_bounds = array<i64: 128, 384>}, {pipeline_mode = #tpu.pipeline_mode<synchronous>, transform_indices = @transform_1, window_bounds = array<i64: 384, 1152>}, {pipeline_mode = #tpu.pipeline_mode<synchronous>, transform_indices = @transform_2, window_bounds = array<i64: 384, 384>}, {pipeline_mode = #tpu.pipeline_mode<synchronous>, transform_indices = @transform_3, window_bounds = array<i64: 1, 384>}, {transform_indices = @transform_4, window_bounds = array<i64: 128, 384>}]} {
    %c0 = arith.constant 0 : index
    %c0_0 = arith.constant 0 : index
    %0 = vector.load %arg1[%c0, %c0_0] : memref<128x384xf32, #tpu.memory_space<vmem>>, vector<128x384xf32>
    %1 = arith.truncf %0 : vector<128x384xf32> to vector<128x384xbf16>
    %c0_1 = arith.constant 0 : index
    %c0_2 = arith.constant 0 : index
    %2 = vector.load %arg2[%c0_1, %c0_2] : memref<384x1152xbf16, #tpu.memory_space<vmem>>, vector<384x1152xbf16>
    %cst = arith.constant dense<0.000000e+00> : vector<128x1152xf32>
    %3 = tpu.matmul %1, %2, %cst {dimension_numbers = #tpu.dot_dimension_numbers<[1], [0], [0], [1], [0, 0, 1, 1], [], []>} : vector<128x384xbf16>, vector<384x1152xbf16>, vector<128x1152xf32> -> vector<128x1152xf32>
    %4 = arith.truncf %3 : vector<128x1152xf32> to vector<128x1152xbf16>
    %5 = tpu.iota {dimensions = array<i32: 0>} : vector<64x64xi32>
    %6 = tpu.iota {dimensions = array<i32: 1>} : vector<64x64xi32>
    %7 = arith.cmpi sge, %5, %6 : vector<64x64xi32>
    %c0_3 = arith.constant 0 : index
    %c0_4 = arith.constant 0 : index
    %8 = vector.load %arg3[%c0_3, %c0_4] : memref<384x384xbf16, #tpu.memory_space<vmem>>, vector<384x384xbf16>
    %c0_5 = arith.constant 0 : index
    %c0_6 = arith.constant 0 : index
    %9 = vector.load %arg4[%c0_5, %c0_6] : memref<1x384xf32, #tpu.memory_space<vmem>>, vector<1x384xf32>
    %cst_7 = arith.constant 0.000000e+00 : f32
    %10 = vector.broadcast %cst_7 : f32 to vector<64x384xf32>
    %11 = vector.extract_strided_slice %4 {offsets = [0, 0], sizes = [64, 64], strides = [1, 1]} : vector<128x1152xbf16> to vector<64x64xbf16>
    %12 = vector.extract_strided_slice %4 {offsets = [0, 384], sizes = [64, 64], strides = [1, 1]} : vector<128x1152xbf16> to vector<64x64xbf16>
    %13 = vector.extract_strided_slice %4 {offsets = [0, 768], sizes = [64, 64], strides = [1, 1]} : vector<128x1152xbf16> to vector<64x64xbf16>
    %cst_8 = arith.constant dense<0.000000e+00> : vector<64x64xf32>
    %14 = tpu.matmul %11, %12, %cst_8 {dimension_numbers = #tpu.dot_dimension_numbers<[1], [1], [0], [0], [0, 0, 1, 0], [], []>} : vector<64x64xbf16>, vector<64x64xbf16>, vector<64x64xf32> -> vector<64x64xf32>
    %cst_9 = arith.constant 1.250000e-01 : f32
    %15 = vector.broadcast %cst_9 : f32 to vector<64x64xf32>
    %16 = arith.mulf %14, %15 : vector<64x64xf32>
    %cst_10 = arith.constant 0xFF800000 : f32
    %17 = vector.broadcast %cst_10 : f32 to vector<64x64xf32>
    %18 = arith.select %7, %16, %17 : vector<64x64xi1>, vector<64x64xf32>
    %cst_11 = arith.constant dense<0xFF800000> : vector<64xf32>
    %19 = vector.multi_reduction <maximumf>, %18, %cst_11 [1] : vector<64x64xf32> to vector<64xf32>
    %20 = vector.shape_cast %19 : vector<64xf32> to vector<64x1xf32>
    %21 = vector.broadcast %20 : vector<64x1xf32> to vector<64x64xf32>
    %22 = arith.subf %18, %21 : vector<64x64xf32>
    %23 = math.exp %22 : vector<64x64xf32>
    %cst_12 = arith.constant dense<0.000000e+00> : vector<64xf32>
    %24 = vector.multi_reduction <add>, %23, %cst_12 [1] : vector<64x64xf32> to vector<64xf32>
    %25 = vector.shape_cast %24 : vector<64xf32> to vector<64x1xf32>
    %26 = tpu.reciprocal %25 {approx = true} : vector<64x1xf32> -> vector<64x1xf32>
    %27 = vector.broadcast %26 : vector<64x1xf32> to vector<64x64xf32>
    %28 = arith.mulf %23, %27 : vector<64x64xf32>
    %29 = arith.truncf %28 : vector<64x64xf32> to vector<64x64xbf16>
    %cst_13 = arith.constant dense<0.000000e+00> : vector<64x64xf32>
    %30 = tpu.matmul %29, %13, %cst_13 {dimension_numbers = #tpu.dot_dimension_numbers<[1], [0], [0], [1], [0, 0, 1, 1], [], []>} : vector<64x64xbf16>, vector<64x64xbf16>, vector<64x64xf32> -> vector<64x64xf32>
    %31 = arith.truncf %30 : vector<64x64xf32> to vector<64x64xbf16>
    %32 = vector.extract_strided_slice %8 {offsets = [0, 0], sizes = [64, 384], strides = [1, 1]} : vector<384x384xbf16> to vector<64x384xbf16>
    %cst_14 = arith.constant dense<0.000000e+00> : vector<64x384xf32>
    %33 = tpu.matmul %31, %32, %cst_14 {dimension_numbers = #tpu.dot_dimension_numbers<[1], [0], [0], [1], [0, 0, 1, 1], [], []>} : vector<64x64xbf16>, vector<64x384xbf16>, vector<64x384xf32> -> vector<64x384xf32>
    %34 = arith.addf %10, %33 : vector<64x384xf32>
    %35 = vector.extract_strided_slice %4 {offsets = [0, 64], sizes = [64, 64], strides = [1, 1]} : vector<128x1152xbf16> to vector<64x64xbf16>
    %36 = vector.extract_strided_slice %4 {offsets = [0, 448], sizes = [64, 64], strides = [1, 1]} : vector<128x1152xbf16> to vector<64x64xbf16>
    %37 = vector.extract_strided_slice %4 {offsets = [0, 832], sizes = [64, 64], strides = [1, 1]} : vector<128x1152xbf16> to vector<64x64xbf16>
    %cst_15 = arith.constant dense<0.000000e+00> : vector<64x64xf32>
    %38 = tpu.matmul %35, %36, %cst_15 {dimension_numbers = #tpu.dot_dimension_numbers<[1], [1], [0], [0], [0, 0, 1, 0], [], []>} : vector<64x64xbf16>, vector<64x64xbf16>, vector<64x64xf32> -> vector<64x64xf32>
    %cst_16 = arith.constant 1.250000e-01 : f32
    %39 = vector.broadcast %cst_16 : f32 to vector<64x64xf32>
    %40 = arith.mulf %38, %39 : vector<64x64xf32>
    %cst_17 = arith.constant 0xFF800000 : f32
    %41 = vector.broadcast %cst_17 : f32 to vector<64x64xf32>
    %42 = arith.select %7, %40, %41 : vector<64x64xi1>, vector<64x64xf32>
    %cst_18 = arith.constant dense<0xFF800000> : vector<64xf32>
    %43 = vector.multi_reduction <maximumf>, %42, %cst_18 [1] : vector<64x64xf32> to vector<64xf32>
    %44 = vector.shape_cast %43 : vector<64xf32> to vector<64x1xf32>
    %45 = vector.broadcast %44 : vector<64x1xf32> to vector<64x64xf32>
    %46 = arith.subf %42, %45 : vector<64x64xf32>
    %47 = math.exp %46 : vector<64x64xf32>
    %cst_19 = arith.constant dense<0.000000e+00> : vector<64xf32>
    %48 = vector.multi_reduction <add>, %47, %cst_19 [1] : vector<64x64xf32> to vector<64xf32>
    %49 = vector.shape_cast %48 : vector<64xf32> to vector<64x1xf32>
    %50 = tpu.reciprocal %49 {approx = true} : vector<64x1xf32> -> vector<64x1xf32>
    %51 = vector.broadcast %50 : vector<64x1xf32> to vector<64x64xf32>
    %52 = arith.mulf %47, %51 : vector<64x64xf32>
    %53 = arith.truncf %52 : vector<64x64xf32> to vector<64x64xbf16>
    %cst_20 = arith.constant dense<0.000000e+00> : vector<64x64xf32>
    %54 = tpu.matmul %53, %37, %cst_20 {dimension_numbers = #tpu.dot_dimension_numbers<[1], [0], [0], [1], [0, 0, 1, 1], [], []>} : vector<64x64xbf16>, vector<64x64xbf16>, vector<64x64xf32> -> vector<64x64xf32>
    %55 = arith.truncf %54 : vector<64x64xf32> to vector<64x64xbf16>
    %56 = vector.extract_strided_slice %8 {offsets = [64, 0], sizes = [64, 384], strides = [1, 1]} : vector<384x384xbf16> to vector<64x384xbf16>
    %cst_21 = arith.constant dense<0.000000e+00> : vector<64x384xf32>
    %57 = tpu.matmul %55, %56, %cst_21 {dimension_numbers = #tpu.dot_dimension_numbers<[1], [0], [0], [1], [0, 0, 1, 1], [], []>} : vector<64x64xbf16>, vector<64x384xbf16>, vector<64x384xf32> -> vector<64x384xf32>
    %58 = arith.addf %34, %57 : vector<64x384xf32>
    %59 = vector.extract_strided_slice %4 {offsets = [0, 128], sizes = [64, 64], strides = [1, 1]} : vector<128x1152xbf16> to vector<64x64xbf16>
    %60 = vector.extract_strided_slice %4 {offsets = [0, 512], sizes = [64, 64], strides = [1, 1]} : vector<128x1152xbf16> to vector<64x64xbf16>
    %61 = vector.extract_strided_slice %4 {offsets = [0, 896], sizes = [64, 64], strides = [1, 1]} : vector<128x1152xbf16> to vector<64x64xbf16>
    %cst_22 = arith.constant dense<0.000000e+00> : vector<64x64xf32>
    %62 = tpu.matmul %59, %60, %cst_22 {dimension_numbers = #tpu.dot_dimension_numbers<[1], [1], [0], [0], [0, 0, 1, 0], [], []>} : vector<64x64xbf16>, vector<64x64xbf16>, vector<64x64xf32> -> vector<64x64xf32>
    %cst_23 = arith.constant 1.250000e-01 : f32
    %63 = vector.broadcast %cst_23 : f32 to vector<64x64xf32>
    %64 = arith.mulf %62, %63 : vector<64x64xf32>
    %cst_24 = arith.constant 0xFF800000 : f32
    %65 = vector.broadcast %cst_24 : f32 to vector<64x64xf32>
    %66 = arith.select %7, %64, %65 : vector<64x64xi1>, vector<64x64xf32>
    %cst_25 = arith.constant dense<0xFF800000> : vector<64xf32>
    %67 = vector.multi_reduction <maximumf>, %66, %cst_25 [1] : vector<64x64xf32> to vector<64xf32>
    %68 = vector.shape_cast %67 : vector<64xf32> to vector<64x1xf32>
    %69 = vector.broadcast %68 : vector<64x1xf32> to vector<64x64xf32>
    %70 = arith.subf %66, %69 : vector<64x64xf32>
    %71 = math.exp %70 : vector<64x64xf32>
    %cst_26 = arith.constant dense<0.000000e+00> : vector<64xf32>
    %72 = vector.multi_reduction <add>, %71, %cst_26 [1] : vector<64x64xf32> to vector<64xf32>
    %73 = vector.shape_cast %72 : vector<64xf32> to vector<64x1xf32>
    %74 = tpu.reciprocal %73 {approx = true} : vector<64x1xf32> -> vector<64x1xf32>
    %75 = vector.broadcast %74 : vector<64x1xf32> to vector<64x64xf32>
    %76 = arith.mulf %71, %75 : vector<64x64xf32>
    %77 = arith.truncf %76 : vector<64x64xf32> to vector<64x64xbf16>
    %cst_27 = arith.constant dense<0.000000e+00> : vector<64x64xf32>
    %78 = tpu.matmul %77, %61, %cst_27 {dimension_numbers = #tpu.dot_dimension_numbers<[1], [0], [0], [1], [0, 0, 1, 1], [], []>} : vector<64x64xbf16>, vector<64x64xbf16>, vector<64x64xf32> -> vector<64x64xf32>
    %79 = arith.truncf %78 : vector<64x64xf32> to vector<64x64xbf16>
    %80 = vector.extract_strided_slice %8 {offsets = [128, 0], sizes = [64, 384], strides = [1, 1]} : vector<384x384xbf16> to vector<64x384xbf16>
    %cst_28 = arith.constant dense<0.000000e+00> : vector<64x384xf32>
    %81 = tpu.matmul %79, %80, %cst_28 {dimension_numbers = #tpu.dot_dimension_numbers<[1], [0], [0], [1], [0, 0, 1, 1], [], []>} : vector<64x64xbf16>, vector<64x384xbf16>, vector<64x384xf32> -> vector<64x384xf32>
    %82 = arith.addf %58, %81 : vector<64x384xf32>
    %83 = vector.extract_strided_slice %4 {offsets = [0, 192], sizes = [64, 64], strides = [1, 1]} : vector<128x1152xbf16> to vector<64x64xbf16>
    %84 = vector.extract_strided_slice %4 {offsets = [0, 576], sizes = [64, 64], strides = [1, 1]} : vector<128x1152xbf16> to vector<64x64xbf16>
    %85 = vector.extract_strided_slice %4 {offsets = [0, 960], sizes = [64, 64], strides = [1, 1]} : vector<128x1152xbf16> to vector<64x64xbf16>
    %cst_29 = arith.constant dense<0.000000e+00> : vector<64x64xf32>
    %86 = tpu.matmul %83, %84, %cst_29 {dimension_numbers = #tpu.dot_dimension_numbers<[1], [1], [0], [0], [0, 0, 1, 0], [], []>} : vector<64x64xbf16>, vector<64x64xbf16>, vector<64x64xf32> -> vector<64x64xf32>
    %cst_30 = arith.constant 1.250000e-01 : f32
    %87 = vector.broadcast %cst_30 : f32 to vector<64x64xf32>
    %88 = arith.mulf %86, %87 : vector<64x64xf32>
    %cst_31 = arith.constant 0xFF800000 : f32
    %89 = vector.broadcast %cst_31 : f32 to vector<64x64xf32>
    %90 = arith.select %7, %88, %89 : vector<64x64xi1>, vector<64x64xf32>
    %cst_32 = arith.constant dense<0xFF800000> : vector<64xf32>
    %91 = vector.multi_reduction <maximumf>, %90, %cst_32 [1] : vector<64x64xf32> to vector<64xf32>
    %92 = vector.shape_cast %91 : vector<64xf32> to vector<64x1xf32>
    %93 = vector.broadcast %92 : vector<64x1xf32> to vector<64x64xf32>
    %94 = arith.subf %90, %93 : vector<64x64xf32>
    %95 = math.exp %94 : vector<64x64xf32>
    %cst_33 = arith.constant dense<0.000000e+00> : vector<64xf32>
    %96 = vector.multi_reduction <add>, %95, %cst_33 [1] : vector<64x64xf32> to vector<64xf32>
    %97 = vector.shape_cast %96 : vector<64xf32> to vector<64x1xf32>
    %98 = tpu.reciprocal %97 {approx = true} : vector<64x1xf32> -> vector<64x1xf32>
    %99 = vector.broadcast %98 : vector<64x1xf32> to vector<64x64xf32>
    %100 = arith.mulf %95, %99 : vector<64x64xf32>
    %101 = arith.truncf %100 : vector<64x64xf32> to vector<64x64xbf16>
    %cst_34 = arith.constant dense<0.000000e+00> : vector<64x64xf32>
    %102 = tpu.matmul %101, %85, %cst_34 {dimension_numbers = #tpu.dot_dimension_numbers<[1], [0], [0], [1], [0, 0, 1, 1], [], []>} : vector<64x64xbf16>, vector<64x64xbf16>, vector<64x64xf32> -> vector<64x64xf32>
    %103 = arith.truncf %102 : vector<64x64xf32> to vector<64x64xbf16>
    %104 = vector.extract_strided_slice %8 {offsets = [192, 0], sizes = [64, 384], strides = [1, 1]} : vector<384x384xbf16> to vector<64x384xbf16>
    %cst_35 = arith.constant dense<0.000000e+00> : vector<64x384xf32>
    %105 = tpu.matmul %103, %104, %cst_35 {dimension_numbers = #tpu.dot_dimension_numbers<[1], [0], [0], [1], [0, 0, 1, 1], [], []>} : vector<64x64xbf16>, vector<64x384xbf16>, vector<64x384xf32> -> vector<64x384xf32>
    %106 = arith.addf %82, %105 : vector<64x384xf32>
    %107 = vector.extract_strided_slice %4 {offsets = [0, 256], sizes = [64, 64], strides = [1, 1]} : vector<128x1152xbf16> to vector<64x64xbf16>
    %108 = vector.extract_strided_slice %4 {offsets = [0, 640], sizes = [64, 64], strides = [1, 1]} : vector<128x1152xbf16> to vector<64x64xbf16>
    %109 = vector.extract_strided_slice %4 {offsets = [0, 1024], sizes = [64, 64], strides = [1, 1]} : vector<128x1152xbf16> to vector<64x64xbf16>
    %cst_36 = arith.constant dense<0.000000e+00> : vector<64x64xf32>
    %110 = tpu.matmul %107, %108, %cst_36 {dimension_numbers = #tpu.dot_dimension_numbers<[1], [1], [0], [0], [0, 0, 1, 0], [], []>} : vector<64x64xbf16>, vector<64x64xbf16>, vector<64x64xf32> -> vector<64x64xf32>
    %cst_37 = arith.constant 1.250000e-01 : f32
    %111 = vector.broadcast %cst_37 : f32 to vector<64x64xf32>
    %112 = arith.mulf %110, %111 : vector<64x64xf32>
    %cst_38 = arith.constant 0xFF800000 : f32
    %113 = vector.broadcast %cst_38 : f32 to vector<64x64xf32>
    %114 = arith.select %7, %112, %113 : vector<64x64xi1>, vector<64x64xf32>
    %cst_39 = arith.constant dense<0xFF800000> : vector<64xf32>
    %115 = vector.multi_reduction <maximumf>, %114, %cst_39 [1] : vector<64x64xf32> to vector<64xf32>
    %116 = vector.shape_cast %115 : vector<64xf32> to vector<64x1xf32>
    %117 = vector.broadcast %116 : vector<64x1xf32> to vector<64x64xf32>
    %118 = arith.subf %114, %117 : vector<64x64xf32>
    %119 = math.exp %118 : vector<64x64xf32>
    %cst_40 = arith.constant dense<0.000000e+00> : vector<64xf32>
    %120 = vector.multi_reduction <add>, %119, %cst_40 [1] : vector<64x64xf32> to vector<64xf32>
    %121 = vector.shape_cast %120 : vector<64xf32> to vector<64x1xf32>
    %122 = tpu.reciprocal %121 {approx = true} : vector<64x1xf32> -> vector<64x1xf32>
    %123 = vector.broadcast %122 : vector<64x1xf32> to vector<64x64xf32>
    %124 = arith.mulf %119, %123 : vector<64x64xf32>
    %125 = arith.truncf %124 : vector<64x64xf32> to vector<64x64xbf16>
    %cst_41 = arith.constant dense<0.000000e+00> : vector<64x64xf32>
    %126 = tpu.matmul %125, %109, %cst_41 {dimension_numbers = #tpu.dot_dimension_numbers<[1], [0], [0], [1], [0, 0, 1, 1], [], []>} : vector<64x64xbf16>, vector<64x64xbf16>, vector<64x64xf32> -> vector<64x64xf32>
    %127 = arith.truncf %126 : vector<64x64xf32> to vector<64x64xbf16>
    %128 = vector.extract_strided_slice %8 {offsets = [256, 0], sizes = [64, 384], strides = [1, 1]} : vector<384x384xbf16> to vector<64x384xbf16>
    %cst_42 = arith.constant dense<0.000000e+00> : vector<64x384xf32>
    %129 = tpu.matmul %127, %128, %cst_42 {dimension_numbers = #tpu.dot_dimension_numbers<[1], [0], [0], [1], [0, 0, 1, 1], [], []>} : vector<64x64xbf16>, vector<64x384xbf16>, vector<64x384xf32> -> vector<64x384xf32>
    %130 = arith.addf %106, %129 : vector<64x384xf32>
    %131 = vector.extract_strided_slice %4 {offsets = [0, 320], sizes = [64, 64], strides = [1, 1]} : vector<128x1152xbf16> to vector<64x64xbf16>
    %132 = vector.extract_strided_slice %4 {offsets = [0, 704], sizes = [64, 64], strides = [1, 1]} : vector<128x1152xbf16> to vector<64x64xbf16>
    %133 = vector.extract_strided_slice %4 {offsets = [0, 1088], sizes = [64, 64], strides = [1, 1]} : vector<128x1152xbf16> to vector<64x64xbf16>
    %cst_43 = arith.constant dense<0.000000e+00> : vector<64x64xf32>
    %134 = tpu.matmul %131, %132, %cst_43 {dimension_numbers = #tpu.dot_dimension_numbers<[1], [1], [0], [0], [0, 0, 1, 0], [], []>} : vector<64x64xbf16>, vector<64x64xbf16>, vector<64x64xf32> -> vector<64x64xf32>
    %cst_44 = arith.constant 1.250000e-01 : f32
    %135 = vector.broadcast %cst_44 : f32 to vector<64x64xf32>
    %136 = arith.mulf %134, %135 : vector<64x64xf32>
    %cst_45 = arith.constant 0xFF800000 : f32
    %137 = vector.broadcast %cst_45 : f32 to vector<64x64xf32>
    %138 = arith.select %7, %136, %137 : vector<64x64xi1>, vector<64x64xf32>
    %cst_46 = arith.constant dense<0xFF800000> : vector<64xf32>
    %139 = vector.multi_reduction <maximumf>, %138, %cst_46 [1] : vector<64x64xf32> to vector<64xf32>
    %140 = vector.shape_cast %139 : vector<64xf32> to vector<64x1xf32>
    %141 = vector.broadcast %140 : vector<64x1xf32> to vector<64x64xf32>
    %142 = arith.subf %138, %141 : vector<64x64xf32>
    %143 = math.exp %142 : vector<64x64xf32>
    %cst_47 = arith.constant dense<0.000000e+00> : vector<64xf32>
    %144 = vector.multi_reduction <add>, %143, %cst_47 [1] : vector<64x64xf32> to vector<64xf32>
    %145 = vector.shape_cast %144 : vector<64xf32> to vector<64x1xf32>
    %146 = tpu.reciprocal %145 {approx = true} : vector<64x1xf32> -> vector<64x1xf32>
    %147 = vector.broadcast %146 : vector<64x1xf32> to vector<64x64xf32>
    %148 = arith.mulf %143, %147 : vector<64x64xf32>
    %149 = arith.truncf %148 : vector<64x64xf32> to vector<64x64xbf16>
    %cst_48 = arith.constant dense<0.000000e+00> : vector<64x64xf32>
    %150 = tpu.matmul %149, %133, %cst_48 {dimension_numbers = #tpu.dot_dimension_numbers<[1], [0], [0], [1], [0, 0, 1, 1], [], []>} : vector<64x64xbf16>, vector<64x64xbf16>, vector<64x64xf32> -> vector<64x64xf32>
    %151 = arith.truncf %150 : vector<64x64xf32> to vector<64x64xbf16>
    %152 = vector.extract_strided_slice %8 {offsets = [320, 0], sizes = [64, 384], strides = [1, 1]} : vector<384x384xbf16> to vector<64x384xbf16>
    %cst_49 = arith.constant dense<0.000000e+00> : vector<64x384xf32>
    %153 = tpu.matmul %151, %152, %cst_49 {dimension_numbers = #tpu.dot_dimension_numbers<[1], [0], [0], [1], [0, 0, 1, 1], [], []>} : vector<64x64xbf16>, vector<64x384xbf16>, vector<64x384xf32> -> vector<64x384xf32>
    %154 = arith.addf %130, %153 : vector<64x384xf32>
    %155 = vector.broadcast %9 : vector<1x384xf32> to vector<64x384xf32>
    %156 = arith.addf %154, %155 : vector<64x384xf32>
    %c0_50 = arith.constant 0 : index
    %c0_51 = arith.constant 0 : index
    %157 = vector.load %arg5[%c0_50, %c0_51] : memref<128x384xf32, #tpu.memory_space<vmem>>, vector<64x384xf32>
    tpu.vector_store %arg5[%c0_50, %c0_51], %156 {strides = array<i32>} : memref<128x384xf32, #tpu.memory_space<vmem>>, vector<64x384xf32>,
    %cst_52 = arith.constant 0.000000e+00 : f32
    %158 = vector.broadcast %cst_52 : f32 to vector<64x384xf32>
    %159 = vector.extract_strided_slice %4 {offsets = [64, 0], sizes = [64, 64], strides = [1, 1]} : vector<128x1152xbf16> to vector<64x64xbf16>
    %160 = vector.extract_strided_slice %4 {offsets = [64, 384], sizes = [64, 64], strides = [1, 1]} : vector<128x1152xbf16> to vector<64x64xbf16>
    %161 = vector.extract_strided_slice %4 {offsets = [64, 768], sizes = [64, 64], strides = [1, 1]} : vector<128x1152xbf16> to vector<64x64xbf16>
    %cst_53 = arith.constant dense<0.000000e+00> : vector<64x64xf32>
    %162 = tpu.matmul %159, %160, %cst_53 {dimension_numbers = #tpu.dot_dimension_numbers<[1], [1], [0], [0], [0, 0, 1, 0], [], []>} : vector<64x64xbf16>, vector<64x64xbf16>, vector<64x64xf32> -> vector<64x64xf32>
    %cst_54 = arith.constant 1.250000e-01 : f32
    %163 = vector.broadcast %cst_54 : f32 to vector<64x64xf32>
    %164 = arith.mulf %162, %163 : vector<64x64xf32>
    %cst_55 = arith.constant 0xFF800000 : f32
    %165 = vector.broadcast %cst_55 : f32 to vector<64x64xf32>
    %166 = arith.select %7, %164, %165 : vector<64x64xi1>, vector<64x64xf32>
    %cst_56 = arith.constant dense<0xFF800000> : vector<64xf32>
    %167 = vector.multi_reduction <maximumf>, %166, %cst_56 [1] : vector<64x64xf32> to vector<64xf32>
    %168 = vector.shape_cast %167 : vector<64xf32> to vector<64x1xf32>
    %169 = vector.broadcast %168 : vector<64x1xf32> to vector<64x64xf32>
    %170 = arith.subf %166, %169 : vector<64x64xf32>
    %171 = math.exp %170 : vector<64x64xf32>
    %cst_57 = arith.constant dense<0.000000e+00> : vector<64xf32>
    %172 = vector.multi_reduction <add>, %171, %cst_57 [1] : vector<64x64xf32> to vector<64xf32>
    %173 = vector.shape_cast %172 : vector<64xf32> to vector<64x1xf32>
    %174 = tpu.reciprocal %173 {approx = true} : vector<64x1xf32> -> vector<64x1xf32>
    %175 = vector.broadcast %174 : vector<64x1xf32> to vector<64x64xf32>
    %176 = arith.mulf %171, %175 : vector<64x64xf32>
    %177 = arith.truncf %176 : vector<64x64xf32> to vector<64x64xbf16>
    %cst_58 = arith.constant dense<0.000000e+00> : vector<64x64xf32>
    %178 = tpu.matmul %177, %161, %cst_58 {dimension_numbers = #tpu.dot_dimension_numbers<[1], [0], [0], [1], [0, 0, 1, 1], [], []>} : vector<64x64xbf16>, vector<64x64xbf16>, vector<64x64xf32> -> vector<64x64xf32>
    %179 = arith.truncf %178 : vector<64x64xf32> to vector<64x64xbf16>
    %180 = vector.extract_strided_slice %8 {offsets = [0, 0], sizes = [64, 384], strides = [1, 1]} : vector<384x384xbf16> to vector<64x384xbf16>
    %cst_59 = arith.constant dense<0.000000e+00> : vector<64x384xf32>
    %181 = tpu.matmul %179, %180, %cst_59 {dimension_numbers = #tpu.dot_dimension_numbers<[1], [0], [0], [1], [0, 0, 1, 1], [], []>} : vector<64x64xbf16>, vector<64x384xbf16>, vector<64x384xf32> -> vector<64x384xf32>
    %182 = arith.addf %158, %181 : vector<64x384xf32>
    %183 = vector.extract_strided_slice %4 {offsets = [64, 64], sizes = [64, 64], strides = [1, 1]} : vector<128x1152xbf16> to vector<64x64xbf16>
    %184 = vector.extract_strided_slice %4 {offsets = [64, 448], sizes = [64, 64], strides = [1, 1]} : vector<128x1152xbf16> to vector<64x64xbf16>
    %185 = vector.extract_strided_slice %4 {offsets = [64, 832], sizes = [64, 64], strides = [1, 1]} : vector<128x1152xbf16> to vector<64x64xbf16>
    %cst_60 = arith.constant dense<0.000000e+00> : vector<64x64xf32>
    %186 = tpu.matmul %183, %184, %cst_60 {dimension_numbers = #tpu.dot_dimension_numbers<[1], [1], [0], [0], [0, 0, 1, 0], [], []>} : vector<64x64xbf16>, vector<64x64xbf16>, vector<64x64xf32> -> vector<64x64xf32>
    %cst_61 = arith.constant 1.250000e-01 : f32
    %187 = vector.broadcast %cst_61 : f32 to vector<64x64xf32>
    %188 = arith.mulf %186, %187 : vector<64x64xf32>
    %cst_62 = arith.constant 0xFF800000 : f32
    %189 = vector.broadcast %cst_62 : f32 to vector<64x64xf32>
    %190 = arith.select %7, %188, %189 : vector<64x64xi1>, vector<64x64xf32>
    %cst_63 = arith.constant dense<0xFF800000> : vector<64xf32>
    %191 = vector.multi_reduction <maximumf>, %190, %cst_63 [1] : vector<64x64xf32> to vector<64xf32>
    %192 = vector.shape_cast %191 : vector<64xf32> to vector<64x1xf32>
    %193 = vector.broadcast %192 : vector<64x1xf32> to vector<64x64xf32>
    %194 = arith.subf %190, %193 : vector<64x64xf32>
    %195 = math.exp %194 : vector<64x64xf32>
    %cst_64 = arith.constant dense<0.000000e+00> : vector<64xf32>
    %196 = vector.multi_reduction <add>, %195, %cst_64 [1] : vector<64x64xf32> to vector<64xf32>
    %197 = vector.shape_cast %196 : vector<64xf32> to vector<64x1xf32>
    %198 = tpu.reciprocal %197 {approx = true} : vector<64x1xf32> -> vector<64x1xf32>
    %199 = vector.broadcast %198 : vector<64x1xf32> to vector<64x64xf32>
    %200 = arith.mulf %195, %199 : vector<64x64xf32>
    %201 = arith.truncf %200 : vector<64x64xf32> to vector<64x64xbf16>
    %cst_65 = arith.constant dense<0.000000e+00> : vector<64x64xf32>
    %202 = tpu.matmul %201, %185, %cst_65 {dimension_numbers = #tpu.dot_dimension_numbers<[1], [0], [0], [1], [0, 0, 1, 1], [], []>} : vector<64x64xbf16>, vector<64x64xbf16>, vector<64x64xf32> -> vector<64x64xf32>
    %203 = arith.truncf %202 : vector<64x64xf32> to vector<64x64xbf16>
    %204 = vector.extract_strided_slice %8 {offsets = [64, 0], sizes = [64, 384], strides = [1, 1]} : vector<384x384xbf16> to vector<64x384xbf16>
    %cst_66 = arith.constant dense<0.000000e+00> : vector<64x384xf32>
    %205 = tpu.matmul %203, %204, %cst_66 {dimension_numbers = #tpu.dot_dimension_numbers<[1], [0], [0], [1], [0, 0, 1, 1], [], []>} : vector<64x64xbf16>, vector<64x384xbf16>, vector<64x384xf32> -> vector<64x384xf32>
    %206 = arith.addf %182, %205 : vector<64x384xf32>
    %207 = vector.extract_strided_slice %4 {offsets = [64, 128], sizes = [64, 64], strides = [1, 1]} : vector<128x1152xbf16> to vector<64x64xbf16>
    %208 = vector.extract_strided_slice %4 {offsets = [64, 512], sizes = [64, 64], strides = [1, 1]} : vector<128x1152xbf16> to vector<64x64xbf16>
    %209 = vector.extract_strided_slice %4 {offsets = [64, 896], sizes = [64, 64], strides = [1, 1]} : vector<128x1152xbf16> to vector<64x64xbf16>
    %cst_67 = arith.constant dense<0.000000e+00> : vector<64x64xf32>
    %210 = tpu.matmul %207, %208, %cst_67 {dimension_numbers = #tpu.dot_dimension_numbers<[1], [1], [0], [0], [0, 0, 1, 0], [], []>} : vector<64x64xbf16>, vector<64x64xbf16>, vector<64x64xf32> -> vector<64x64xf32>
    %cst_68 = arith.constant 1.250000e-01 : f32
    %211 = vector.broadcast %cst_68 : f32 to vector<64x64xf32>
    %212 = arith.mulf %210, %211 : vector<64x64xf32>
    %cst_69 = arith.constant 0xFF800000 : f32
    %213 = vector.broadcast %cst_69 : f32 to vector<64x64xf32>
    %214 = arith.select %7, %212, %213 : vector<64x64xi1>, vector<64x64xf32>
    %cst_70 = arith.constant dense<0xFF800000> : vector<64xf32>
    %215 = vector.multi_reduction <maximumf>, %214, %cst_70 [1] : vector<64x64xf32> to vector<64xf32>
    %216 = vector.shape_cast %215 : vector<64xf32> to vector<64x1xf32>
    %217 = vector.broadcast %216 : vector<64x1xf32> to vector<64x64xf32>
    %218 = arith.subf %214, %217 : vector<64x64xf32>
    %219 = math.exp %218 : vector<64x64xf32>
    %cst_71 = arith.constant dense<0.000000e+00> : vector<64xf32>
    %220 = vector.multi_reduction <add>, %219, %cst_71 [1] : vector<64x64xf32> to vector<64xf32>
    %221 = vector.shape_cast %220 : vector<64xf32> to vector<64x1xf32>
    %222 = tpu.reciprocal %221 {approx = true} : vector<64x1xf32> -> vector<64x1xf32>
    %223 = vector.broadcast %222 : vector<64x1xf32> to vector<64x64xf32>
    %224 = arith.mulf %219, %223 : vector<64x64xf32>
    %225 = arith.truncf %224 : vector<64x64xf32> to vector<64x64xbf16>
    %cst_72 = arith.constant dense<0.000000e+00> : vector<64x64xf32>
    %226 = tpu.matmul %225, %209, %cst_72 {dimension_numbers = #tpu.dot_dimension_numbers<[1], [0], [0], [1], [0, 0, 1, 1], [], []>} : vector<64x64xbf16>, vector<64x64xbf16>, vector<64x64xf32> -> vector<64x64xf32>
    %227 = arith.truncf %226 : vector<64x64xf32> to vector<64x64xbf16>
    %228 = vector.extract_strided_slice %8 {offsets = [128, 0], sizes = [64, 384], strides = [1, 1]} : vector<384x384xbf16> to vector<64x384xbf16>
    %cst_73 = arith.constant dense<0.000000e+00> : vector<64x384xf32>
    %229 = tpu.matmul %227, %228, %cst_73 {dimension_numbers = #tpu.dot_dimension_numbers<[1], [0], [0], [1], [0, 0, 1, 1], [], []>} : vector<64x64xbf16>, vector<64x384xbf16>, vector<64x384xf32> -> vector<64x384xf32>
    %230 = arith.addf %206, %229 : vector<64x384xf32>
    %231 = vector.extract_strided_slice %4 {offsets = [64, 192], sizes = [64, 64], strides = [1, 1]} : vector<128x1152xbf16> to vector<64x64xbf16>
    %232 = vector.extract_strided_slice %4 {offsets = [64, 576], sizes = [64, 64], strides = [1, 1]} : vector<128x1152xbf16> to vector<64x64xbf16>
    %233 = vector.extract_strided_slice %4 {offsets = [64, 960], sizes = [64, 64], strides = [1, 1]} : vector<128x1152xbf16> to vector<64x64xbf16>
    %cst_74 = arith.constant dense<0.000000e+00> : vector<64x64xf32>
    %234 = tpu.matmul %231, %232, %cst_74 {dimension_numbers = #tpu.dot_dimension_numbers<[1], [1], [0], [0], [0, 0, 1, 0], [], []>} : vector<64x64xbf16>, vector<64x64xbf16>, vector<64x64xf32> -> vector<64x64xf32>
    %cst_75 = arith.constant 1.250000e-01 : f32
    %235 = vector.broadcast %cst_75 : f32 to vector<64x64xf32>
    %236 = arith.mulf %234, %235 : vector<64x64xf32>
    %cst_76 = arith.constant 0xFF800000 : f32
    %237 = vector.broadcast %cst_76 : f32 to vector<64x64xf32>
    %238 = arith.select %7, %236, %237 : vector<64x64xi1>, vector<64x64xf32>
    %cst_77 = arith.constant dense<0xFF800000> : vector<64xf32>
    %239 = vector.multi_reduction <maximumf>, %238, %cst_77 [1] : vector<64x64xf32> to vector<64xf32>
    %240 = vector.shape_cast %239 : vector<64xf32> to vector<64x1xf32>
    %241 = vector.broadcast %240 : vector<64x1xf32> to vector<64x64xf32>
    %242 = arith.subf %238, %241 : vector<64x64xf32>
    %243 = math.exp %242 : vector<64x64xf32>
    %cst_78 = arith.constant dense<0.000000e+00> : vector<64xf32>
    %244 = vector.multi_reduction <add>, %243, %cst_78 [1] : vector<64x64xf32> to vector<64xf32>
    %245 = vector.shape_cast %244 : vector<64xf32> to vector<64x1xf32>
    %246 = tpu.reciprocal %245 {approx = true} : vector<64x1xf32> -> vector<64x1xf32>
    %247 = vector.broadcast %246 : vector<64x1xf32> to vector<64x64xf32>
    %248 = arith.mulf %243, %247 : vector<64x64xf32>
    %249 = arith.truncf %248 : vector<64x64xf32> to vector<64x64xbf16>
    %cst_79 = arith.constant dense<0.000000e+00> : vector<64x64xf32>
    %250 = tpu.matmul %249, %233, %cst_79 {dimension_numbers = #tpu.dot_dimension_numbers<[1], [0], [0], [1], [0, 0, 1, 1], [], []>} : vector<64x64xbf16>, vector<64x64xbf16>, vector<64x64xf32> -> vector<64x64xf32>
    %251 = arith.truncf %250 : vector<64x64xf32> to vector<64x64xbf16>
    %252 = vector.extract_strided_slice %8 {offsets = [192, 0], sizes = [64, 384], strides = [1, 1]} : vector<384x384xbf16> to vector<64x384xbf16>
    %cst_80 = arith.constant dense<0.000000e+00> : vector<64x384xf32>
    %253 = tpu.matmul %251, %252, %cst_80 {dimension_numbers = #tpu.dot_dimension_numbers<[1], [0], [0], [1], [0, 0, 1, 1], [], []>} : vector<64x64xbf16>, vector<64x384xbf16>, vector<64x384xf32> -> vector<64x384xf32>
    %254 = arith.addf %230, %253 : vector<64x384xf32>
    %255 = vector.extract_strided_slice %4 {offsets = [64, 256], sizes = [64, 64], strides = [1, 1]} : vector<128x1152xbf16> to vector<64x64xbf16>
    %256 = vector.extract_strided_slice %4 {offsets = [64, 640], sizes = [64, 64], strides = [1, 1]} : vector<128x1152xbf16> to vector<64x64xbf16>
    %257 = vector.extract_strided_slice %4 {offsets = [64, 1024], sizes = [64, 64], strides = [1, 1]} : vector<128x1152xbf16> to vector<64x64xbf16>
    %cst_81 = arith.constant dense<0.000000e+00> : vector<64x64xf32>
    %258 = tpu.matmul %255, %256, %cst_81 {dimension_numbers = #tpu.dot_dimension_numbers<[1], [1], [0], [0], [0, 0, 1, 0], [], []>} : vector<64x64xbf16>, vector<64x64xbf16>, vector<64x64xf32> -> vector<64x64xf32>
    %cst_82 = arith.constant 1.250000e-01 : f32
    %259 = vector.broadcast %cst_82 : f32 to vector<64x64xf32>
    %260 = arith.mulf %258, %259 : vector<64x64xf32>
    %cst_83 = arith.constant 0xFF800000 : f32
    %261 = vector.broadcast %cst_83 : f32 to vector<64x64xf32>
    %262 = arith.select %7, %260, %261 : vector<64x64xi1>, vector<64x64xf32>
    %cst_84 = arith.constant dense<0xFF800000> : vector<64xf32>
    %263 = vector.multi_reduction <maximumf>, %262, %cst_84 [1] : vector<64x64xf32> to vector<64xf32>
    %264 = vector.shape_cast %263 : vector<64xf32> to vector<64x1xf32>
    %265 = vector.broadcast %264 : vector<64x1xf32> to vector<64x64xf32>
    %266 = arith.subf %262, %265 : vector<64x64xf32>
    %267 = math.exp %266 : vector<64x64xf32>
    %cst_85 = arith.constant dense<0.000000e+00> : vector<64xf32>
    %268 = vector.multi_reduction <add>, %267, %cst_85 [1] : vector<64x64xf32> to vector<64xf32>
    %269 = vector.shape_cast %268 : vector<64xf32> to vector<64x1xf32>
    %270 = tpu.reciprocal %269 {approx = true} : vector<64x1xf32> -> vector<64x1xf32>
    %271 = vector.broadcast %270 : vector<64x1xf32> to vector<64x64xf32>
    %272 = arith.mulf %267, %271 : vector<64x64xf32>
    %273 = arith.truncf %272 : vector<64x64xf32> to vector<64x64xbf16>
    %cst_86 = arith.constant dense<0.000000e+00> : vector<64x64xf32>
    %274 = tpu.matmul %273, %257, %cst_86 {dimension_numbers = #tpu.dot_dimension_numbers<[1], [0], [0], [1], [0, 0, 1, 1], [], []>} : vector<64x64xbf16>, vector<64x64xbf16>, vector<64x64xf32> -> vector<64x64xf32>
    %275 = arith.truncf %274 : vector<64x64xf32> to vector<64x64xbf16>
    %276 = vector.extract_strided_slice %8 {offsets = [256, 0], sizes = [64, 384], strides = [1, 1]} : vector<384x384xbf16> to vector<64x384xbf16>
    %cst_87 = arith.constant dense<0.000000e+00> : vector<64x384xf32>
    %277 = tpu.matmul %275, %276, %cst_87 {dimension_numbers = #tpu.dot_dimension_numbers<[1], [0], [0], [1], [0, 0, 1, 1], [], []>} : vector<64x64xbf16>, vector<64x384xbf16>, vector<64x384xf32> -> vector<64x384xf32>
    %278 = arith.addf %254, %277 : vector<64x384xf32>
    %279 = vector.extract_strided_slice %4 {offsets = [64, 320], sizes = [64, 64], strides = [1, 1]} : vector<128x1152xbf16> to vector<64x64xbf16>
    %280 = vector.extract_strided_slice %4 {offsets = [64, 704], sizes = [64, 64], strides = [1, 1]} : vector<128x1152xbf16> to vector<64x64xbf16>
    %281 = vector.extract_strided_slice %4 {offsets = [64, 1088], sizes = [64, 64], strides = [1, 1]} : vector<128x1152xbf16> to vector<64x64xbf16>
    %cst_88 = arith.constant dense<0.000000e+00> : vector<64x64xf32>
    %282 = tpu.matmul %279, %280, %cst_88 {dimension_numbers = #tpu.dot_dimension_numbers<[1], [1], [0], [0], [0, 0, 1, 0], [], []>} : vector<64x64xbf16>, vector<64x64xbf16>, vector<64x64xf32> -> vector<64x64xf32>
    %cst_89 = arith.constant 1.250000e-01 : f32
    %283 = vector.broadcast %cst_89 : f32 to vector<64x64xf32>
    %284 = arith.mulf %282, %283 : vector<64x64xf32>
    %cst_90 = arith.constant 0xFF800000 : f32
    %285 = vector.broadcast %cst_90 : f32 to vector<64x64xf32>
    %286 = arith.select %7, %284, %285 : vector<64x64xi1>, vector<64x64xf32>
    %cst_91 = arith.constant dense<0xFF800000> : vector<64xf32>
    %287 = vector.multi_reduction <maximumf>, %286, %cst_91 [1] : vector<64x64xf32> to vector<64xf32>
    %288 = vector.shape_cast %287 : vector<64xf32> to vector<64x1xf32>
    %289 = vector.broadcast %288 : vector<64x1xf32> to vector<64x64xf32>
    %290 = arith.subf %286, %289 : vector<64x64xf32>
    %291 = math.exp %290 : vector<64x64xf32>
    %cst_92 = arith.constant dense<0.000000e+00> : vector<64xf32>
    %292 = vector.multi_reduction <add>, %291, %cst_92 [1] : vector<64x64xf32> to vector<64xf32>
    %293 = vector.shape_cast %292 : vector<64xf32> to vector<64x1xf32>
    %294 = tpu.reciprocal %293 {approx = true} : vector<64x1xf32> -> vector<64x1xf32>
    %295 = vector.broadcast %294 : vector<64x1xf32> to vector<64x64xf32>
    %296 = arith.mulf %291, %295 : vector<64x64xf32>
    %297 = arith.truncf %296 : vector<64x64xf32> to vector<64x64xbf16>
    %cst_93 = arith.constant dense<0.000000e+00> : vector<64x64xf32>
    %298 = tpu.matmul %297, %281, %cst_93 {dimension_numbers = #tpu.dot_dimension_numbers<[1], [0], [0], [1], [0, 0, 1, 1], [], []>} : vector<64x64xbf16>, vector<64x64xbf16>, vector<64x64xf32> -> vector<64x64xf32>
    %299 = arith.truncf %298 : vector<64x64xf32> to vector<64x64xbf16>
    %300 = vector.extract_strided_slice %8 {offsets = [320, 0], sizes = [64, 384], strides = [1, 1]} : vector<384x384xbf16> to vector<64x384xbf16>
    %cst_94 = arith.constant dense<0.000000e+00> : vector<64x384xf32>
    %301 = tpu.matmul %299, %300, %cst_94 {dimension_numbers = #tpu.dot_dimension_numbers<[1], [0], [0], [1], [0, 0, 1, 1], [], []>} : vector<64x64xbf16>, vector<64x384xbf16>, vector<64x384xf32> -> vector<64x384xf32>
    %302 = arith.addf %278, %301 : vector<64x384xf32>
    %303 = vector.broadcast %9 : vector<1x384xf32> to vector<64x384xf32>
    %304 = arith.addf %302, %303 : vector<64x384xf32>
    %c64 = arith.constant 64 : index
    %c0_95 = arith.constant 0 : index
    %305 = vector.load %arg5[%c64, %c0_95] : memref<128x384xf32, #tpu.memory_space<vmem>>, vector<64x384xf32>
    tpu.vector_store %arg5[%c64, %c0_95], %304 {strides = array<i32>} : memref<128x384xf32, #tpu.memory_space<vmem>>, vector<64x384xf32>,
    return
  }
  func.func @transform_0(%arg0: i32) -> (i32, i32) {
    %c0_i32 = arith.constant 0 : i32
    %c0_i32_0 = arith.constant 0 : i32
    return %arg0, %c0_i32 : i32, i32
  }
  func.func @transform_1(%arg0: i32) -> (i32, i32) {
    %c0_i32 = arith.constant 0 : i32
    %c0_i32_0 = arith.constant 0 : i32
    %c0_i32_1 = arith.constant 0 : i32
    return %c0_i32, %c0_i32_0 : i32, i32
  }
  func.func @transform_2(%arg0: i32) -> (i32, i32) {
    %c0_i32 = arith.constant 0 : i32
    %c0_i32_0 = arith.constant 0 : i32
    %c0_i32_1 = arith.constant 0 : i32
    return %c0_i32, %c0_i32_0 : i32, i32
  }
  func.func @transform_3(%arg0: i32) -> (i32, i32) {
    %c0_i32 = arith.constant 0 : i32
    %c0_i32_0 = arith.constant 0 : i32
    %c0_i32_1 = arith.constant 0 : i32
    return %c0_i32, %c0_i32_0 : i32, i32
  }
  func.func @transform_4(%arg0: i32) -> (i32, i32) {
    %c0_i32 = arith.constant 0 : i32
    %c0_i32_0 = arith.constant 0 : i32
    return %arg0, %c0_i32 : i32, i32
  }
}

</mosaic_0001>

<llo_original>
// kernel: tpu_custom_call.1
$region0: #{tpu_custom_call.1}
  #allocation0 [shape = 'u32[]', space=smem, size = 0x4, offset = 0x4, fixed_abs, tag = 'smem constant byte address 0x4 - core index']
  #allocation1 [shape = 'u32[72,128]{1,0:T(1,128)}', space=vmem, size = 0x9000, scoped, tag = 'internal scratch']
  %s0 = inlined_call_operand.hbm [shape: f32[128,384], index: 0, kind: input, shape index: {}]
  %s1 = inlined_call_operand.hbm [shape: bf16[384,1152], index: 1, kind: input, shape index: {}]
  %s2 = inlined_call_operand.hbm [shape: bf16[384,384], index: 2, kind: input, shape index: {}]
  %s3 = inlined_call_operand.hbm [shape: f32[1,384], index: 3, kind: input, shape index: {}]
  %s4 = inlined_call_operand.hbm [shape: f32[128,384], index: 4, kind: output, shape index: {}]
  %s5 = sld [smem:[#allocation0]]
  $region42: #{tpu_custom_call.1} parent=0
    _
  %s7 = ssub.s32 1, %s5
  %s8 = scalar_select 0, %s7, %s5
  $region1: #{tpu_custom_call.1} parent=0
    #allocation2 [shape = 'u8[196608]{0}', space=vmem, size = 0x30000, scoped, tag = 'input window, operand 0, single buffered']
    #allocation3 [shape = 's32[1]{0}', space=sflag, size = 0x4, scoped, tag = 'scoped memory for tpu_custom_call.1']
    #allocation4 [shape = 's32[1]{0}', space=sflag, size = 0x4, scoped, tag = 'scoped memory for tpu_custom_call.1']
    #allocation5 [shape = 'u8[884736]{0}', space=vmem, size = 0xd8000, scoped, tag = 'input window, operand 1, single buffered']
    #allocation6 [shape = 's32[1]{0}', space=sflag, size = 0x4, scoped, tag = 'scoped memory for tpu_custom_call.1']
    #allocation7 [shape = 'u8[294912]{0}', space=vmem, size = 0x48000, scoped, tag = 'input window, operand 2, single buffered']
    #allocation8 [shape = 'u8[1536]{0}', space=vmem, size = 0x800, scoped, tag = 'input window, operand 3, single buffered']
    #allocation9 [shape = 's32[1]{0}', space=sflag, size = 0x4, scoped, tag = 'scoped memory for tpu_custom_call.1']
    #allocation10 [shape = 'u8[196608]{0}', space=vmem, size = 0x30000, scoped, tag = 'output window, operand 0, single buffered']
    %9 = vsyncpa [#allocation3], 0
    %10 = vsyncpa [#allocation6], 0
    %11 = vsyncpa [#allocation9], 0
    %12 = vsyncpa [#allocation4], 0
    // Predicated region
    $region2: #{tpu_custom_call.1} parent=1 // pred_check
      _
    $region3: #{tpu_custom_call.1} parent=1 // pred_check_branch
      %14 = sbr.rel (0) target = $region5
    $region4: #{tpu_custom_call.1} parent=1 // pred_region
      %16 = vsyncadd [#allocation3], 0
      %s17 = sshll.u32 %s0, 4
      %s18 = int_to_ptr.hbm [resolvable:$true] %s17
      %s19 = sshll.u32 [#allocation2], 4
      %s20 = int_to_ptr.vmem [resolvable:$true] %s19
      %25 = dma.hbm_to_vmem [thread:$0]  %s18, 6144, %s20, [#allocation3], 384, 384, 24
    $region5: #{tpu_custom_call.1} parent=1 // pred_fallthru
      _
    // Predicated region
    $region6: #{tpu_custom_call.1} parent=1 // pred_check
      _
    $region7: #{tpu_custom_call.1} parent=1 // pred_check_branch
      %27 = sbr.rel (0) target = $region9
    $region8: #{tpu_custom_call.1} parent=1 // pred_region
      %29 = vsyncadd [#allocation6], 0
      %s30 = sshll.u32 %s1, 4
      %s31 = int_to_ptr.hbm [resolvable:$true] %s30
      %s32 = sshll.u32 [#allocation5], 4
      %s33 = int_to_ptr.vmem [resolvable:$true] %s32
      %38 = dma.hbm_to_vmem [thread:$0]  %s31, 27648, %s33, [#allocation6], 576, 576, 36
    $region9: #{tpu_custom_call.1} parent=1 // pred_fallthru
      _
    // Predicated region
    $region10: #{tpu_custom_call.1} parent=1 // pred_check
      _
    $region11: #{tpu_custom_call.1} parent=1 // pred_check_branch
      %40 = sbr.rel (0) target = $region13
    $region12: #{tpu_custom_call.1} parent=1 // pred_region
      %42 = vsyncadd [#allocation6], 0
      %s43 = sshll.u32 %s2, 4
      %s44 = int_to_ptr.hbm [resolvable:$true] %s43
      %s45 = sshll.u32 [#allocation7], 4
      %s46 = int_to_ptr.vmem [resolvable:$true] %s45
      %51 = dma.hbm_to_vmem [thread:$0]  %s44, 9216, %s46, [#allocation6], 192, 192, 12
    $region13: #{tpu_custom_call.1} parent=1 // pred_fallthru
      _
    // Predicated region
    $region14: #{tpu_custom_call.1} parent=1 // pred_check
      _
    $region15: #{tpu_custom_call.1} parent=1 // pred_check_branch
      %53 = sbr.rel (0) target = $region17
    $region16: #{tpu_custom_call.1} parent=1 // pred_region
      %55 = vsyncadd [#allocation9], 0
      %s57 = sshll.u32 %s3, 4
      %s58 = int_to_ptr.hbm [resolvable:$true] %s57
      %s59 = sshll.u32 [#allocation8], 4
      %s60 = int_to_ptr.vmem [resolvable:$true] %s59
      %62 = dma.hbm_to_vmem [thread:$0]  %s58, 48, %s60, [#allocation9]
    $region17: #{tpu_custom_call.1} parent=1 // pred_fallthru
      _
    // Predicated region
    $region18: #{tpu_custom_call.1} parent=1 // pred_check
      _
    $region19: #{tpu_custom_call.1} parent=1 // pred_check_branch
      %64 = sbr.rel (0) target = $region21
    $region20: #{tpu_custom_call.1} parent=1 // pred_region
      %66 = dma.done [#allocation3], 6144
    $region21: #{tpu_custom_call.1} parent=1 // pred_fallthru
      _
    // Predicated region
    $region22: #{tpu_custom_call.1} parent=1 // pred_check
      _
    $region23: #{tpu_custom_call.1} parent=1 // pred_check_branch
      %68 = sbr.rel (0) target = $region25
    $region24: #{tpu_custom_call.1} parent=1 // pred_region
      %70 = dma.done [#allocation6], 27648
    $region25: #{tpu_custom_call.1} parent=1 // pred_fallthru
      _
    // Predicated region
    $region26: #{tpu_custom_call.1} parent=1 // pred_check
      _
    $region27: #{tpu_custom_call.1} parent=1 // pred_check_branch
      %72 = sbr.rel (0) target = $region29
    $region28: #{tpu_custom_call.1} parent=1 // pred_region
      %74 = dma.done [#allocation6], 9216
    $region29: #{tpu_custom_call.1} parent=1 // pred_fallthru
      _
    // Predicated region
    $region30: #{tpu_custom_call.1} parent=1 // pred_check
      _
    $region31: #{tpu_custom_call.1} parent=1 // pred_check_branch
      %76 = sbr.rel (0) target = $region33
    $region32: #{tpu_custom_call.1} parent=1 // pred_region
      %78 = dma.done [#allocation9], 48
    $region33: #{tpu_custom_call.1} parent=1 // pred_fallthru
      _
    %v80 = vld [vmem:[#allocation2] sm:$0xff]
    %v81 = vld [vmem:[#allocation2 + $0x8] sm:$0xff]
    %v82 = vld [vmem:[#allocation2 + $0x10] sm:$0xff]
    %v83 = vld [vmem:[#allocation2 + $0x18] sm:$0xff]
    %v84 = vld [vmem:[#allocation2 + $0x20] sm:$0xff]
    %v85 = vld [vmem:[#allocation2 + $0x28] sm:$0xff]
    %v86 = vld [vmem:[#allocation2 + $0x30] sm:$0xff]
    %v87 = vld [vmem:[#allocation2 + $0x38] sm:$0xff]
    %v88 = vld [vmem:[#allocation2 + $0x40] sm:$0xff]
    %v89 = vld [vmem:[#allocation2 + $0x48] sm:$0xff]
    %v90 = vld [vmem:[#allocation2 + $0x50] sm:$0xff]
    %v91 = vld [vmem:[#allocation2 + $0x58] sm:$0xff]
    %v92 = vld [vmem:[#allocation2 + $0x60] sm:$0xff]
    %v93 = vld [vmem:[#allocation2 + $0x68] sm:$0xff]
    %v94 = vld [vmem:[#allocation2 + $0x70] sm:$0xff]
    %v95 = vld [vmem:[#allocation2 + $0x78] sm:$0xff]
    %v96 = vld [vmem:[#allocation2 + $0x80] sm:$0xff]
    %v97 = vld [vmem:[#allocation2 + $0x88] sm:$0xff]
    %v98 = vld [vmem:[#allocation2 + $0x90] sm:$0xff]
    %v99 = vld [vmem:[#allocation2 + $0x98] sm:$0xff]
    %v100 = vld [vmem:[#allocation2 + $0xa0] sm:$0xff]
    %v101 = vld [vmem:[#allocation2 + $0xa8] sm:$0xff]
    %v102 = vld [vmem:[#allocation2 + $0xb0] sm:$0xff]
    %v103 = vld [vmem:[#allocation2 + $0xb8] sm:$0xff]
    %v104 = vld [vmem:[#allocation2 + $0xc0] sm:$0xff]
    %v105 = vld [vmem:[#allocation2 + $0xc8] sm:$0xff]
    %v106 = vld [vmem:[#allocation2 + $0xd0] sm:$0xff]
    %v107 = vld [vmem:[#allocation2 + $0xd8] sm:$0xff]
    %v108 = vld [vmem:[#allocation2 + $0xe0] sm:$0xff]
    %v109 = vld [vmem:[#allocation2 + $0xe8] sm:$0xff]
    %v110 = vld [vmem:[#allocation2 + $0xf0] sm:$0xff]
    %v111 = vld [vmem:[#allocation2 + $0xf8] sm:$0xff]
    %v112 = vld [vmem:[#allocation2 + $0x100] sm:$0xff]
    %v113 = vld [vmem:[#allocation2 + $0x108] sm:$0xff]
    %v114 = vld [vmem:[#allocation2 + $0x110] sm:$0xff]
    %v115 = vld [vmem:[#allocation2 + $0x118] sm:$0xff]
    %v116 = vld [vmem:[#allocation2 + $0x120] sm:$0xff]
    %v117 = vld [vmem:[#allocation2 + $0x128] sm:$0xff]
    %v118 = vld [vmem:[#allocation2 + $0x130] sm:$0xff]
    %v119 = vld [vmem:[#allocation2 + $0x138] sm:$0xff]
    %v120 = vld [vmem:[#allocation2 + $0x140] sm:$0xff]
    %v121 = vld [vmem:[#allocation2 + $0x148] sm:$0xff]
    %v122 = vld [vmem:[#allocation2 + $0x150] sm:$0xff]
    %v123 = vld [vmem:[#allocation2 + $0x158] sm:$0xff]
    %v124 = vld [vmem:[#allocation2 + $0x160] sm:$0xff]
    %v125 = vld [vmem:[#allocation2 + $0x168] sm:$0xff]
    %v126 = vld [vmem:[#allocation2 + $0x170] sm:$0xff]
    %v127 = vld [vmem:[#allocation2 + $0x178] sm:$0xff]
    %v128 = vpack.c.bf16 %v83, %v80
    %v129 = vpack.c.bf16 %v84, %v81
    %v130 = vpack.c.bf16 %v85, %v82
    %v131 = vpack.c.bf16 %v89, %v86
    %v132 = vpack.c.bf16 %v90, %v87
    %v133 = vpack.c.bf16 %v91, %v88
    %v134 = vpack.c.bf16 %v95, %v92
    %v135 = vpack.c.bf16 %v96, %v93
    %v136 = vpack.c.bf16 %v97, %v94
    %v137 = vpack.c.bf16 %v101, %v98
    %v138 = vpack.c.bf16 %v102, %v99
    %v139 = vpack.c.bf16 %v103, %v100
    %v140 = vpack.c.bf16 %v107, %v104
    %v141 = vpack.c.bf16 %v108, %v105
    %v142 = vpack.c.bf16 %v109, %v106
    %v143 = vpack.c.bf16 %v113, %v110
    %v144 = vpack.c.bf16 %v114, %v111
    %v145 = vpack.c.bf16 %v115, %v112
    %v146 = vpack.c.bf16 %v119, %v116
    %v147 = vpack.c.bf16 %v120, %v117
    %v148 = vpack.c.bf16 %v121, %v118
    %v149 = vpack.c.bf16 %v125, %v122
    %v150 = vpack.c.bf16 %v126, %v123
    %v151 = vpack.c.bf16 %v127, %v124
    %v152 = vld [vmem:[#allocation5] sm:$0xff]
    %v153 = vld [vmem:[#allocation5 + $0x8] sm:$0xff]
    %v154 = vld [vmem:[#allocation5 + $0x10] sm:$0xff]
    %v155 = vld [vmem:[#allocation5 + $0x18] sm:$0xff]
    %v156 = vld [vmem:[#allocation5 + $0x20] sm:$0xf]
    %v157 = vld [vmem:[#allocation5 + $0x24] sm:$0xff]
    %v158 = vld [vmem:[#allocation5 + $0x2c] sm:$0xff]
    %v159 = vld [vmem:[#allocation5 + $0x34] sm:$0xff]
    %v160 = vld [vmem:[#allocation5 + $0x3c] sm:$0xff]
    %v161 = vld [vmem:[#allocation5 + $0x44] sm:$0xf]
    %v162 = vld [vmem:[#allocation5 + $0x48] sm:$0xff]
    %v163 = vld [vmem:[#allocation5 + $0x50] sm:$0xff]
    %v164 = vld [vmem:[#allocation5 + $0x58] sm:$0xff]
    %v165 = vld [vmem:[#allocation5 + $0x60] sm:$0xff]
    %v166 = vld [vmem:[#allocation5 + $0x68] sm:$0xf]
    %v167 = vld [vmem:[#allocation5 + $0x6c] sm:$0xff]
    %v168 = vld [vmem:[#allocation5 + $0x74] sm:$0xff]
    %v169 = vld [vmem:[#allocation5 + $0x7c] sm:$0xff]
    %v170 = vld [vmem:[#allocation5 + $0x84] sm:$0xff]
    %v171 = vld [vmem:[#allocation5 + $0x8c] sm:$0xf]
    %v172 = vld [vmem:[#allocation5 + $0x90] sm:$0xff]
    %v173 = vld [vmem:[#allocation5 + $0x98] sm:$0xff]
    %v174 = vld [vmem:[#allocation5 + $0xa0] sm:$0xff]
    %v175 = vld [vmem:[#allocation5 + $0xa8] sm:$0xff]
    %v176 = vld [vmem:[#allocation5 + $0xb0] sm:$0xf]
    %v177 = vld [vmem:[#allocation5 + $0xb4] sm:$0xff]
    %v178 = vld [vmem:[#allocation5 + $0xbc] sm:$0xff]
    %v179 = vld [vmem:[#allocation5 + $0xc4] sm:$0xff]
    %v180 = vld [vmem:[#allocation5 + $0xcc] sm:$0xff]
    %v181 = vld [vmem:[#allocation5 + $0xd4] sm:$0xf]
    %v182 = vld [vmem:[#allocation5 + $0xd8] sm:$0xff]
    %v183 = vld [vmem:[#allocation5 + $0xe0] sm:$0xff]
    %v184 = vld [vmem:[#allocation5 + $0xe8] sm:$0xff]
    %v185 = vld [vmem:[#allocation5 + $0xf0] sm:$0xff]
    %v186 = vld [vmem:[#allocation5 + $0xf8] sm:$0xf]
    %v187 = vld [vmem:[#allocation5 + $0xfc] sm:$0xff]
    %v188 = vld [vmem:[#allocation5 + $0x104] sm:$0xff]
    %v189 = vld [vmem:[#allocation5 + $0x10c] sm:$0xff]
    %v190 = vld [vmem:[#allocation5 + $0x114] sm:$0xff]
    %v191 = vld [vmem:[#allocation5 + $0x11c] sm:$0xf]
    %v192 = vld [vmem:[#allocation5 + $0x120] sm:$0xff]
    %v193 = vld [vmem:[#allocation5 + $0x128] sm:$0xff]
    %v194 = vld [vmem:[#allocation5 + $0x130] sm:$0xff]
    %v195 = vld [vmem:[#allocation5 + $0x138] sm:$0xff]
    %v196 = vld [vmem:[#allocation5 + $0x140] sm:$0xf]
    %v197 = vld [vmem:[#allocation5 + $0x144] sm:$0xff]
    %v198 = vld [vmem:[#allocation5 + $0x14c] sm:$0xff]
    %v199 = vld [vmem:[#allocation5 + $0x154] sm:$0xff]
    %v200 = vld [vmem:[#allocation5 + $0x15c] sm:$0xff]
    %v201 = vld [vmem:[#allocation5 + $0x164] sm:$0xf]
    %v202 = vld [vmem:[#allocation5 + $0x168] sm:$0xff]
    %v203 = vld [vmem:[#allocation5 + $0x170] sm:$0xff]
    %v204 = vld [vmem:[#allocation5 + $0x178] sm:$0xff]
    %v205 = vld [vmem:[#allocation5 + $0x180] sm:$0xff]
    %v206 = vld [vmem:[#allocation5 + $0x188] sm:$0xf]
    %v207 = vld [vmem:[#allocation5 + $0x18c] sm:$0xff]
    %v208 = vld [vmem:[#allocation5 + $0x194] sm:$0xff]
    %v209 = vld [vmem:[#allocation5 + $0x19c] sm:$0xff]
    %v210 = vld [vmem:[#allocation5 + $0x1a4] sm:$0xff]
    %v211 = vld [vmem:[#allocation5 + $0x1ac] sm:$0xf]
    %v212 = vld [vmem:[#allocation5 + $0x1b0] sm:$0xff]
    %v213 = vld [vmem:[#allocation5 + $0x1b8] sm:$0xff]
    %v214 = vld [vmem:[#allocation5 + $0x1c0] sm:$0xff]
    %v215 = vld [vmem:[#allocation5 + $0x1c8] sm:$0xff]
    %v216 = vld [vmem:[#allocation5 + $0x1d0] sm:$0xf]
    %v217 = vld [vmem:[#allocation5 + $0x1d4] sm:$0xff]
    %v218 = vld [vmem:[#allocation5 + $0x1dc] sm:$0xff]
    %v219 = vld [vmem:[#allocation5 + $0x1e4] sm:$0xff]
    %v220 = vld [vmem:[#allocation5 + $0x1ec] sm:$0xff]
    %v221 = vld [vmem:[#allocation5 + $0x1f4] sm:$0xf]
    %v222 = vld [vmem:[#allocation5 + $0x1f8] sm:$0xff]
    %v223 = vld [vmem:[#allocation5 + $0x200] sm:$0xff]
    %v224 = vld [vmem:[#allocation5 + $0x208] sm:$0xff]
    %v225 = vld [vmem:[#allocation5 + $0x210] sm:$0xff]
    %v226 = vld [vmem:[#allocation5 + $0x218] sm:$0xf]
    %v227 = vld [vmem:[#allocation5 + $0x21c] sm:$0xff]
    %v228 = vld [vmem:[#allocation5 + $0x224] sm:$0xff]
    %v229 = vld [vmem:[#allocation5 + $0x22c] sm:$0xff]
    %v230 = vld [vmem:[#allocation5 + $0x234] sm:$0xff]
    %v231 = vld [vmem:[#allocation5 + $0x23c] sm:$0xf]
    %v232 = vld [vmem:[#allocation5 + $0x240] sm:$0xff]
    %v233 = vld [vmem:[#allocation5 + $0x248] sm:$0xff]
    %v234 = vld [vmem:[#allocation5 + $0x250] sm:$0xff]
    %v235 = vld [vmem:[#allocation5 + $0x258] sm:$0xff]
    %v236 = vld [vmem:[#allocation5 + $0x260] sm:$0xf]
    %v237 = vld [vmem:[#allocation5 + $0x264] sm:$0xff]
    %v238 = vld [vmem:[#allocation5 + $0x26c] sm:$0xff]
    %v239 = vld [vmem:[#allocation5 + $0x274] sm:$0xff]
    %v240 = vld [vmem:[#allocation5 + $0x27c] sm:$0xff]
    %v241 = vld [vmem:[#allocation5 + $0x284] sm:$0xf]
    %v242 = vld [vmem:[#allocation5 + $0x288] sm:$0xff]
    %v243 = vld [vmem:[#allocation5 + $0x290] sm:$0xff]
    %v244 = vld [vmem:[#allocation5 + $0x298] sm:$0xff]
    %v245 = vld [vmem:[#allocation5 + $0x2a0] sm:$0xff]
    %v246 = vld [vmem:[#allocation5 + $0x2a8] sm:$0xf]
    %v247 = vld [vmem:[#allocation5 + $0x2ac] sm:$0xff]
    %v248 = vld [vmem:[#allocation5 + $0x2b4] sm:$0xff]
    %v249 = vld [vmem:[#allocation5 + $0x2bc] sm:$0xff]
    %v250 = vld [vmem:[#allocation5 + $0x2c4] sm:$0xff]
    %v251 = vld [vmem:[#allocation5 + $0x2cc] sm:$0xf]
    %v252 = vld [vmem:[#allocation5 + $0x2d0] sm:$0xff]
    %v253 = vld [vmem:[#allocation5 + $0x2d8] sm:$0xff]
    %v254 = vld [vmem:[#allocation5 + $0x2e0] sm:$0xff]
    %v255 = vld [vmem:[#allocation5 + $0x2e8] sm:$0xff]
    %v256 = vld [vmem:[#allocation5 + $0x2f0] sm:$0xf]
    %v257 = vld [vmem:[#allocation5 + $0x2f4] sm:$0xff]
    %v258 = vld [vmem:[#allocation5 + $0x2fc] sm:$0xff]
    %v259 = vld [vmem:[#allocation5 + $0x304] sm:$0xff]
    %v260 = vld [vmem:[#allocation5 + $0x30c] sm:$0xff]
    %v261 = vld [vmem:[#allocation5 + $0x314] sm:$0xf]
    %v262 = vld [vmem:[#allocation5 + $0x318] sm:$0xff]
    %v263 = vld [vmem:[#allocation5 + $0x320] sm:$0xff]
    %v264 = vld [vmem:[#allocation5 + $0x328] sm:$0xff]
    %v265 = vld [vmem:[#allocation5 + $0x330] sm:$0xff]
    %v266 = vld [vmem:[#allocation5 + $0x338] sm:$0xf]
    %v267 = vld [vmem:[#allocation5 + $0x33c] sm:$0xff]
    %v268 = vld [vmem:[#allocation5 + $0x344] sm:$0xff]
    %v269 = vld [vmem:[#allocation5 + $0x34c] sm:$0xff]
    %v270 = vld [vmem:[#allocation5 + $0x354] sm:$0xff]
    %v271 = vld [vmem:[#allocation5 + $0x35c] sm:$0xf]
    %v272 = vld [vmem:[#allocation5 + $0x360] sm:$0xff]
    %v273 = vld [vmem:[#allocation5 + $0x368] sm:$0xff]
    %v274 = vld [vmem:[#allocation5 + $0x370] sm:$0xff]
    %v275 = vld [vmem:[#allocation5 + $0x378] sm:$0xff]
    %v276 = vld [vmem:[#allocation5 + $0x380] sm:$0xf]
    %v277 = vld [vmem:[#allocation5 + $0x384] sm:$0xff]
    %v278 = vld [vmem:[#allocation5 + $0x38c] sm:$0xff]
    %v279 = vld [vmem:[#allocation5 + $0x394] sm:$0xff]
    %v280 = vld [vmem:[#allocation5 + $0x39c] sm:$0xff]
    %v281 = vld [vmem:[#allocation5 + $0x3a4] sm:$0xf]
    %v282 = vld [vmem:[#allocation5 + $0x3a8] sm:$0xff]
    %v283 = vld [vmem:[#allocation5 + $0x3b0] sm:$0xff]
    %v284 = vld [vmem:[#allocation5 + $0x3b8] sm:$0xff]
    %v285 = vld [vmem:[#allocation5 + $0x3c0] sm:$0xff]
    %v286 = vld [vmem:[#allocation5 + $0x3c8] sm:$0xf]
    %v287 = vld [vmem:[#allocation5 + $0x3cc] sm:$0xff]
    %v288 = vld [vmem:[#allocation5 + $0x3d4] sm:$0xff]
    %v289 = vld [vmem:[#allocation5 + $0x3dc] sm:$0xff]
    %v290 = vld [vmem:[#allocation5 + $0x3e4] sm:$0xff]
    %v291 = vld [vmem:[#allocation5 + $0x3ec] sm:$0xf]
    %v292 = vld [vmem:[#allocation5 + $0x3f0] sm:$0xff]
    %v293 = vld [vmem:[#allocation5 + $0x3f8] sm:$0xff]
    %v294 = vld [vmem:[#allocation5 + $0x400] sm:$0xff]
    %v295 = vld [vmem:[#allocation5 + $0x408] sm:$0xff]
    %v296 = vld [vmem:[#allocation5 + $0x410] sm:$0xf]
    %v297 = vld [vmem:[#allocation5 + $0x414] sm:$0xff]
    %v298 = vld [vmem:[#allocation5 + $0x41c] sm:$0xff]
    %v299 = vld [vmem:[#allocation5 + $0x424] sm:$0xff]
    %v300 = vld [vmem:[#allocation5 + $0x42c] sm:$0xff]
    %v301 = vld [vmem:[#allocation5 + $0x434] sm:$0xf]
    %v302 = vld [vmem:[#allocation5 + $0x438] sm:$0xff]
    %v303 = vld [vmem:[#allocation5 + $0x440] sm:$0xff]
    %v304 = vld [vmem:[#allocation5 + $0x448] sm:$0xff]
    %v305 = vld [vmem:[#allocation5 + $0x450] sm:$0xff]
    %v306 = vld [vmem:[#allocation5 + $0x458] sm:$0xf]
    %v307 = vld [vmem:[#allocation5 + $0x45c] sm:$0xff]
    %v308 = vld [vmem:[#allocation5 + $0x464] sm:$0xff]
    %v309 = vld [vmem:[#allocation5 + $0x46c] sm:$0xff]
    %v310 = vld [vmem:[#allocation5 + $0x474] sm:$0xff]
    %v311 = vld [vmem:[#allocation5 + $0x47c] sm:$0xf]
    %v312 = vld [vmem:[#allocation5 + $0x480] sm:$0xff]
    %v313 = vld [vmem:[#allocation5 + $0x488] sm:$0xff]
    %v314 = vld [vmem:[#allocation5 + $0x490] sm:$0xff]
    %v315 = vld [vmem:[#allocation5 + $0x498] sm:$0xff]
    %v316 = vld [vmem:[#allocation5 + $0x4a0] sm:$0xf]
    %v317 = vld [vmem:[#allocation5 + $0x4a4] sm:$0xff]
    %v318 = vld [vmem:[#allocation5 + $0x4ac] sm:$0xff]
    %v319 = vld [vmem:[#allocation5 + $0x4b4] sm:$0xff]
    %v320 = vld [vmem:[#allocation5 + $0x4bc] sm:$0xff]
    %v321 = vld [vmem:[#allocation5 + $0x4c4] sm:$0xf]
    %v322 = vld [vmem:[#allocation5 + $0x4c8] sm:$0xff]
    %v323 = vld [vmem:[#allocation5 + $0x4d0] sm:$0xff]
    %v324 = vld [vmem:[#allocation5 + $0x4d8] sm:$0xff]
    %v325 = vld [vmem:[#allocation5 + $0x4e0] sm:$0xff]
    %v326 = vld [vmem:[#allocation5 + $0x4e8] sm:$0xf]
    %v327 = vld [vmem:[#allocation5 + $0x4ec] sm:$0xff]
    %v328 = vld [vmem:[#allocation5 + $0x4f4] sm:$0xff]
    %v329 = vld [vmem:[#allocation5 + $0x4fc] sm:$0xff]
    %v330 = vld [vmem:[#allocation5 + $0x504] sm:$0xff]
    %v331 = vld [vmem:[#allocation5 + $0x50c] sm:$0xf]
    %v332 = vld [vmem:[#allocation5 + $0x510] sm:$0xff]
    %v333 = vld [vmem:[#allocation5 + $0x518] sm:$0xff]
    %v334 = vld [vmem:[#allocation5 + $0x520] sm:$0xff]
    %v335 = vld [vmem:[#allocation5 + $0x528] sm:$0xff]
    %v336 = vld [vmem:[#allocation5 + $0x530] sm:$0xf]
    %v337 = vld [vmem:[#allocation5 + $0x534] sm:$0xff]
    %v338 = vld [vmem:[#allocation5 + $0x53c] sm:$0xff]
    %v339 = vld [vmem:[#allocation5 + $0x544] sm:$0xff]
    %v340 = vld [vmem:[#allocation5 + $0x54c] sm:$0xff]
    %v341 = vld [vmem:[#allocation5 + $0x554] sm:$0xf]
    %v342 = vld [vmem:[#allocation5 + $0x558] sm:$0xff]
    %v343 = vld [vmem:[#allocation5 + $0x560] sm:$0xff]
    %v344 = vld [vmem:[#allocation5 + $0x568] sm:$0xff]
    %v345 = vld [vmem:[#allocation5 + $0x570] sm:$0xff]
    %v346 = vld [vmem:[#allocation5 + $0x578] sm:$0xf]
    %v347 = vld [vmem:[#allocation5 + $0x57c] sm:$0xff]
    %v348 = vld [vmem:[#allocation5 + $0x584] sm:$0xff]
    %v349 = vld [vmem:[#allocation5 + $0x58c] sm:$0xff]
    %v350 = vld [vmem:[#allocation5 + $0x594] sm:$0xff]
    %v351 = vld [vmem:[#allocation5 + $0x59c] sm:$0xf]
    %v352 = vld [vmem:[#allocation5 + $0x5a0] sm:$0xff]
    %v353 = vld [vmem:[#allocation5 + $0x5a8] sm:$0xff]
    %v354 = vld [vmem:[#allocation5 + $0x5b0] sm:$0xff]
    %v355 = vld [vmem:[#allocation5 + $0x5b8] sm:$0xff]
    %v356 = vld [vmem:[#allocation5 + $0x5c0] sm:$0xf]
    %v357 = vld [vmem:[#allocation5 + $0x5c4] sm:$0xff]
    %v358 = vld [vmem:[#allocation5 + $0x5cc] sm:$0xff]
    %v359 = vld [vmem:[#allocation5 + $0x5d4] sm:$0xff]
    %v360 = vld [vmem:[#allocation5 + $0x5dc] sm:$0xff]
    %v361 = vld [vmem:[#allocation5 + $0x5e4] sm:$0xf]
    %v362 = vld [vmem:[#allocation5 + $0x5e8] sm:$0xff]
    %v363 = vld [vmem:[#allocation5 + $0x5f0] sm:$0xff]
    %v364 = vld [vmem:[#allocation5 + $0x5f8] sm:$0xff]
    %v365 = vld [vmem:[#allocation5 + $0x600] sm:$0xff]
    %v366 = vld [vmem:[#allocation5 + $0x608] sm:$0xf]
    %v367 = vld [vmem:[#allocation5 + $0x60c] sm:$0xff]
    %v368 = vld [vmem:[#allocation5 + $0x614] sm:$0xff]
    %v369 = vld [vmem:[#allocation5 + $0x61c] sm:$0xff]
    %v370 = vld [vmem:[#allocation5 + $0x624] sm:$0xff]
    %v371 = vld [vmem:[#allocation5 + $0x62c] sm:$0xf]
    %v372 = vld [vmem:[#allocation5 + $0x630] sm:$0xff]
    %v373 = vld [vmem:[#allocation5 + $0x638] sm:$0xff]
    %v374 = vld [vmem:[#allocation5 + $0x640] sm:$0xff]
    %v375 = vld [vmem:[#allocation5 + $0x648] sm:$0xff]
    %v376 = vld [vmem:[#allocation5 + $0x650] sm:$0xf]
    %v377 = vld [vmem:[#allocation5 + $0x654] sm:$0xff]
    %v378 = vld [vmem:[#allocation5 + $0x65c] sm:$0xff]
    %v379 = vld [vmem:[#allocation5 + $0x664] sm:$0xff]
    %v380 = vld [vmem:[#allocation5 + $0x66c] sm:$0xff]
    %v381 = vld [vmem:[#allocation5 + $0x674] sm:$0xf]
    %v382 = vld [vmem:[#allocation5 + $0x678] sm:$0xff]
    %v383 = vld [vmem:[#allocation5 + $0x680] sm:$0xff]
    %v384 = vld [vmem:[#allocation5 + $0x688] sm:$0xff]
    %v385 = vld [vmem:[#allocation5 + $0x690] sm:$0xff]
    %v386 = vld [vmem:[#allocation5 + $0x698] sm:$0xf]
    %v387 = vld [vmem:[#allocation5 + $0x69c] sm:$0xff]
    %v388 = vld [vmem:[#allocation5 + $0x6a4] sm:$0xff]
    %v389 = vld [vmem:[#allocation5 + $0x6ac] sm:$0xff]
    %v390 = vld [vmem:[#allocation5 + $0x6b4] sm:$0xff]
    %v391 = vld [vmem:[#allocation5 + $0x6bc] sm:$0xf]
    %v632 = vunpack.c.l.b16 %v152
    %v633 = vunpack.c.h.b16 %v152
    %v634 = vunpack.c.l.b16 %v153
    %v635 = vunpack.c.h.b16 %v153
    %v636 = vunpack.c.l.b16 %v154
    %v637 = vunpack.c.h.b16 %v154
    %v638 = vunpack.c.l.b16 %v155
    %v639 = vunpack.c.h.b16 %v155
    %v640 = vunpack.c.l.b16 %v156
    %v641 = vunpack.c.l.b16 %v157
    %v642 = vunpack.c.h.b16 %v157
    %v643 = vunpack.c.l.b16 %v158
    %v644 = vunpack.c.h.b16 %v158
    %v645 = vunpack.c.l.b16 %v159
    %v646 = vunpack.c.h.b16 %v159
    %v647 = vunpack.c.l.b16 %v160
    %v648 = vunpack.c.h.b16 %v160
    %v649 = vunpack.c.l.b16 %v161
    %v650 = vunpack.c.l.b16 %v162
    %v651 = vunpack.c.h.b16 %v162
    %v652 = vunpack.c.l.b16 %v163
    %v653 = vunpack.c.h.b16 %v163
    %v654 = vunpack.c.l.b16 %v164
    %v655 = vunpack.c.h.b16 %v164
    %v656 = vunpack.c.l.b16 %v165
    %v657 = vunpack.c.h.b16 %v165
    %v658 = vunpack.c.l.b16 %v166
    %v659 = vunpack.c.l.b16 %v167
    %v660 = vunpack.c.h.b16 %v167
    %v661 = vunpack.c.l.b16 %v168
    %v662 = vunpack.c.h.b16 %v168
    %v663 = vunpack.c.l.b16 %v169
    %v664 = vunpack.c.h.b16 %v169
    %v665 = vunpack.c.l.b16 %v170
    %v666 = vunpack.c.h.b16 %v170
    %v667 = vunpack.c.l.b16 %v171
    %v668 = vunpack.c.l.b16 %v172
    %v669 = vunpack.c.h.b16 %v172
    %v670 = vunpack.c.l.b16 %v173
    %v671 = vunpack.c.h.b16 %v173
    %v672 = vunpack.c.l.b16 %v174
    %v673 = vunpack.c.h.b16 %v174
    %v674 = vunpack.c.l.b16 %v175
    %v675 = vunpack.c.h.b16 %v175
    %v676 = vunpack.c.l.b16 %v176
    %v677 = vunpack.c.l.b16 %v177
    %v678 = vunpack.c.h.b16 %v177
    %v679 = vunpack.c.l.b16 %v178
    %v680 = vunpack.c.h.b16 %v178
    %v681 = vunpack.c.l.b16 %v179
    %v682 = vunpack.c.h.b16 %v179
    %v683 = vunpack.c.l.b16 %v180
    %v684 = vunpack.c.h.b16 %v180
    %v685 = vunpack.c.l.b16 %v181
    %v686 = vunpack.c.l.b16 %v182
    %v687 = vunpack.c.h.b16 %v182
    %v688 = vunpack.c.l.b16 %v183
    %v689 = vunpack.c.h.b16 %v183
    %v690 = vunpack.c.l.b16 %v184
    %v691 = vunpack.c.h.b16 %v184
    %v692 = vunpack.c.l.b16 %v185
    %v693 = vunpack.c.h.b16 %v185
    %v694 = vunpack.c.l.b16 %v186
    %v695 = vunpack.c.l.b16 %v187
    %v696 = vunpack.c.h.b16 %v187
    %v697 = vunpack.c.l.b16 %v188
    %v698 = vunpack.c.h.b16 %v188
    %v699 = vunpack.c.l.b16 %v189
    %v700 = vunpack.c.h.b16 %v189
    %v701 = vunpack.c.l.b16 %v190
    %v702 = vunpack.c.h.b16 %v190
    %v703 = vunpack.c.l.b16 %v191
    %v704 = vunpack.c.l.b16 %v192
    %v705 = vunpack.c.h.b16 %v192
    %v706 = vunpack.c.l.b16 %v193
    %v707 = vunpack.c.h.b16 %v193
    %v708 = vunpack.c.l.b16 %v194
    %v709 = vunpack.c.h.b16 %v194
    %v710 = vunpack.c.l.b16 %v195
    %v711 = vunpack.c.h.b16 %v195
    %v712 = vunpack.c.l.b16 %v196
    %v713 = vunpack.c.l.b16 %v197
    %v714 = vunpack.c.h.b16 %v197
    %v715 = vunpack.c.l.b16 %v198
    %v716 = vunpack.c.h.b16 %v198
    %v717 = vunpack.c.l.b16 %v199
    %v718 = vunpack.c.h.b16 %v199
    %v719 = vunpack.c.l.b16 %v200
    %v720 = vunpack.c.h.b16 %v200
    %v721 = vunpack.c.l.b16 %v201
    %v722 = vunpack.c.l.b16 %v202
    %v723 = vunpack.c.h.b16 %v202
    %v724 = vunpack.c.l.b16 %v203
    %v725 = vunpack.c.h.b16 %v203
    %v726 = vunpack.c.l.b16 %v204
    %v727 = vunpack.c.h.b16 %v204
    %v728 = vunpack.c.l.b16 %v205
    %v729 = vunpack.c.h.b16 %v205
    %v730 = vunpack.c.l.b16 %v206
    %v731 = vunpack.c.l.b16 %v207
    %v732 = vunpack.c.h.b16 %v207
    %v733 = vunpack.c.l.b16 %v208
    %v734 = vunpack.c.h.b16 %v208
    %v735 = vunpack.c.l.b16 %v209
    %v736 = vunpack.c.h.b16 %v209
    %v737 = vunpack.c.l.b16 %v210
    %v738 = vunpack.c.h.b16 %v210
    %v739 = vunpack.c.l.b16 %v211
    %v740 = vunpack.c.l.b16 %v212
    %v741 = vunpack.c.h.b16 %v212
    %v742 = vunpack.c.l.b16 %v213
    %v743 = vunpack.c.h.b16 %v213
    %v744 = vunpack.c.l.b16 %v214
    %v745 = vunpack.c.h.b16 %v214
    %v746 = vunpack.c.l.b16 %v215
    %v747 = vunpack.c.h.b16 %v215
    %v748 = vunpack.c.l.b16 %v216
    %v749 = vunpack.c.l.b16 %v217
    %v750 = vunpack.c.h.b16 %v217
    %v751 = vunpack.c.l.b16 %v218
    %v752 = vunpack.c.h.b16 %v218
    %v753 = vunpack.c.l.b16 %v219
    %v754 = vunpack.c.h.b16 %v219
    %v755 = vunpack.c.l.b16 %v220
    %v756 = vunpack.c.h.b16 %v220
    %v757 = vunpack.c.l.b16 %v221
    %v758 = vunpack.c.l.b16 %v222
    %v759 = vunpack.c.h.b16 %v222
    %v760 = vunpack.c.l.b16 %v223
    %v761 = vunpack.c.h.b16 %v223
    %v762 = vunpack.c.l.b16 %v224
    %v763 = vunpack.c.h.b16 %v224
    %v764 = vunpack.c.l.b16 %v225
    %v765 = vunpack.c.h.b16 %v225
    %v766 = vunpack.c.l.b16 %v226
    %v767 = vunpack.c.l.b16 %v227
    %v768 = vunpack.c.h.b16 %v227
    %v769 = vunpack.c.l.b16 %v228
    %v770 = vunpack.c.h.b16 %v228
    %v771 = vunpack.c.l.b16 %v229
    %v772 = vunpack.c.h.b16 %v229
    %v773 = vunpack.c.l.b16 %v230
    %v774 = vunpack.c.h.b16 %v230
    %v775 = vunpack.c.l.b16 %v231
    %v776 = vunpack.c.l.b16 %v232
    %v777 = vunpack.c.h.b16 %v232
    %v778 = vunpack.c.l.b16 %v233
    %v779 = vunpack.c.h.b16 %v233
    %v780 = vunpack.c.l.b16 %v234
    %v781 = vunpack.c.h.b16 %v234
    %v782 = vunpack.c.l.b16 %v235
    %v783 = vunpack.c.h.b16 %v235
    %v784 = vunpack.c.l.b16 %v236
    %v785 = vunpack.c.l.b16 %v237
    %v786 = vunpack.c.h.b16 %v237
    %v787 = vunpack.c.l.b16 %v238
    %v788 = vunpack.c.h.b16 %v238
    %v789 = vunpack.c.l.b16 %v239
    %v790 = vunpack.c.h.b16 %v239
    %v791 = vunpack.c.l.b16 %v240
    %v792 = vunpack.c.h.b16 %v240
    %v793 = vunpack.c.l.b16 %v241
    %v794 = vunpack.c.l.b16 %v242
    %v795 = vunpack.c.h.b16 %v242
    %v796 = vunpack.c.l.b16 %v243
    %v797 = vunpack.c.h.b16 %v243
    %v798 = vunpack.c.l.b16 %v244
    %v799 = vunpack.c.h.b16 %v244
    %v800 = vunpack.c.l.b16 %v245
    %v801 = vunpack.c.h.b16 %v245
    %v802 = vunpack.c.l.b16 %v246
    %v803 = vunpack.c.l.b16 %v247
    %v804 = vunpack.c.h.b16 %v247
    %v805 = vunpack.c.l.b16 %v248
    %v806 = vunpack.c.h.b16 %v248
    %v807 = vunpack.c.l.b16 %v249
    %v808 = vunpack.c.h.b16 %v249
    %v809 = vunpack.c.l.b16 %v250
    %v810 = vunpack.c.h.b16 %v250
    %v811 = vunpack.c.l.b16 %v251
    %v812 = vunpack.c.l.b16 %v252
    %v813 = vunpack.c.h.b16 %v252
    %v814 = vunpack.c.l.b16 %v253
    %v815 = vunpack.c.h.b16 %v253
    %v816 = vunpack.c.l.b16 %v254
    %v817 = vunpack.c.h.b16 %v254
    %v818 = vunpack.c.l.b16 %v255
    %v819 = vunpack.c.h.b16 %v255
    %v820 = vunpack.c.l.b16 %v256
    %v821 = vunpack.c.l.b16 %v257
    %v822 = vunpack.c.h.b16 %v257
    %v823 = vunpack.c.l.b16 %v258
    %v824 = vunpack.c.h.b16 %v258
    %v825 = vunpack.c.l.b16 %v259
    %v826 = vunpack.c.h.b16 %v259
    %v827 = vunpack.c.l.b16 %v260
    %v828 = vunpack.c.h.b16 %v260
    %v829 = vunpack.c.l.b16 %v261
    %v830 = vunpack.c.l.b16 %v262
    %v831 = vunpack.c.h.b16 %v262
    %v832 = vunpack.c.l.b16 %v263
    %v833 = vunpack.c.h.b16 %v263
    %v834 = vunpack.c.l.b16 %v264
    %v835 = vunpack.c.h.b16 %v264
    %v836 = vunpack.c.l.b16 %v265
    %v837 = vunpack.c.h.b16 %v265
    %v838 = vunpack.c.l.b16 %v266
    %v839 = vunpack.c.l.b16 %v267
    %v840 = vunpack.c.h.b16 %v267
    %v841 = vunpack.c.l.b16 %v268
    %v842 = vunpack.c.h.b16 %v268
    %v843 = vunpack.c.l.b16 %v269
    %v844 = vunpack.c.h.b16 %v269
    %v845 = vunpack.c.l.b16 %v270
    %v846 = vunpack.c.h.b16 %v270
    %v847 = vunpack.c.l.b16 %v271
    %v848 = vunpack.c.l.b16 %v272
    %v849 = vunpack.c.h.b16 %v272
    %v850 = vunpack.c.l.b16 %v273
    %v851 = vunpack.c.h.b16 %v273
    %v852 = vunpack.c.l.b16 %v274
    %v853 = vunpack.c.h.b16 %v274
    %v854 = vunpack.c.l.b16 %v275
    %v855 = vunpack.c.h.b16 %v275
    %v856 = vunpack.c.l.b16 %v276
    %v857 = vunpack.c.l.b16 %v277
    %v858 = vunpack.c.h.b16 %v277
    %v859 = vunpack.c.l.b16 %v278
    %v860 = vunpack.c.h.b16 %v278
    %v861 = vunpack.c.l.b16 %v279
    %v862 = vunpack.c.h.b16 %v279
    %v863 = vunpack.c.l.b16 %v280
    %v864 = vunpack.c.h.b16 %v280
    %v865 = vunpack.c.l.b16 %v281
    %v866 = vunpack.c.l.b16 %v282
    %v867 = vunpack.c.h.b16 %v282
    %v868 = vunpack.c.l.b16 %v283
    %v869 = vunpack.c.h.b16 %v283
    %v870 = vunpack.c.l.b16 %v284
    %v871 = vunpack.c.h.b16 %v284
    %v872 = vunpack.c.l.b16 %v285
    %v873 = vunpack.c.h.b16 %v285
    %v874 = vunpack.c.l.b16 %v286
    %v875 = vunpack.c.l.b16 %v287
    %v876 = vunpack.c.h.b16 %v287
    %v877 = vunpack.c.l.b16 %v288
    %v878 = vunpack.c.h.b16 %v288
    %v879 = vunpack.c.l.b16 %v289
    %v880 = vunpack.c.h.b16 %v289
    %v881 = vunpack.c.l.b16 %v290
    %v882 = vunpack.c.h.b16 %v290
    %v883 = vunpack.c.l.b16 %v291
    %v884 = vunpack.c.l.b16 %v292
    %v885 = vunpack.c.h.b16 %v292
    %v886 = vunpack.c.l.b16 %v293
    %v887 = vunpack.c.h.b16 %v293
    %v888 = vunpack.c.l.b16 %v294
    %v889 = vunpack.c.h.b16 %v294
    %v890 = vunpack.c.l.b16 %v295
    %v891 = vunpack.c.h.b16 %v295
    %v892 = vunpack.c.l.b16 %v296
    %v893 = vunpack.c.l.b16 %v297
    %v894 = vunpack.c.h.b16 %v297
    %v895 = vunpack.c.l.b16 %v298
    %v896 = vunpack.c.h.b16 %v298
    %v897 = vunpack.c.l.b16 %v299
    %v898 = vunpack.c.h.b16 %v299
    %v899 = vunpack.c.l.b16 %v300
    %v900 = vunpack.c.h.b16 %v300
    %v901 = vunpack.c.l.b16 %v301
    %v902 = vunpack.c.l.b16 %v302
    %v903 = vunpack.c.h.b16 %v302
    %v904 = vunpack.c.l.b16 %v303
    %v905 = vunpack.c.h.b16 %v303
    %v906 = vunpack.c.l.b16 %v304
    %v907 = vunpack.c.h.b16 %v304
    %v908 = vunpack.c.l.b16 %v305
    %v909 = vunpack.c.h.b16 %v305
    %v910 = vunpack.c.l.b16 %v306
    %v911 = vunpack.c.l.b16 %v307
    %v912 = vunpack.c.h.b16 %v307
    %v913 = vunpack.c.l.b16 %v308
    %v914 = vunpack.c.h.b16 %v308
    %v915 = vunpack.c.l.b16 %v309
    %v916 = vunpack.c.h.b16 %v309
    %v917 = vunpack.c.l.b16 %v310
    %v918 = vunpack.c.h.b16 %v310
    %v919 = vunpack.c.l.b16 %v311
    %v920 = vunpack.c.l.b16 %v312
    %v921 = vunpack.c.h.b16 %v312
    %v922 = vunpack.c.l.b16 %v313
    %v923 = vunpack.c.h.b16 %v313
    %v924 = vunpack.c.l.b16 %v314
    %v925 = vunpack.c.h.b16 %v314
    %v926 = vunpack.c.l.b16 %v315
    %v927 = vunpack.c.h.b16 %v315
    %v928 = vunpack.c.l.b16 %v316
    %v929 = vunpack.c.l.b16 %v317
    %v930 = vunpack.c.h.b16 %v317
    %v931 = vunpack.c.l.b16 %v318
    %v932 = vunpack.c.h.b16 %v318
    %v933 = vunpack.c.l.b16 %v319
    %v934 = vunpack.c.h.b16 %v319
    %v935 = vunpack.c.l.b16 %v320
    %v936 = vunpack.c.h.b16 %v320
    %v937 = vunpack.c.l.b16 %v321
    %v938 = vunpack.c.l.b16 %v322
    %v939 = vunpack.c.h.b16 %v322
    %v940 = vunpack.c.l.b16 %v323
    %v941 = vunpack.c.h.b16 %v323
    %v942 = vunpack.c.l.b16 %v324
    %v943 = vunpack.c.h.b16 %v324
    %v944 = vunpack.c.l.b16 %v325
    %v945 = vunpack.c.h.b16 %v325
    %v946 = vunpack.c.l.b16 %v326
    %v947 = vunpack.c.l.b16 %v327
    %v948 = vunpack.c.h.b16 %v327
    %v949 = vunpack.c.l.b16 %v328
    %v950 = vunpack.c.h.b16 %v328
    %v951 = vunpack.c.l.b16 %v329
    %v952 = vunpack.c.h.b16 %v329
    %v953 = vunpack.c.l.b16 %v330
    %v954 = vunpack.c.h.b16 %v330
    %v955 = vunpack.c.l.b16 %v331
    %v956 = vunpack.c.l.b16 %v332
    %v957 = vunpack.c.h.b16 %v332
    %v958 = vunpack.c.l.b16 %v333
    %v959 = vunpack.c.h.b16 %v333
    %v960 = vunpack.c.l.b16 %v334
    %v961 = vunpack.c.h.b16 %v334
    %v962 = vunpack.c.l.b16 %v335
    %v963 = vunpack.c.h.b16 %v335
    %v964 = vunpack.c.l.b16 %v336
    %v965 = vunpack.c.l.b16 %v337
    %v966 = vunpack.c.h.b16 %v337
    %v967 = vunpack.c.l.b16 %v338
    %v968 = vunpack.c.h.b16 %v338
    %v969 = vunpack.c.l.b16 %v339
    %v970 = vunpack.c.h.b16 %v339
    %v971 = vunpack.c.l.b16 %v340
    %v972 = vunpack.c.h.b16 %v340
    %v973 = vunpack.c.l.b16 %v341
    %v974 = vunpack.c.l.b16 %v342
    %v975 = vunpack.c.h.b16 %v342
    %v976 = vunpack.c.l.b16 %v343
    %v977 = vunpack.c.h.b16 %v343
    %v978 = vunpack.c.l.b16 %v344
    %v979 = vunpack.c.h.b16 %v344
    %v980 = vunpack.c.l.b16 %v345
    %v981 = vunpack.c.h.b16 %v345
    %v982 = vunpack.c.l.b16 %v346
    %v983 = vunpack.c.l.b16 %v347
    %v984 = vunpack.c.h.b16 %v347
    %v985 = vunpack.c.l.b16 %v348
    %v986 = vunpack.c.h.b16 %v348
    %v987 = vunpack.c.l.b16 %v349
    %v988 = vunpack.c.h.b16 %v349
    %v989 = vunpack.c.l.b16 %v350
    %v990 = vunpack.c.h.b16 %v350
    %v991 = vunpack.c.l.b16 %v351
    %v992 = vunpack.c.l.b16 %v352
    %v993 = vunpack.c.h.b16 %v352
    %v994 = vunpack.c.l.b16 %v353
    %v995 = vunpack.c.h.b16 %v353
    %v996 = vunpack.c.l.b16 %v354
    %v997 = vunpack.c.h.b16 %v354
    %v998 = vunpack.c.l.b16 %v355
    %v999 = vunpack.c.h.b16 %v355
    %v1000 = vunpack.c.l.b16 %v356
    %v1001 = vunpack.c.l.b16 %v357
    %v1002 = vunpack.c.h.b16 %v357
    %v1003 = vunpack.c.l.b16 %v358
    %v1004 = vunpack.c.h.b16 %v358
    %v1005 = vunpack.c.l.b16 %v359
    %v1006 = vunpack.c.h.b16 %v359
    %v1007 = vunpack.c.l.b16 %v360
    %v1008 = vunpack.c.h.b16 %v360
    %v1009 = vunpack.c.l.b16 %v361
    %v1010 = vunpack.c.l.b16 %v362
    %v1011 = vunpack.c.h.b16 %v362
    %v1012 = vunpack.c.l.b16 %v363
    %v1013 = vunpack.c.h.b16 %v363
    %v1014 = vunpack.c.l.b16 %v364
    %v1015 = vunpack.c.h.b16 %v364
    %v1016 = vunpack.c.l.b16 %v365
    %v1017 = vunpack.c.h.b16 %v365
    %v1018 = vunpack.c.l.b16 %v366
    %v1019 = vunpack.c.l.b16 %v367
    %v1020 = vunpack.c.h.b16 %v367
    %v1021 = vunpack.c.l.b16 %v368
    %v1022 = vunpack.c.h.b16 %v368
    %v1023 = vunpack.c.l.b16 %v369
    %v1024 = vunpack.c.h.b16 %v369
    %v1025 = vunpack.c.l.b16 %v370
    %v1026 = vunpack.c.h.b16 %v370
    %v1027 = vunpack.c.l.b16 %v371
    %v1028 = vunpack.c.l.b16 %v372
    %v1029 = vunpack.c.h.b16 %v372
    %v1030 = vunpack.c.l.b16 %v373
    %v1031 = vunpack.c.h.b16 %v373
    %v1032 = vunpack.c.l.b16 %v374
    %v1033 = vunpack.c.h.b16 %v374
    %v1034 = vunpack.c.l.b16 %v375
    %v1035 = vunpack.c.h.b16 %v375
    %v1036 = vunpack.c.l.b16 %v376
    %v1037 = vunpack.c.l.b16 %v377
    %v1038 = vunpack.c.h.b16 %v377
    %v1039 = vunpack.c.l.b16 %v378
    %v1040 = vunpack.c.h.b16 %v378
    %v1041 = vunpack.c.l.b16 %v379
    %v1042 = vunpack.c.h.b16 %v379
    %v1043 = vunpack.c.l.b16 %v380
    %v1044 = vunpack.c.h.b16 %v380
    %v1045 = vunpack.c.l.b16 %v381
    %v1046 = vunpack.c.l.b16 %v382
    %v1047 = vunpack.c.h.b16 %v382
    %v1048 = vunpack.c.l.b16 %v383
    %v1049 = vunpack.c.h.b16 %v383
    %v1050 = vunpack.c.l.b16 %v384
    %v1051 = vunpack.c.h.b16 %v384
    %v1052 = vunpack.c.l.b16 %v385
    %v1053 = vunpack.c.h.b16 %v385
    %v1054 = vunpack.c.l.b16 %v386
    %v1055 = vunpack.c.l.b16 %v387
    %v1056 = vunpack.c.h.b16 %v387
    %v1057 = vunpack.c.l.b16 %v388
    %v1058 = vunpack.c.h.b16 %v388
    %v1059 = vunpack.c.l.b16 %v389
    %v1060 = vunpack.c.h.b16 %v389
    %v1061 = vunpack.c.l.b16 %v390
    %v1062 = vunpack.c.h.b16 %v390
    %v1063 = vunpack.c.l.b16 %v391
    %v1064 = vpack.c.b16 %v641, %v632
    %v1065 = vpack.c.b16 %v642, %v633
    %v1066 = vpack.c.b16 %v643, %v634
    %v1067 = vpack.c.b16 %v644, %v635
    %v1068 = vpack.c.b16 %v645, %v636
    %v1069 = vpack.c.b16 %v646, %v637
    %v1070 = vpack.c.b16 %v647, %v638
    %v1071 = vpack.c.b16 %v648, %v639
    %v1072 = vpack.c.b16 %v649, %v640
    %v1073 = vpack.c.b16 %v659, %v650
    %v1074 = vpack.c.b16 %v660, %v651
    %v1075 = vpack.c.b16 %v661, %v652
    %v1076 = vpack.c.b16 %v662, %v653
    %v1077 = vpack.c.b16 %v663, %v654
    %v1078 = vpack.c.b16 %v664, %v655
    %v1079 = vpack.c.b16 %v665, %v656
    %v1080 = vpack.c.b16 %v666, %v657
    %v1081 = vpack.c.b16 %v667, %v658
    %v1082 = vpack.c.b16 %v677, %v668
    %v1083 = vpack.c.b16 %v678, %v669
    %v1084 = vpack.c.b16 %v679, %v670
    %v1085 = vpack.c.b16 %v680, %v671
    %v1086 = vpack.c.b16 %v681, %v672
    %v1087 = vpack.c.b16 %v682, %v673
    %v1088 = vpack.c.b16 %v683, %v674
    %v1089 = vpack.c.b16 %v684, %v675
    %v1090 = vpack.c.b16 %v685, %v676
    %v1091 = vpack.c.b16 %v695, %v686
    %v1092 = vpack.c.b16 %v696, %v687
    %v1093 = vpack.c.b16 %v697, %v688
    %v1094 = vpack.c.b16 %v698, %v689
    %v1095 = vpack.c.b16 %v699, %v690
    %v1096 = vpack.c.b16 %v700, %v691
    %v1097 = vpack.c.b16 %v701, %v692
    %v1098 = vpack.c.b16 %v702, %v693
    %v1099 = vpack.c.b16 %v703, %v694
    %v1100 = vpack.c.b16 %v713, %v704
    %v1101 = vpack.c.b16 %v714, %v705
    %v1102 = vpack.c.b16 %v715, %v706
    %v1103 = vpack.c.b16 %v716, %v707
    %v1104 = vpack.c.b16 %v717, %v708
    %v1105 = vpack.c.b16 %v718, %v709
    %v1106 = vpack.c.b16 %v719, %v710
    %v1107 = vpack.c.b16 %v720, %v711
    %v1108 = vpack.c.b16 %v721, %v712
    %v1109 = vpack.c.b16 %v731, %v722
    %v1110 = vpack.c.b16 %v732, %v723
    %v1111 = vpack.c.b16 %v733, %v724
    %v1112 = vpack.c.b16 %v734, %v725
    %v1113 = vpack.c.b16 %v735, %v726
    %v1114 = vpack.c.b16 %v736, %v727
    %v1115 = vpack.c.b16 %v737, %v728
    %v1116 = vpack.c.b16 %v738, %v729
    %v1117 = vpack.c.b16 %v739, %v730
    %v1118 = vpack.c.b16 %v749, %v740
    %v1119 = vpack.c.b16 %v750, %v741
    %v1120 = vpack.c.b16 %v751, %v742
    %v1121 = vpack.c.b16 %v752, %v743
    %v1122 = vpack.c.b16 %v753, %v744
    %v1123 = vpack.c.b16 %v754, %v745
    %v1124 = vpack.c.b16 %v755, %v746
    %v1125 = vpack.c.b16 %v756, %v747
    %v1126 = vpack.c.b16 %v757, %v748
    %v1127 = vpack.c.b16 %v767, %v758
    %v1128 = vpack.c.b16 %v768, %v759
    %v1129 = vpack.c.b16 %v769, %v760
    %v1130 = vpack.c.b16 %v770, %v761
    %v1131 = vpack.c.b16 %v771, %v762
    %v1132 = vpack.c.b16 %v772, %v763
    %v1133 = vpack.c.b16 %v773, %v764
    %v1134 = vpack.c.b16 %v774, %v765
    %v1135 = vpack.c.b16 %v775, %v766
    %v1136 = vpack.c.b16 %v785, %v776
    %v1137 = vpack.c.b16 %v786, %v777
    %v1138 = vpack.c.b16 %v787, %v778
    %v1139 = vpack.c.b16 %v788, %v779
    %v1140 = vpack.c.b16 %v789, %v780
    %v1141 = vpack.c.b16 %v790, %v781
    %v1142 = vpack.c.b16 %v791, %v782
    %v1143 = vpack.c.b16 %v792, %v783
    %v1144 = vpack.c.b16 %v793, %v784
    %v1145 = vpack.c.b16 %v803, %v794
    %v1146 = vpack.c.b16 %v804, %v795
    %v1147 = vpack.c.b16 %v805, %v796
    %v1148 = vpack.c.b16 %v806, %v797
    %v1149 = vpack.c.b16 %v807, %v798
    %v1150 = vpack.c.b16 %v808, %v799
    %v1151 = vpack.c.b16 %v809, %v800
    %v1152 = vpack.c.b16 %v810, %v801
    %v1153 = vpack.c.b16 %v811, %v802
    %v1154 = vpack.c.b16 %v821, %v812
    %v1155 = vpack.c.b16 %v822, %v813
    %v1156 = vpack.c.b16 %v823, %v814
    %v1157 = vpack.c.b16 %v824, %v815
    %v1158 = vpack.c.b16 %v825, %v816
    %v1159 = vpack.c.b16 %v826, %v817
    %v1160 = vpack.c.b16 %v827, %v818
    %v1161 = vpack.c.b16 %v828, %v819
    %v1162 = vpack.c.b16 %v829, %v820
    %v1163 = vpack.c.b16 %v839, %v830
    %v1164 = vpack.c.b16 %v840, %v831
    %v1165 = vpack.c.b16 %v841, %v832
    %v1166 = vpack.c.b16 %v842, %v833
    %v1167 = vpack.c.b16 %v843, %v834
    %v1168 = vpack.c.b16 %v844, %v835
    %v1169 = vpack.c.b16 %v845, %v836
    %v1170 = vpack.c.b16 %v846, %v837
    %v1171 = vpack.c.b16 %v847, %v838
    %v1172 = vpack.c.b16 %v857, %v848
    %v1173 = vpack.c.b16 %v858, %v849
    %v1174 = vpack.c.b16 %v859, %v850
    %v1175 = vpack.c.b16 %v860, %v851
    %v1176 = vpack.c.b16 %v861, %v852
    %v1177 = vpack.c.b16 %v862, %v853
    %v1178 = vpack.c.b16 %v863, %v854
    %v1179 = vpack.c.b16 %v864, %v855
    %v1180 = vpack.c.b16 %v865, %v856
    %v1181 = vpack.c.b16 %v875, %v866
    %v1182 = vpack.c.b16 %v876, %v867
    %v1183 = vpack.c.b16 %v877, %v868
    %v1184 = vpack.c.b16 %v878, %v869
    %v1185 = vpack.c.b16 %v879, %v870
    %v1186 = vpack.c.b16 %v880, %v871
    %v1187 = vpack.c.b16 %v881, %v872
    %v1188 = vpack.c.b16 %v882, %v873
    %v1189 = vpack.c.b16 %v883, %v874
    %v1190 = vpack.c.b16 %v893, %v884
    %v1191 = vpack.c.b16 %v894, %v885
    %v1192 = vpack.c.b16 %v895, %v886
    %v1193 = vpack.c.b16 %v896, %v887
    %v1194 = vpack.c.b16 %v897, %v888
    %v1195 = vpack.c.b16 %v898, %v889
    %v1196 = vpack.c.b16 %v899, %v890
    %v1197 = vpack.c.b16 %v900, %v891
    %v1198 = vpack.c.b16 %v901, %v892
    %v1199 = vpack.c.b16 %v911, %v902
    %v1200 = vpack.c.b16 %v912, %v903
    %v1201 = vpack.c.b16 %v913, %v904
    %v1202 = vpack.c.b16 %v914, %v905
    %v1203 = vpack.c.b16 %v915, %v906
    %v1204 = vpack.c.b16 %v916, %v907
    %v1205 = vpack.c.b16 %v917, %v908
    %v1206 = vpack.c.b16 %v918, %v909
    %v1207 = vpack.c.b16 %v919, %v910
    %v1208 = vpack.c.b16 %v929, %v920
    %v1209 = vpack.c.b16 %v930, %v921
    %v1210 = vpack.c.b16 %v931, %v922
    %v1211 = vpack.c.b16 %v932, %v923
    %v1212 = vpack.c.b16 %v933, %v924
    %v1213 = vpack.c.b16 %v934, %v925
    %v1214 = vpack.c.b16 %v935, %v926
    %v1215 = vpack.c.b16 %v936, %v927
    %v1216 = vpack.c.b16 %v937, %v928
    %v1217 = vpack.c.b16 %v947, %v938
    %v1218 = vpack.c.b16 %v948, %v939
    %v1219 = vpack.c.b16 %v949, %v940
    %v1220 = vpack.c.b16 %v950, %v941
    %v1221 = vpack.c.b16 %v951, %v942
    %v1222 = vpack.c.b16 %v952, %v943
    %v1223 = vpack.c.b16 %v953, %v944
    %v1224 = vpack.c.b16 %v954, %v945
    %v1225 = vpack.c.b16 %v955, %v946
    %v1226 = vpack.c.b16 %v965, %v956
    %v1227 = vpack.c.b16 %v966, %v957
    %v1228 = vpack.c.b16 %v967, %v958
    %v1229 = vpack.c.b16 %v968, %v959
    %v1230 = vpack.c.b16 %v969, %v960
    %v1231 = vpack.c.b16 %v970, %v961
    %v1232 = vpack.c.b16 %v971, %v962
    %v1233 = vpack.c.b16 %v972, %v963
    %v1234 = vpack.c.b16 %v973, %v964
    %v1235 = vpack.c.b16 %v983, %v974
    %v1236 = vpack.c.b16 %v984, %v975
    %v1237 = vpack.c.b16 %v985, %v976
    %v1238 = vpack.c.b16 %v986, %v977
    %v1239 = vpack.c.b16 %v987, %v978
    %v1240 = vpack.c.b16 %v988, %v979
    %v1241 = vpack.c.b16 %v989, %v980
    %v1242 = vpack.c.b16 %v990, %v981
    %v1243 = vpack.c.b16 %v991, %v982
    %v1244 = vpack.c.b16 %v1001, %v992
    %v1245 = vpack.c.b16 %v1002, %v993
    %v1246 = vpack.c.b16 %v1003, %v994
    %v1247 = vpack.c.b16 %v1004, %v995
    %v1248 = vpack.c.b16 %v1005, %v996
    %v1249 = vpack.c.b16 %v1006, %v997
    %v1250 = vpack.c.b16 %v1007, %v998
    %v1251 = vpack.c.b16 %v1008, %v999
    %v1252 = vpack.c.b16 %v1009, %v1000
    %v1253 = vpack.c.b16 %v1019, %v1010
    %v1254 = vpack.c.b16 %v1020, %v1011
    %v1255 = vpack.c.b16 %v1021, %v1012
    %v1256 = vpack.c.b16 %v1022, %v1013
    %v1257 = vpack.c.b16 %v1023, %v1014
    %v1258 = vpack.c.b16 %v1024, %v1015
    %v1259 = vpack.c.b16 %v1025, %v1016
    %v1260 = vpack.c.b16 %v1026, %v1017
    %v1261 = vpack.c.b16 %v1027, %v1018
    %v1262 = vpack.c.b16 %v1037, %v1028
    %v1263 = vpack.c.b16 %v1038, %v1029
    %v1264 = vpack.c.b16 %v1039, %v1030
    %v1265 = vpack.c.b16 %v1040, %v1031
    %v1266 = vpack.c.b16 %v1041, %v1032
    %v1267 = vpack.c.b16 %v1042, %v1033
    %v1268 = vpack.c.b16 %v1043, %v1034
    %v1269 = vpack.c.b16 %v1044, %v1035
    %v1270 = vpack.c.b16 %v1045, %v1036
    %v1271 = vpack.c.b16 %v1055, %v1046
    %v1272 = vpack.c.b16 %v1056, %v1047
    %v1273 = vpack.c.b16 %v1057, %v1048
    %v1274 = vpack.c.b16 %v1058, %v1049
    %v1275 = vpack.c.b16 %v1059, %v1050
    %v1276 = vpack.c.b16 %v1060, %v1051
    %v1277 = vpack.c.b16 %v1061, %v1052
    %v1278 = vpack.c.b16 %v1062, %v1053
    %v1279 = vpack.c.b16 %v1063, %v1054
    %1496 = vmatpush.bf16.msra.mxu0 %v1127
    %1497 = vmatpush.bf16.msra.mxu0 %v1118
    %1498 = vmatpush.bf16.msra.mxu0 %v1109
    %1499 = vmatpush.bf16.msra.mxu0 %v1100
    %1500 = vmatpush.bf16.msra.mxu0 %v1091
    %1501 = vmatpush.bf16.msra.mxu0 %v1082
    %1502 = vmatpush.bf16.msra.mxu0 %v1073
    %1503 = vmatpush.bf16.msra.mxu0 %v1064
    %1504 = vmatmul.bf16.gmra.mxu0 %v128
    %v1505 = vpop.f32.mrf.mxu0
    %v1506 = vadd.f32 0.0, %v1505
    %v1507 = vpop.f32.mrf.mxu0
    %v1508 = vadd.f32 0.0, %v1507
    %1509 = vmatmul.bf16.gmra.mxu0 %v131
    %v1510 = vpop.f32.mrf.mxu0
    %v1511 = vadd.f32 0.0, %v1510
    %v1512 = vpop.f32.mrf.mxu0
    %v1513 = vadd.f32 0.0, %v1512
    %1514 = vmatmul.bf16.gmra.mxu0 %v134
    %v1515 = vpop.f32.mrf.mxu0
    %v1516 = vadd.f32 0.0, %v1515
    %v1517 = vpop.f32.mrf.mxu0
    %v1518 = vadd.f32 0.0, %v1517
    %1519 = vmatmul.bf16.gmra.mxu0 %v137
    %v1520 = vpop.f32.mrf.mxu0
    %v1521 = vadd.f32 0.0, %v1520
    %v1522 = vpop.f32.mrf.mxu0
    %v1523 = vadd.f32 0.0, %v1522
    %1524 = vmatmul.bf16.gmra.mxu0 %v140
    %v1525 = vpop.f32.mrf.mxu0
    %v1526 = vadd.f32 0.0, %v1525
    %v1527 = vpop.f32.mrf.mxu0
    %v1528 = vadd.f32 0.0, %v1527
    %1529 = vmatmul.bf16.gmra.mxu0 %v143
    %v1530 = vpop.f32.mrf.mxu0
    %v1531 = vadd.f32 0.0, %v1530
    %v1532 = vpop.f32.mrf.mxu0
    %v1533 = vadd.f32 0.0, %v1532
    %1534 = vmatmul.bf16.gmra.mxu0 %v146
    %v1535 = vpop.f32.mrf.mxu0
    %v1536 = vadd.f32 0.0, %v1535
    %v1537 = vpop.f32.mrf.mxu0
    %v1538 = vadd.f32 0.0, %v1537
    %1539 = vmatmul.bf16.gmra.mxu0 %v149
    %v1540 = vpop.f32.mrf.mxu0
    %v1541 = vadd.f32 0.0, %v1540
    %v1542 = vpop.f32.mrf.mxu0
    %v1543 = vadd.f32 0.0, %v1542
    %1544 = vdwg.mxu0
    %1545 = vmatpush.bf16.msra.mxu0 %v1199
    %1546 = vmatpush.bf16.msra.mxu0 %v1190
    %1547 = vmatpush.bf16.msra.mxu0 %v1181
    %1548 = vmatpush.bf16.msra.mxu0 %v1172
    %1549 = vmatpush.bf16.msra.mxu0 %v1163
    %1550 = vmatpush.bf16.msra.mxu0 %v1154
    %1551 = vmatpush.bf16.msra.mxu0 %v1145
    %1552 = vmatpush.bf16.msra.mxu0 %v1136
    %1553 = vmatmul.bf16.gmra.mxu0 %v129
    %v1554 = vpop.f32.mrf.mxu0
    %v1555 = vadd.f32 %v1506, %v1554
    %v1556 = vpop.f32.mrf.mxu0
    %v1557 = vadd.f32 %v1508, %v1556
    %1558 = vmatmul.bf16.gmra.mxu0 %v132
    %v1559 = vpop.f32.mrf.mxu0
    %v1560 = vadd.f32 %v1511, %v1559
    %v1561 = vpop.f32.mrf.mxu0
    %v1562 = vadd.f32 %v1513, %v1561
    %1563 = vmatmul.bf16.gmra.mxu0 %v135
    %v1564 = vpop.f32.mrf.mxu0
    %v1565 = vadd.f32 %v1516, %v1564
    %v1566 = vpop.f32.mrf.mxu0
    %v1567 = vadd.f32 %v1518, %v1566
    %1568 = vmatmul.bf16.gmra.mxu0 %v138
    %v1569 = vpop.f32.mrf.mxu0
    %v1570 = vadd.f32 %v1521, %v1569
    %v1571 = vpop.f32.mrf.mxu0
    %v1572 = vadd.f32 %v1523, %v1571
    %1573 = vmatmul.bf16.gmra.mxu0 %v141
    %v1574 = vpop.f32.mrf.mxu0
    %v1575 = vadd.f32 %v1526, %v1574
    %v1576 = vpop.f32.mrf.mxu0
    %v1577 = vadd.f32 %v1528, %v1576
    %1578 = vmatmul.bf16.gmra.mxu0 %v144
    %v1579 = vpop.f32.mrf.mxu0
    %v1580 = vadd.f32 %v1531, %v1579
    %v1581 = vpop.f32.mrf.mxu0
    %v1582 = vadd.f32 %v1533, %v1581
    %1583 = vmatmul.bf16.gmra.mxu0 %v147
    %v1584 = vpop.f32.mrf.mxu0
    %v1585 = vadd.f32 %v1536, %v1584
    %v1586 = vpop.f32.mrf.mxu0
    %v1587 = vadd.f32 %v1538, %v1586
    %1588 = vmatmul.bf16.gmra.mxu0 %v150
    %v1589 = vpop.f32.mrf.mxu0
    %v1590 = vadd.f32 %v1541, %v1589
    %v1591 = vpop.f32.mrf.mxu0
    %v1592 = vadd.f32 %v1543, %v1591
    %1593 = vdwg.mxu0
    %1594 = vmatpush.bf16.msra.mxu0 %v1271
    %1595 = vmatpush.bf16.msra.mxu0 %v1262
    %1596 = vmatpush.bf16.msra.mxu0 %v1253
    %1597 = vmatpush.bf16.msra.mxu0 %v1244
    %1598 = vmatpush.bf16.msra.mxu0 %v1235
    %1599 = vmatpush.bf16.msra.mxu0 %v1226
    %1600 = vmatpush.bf16.msra.mxu0 %v1217
    %1601 = vmatpush.bf16.msra.mxu0 %v1208
    %1602 = vmatmul.bf16.gmra.mxu0 %v130
    %v1603 = vpop.f32.mrf.mxu0
    %v1604 = vadd.f32 %v1555, %v1603
    %v1605 = vpop.f32.mrf.mxu0
    %v1606 = vadd.f32 %v1557, %v1605
    %1607 = vmatmul.bf16.gmra.mxu0 %v133
    %v1608 = vpop.f32.mrf.mxu0
    %v1609 = vadd.f32 %v1560, %v1608
    %v1610 = vpop.f32.mrf.mxu0
    %v1611 = vadd.f32 %v1562, %v1610
    %1612 = vmatmul.bf16.gmra.mxu0 %v136
    %v1613 = vpop.f32.mrf.mxu0
    %v1614 = vadd.f32 %v1565, %v1613
    %v1615 = vpop.f32.mrf.mxu0
    %v1616 = vadd.f32 %v1567, %v1615
    %1617 = vmatmul.bf16.gmra.mxu0 %v139
    %v1618 = vpop.f32.mrf.mxu0
    %v1619 = vadd.f32 %v1570, %v1618
    %v1620 = vpop.f32.mrf.mxu0
    %v1621 = vadd.f32 %v1572, %v1620
    %1622 = vmatmul.bf16.gmra.mxu0 %v142
    %v1623 = vpop.f32.mrf.mxu0
    %v1624 = vadd.f32 %v1575, %v1623
    %v1625 = vpop.f32.mrf.mxu0
    %v1626 = vadd.f32 %v1577, %v1625
    %1627 = vmatmul.bf16.gmra.mxu0 %v145
    %v1628 = vpop.f32.mrf.mxu0
    %v1629 = vadd.f32 %v1580, %v1628
    %v1630 = vpop.f32.mrf.mxu0
    %v1631 = vadd.f32 %v1582, %v1630
    %1632 = vmatmul.bf16.gmra.mxu0 %v148
    %v1633 = vpop.f32.mrf.mxu0
    %v1634 = vadd.f32 %v1585, %v1633
    %v1635 = vpop.f32.mrf.mxu0
    %v1636 = vadd.f32 %v1587, %v1635
    %1637 = vmatmul.bf16.gmra.mxu0 %v151
    %v1638 = vpop.f32.mrf.mxu0
    %v1639 = vadd.f32 %v1590, %v1638
    %v1640 = vpop.f32.mrf.mxu0
    %v1641 = vadd.f32 %v1592, %v1640
    %1642 = vdwg.mxu0
    %1643 = vmatpush.bf16.msra.mxu0 %v1128
    %1644 = vmatpush.bf16.msra.mxu0 %v1119
    %1645 = vmatpush.bf16.msra.mxu0 %v1110
    %1646 = vmatpush.bf16.msra.mxu0 %v1101
    %1647 = vmatpush.bf16.msra.mxu0 %v1092
    %1648 = vmatpush.bf16.msra.mxu0 %v1083
    %1649 = vmatpush.bf16.msra.mxu0 %v1074
    %1650 = vmatpush.bf16.msra.mxu0 %v1065
    %1651 = vmatmul.bf16.gmra.mxu0 %v128
    %v1652 = vpop.f32.mrf.mxu0
    %v1653 = vadd.f32 0.0, %v1652
    %v1654 = vpop.f32.mrf.mxu0
    %v1655 = vadd.f32 0.0, %v1654
    %1656 = vmatmul.bf16.gmra.mxu0 %v131
    %v1657 = vpop.f32.mrf.mxu0
    %v1658 = vadd.f32 0.0, %v1657
    %v1659 = vpop.f32.mrf.mxu0
    %v1660 = vadd.f32 0.0, %v1659
    %1661 = vmatmul.bf16.gmra.mxu0 %v134
    %v1662 = vpop.f32.mrf.mxu0
    %v1663 = vadd.f32 0.0, %v1662
    %v1664 = vpop.f32.mrf.mxu0
    %v1665 = vadd.f32 0.0, %v1664
    %1666 = vmatmul.bf16.gmra.mxu0 %v137
    %v1667 = vpop.f32.mrf.mxu0
    %v1668 = vadd.f32 0.0, %v1667
    %v1669 = vpop.f32.mrf.mxu0
    %v1670 = vadd.f32 0.0, %v1669
    %1671 = vmatmul.bf16.gmra.mxu0 %v140
    %v1672 = vpop.f32.mrf.mxu0
    %v1673 = vadd.f32 0.0, %v1672
    %v1674 = vpop.f32.mrf.mxu0
    %v1675 = vadd.f32 0.0, %v1674
    %1676 = vmatmul.bf16.gmra.mxu0 %v143
    %v1677 = vpop.f32.mrf.mxu0
    %v1678 = vadd.f32 0.0, %v1677
    %v1679 = vpop.f32.mrf.mxu0
    %v1680 = vadd.f32 0.0, %v1679
    %1681 = vmatmul.bf16.gmra.mxu0 %v146
    %v1682 = vpop.f32.mrf.mxu0
    %v1683 = vadd.f32 0.0, %v1682
    %v1684 = vpop.f32.mrf.mxu0
    %v1685 = vadd.f32 0.0, %v1684
    %1686 = vmatmul.bf16.gmra.mxu0 %v149
    %v1687 = vpop.f32.mrf.mxu0
    %v1688 = vadd.f32 0.0, %v1687
    %v1689 = vpop.f32.mrf.mxu0
    %v1690 = vadd.f32 0.0, %v1689
    %1691 = vdwg.mxu0
    %1692 = vmatpush.bf16.msra.mxu0 %v1200
    %1693 = vmatpush.bf16.msra.mxu0 %v1191
    %1694 = vmatpush.bf16.msra.mxu0 %v1182
    %1695 = vmatpush.bf16.msra.mxu0 %v1173
    %1696 = vmatpush.bf16.msra.mxu0 %v1164
    %1697 = vmatpush.bf16.msra.mxu0 %v1155
    %1698 = vmatpush.bf16.msra.mxu0 %v1146
    %1699 = vmatpush.bf16.msra.mxu0 %v1137
    %1700 = vmatmul.bf16.gmra.mxu0 %v129
    %v1701 = vpop.f32.mrf.mxu0
    %v1702 = vadd.f32 %v1653, %v1701
    %v1703 = vpop.f32.mrf.mxu0
    %v1704 = vadd.f32 %v1655, %v1703
    %1705 = vmatmul.bf16.gmra.mxu0 %v132
    %v1706 = vpop.f32.mrf.mxu0
    %v1707 = vadd.f32 %v1658, %v1706
    %v1708 = vpop.f32.mrf.mxu0
    %v1709 = vadd.f32 %v1660, %v1708
    %1710 = vmatmul.bf16.gmra.mxu0 %v135
    %v1711 = vpop.f32.mrf.mxu0
    %v1712 = vadd.f32 %v1663, %v1711
    %v1713 = vpop.f32.mrf.mxu0
    %v1714 = vadd.f32 %v1665, %v1713
    %1715 = vmatmul.bf16.gmra.mxu0 %v138
    %v1716 = vpop.f32.mrf.mxu0
    %v1717 = vadd.f32 %v1668, %v1716
    %v1718 = vpop.f32.mrf.mxu0
    %v1719 = vadd.f32 %v1670, %v1718
    %1720 = vmatmul.bf16.gmra.mxu0 %v141
    %v1721 = vpop.f32.mrf.mxu0
    %v1722 = vadd.f32 %v1673, %v1721
    %v1723 = vpop.f32.mrf.mxu0
    %v1724 = vadd.f32 %v1675, %v1723
    %1725 = vmatmul.bf16.gmra.mxu0 %v144
    %v1726 = vpop.f32.mrf.mxu0
    %v1727 = vadd.f32 %v1678, %v1726
    %v1728 = vpop.f32.mrf.mxu0
    %v1729 = vadd.f32 %v1680, %v1728
    %1730 = vmatmul.bf16.gmra.mxu0 %v147
    %v1731 = vpop.f32.mrf.mxu0
    %v1732 = vadd.f32 %v1683, %v1731
    %v1733 = vpop.f32.mrf.mxu0
    %v1734 = vadd.f32 %v1685, %v1733
    %1735 = vmatmul.bf16.gmra.mxu0 %v150
    %v1736 = vpop.f32.mrf.mxu0
    %v1737 = vadd.f32 %v1688, %v1736
    %v1738 = vpop.f32.mrf.mxu0
    %v1739 = vadd.f32 %v1690, %v1738
    %1740 = vdwg.mxu0
    %1741 = vmatpush.bf16.msra.mxu0 %v1272
    %1742 = vmatpush.bf16.msra.mxu0 %v1263
    %1743 = vmatpush.bf16.msra.mxu0 %v1254
    %1744 = vmatpush.bf16.msra.mxu0 %v1245
    %1745 = vmatpush.bf16.msra.mxu0 %v1236
    %1746 = vmatpush.bf16.msra.mxu0 %v1227
    %1747 = vmatpush.bf16.msra.mxu0 %v1218
    %1748 = vmatpush.bf16.msra.mxu0 %v1209
    %1749 = vmatmul.bf16.gmra.mxu0 %v130
    %v1750 = vpop.f32.mrf.mxu0
    %v1751 = vadd.f32 %v1702, %v1750
    %v1752 = vpop.f32.mrf.mxu0
    %v1753 = vadd.f32 %v1704, %v1752
    %1754 = vmatmul.bf16.gmra.mxu0 %v133
    %v1755 = vpop.f32.mrf.mxu0
    %v1756 = vadd.f32 %v1707, %v1755
    %v1757 = vpop.f32.mrf.mxu0
    %v1758 = vadd.f32 %v1709, %v1757
    %1759 = vmatmul.bf16.gmra.mxu0 %v136
    %v1760 = vpop.f32.mrf.mxu0
    %v1761 = vadd.f32 %v1712, %v1760
    %v1762 = vpop.f32.mrf.mxu0
    %v1763 = vadd.f32 %v1714, %v1762
    %1764 = vmatmul.bf16.gmra.mxu0 %v139
    %v1765 = vpop.f32.mrf.mxu0
    %v1766 = vadd.f32 %v1717, %v1765
    %v1767 = vpop.f32.mrf.mxu0
    %v1768 = vadd.f32 %v1719, %v1767
    %1769 = vmatmul.bf16.gmra.mxu0 %v142
    %v1770 = vpop.f32.mrf.mxu0
    %v1771 = vadd.f32 %v1722, %v1770
    %v1772 = vpop.f32.mrf.mxu0
    %v1773 = vadd.f32 %v1724, %v1772
    %1774 = vmatmul.bf16.gmra.mxu0 %v145
    %v1775 = vpop.f32.mrf.mxu0
    %v1776 = vadd.f32 %v1727, %v1775
    %v1777 = vpop.f32.mrf.mxu0
    %v1778 = vadd.f32 %v1729, %v1777
    %1779 = vmatmul.bf16.gmra.mxu0 %v148
    %v1780 = vpop.f32.mrf.mxu0
    %v1781 = vadd.f32 %v1732, %v1780
    %v1782 = vpop.f32.mrf.mxu0
    %v1783 = vadd.f32 %v1734, %v1782
    %1784 = vmatmul.bf16.gmra.mxu0 %v151
    %v1785 = vpop.f32.mrf.mxu0
    %v1786 = vadd.f32 %v1737, %v1785
    %v1787 = vpop.f32.mrf.mxu0
    %v1788 = vadd.f32 %v1739, %v1787
    %1789 = vdwg.mxu0
    %1790 = vmatpush.bf16.msra.mxu0 %v1129
    %1791 = vmatpush.bf16.msra.mxu0 %v1120
    %1792 = vmatpush.bf16.msra.mxu0 %v1111
    %1793 = vmatpush.bf16.msra.mxu0 %v1102
    %1794 = vmatpush.bf16.msra.mxu0 %v1093
    %1795 = vmatpush.bf16.msra.mxu0 %v1084
    %1796 = vmatpush.bf16.msra.mxu0 %v1075
    %1797 = vmatpush.bf16.msra.mxu0 %v1066
    %1798 = vmatmul.bf16.gmra.mxu0 %v128
    %v1799 = vpop.f32.mrf.mxu0
    %v1800 = vadd.f32 0.0, %v1799
    %v1801 = vpop.f32.mrf.mxu0
    %v1802 = vadd.f32 0.0, %v1801
    %1803 = vmatmul.bf16.gmra.mxu0 %v131
    %v1804 = vpop.f32.mrf.mxu0
    %v1805 = vadd.f32 0.0, %v1804
    %v1806 = vpop.f32.mrf.mxu0
    %v1807 = vadd.f32 0.0, %v1806
    %1808 = vmatmul.bf16.gmra.mxu0 %v134
    %v1809 = vpop.f32.mrf.mxu0
    %v1810 = vadd.f32 0.0, %v1809
    %v1811 = vpop.f32.mrf.mxu0
    %v1812 = vadd.f32 0.0, %v1811
    %1813 = vmatmul.bf16.gmra.mxu0 %v137
    %v1814 = vpop.f32.mrf.mxu0
    %v1815 = vadd.f32 0.0, %v1814
    %v1816 = vpop.f32.mrf.mxu0
    %v1817 = vadd.f32 0.0, %v1816
    %1818 = vmatmul.bf16.gmra.mxu0 %v140
    %v1819 = vpop.f32.mrf.mxu0
    %v1820 = vadd.f32 0.0, %v1819
    %v1821 = vpop.f32.mrf.mxu0
    %v1822 = vadd.f32 0.0, %v1821
    %1823 = vmatmul.bf16.gmra.mxu0 %v143
    %v1824 = vpop.f32.mrf.mxu0
    %v1825 = vadd.f32 0.0, %v1824
    %v1826 = vpop.f32.mrf.mxu0
    %v1827 = vadd.f32 0.0, %v1826
    %1828 = vmatmul.bf16.gmra.mxu0 %v146
    %v1829 = vpop.f32.mrf.mxu0
    %v1830 = vadd.f32 0.0, %v1829
    %v1831 = vpop.f32.mrf.mxu0
    %v1832 = vadd.f32 0.0, %v1831
    %1833 = vmatmul.bf16.gmra.mxu0 %v149
    %v1834 = vpop.f32.mrf.mxu0
    %v1835 = vadd.f32 0.0, %v1834
    %v1836 = vpop.f32.mrf.mxu0
    %v1837 = vadd.f32 0.0, %v1836
    %1838 = vdwg.mxu0
    %1839 = vmatpush.bf16.msra.mxu0 %v1201
    %1840 = vmatpush.bf16.msra.mxu0 %v1192
    %1841 = vmatpush.bf16.msra.mxu0 %v1183
    %1842 = vmatpush.bf16.msra.mxu0 %v1174
    %1843 = vmatpush.bf16.msra.mxu0 %v1165
    %1844 = vmatpush.bf16.msra.mxu0 %v1156
    %1845 = vmatpush.bf16.msra.mxu0 %v1147
    %1846 = vmatpush.bf16.msra.mxu0 %v1138
    %1847 = vmatmul.bf16.gmra.mxu0 %v129
    %v1848 = vpop.f32.mrf.mxu0
    %v1849 = vadd.f32 %v1800, %v1848
    %v1850 = vpop.f32.mrf.mxu0
    %v1851 = vadd.f32 %v1802, %v1850
    %1852 = vmatmul.bf16.gmra.mxu0 %v132
    %v1853 = vpop.f32.mrf.mxu0
    %v1854 = vadd.f32 %v1805, %v1853
    %v1855 = vpop.f32.mrf.mxu0
    %v1856 = vadd.f32 %v1807, %v1855
    %1857 = vmatmul.bf16.gmra.mxu0 %v135
    %v1858 = vpop.f32.mrf.mxu0
    %v1859 = vadd.f32 %v1810, %v1858
    %v1860 = vpop.f32.mrf.mxu0
    %v1861 = vadd.f32 %v1812, %v1860
    %1862 = vmatmul.bf16.gmra.mxu0 %v138
    %v1863 = vpop.f32.mrf.mxu0
    %v1864 = vadd.f32 %v1815, %v1863
    %v1865 = vpop.f32.mrf.mxu0
    %v1866 = vadd.f32 %v1817, %v1865
    %1867 = vmatmul.bf16.gmra.mxu0 %v141
    %v1868 = vpop.f32.mrf.mxu0
    %v1869 = vadd.f32 %v1820, %v1868
    %v1870 = vpop.f32.mrf.mxu0
    %v1871 = vadd.f32 %v1822, %v1870
    %1872 = vmatmul.bf16.gmra.mxu0 %v144
    %v1873 = vpop.f32.mrf.mxu0
    %v1874 = vadd.f32 %v1825, %v1873
    %v1875 = vpop.f32.mrf.mxu0
    %v1876 = vadd.f32 %v1827, %v1875
    %1877 = vmatmul.bf16.gmra.mxu0 %v147
    %v1878 = vpop.f32.mrf.mxu0
    %v1879 = vadd.f32 %v1830, %v1878
    %v1880 = vpop.f32.mrf.mxu0
    %v1881 = vadd.f32 %v1832, %v1880
    %1882 = vmatmul.bf16.gmra.mxu0 %v150
    %v1883 = vpop.f32.mrf.mxu0
    %v1884 = vadd.f32 %v1835, %v1883
    %v1885 = vpop.f32.mrf.mxu0
    %v1886 = vadd.f32 %v1837, %v1885
    %1887 = vdwg.mxu0
    %1888 = vmatpush.bf16.msra.mxu0 %v1273
    %1889 = vmatpush.bf16.msra.mxu0 %v1264
    %1890 = vmatpush.bf16.msra.mxu0 %v1255
    %1891 = vmatpush.bf16.msra.mxu0 %v1246
    %1892 = vmatpush.bf16.msra.mxu0 %v1237
    %1893 = vmatpush.bf16.msra.mxu0 %v1228
    %1894 = vmatpush.bf16.msra.mxu0 %v1219
    %1895 = vmatpush.bf16.msra.mxu0 %v1210
    %1896 = vmatmul.bf16.gmra.mxu0 %v130
    %v1897 = vpop.f32.mrf.mxu0
    %v1898 = vadd.f32 %v1849, %v1897
    %v1899 = vpop.f32.mrf.mxu0
    %v1900 = vadd.f32 %v1851, %v1899
    %1901 = vmatmul.bf16.gmra.mxu0 %v133
    %v1902 = vpop.f32.mrf.mxu0
    %v1903 = vadd.f32 %v1854, %v1902
    %v1904 = vpop.f32.mrf.mxu0
    %v1905 = vadd.f32 %v1856, %v1904
    %1906 = vmatmul.bf16.gmra.mxu0 %v136
    %v1907 = vpop.f32.mrf.mxu0
    %v1908 = vadd.f32 %v1859, %v1907
    %v1909 = vpop.f32.mrf.mxu0
    %v1910 = vadd.f32 %v1861, %v1909
    %1911 = vmatmul.bf16.gmra.mxu0 %v139
    %v1912 = vpop.f32.mrf.mxu0
    %v1913 = vadd.f32 %v1864, %v1912
    %v1914 = vpop.f32.mrf.mxu0
    %v1915 = vadd.f32 %v1866, %v1914
    %1916 = vmatmul.bf16.gmra.mxu0 %v142
    %v1917 = vpop.f32.mrf.mxu0
    %v1918 = vadd.f32 %v1869, %v1917
    %v1919 = vpop.f32.mrf.mxu0
    %v1920 = vadd.f32 %v1871, %v1919
    %1921 = vmatmul.bf16.gmra.mxu0 %v145
    %v1922 = vpop.f32.mrf.mxu0
    %v1923 = vadd.f32 %v1874, %v1922
    %v1924 = vpop.f32.mrf.mxu0
    %v1925 = vadd.f32 %v1876, %v1924
    %1926 = vmatmul.bf16.gmra.mxu0 %v148
    %v1927 = vpop.f32.mrf.mxu0
    %v1928 = vadd.f32 %v1879, %v1927
    %v1929 = vpop.f32.mrf.mxu0
    %v1930 = vadd.f32 %v1881, %v1929
    %1931 = vmatmul.bf16.gmra.mxu0 %v151
    %v1932 = vpop.f32.mrf.mxu0
    %v1933 = vadd.f32 %v1884, %v1932
    %v1934 = vpop.f32.mrf.mxu0
    %v1935 = vadd.f32 %v1886, %v1934
    %1936 = vdwg.mxu0
    %1937 = vmatpush.bf16.msra.mxu0 %v1130
    %1938 = vmatpush.bf16.msra.mxu0 %v1121
    %1939 = vmatpush.bf16.msra.mxu0 %v1112
    %1940 = vmatpush.bf16.msra.mxu0 %v1103
    %1941 = vmatpush.bf16.msra.mxu0 %v1094
    %1942 = vmatpush.bf16.msra.mxu0 %v1085
    %1943 = vmatpush.bf16.msra.mxu0 %v1076
    %1944 = vmatpush.bf16.msra.mxu0 %v1067
    %1945 = vmatmul.bf16.gmra.mxu0 %v128
    %v1946 = vpop.f32.mrf.mxu0
    %v1947 = vadd.f32 0.0, %v1946
    %v1948 = vpop.f32.mrf.mxu0
    %v1949 = vadd.f32 0.0, %v1948
    %1950 = vmatmul.bf16.gmra.mxu0 %v131
    %v1951 = vpop.f32.mrf.mxu0
    %v1952 = vadd.f32 0.0, %v1951
    %v1953 = vpop.f32.mrf.mxu0
    %v1954 = vadd.f32 0.0, %v1953
    %1955 = vmatmul.bf16.gmra.mxu0 %v134
    %v1956 = vpop.f32.mrf.mxu0
    %v1957 = vadd.f32 0.0, %v1956
    %v1958 = vpop.f32.mrf.mxu0
    %v1959 = vadd.f32 0.0, %v1958
    %1960 = vmatmul.bf16.gmra.mxu0 %v137
    %v1961 = vpop.f32.mrf.mxu0
    %v1962 = vadd.f32 0.0, %v1961
    %v1963 = vpop.f32.mrf.mxu0
    %v1964 = vadd.f32 0.0, %v1963
    %1965 = vmatmul.bf16.gmra.mxu0 %v140
    %v1966 = vpop.f32.mrf.mxu0
    %v1967 = vadd.f32 0.0, %v1966
    %v1968 = vpop.f32.mrf.mxu0
    %v1969 = vadd.f32 0.0, %v1968
    %1970 = vmatmul.bf16.gmra.mxu0 %v143
    %v1971 = vpop.f32.mrf.mxu0
    %v1972 = vadd.f32 0.0, %v1971
    %v1973 = vpop.f32.mrf.mxu0
    %v1974 = vadd.f32 0.0, %v1973
    %1975 = vmatmul.bf16.gmra.mxu0 %v146
    %v1976 = vpop.f32.mrf.mxu0
    %v1977 = vadd.f32 0.0, %v1976
    %v1978 = vpop.f32.mrf.mxu0
    %v1979 = vadd.f32 0.0, %v1978
    %1980 = vmatmul.bf16.gmra.mxu0 %v149
    %v1981 = vpop.f32.mrf.mxu0
    %v1982 = vadd.f32 0.0, %v1981
    %v1983 = vpop.f32.mrf.mxu0
    %v1984 = vadd.f32 0.0, %v1983
    %1985 = vdwg.mxu0
    %1986 = vmatpush.bf16.msra.mxu0 %v1202
    %1987 = vmatpush.bf16.msra.mxu0 %v1193
    %1988 = vmatpush.bf16.msra.mxu0 %v1184
    %1989 = vmatpush.bf16.msra.mxu0 %v1175
    %1990 = vmatpush.bf16.msra.mxu0 %v1166
    %1991 = vmatpush.bf16.msra.mxu0 %v1157
    %1992 = vmatpush.bf16.msra.mxu0 %v1148
    %1993 = vmatpush.bf16.msra.mxu0 %v1139
    %1994 = vmatmul.bf16.gmra.mxu0 %v129
    %v1995 = vpop.f32.mrf.mxu0
    %v1996 = vadd.f32 %v1947, %v1995
    %v1997 = vpop.f32.mrf.mxu0
    %v1998 = vadd.f32 %v1949, %v1997
    %1999 = vmatmul.bf16.gmra.mxu0 %v132
    %v2000 = vpop.f32.mrf.mxu0
    %v2001 = vadd.f32 %v1952, %v2000
    %v2002 = vpop.f32.mrf.mxu0
    %v2003 = vadd.f32 %v1954, %v2002
    %2004 = vmatmul.bf16.gmra.mxu0 %v135
    %v2005 = vpop.f32.mrf.mxu0
    %v2006 = vadd.f32 %v1957, %v2005
    %v2007 = vpop.f32.mrf.mxu0
    %v2008 = vadd.f32 %v1959, %v2007
    %2009 = vmatmul.bf16.gmra.mxu0 %v138
    %v2010 = vpop.f32.mrf.mxu0
    %v2011 = vadd.f32 %v1962, %v2010
    %v2012 = vpop.f32.mrf.mxu0
    %v2013 = vadd.f32 %v1964, %v2012
    %2014 = vmatmul.bf16.gmra.mxu0 %v141
    %v2015 = vpop.f32.mrf.mxu0
    %v2016 = vadd.f32 %v1967, %v2015
    %v2017 = vpop.f32.mrf.mxu0
    %v2018 = vadd.f32 %v1969, %v2017
    %2019 = vmatmul.bf16.gmra.mxu0 %v144
    %v2020 = vpop.f32.mrf.mxu0
    %v2021 = vadd.f32 %v1972, %v2020
    %v2022 = vpop.f32.mrf.mxu0
    %v2023 = vadd.f32 %v1974, %v2022
    %2024 = vmatmul.bf16.gmra.mxu0 %v147
    %v2025 = vpop.f32.mrf.mxu0
    %v2026 = vadd.f32 %v1977, %v2025
    %v2027 = vpop.f32.mrf.mxu0
    %v2028 = vadd.f32 %v1979, %v2027
    %2029 = vmatmul.bf16.gmra.mxu0 %v150
    %v2030 = vpop.f32.mrf.mxu0
    %v2031 = vadd.f32 %v1982, %v2030
    %v2032 = vpop.f32.mrf.mxu0
    %v2033 = vadd.f32 %v1984, %v2032
    %2034 = vdwg.mxu0
    %2035 = vmatpush.bf16.msra.mxu0 %v1274
    %2036 = vmatpush.bf16.msra.mxu0 %v1265
    %2037 = vmatpush.bf16.msra.mxu0 %v1256
    %2038 = vmatpush.bf16.msra.mxu0 %v1247
    %2039 = vmatpush.bf16.msra.mxu0 %v1238
    %2040 = vmatpush.bf16.msra.mxu0 %v1229
    %2041 = vmatpush.bf16.msra.mxu0 %v1220
    %2042 = vmatpush.bf16.msra.mxu0 %v1211
    %2043 = vmatmul.bf16.gmra.mxu0 %v130
    %v2044 = vpop.f32.mrf.mxu0
    %v2045 = vadd.f32 %v1996, %v2044
    %v2046 = vpop.f32.mrf.mxu0
    %v2047 = vadd.f32 %v1998, %v2046
    %2048 = vmatmul.bf16.gmra.mxu0 %v133
    %v2049 = vpop.f32.mrf.mxu0
    %v2050 = vadd.f32 %v2001, %v2049
    %v2051 = vpop.f32.mrf.mxu0
    %v2052 = vadd.f32 %v2003, %v2051
    %2053 = vmatmul.bf16.gmra.mxu0 %v136
    %v2054 = vpop.f32.mrf.mxu0
    %v2055 = vadd.f32 %v2006, %v2054
    %v2056 = vpop.f32.mrf.mxu0
    %v2057 = vadd.f32 %v2008, %v2056
    %2058 = vmatmul.bf16.gmra.mxu0 %v139
    %v2059 = vpop.f32.mrf.mxu0
    %v2060 = vadd.f32 %v2011, %v2059
    %v2061 = vpop.f32.mrf.mxu0
    %v2062 = vadd.f32 %v2013, %v2061
    %2063 = vmatmul.bf16.gmra.mxu0 %v142
    %v2064 = vpop.f32.mrf.mxu0
    %v2065 = vadd.f32 %v2016, %v2064
    %v2066 = vpop.f32.mrf.mxu0
    %v2067 = vadd.f32 %v2018, %v2066
    %2068 = vmatmul.bf16.gmra.mxu0 %v145
    %v2069 = vpop.f32.mrf.mxu0
    %v2070 = vadd.f32 %v2021, %v2069
    %v2071 = vpop.f32.mrf.mxu0
    %v2072 = vadd.f32 %v2023, %v2071
    %2073 = vmatmul.bf16.gmra.mxu0 %v148
    %v2074 = vpop.f32.mrf.mxu0
    %v2075 = vadd.f32 %v2026, %v2074
    %v2076 = vpop.f32.mrf.mxu0
    %v2077 = vadd.f32 %v2028, %v2076
    %2078 = vmatmul.bf16.gmra.mxu0 %v151
    %v2079 = vpop.f32.mrf.mxu0
    %v2080 = vadd.f32 %v2031, %v2079
    %v2081 = vpop.f32.mrf.mxu0
    %v2082 = vadd.f32 %v2033, %v2081
    %2083 = vdwg.mxu0
    %2084 = vmatpush.bf16.msra.mxu0 %v1131
    %2085 = vmatpush.bf16.msra.mxu0 %v1122
    %2086 = vmatpush.bf16.msra.mxu0 %v1113
    %2087 = vmatpush.bf16.msra.mxu0 %v1104
    %2088 = vmatpush.bf16.msra.mxu0 %v1095
    %2089 = vmatpush.bf16.msra.mxu0 %v1086
    %2090 = vmatpush.bf16.msra.mxu0 %v1077
    %2091 = vmatpush.bf16.msra.mxu0 %v1068
    %2092 = vmatmul.bf16.gmra.mxu0 %v128
    %v2093 = vpop.f32.mrf.mxu0
    %v2094 = vadd.f32 0.0, %v2093
    %v2095 = vpop.f32.mrf.mxu0
    %v2096 = vadd.f32 0.0, %v2095
    %2097 = vmatmul.bf16.gmra.mxu0 %v131
    %v2098 = vpop.f32.mrf.mxu0
    %v2099 = vadd.f32 0.0, %v2098
    %v2100 = vpop.f32.mrf.mxu0
    %v2101 = vadd.f32 0.0, %v2100
    %2102 = vmatmul.bf16.gmra.mxu0 %v134
    %v2103 = vpop.f32.mrf.mxu0
    %v2104 = vadd.f32 0.0, %v2103
    %v2105 = vpop.f32.mrf.mxu0
    %v2106 = vadd.f32 0.0, %v2105
    %2107 = vmatmul.bf16.gmra.mxu0 %v137
    %v2108 = vpop.f32.mrf.mxu0
    %v2109 = vadd.f32 0.0, %v2108
    %v2110 = vpop.f32.mrf.mxu0
    %v2111 = vadd.f32 0.0, %v2110
    %2112 = vmatmul.bf16.gmra.mxu0 %v140
    %v2113 = vpop.f32.mrf.mxu0
    %v2114 = vadd.f32 0.0, %v2113
    %v2115 = vpop.f32.mrf.mxu0
    %v2116 = vadd.f32 0.0, %v2115
    %2117 = vmatmul.bf16.gmra.mxu0 %v143
    %v2118 = vpop.f32.mrf.mxu0
    %v2119 = vadd.f32 0.0, %v2118
    %v2120 = vpop.f32.mrf.mxu0
    %v2121 = vadd.f32 0.0, %v2120
    %2122 = vmatmul.bf16.gmra.mxu0 %v146
    %v2123 = vpop.f32.mrf.mxu0
    %v2124 = vadd.f32 0.0, %v2123
    %v2125 = vpop.f32.mrf.mxu0
    %v2126 = vadd.f32 0.0, %v2125
    %2127 = vmatmul.bf16.gmra.mxu0 %v149
    %v2128 = vpop.f32.mrf.mxu0
    %v2129 = vadd.f32 0.0, %v2128
    %v2130 = vpop.f32.mrf.mxu0
    %v2131 = vadd.f32 0.0, %v2130
    %2132 = vdwg.mxu0
    %2133 = vmatpush.bf16.msra.mxu0 %v1203
    %2134 = vmatpush.bf16.msra.mxu0 %v1194
    %2135 = vmatpush.bf16.msra.mxu0 %v1185
    %2136 = vmatpush.bf16.msra.mxu0 %v1176
    %2137 = vmatpush.bf16.msra.mxu0 %v1167
    %2138 = vmatpush.bf16.msra.mxu0 %v1158
    %2139 = vmatpush.bf16.msra.mxu0 %v1149
    %2140 = vmatpush.bf16.msra.mxu0 %v1140
    %2141 = vmatmul.bf16.gmra.mxu0 %v129
    %v2142 = vpop.f32.mrf.mxu0
    %v2143 = vadd.f32 %v2094, %v2142
    %v2144 = vpop.f32.mrf.mxu0
    %v2145 = vadd.f32 %v2096, %v2144
    %2146 = vmatmul.bf16.gmra.mxu0 %v132
    %v2147 = vpop.f32.mrf.mxu0
    %v2148 = vadd.f32 %v2099, %v2147
    %v2149 = vpop.f32.mrf.mxu0
    %v2150 = vadd.f32 %v2101, %v2149
    %2151 = vmatmul.bf16.gmra.mxu0 %v135
    %v2152 = vpop.f32.mrf.mxu0
    %v2153 = vadd.f32 %v2104, %v2152
    %v2154 = vpop.f32.mrf.mxu0
    %v2155 = vadd.f32 %v2106, %v2154
    %2156 = vmatmul.bf16.gmra.mxu0 %v138
    %v2157 = vpop.f32.mrf.mxu0
    %v2158 = vadd.f32 %v2109, %v2157
    %v2159 = vpop.f32.mrf.mxu0
    %v2160 = vadd.f32 %v2111, %v2159
    %2161 = vmatmul.bf16.gmra.mxu0 %v141
    %v2162 = vpop.f32.mrf.mxu0
    %v2163 = vadd.f32 %v2114, %v2162
    %v2164 = vpop.f32.mrf.mxu0
    %v2165 = vadd.f32 %v2116, %v2164
    %2166 = vmatmul.bf16.gmra.mxu0 %v144
    %v2167 = vpop.f32.mrf.mxu0
    %v2168 = vadd.f32 %v2119, %v2167
    %v2169 = vpop.f32.mrf.mxu0
    %v2170 = vadd.f32 %v2121, %v2169
    %2171 = vmatmul.bf16.gmra.mxu0 %v147
    %v2172 = vpop.f32.mrf.mxu0
    %v2173 = vadd.f32 %v2124, %v2172
    %v2174 = vpop.f32.mrf.mxu0
    %v2175 = vadd.f32 %v2126, %v2174
    %2176 = vmatmul.bf16.gmra.mxu0 %v150
    %v2177 = vpop.f32.mrf.mxu0
    %v2178 = vadd.f32 %v2129, %v2177
    %v2179 = vpop.f32.mrf.mxu0
    %v2180 = vadd.f32 %v2131, %v2179
    %2181 = vdwg.mxu0
    %2182 = vmatpush.bf16.msra.mxu0 %v1275
    %2183 = vmatpush.bf16.msra.mxu0 %v1266
    %2184 = vmatpush.bf16.msra.mxu0 %v1257
    %2185 = vmatpush.bf16.msra.mxu0 %v1248
    %2186 = vmatpush.bf16.msra.mxu0 %v1239
    %2187 = vmatpush.bf16.msra.mxu0 %v1230
    %2188 = vmatpush.bf16.msra.mxu0 %v1221
    %2189 = vmatpush.bf16.msra.mxu0 %v1212
    %2190 = vmatmul.bf16.gmra.mxu0 %v130
    %v2191 = vpop.f32.mrf.mxu0
    %v2192 = vadd.f32 %v2143, %v2191
    %v2193 = vpop.f32.mrf.mxu0
    %v2194 = vadd.f32 %v2145, %v2193
    %2195 = vmatmul.bf16.gmra.mxu0 %v133
    %v2196 = vpop.f32.mrf.mxu0
    %v2197 = vadd.f32 %v2148, %v2196
    %v2198 = vpop.f32.mrf.mxu0
    %v2199 = vadd.f32 %v2150, %v2198
    %2200 = vmatmul.bf16.gmra.mxu0 %v136
    %v2201 = vpop.f32.mrf.mxu0
    %v2202 = vadd.f32 %v2153, %v2201
    %v2203 = vpop.f32.mrf.mxu0
    %v2204 = vadd.f32 %v2155, %v2203
    %2205 = vmatmul.bf16.gmra.mxu0 %v139
    %v2206 = vpop.f32.mrf.mxu0
    %v2207 = vadd.f32 %v2158, %v2206
    %v2208 = vpop.f32.mrf.mxu0
    %v2209 = vadd.f32 %v2160, %v2208
    %2210 = vmatmul.bf16.gmra.mxu0 %v142
    %v2211 = vpop.f32.mrf.mxu0
    %v2212 = vadd.f32 %v2163, %v2211
    %v2213 = vpop.f32.mrf.mxu0
    %v2214 = vadd.f32 %v2165, %v2213
    %2215 = vmatmul.bf16.gmra.mxu0 %v145
    %v2216 = vpop.f32.mrf.mxu0
    %v2217 = vadd.f32 %v2168, %v2216
    %v2218 = vpop.f32.mrf.mxu0
    %v2219 = vadd.f32 %v2170, %v2218
    %2220 = vmatmul.bf16.gmra.mxu0 %v148
    %v2221 = vpop.f32.mrf.mxu0
    %v2222 = vadd.f32 %v2173, %v2221
    %v2223 = vpop.f32.mrf.mxu0
    %v2224 = vadd.f32 %v2175, %v2223
    %2225 = vmatmul.bf16.gmra.mxu0 %v151
    %v2226 = vpop.f32.mrf.mxu0
    %v2227 = vadd.f32 %v2178, %v2226
    %v2228 = vpop.f32.mrf.mxu0
    %v2229 = vadd.f32 %v2180, %v2228
    %2230 = vdwg.mxu0
    %2231 = vmatpush.bf16.msra.mxu0 %v1132
    %2232 = vmatpush.bf16.msra.mxu0 %v1123
    %2233 = vmatpush.bf16.msra.mxu0 %v1114
    %2234 = vmatpush.bf16.msra.mxu0 %v1105
    %2235 = vmatpush.bf16.msra.mxu0 %v1096
    %2236 = vmatpush.bf16.msra.mxu0 %v1087
    %2237 = vmatpush.bf16.msra.mxu0 %v1078
    %2238 = vmatpush.bf16.msra.mxu0 %v1069
    %2239 = vmatmul.bf16.gmra.mxu0 %v128
    %v2240 = vpop.f32.mrf.mxu0
    %v2241 = vadd.f32 0.0, %v2240
    %v2242 = vpop.f32.mrf.mxu0
    %v2243 = vadd.f32 0.0, %v2242
    %2244 = vmatmul.bf16.gmra.mxu0 %v131
    %v2245 = vpop.f32.mrf.mxu0
    %v2246 = vadd.f32 0.0, %v2245
    %v2247 = vpop.f32.mrf.mxu0
    %v2248 = vadd.f32 0.0, %v2247
    %2249 = vmatmul.bf16.gmra.mxu0 %v134
    %v2250 = vpop.f32.mrf.mxu0
    %v2251 = vadd.f32 0.0, %v2250
    %v2252 = vpop.f32.mrf.mxu0
    %v2253 = vadd.f32 0.0, %v2252
    %2254 = vmatmul.bf16.gmra.mxu0 %v137
    %v2255 = vpop.f32.mrf.mxu0
    %v2256 = vadd.f32 0.0, %v2255
    %v2257 = vpop.f32.mrf.mxu0
    %v2258 = vadd.f32 0.0, %v2257
    %2259 = vmatmul.bf16.gmra.mxu0 %v140
    %v2260 = vpop.f32.mrf.mxu0
    %v2261 = vadd.f32 0.0, %v2260
    %v2262 = vpop.f32.mrf.mxu0
    %v2263 = vadd.f32 0.0, %v2262
    %2264 = vmatmul.bf16.gmra.mxu0 %v143
    %v2265 = vpop.f32.mrf.mxu0
    %v2266 = vadd.f32 0.0, %v2265
    %v2267 = vpop.f32.mrf.mxu0
    %v2268 = vadd.f32 0.0, %v2267
    %2269 = vmatmul.bf16.gmra.mxu0 %v146
    %v2270 = vpop.f32.mrf.mxu0
    %v2271 = vadd.f32 0.0, %v2270
    %v2272 = vpop.f32.mrf.mxu0
    %v2273 = vadd.f32 0.0, %v2272
    %2274 = vmatmul.bf16.gmra.mxu0 %v149
    %v2275 = vpop.f32.mrf.mxu0
    %v2276 = vadd.f32 0.0, %v2275
    %v2277 = vpop.f32.mrf.mxu0
    %v2278 = vadd.f32 0.0, %v2277
    %2279 = vdwg.mxu0
    %2280 = vmatpush.bf16.msra.mxu0 %v1204
    %2281 = vmatpush.bf16.msra.mxu0 %v1195
    %2282 = vmatpush.bf16.msra.mxu0 %v1186
    %2283 = vmatpush.bf16.msra.mxu0 %v1177
    %2284 = vmatpush.bf16.msra.mxu0 %v1168
    %2285 = vmatpush.bf16.msra.mxu0 %v1159
    %2286 = vmatpush.bf16.msra.mxu0 %v1150
    %2287 = vmatpush.bf16.msra.mxu0 %v1141
    %2288 = vmatmul.bf16.gmra.mxu0 %v129
    %v2289 = vpop.f32.mrf.mxu0
    %v2290 = vadd.f32 %v2241, %v2289
    %v2291 = vpop.f32.mrf.mxu0
    %v2292 = vadd.f32 %v2243, %v2291
    %2293 = vmatmul.bf16.gmra.mxu0 %v132
    %v2294 = vpop.f32.mrf.mxu0
    %v2295 = vadd.f32 %v2246, %v2294
    %v2296 = vpop.f32.mrf.mxu0
    %v2297 = vadd.f32 %v2248, %v2296
    %2298 = vmatmul.bf16.gmra.mxu0 %v135
    %v2299 = vpop.f32.mrf.mxu0
    %v2300 = vadd.f32 %v2251, %v2299
    %v2301 = vpop.f32.mrf.mxu0
    %v2302 = vadd.f32 %v2253, %v2301
    %2303 = vmatmul.bf16.gmra.mxu0 %v138
    %v2304 = vpop.f32.mrf.mxu0
    %v2305 = vadd.f32 %v2256, %v2304
    %v2306 = vpop.f32.mrf.mxu0
    %v2307 = vadd.f32 %v2258, %v2306
    %2308 = vmatmul.bf16.gmra.mxu0 %v141
    %v2309 = vpop.f32.mrf.mxu0
    %v2310 = vadd.f32 %v2261, %v2309
    %v2311 = vpop.f32.mrf.mxu0
    %v2312 = vadd.f32 %v2263, %v2311
    %2313 = vmatmul.bf16.gmra.mxu0 %v144
    %v2314 = vpop.f32.mrf.mxu0
    %v2315 = vadd.f32 %v2266, %v2314
    %v2316 = vpop.f32.mrf.mxu0
    %v2317 = vadd.f32 %v2268, %v2316
    %2318 = vmatmul.bf16.gmra.mxu0 %v147
    %v2319 = vpop.f32.mrf.mxu0
    %v2320 = vadd.f32 %v2271, %v2319
    %v2321 = vpop.f32.mrf.mxu0
    %v2322 = vadd.f32 %v2273, %v2321
    %2323 = vmatmul.bf16.gmra.mxu0 %v150
    %v2324 = vpop.f32.mrf.mxu0
    %v2325 = vadd.f32 %v2276, %v2324
    %v2326 = vpop.f32.mrf.mxu0
    %v2327 = vadd.f32 %v2278, %v2326
    %2328 = vdwg.mxu0
    %2329 = vmatpush.bf16.msra.mxu0 %v1276
    %2330 = vmatpush.bf16.msra.mxu0 %v1267
    %2331 = vmatpush.bf16.msra.mxu0 %v1258
    %2332 = vmatpush.bf16.msra.mxu0 %v1249
    %2333 = vmatpush.bf16.msra.mxu0 %v1240
    %2334 = vmatpush.bf16.msra.mxu0 %v1231
    %2335 = vmatpush.bf16.msra.mxu0 %v1222
    %2336 = vmatpush.bf16.msra.mxu0 %v1213
    %2337 = vmatmul.bf16.gmra.mxu0 %v130
    %v2338 = vpop.f32.mrf.mxu0
    %v2339 = vadd.f32 %v2290, %v2338
    %v2340 = vpop.f32.mrf.mxu0
    %v2341 = vadd.f32 %v2292, %v2340
    %2342 = vmatmul.bf16.gmra.mxu0 %v133
    %v2343 = vpop.f32.mrf.mxu0
    %v2344 = vadd.f32 %v2295, %v2343
    %v2345 = vpop.f32.mrf.mxu0
    %v2346 = vadd.f32 %v2297, %v2345
    %2347 = vmatmul.bf16.gmra.mxu0 %v136
    %v2348 = vpop.f32.mrf.mxu0
    %v2349 = vadd.f32 %v2300, %v2348
    %v2350 = vpop.f32.mrf.mxu0
    %v2351 = vadd.f32 %v2302, %v2350
    %2352 = vmatmul.bf16.gmra.mxu0 %v139
    %v2353 = vpop.f32.mrf.mxu0
    %v2354 = vadd.f32 %v2305, %v2353
    %v2355 = vpop.f32.mrf.mxu0
    %v2356 = vadd.f32 %v2307, %v2355
    %2357 = vmatmul.bf16.gmra.mxu0 %v142
    %v2358 = vpop.f32.mrf.mxu0
    %v2359 = vadd.f32 %v2310, %v2358
    %v2360 = vpop.f32.mrf.mxu0
    %v2361 = vadd.f32 %v2312, %v2360
    %2362 = vmatmul.bf16.gmra.mxu0 %v145
    %v2363 = vpop.f32.mrf.mxu0
    %v2364 = vadd.f32 %v2315, %v2363
    %v2365 = vpop.f32.mrf.mxu0
    %v2366 = vadd.f32 %v2317, %v2365
    %2367 = vmatmul.bf16.gmra.mxu0 %v148
    %v2368 = vpop.f32.mrf.mxu0
    %v2369 = vadd.f32 %v2320, %v2368
    %v2370 = vpop.f32.mrf.mxu0
    %v2371 = vadd.f32 %v2322, %v2370
    %2372 = vmatmul.bf16.gmra.mxu0 %v151
    %v2373 = vpop.f32.mrf.mxu0
    %v2374 = vadd.f32 %v2325, %v2373
    %v2375 = vpop.f32.mrf.mxu0
    %v2376 = vadd.f32 %v2327, %v2375
    %2377 = vdwg.mxu0
    %2378 = vmatpush.bf16.msra.mxu0 %v1133
    %2379 = vmatpush.bf16.msra.mxu0 %v1124
    %2380 = vmatpush.bf16.msra.mxu0 %v1115
    %2381 = vmatpush.bf16.msra.mxu0 %v1106
    %2382 = vmatpush.bf16.msra.mxu0 %v1097
    %2383 = vmatpush.bf16.msra.mxu0 %v1088
    %2384 = vmatpush.bf16.msra.mxu0 %v1079
    %2385 = vmatpush.bf16.msra.mxu0 %v1070
    %2386 = vmatmul.bf16.gmra.mxu0 %v128
    %v2387 = vpop.f32.mrf.mxu0
    %v2388 = vadd.f32 0.0, %v2387
    %v2389 = vpop.f32.mrf.mxu0
    %v2390 = vadd.f32 0.0, %v2389
    %2391 = vmatmul.bf16.gmra.mxu0 %v131
    %v2392 = vpop.f32.mrf.mxu0
    %v2393 = vadd.f32 0.0, %v2392
    %v2394 = vpop.f32.mrf.mxu0
    %v2395 = vadd.f32 0.0, %v2394
    %2396 = vmatmul.bf16.gmra.mxu0 %v134
    %v2397 = vpop.f32.mrf.mxu0
    %v2398 = vadd.f32 0.0, %v2397
    %v2399 = vpop.f32.mrf.mxu0
    %v2400 = vadd.f32 0.0, %v2399
    %2401 = vmatmul.bf16.gmra.mxu0 %v137
    %v2402 = vpop.f32.mrf.mxu0
    %v2403 = vadd.f32 0.0, %v2402
    %v2404 = vpop.f32.mrf.mxu0
    %v2405 = vadd.f32 0.0, %v2404
    %2406 = vmatmul.bf16.gmra.mxu0 %v140
    %v2407 = vpop.f32.mrf.mxu0
    %v2408 = vadd.f32 0.0, %v2407
    %v2409 = vpop.f32.mrf.mxu0
    %v2410 = vadd.f32 0.0, %v2409
    %2411 = vmatmul.bf16.gmra.mxu0 %v143
    %v2412 = vpop.f32.mrf.mxu0
    %v2413 = vadd.f32 0.0, %v2412
    %v2414 = vpop.f32.mrf.mxu0
    %v2415 = vadd.f32 0.0, %v2414
    %2416 = vmatmul.bf16.gmra.mxu0 %v146
    %v2417 = vpop.f32.mrf.mxu0
    %v2418 = vadd.f32 0.0, %v2417
    %v2419 = vpop.f32.mrf.mxu0
    %v2420 = vadd.f32 0.0, %v2419
    %2421 = vmatmul.bf16.gmra.mxu0 %v149
    %v2422 = vpop.f32.mrf.mxu0
    %v2423 = vadd.f32 0.0, %v2422
    %v2424 = vpop.f32.mrf.mxu0
    %v2425 = vadd.f32 0.0, %v2424
    %2426 = vdwg.mxu0
    %2427 = vmatpush.bf16.msra.mxu0 %v1205
    %2428 = vmatpush.bf16.msra.mxu0 %v1196
    %2429 = vmatpush.bf16.msra.mxu0 %v1187
    %2430 = vmatpush.bf16.msra.mxu0 %v1178
    %2431 = vmatpush.bf16.msra.mxu0 %v1169
    %2432 = vmatpush.bf16.msra.mxu0 %v1160
    %2433 = vmatpush.bf16.msra.mxu0 %v1151
    %2434 = vmatpush.bf16.msra.mxu0 %v1142
    %2435 = vmatmul.bf16.gmra.mxu0 %v129
    %v2436 = vpop.f32.mrf.mxu0
    %v2437 = vadd.f32 %v2388, %v2436
    %v2438 = vpop.f32.mrf.mxu0
    %v2439 = vadd.f32 %v2390, %v2438
    %2440 = vmatmul.bf16.gmra.mxu0 %v132
    %v2441 = vpop.f32.mrf.mxu0
    %v2442 = vadd.f32 %v2393, %v2441
    %v2443 = vpop.f32.mrf.mxu0
    %v2444 = vadd.f32 %v2395, %v2443
    %2445 = vmatmul.bf16.gmra.mxu0 %v135
    %v2446 = vpop.f32.mrf.mxu0
    %v2447 = vadd.f32 %v2398, %v2446
    %v2448 = vpop.f32.mrf.mxu0
    %v2449 = vadd.f32 %v2400, %v2448
    %2450 = vmatmul.bf16.gmra.mxu0 %v138
    %v2451 = vpop.f32.mrf.mxu0
    %v2452 = vadd.f32 %v2403, %v2451
    %v2453 = vpop.f32.mrf.mxu0
    %v2454 = vadd.f32 %v2405, %v2453
    %2455 = vmatmul.bf16.gmra.mxu0 %v141
    %v2456 = vpop.f32.mrf.mxu0
    %v2457 = vadd.f32 %v2408, %v2456
    %v2458 = vpop.f32.mrf.mxu0
    %v2459 = vadd.f32 %v2410, %v2458
    %2460 = vmatmul.bf16.gmra.mxu0 %v144
    %v2461 = vpop.f32.mrf.mxu0
    %v2462 = vadd.f32 %v2413, %v2461
    %v2463 = vpop.f32.mrf.mxu0
    %v2464 = vadd.f32 %v2415, %v2463
    %2465 = vmatmul.bf16.gmra.mxu0 %v147
    %v2466 = vpop.f32.mrf.mxu0
    %v2467 = vadd.f32 %v2418, %v2466
    %v2468 = vpop.f32.mrf.mxu0
    %v2469 = vadd.f32 %v2420, %v2468
    %2470 = vmatmul.bf16.gmra.mxu0 %v150
    %v2471 = vpop.f32.mrf.mxu0
    %v2472 = vadd.f32 %v2423, %v2471
    %v2473 = vpop.f32.mrf.mxu0
    %v2474 = vadd.f32 %v2425, %v2473
    %2475 = vdwg.mxu0
    %2476 = vmatpush.bf16.msra.mxu0 %v1277
    %2477 = vmatpush.bf16.msra.mxu0 %v1268
    %2478 = vmatpush.bf16.msra.mxu0 %v1259
    %2479 = vmatpush.bf16.msra.mxu0 %v1250
    %2480 = vmatpush.bf16.msra.mxu0 %v1241
    %2481 = vmatpush.bf16.msra.mxu0 %v1232
    %2482 = vmatpush.bf16.msra.mxu0 %v1223
    %2483 = vmatpush.bf16.msra.mxu0 %v1214
    %2484 = vmatmul.bf16.gmra.mxu0 %v130
    %v2485 = vpop.f32.mrf.mxu0
    %v2486 = vadd.f32 %v2437, %v2485
    %v2487 = vpop.f32.mrf.mxu0
    %v2488 = vadd.f32 %v2439, %v2487
    %2489 = vmatmul.bf16.gmra.mxu0 %v133
    %v2490 = vpop.f32.mrf.mxu0
    %v2491 = vadd.f32 %v2442, %v2490
    %v2492 = vpop.f32.mrf.mxu0
    %v2493 = vadd.f32 %v2444, %v2492
    %2494 = vmatmul.bf16.gmra.mxu0 %v136
    %v2495 = vpop.f32.mrf.mxu0
    %v2496 = vadd.f32 %v2447, %v2495
    %v2497 = vpop.f32.mrf.mxu0
    %v2498 = vadd.f32 %v2449, %v2497
    %2499 = vmatmul.bf16.gmra.mxu0 %v139
    %v2500 = vpop.f32.mrf.mxu0
    %v2501 = vadd.f32 %v2452, %v2500
    %v2502 = vpop.f32.mrf.mxu0
    %v2503 = vadd.f32 %v2454, %v2502
    %2504 = vmatmul.bf16.gmra.mxu0 %v142
    %v2505 = vpop.f32.mrf.mxu0
    %v2506 = vadd.f32 %v2457, %v2505
    %v2507 = vpop.f32.mrf.mxu0
    %v2508 = vadd.f32 %v2459, %v2507
    %2509 = vmatmul.bf16.gmra.mxu0 %v145
    %v2510 = vpop.f32.mrf.mxu0
    %v2511 = vadd.f32 %v2462, %v2510
    %v2512 = vpop.f32.mrf.mxu0
    %v2513 = vadd.f32 %v2464, %v2512
    %2514 = vmatmul.bf16.gmra.mxu0 %v148
    %v2515 = vpop.f32.mrf.mxu0
    %v2516 = vadd.f32 %v2467, %v2515
    %v2517 = vpop.f32.mrf.mxu0
    %v2518 = vadd.f32 %v2469, %v2517
    %2519 = vmatmul.bf16.gmra.mxu0 %v151
    %v2520 = vpop.f32.mrf.mxu0
    %v2521 = vadd.f32 %v2472, %v2520
    %v2522 = vpop.f32.mrf.mxu0
    %v2523 = vadd.f32 %v2474, %v2522
    %2524 = vdwg.mxu0
    %2525 = vmatpush.bf16.msra.mxu0 %v1134
    %2526 = vmatpush.bf16.msra.mxu0 %v1125
    %2527 = vmatpush.bf16.msra.mxu0 %v1116
    %2528 = vmatpush.bf16.msra.mxu0 %v1107
    %2529 = vmatpush.bf16.msra.mxu0 %v1098
    %2530 = vmatpush.bf16.msra.mxu0 %v1089
    %2531 = vmatpush.bf16.msra.mxu0 %v1080
    %2532 = vmatpush.bf16.msra.mxu0 %v1071
    %2533 = vmatmul.bf16.gmra.mxu0 %v128
    %v2534 = vpop.f32.mrf.mxu0
    %v2535 = vadd.f32 0.0, %v2534
    %v2536 = vpop.f32.mrf.mxu0
    %v2537 = vadd.f32 0.0, %v2536
    %2538 = vmatmul.bf16.gmra.mxu0 %v131
    %v2539 = vpop.f32.mrf.mxu0
    %v2540 = vadd.f32 0.0, %v2539
    %v2541 = vpop.f32.mrf.mxu0
    %v2542 = vadd.f32 0.0, %v2541
    %2543 = vmatmul.bf16.gmra.mxu0 %v134
    %v2544 = vpop.f32.mrf.mxu0
    %v2545 = vadd.f32 0.0, %v2544
    %v2546 = vpop.f32.mrf.mxu0
    %v2547 = vadd.f32 0.0, %v2546
    %2548 = vmatmul.bf16.gmra.mxu0 %v137
    %v2549 = vpop.f32.mrf.mxu0
    %v2550 = vadd.f32 0.0, %v2549
    %v2551 = vpop.f32.mrf.mxu0
    %v2552 = vadd.f32 0.0, %v2551
    %2553 = vmatmul.bf16.gmra.mxu0 %v140
    %v2554 = vpop.f32.mrf.mxu0
    %v2555 = vadd.f32 0.0, %v2554
    %v2556 = vpop.f32.mrf.mxu0
    %v2557 = vadd.f32 0.0, %v2556
    %2558 = vmatmul.bf16.gmra.mxu0 %v143
    %v2559 = vpop.f32.mrf.mxu0
    %v2560 = vadd.f32 0.0, %v2559
    %v2561 = vpop.f32.mrf.mxu0
    %v2562 = vadd.f32 0.0, %v2561
    %2563 = vmatmul.bf16.gmra.mxu0 %v146
    %v2564 = vpop.f32.mrf.mxu0
    %v2565 = vadd.f32 0.0, %v2564
    %v2566 = vpop.f32.mrf.mxu0
    %v2567 = vadd.f32 0.0, %v2566
    %2568 = vmatmul.bf16.gmra.mxu0 %v149
    %v2569 = vpop.f32.mrf.mxu0
    %v2570 = vadd.f32 0.0, %v2569
    %v2571 = vpop.f32.mrf.mxu0
    %v2572 = vadd.f32 0.0, %v2571
    %2573 = vdwg.mxu0
    %2574 = vmatpush.bf16.msra.mxu0 %v1206
    %2575 = vmatpush.bf16.msra.mxu0 %v1197
    %2576 = vmatpush.bf16.msra.mxu0 %v1188
    %2577 = vmatpush.bf16.msra.mxu0 %v1179
    %2578 = vmatpush.bf16.msra.mxu0 %v1170
    %2579 = vmatpush.bf16.msra.mxu0 %v1161
    %2580 = vmatpush.bf16.msra.mxu0 %v1152
    %2581 = vmatpush.bf16.msra.mxu0 %v1143
    %2582 = vmatmul.bf16.gmra.mxu0 %v129
    %v2583 = vpop.f32.mrf.mxu0
    %v2584 = vadd.f32 %v2535, %v2583
    %v2585 = vpop.f32.mrf.mxu0
    %v2586 = vadd.f32 %v2537, %v2585
    %2587 = vmatmul.bf16.gmra.mxu0 %v132
    %v2588 = vpop.f32.mrf.mxu0
    %v2589 = vadd.f32 %v2540, %v2588
    %v2590 = vpop.f32.mrf.mxu0
    %v2591 = vadd.f32 %v2542, %v2590
    %2592 = vmatmul.bf16.gmra.mxu0 %v135
    %v2593 = vpop.f32.mrf.mxu0
    %v2594 = vadd.f32 %v2545, %v2593
    %v2595 = vpop.f32.mrf.mxu0
    %v2596 = vadd.f32 %v2547, %v2595
    %2597 = vmatmul.bf16.gmra.mxu0 %v138
    %v2598 = vpop.f32.mrf.mxu0
    %v2599 = vadd.f32 %v2550, %v2598
    %v2600 = vpop.f32.mrf.mxu0
    %v2601 = vadd.f32 %v2552, %v2600
    %2602 = vmatmul.bf16.gmra.mxu0 %v141
    %v2603 = vpop.f32.mrf.mxu0
    %v2604 = vadd.f32 %v2555, %v2603
    %v2605 = vpop.f32.mrf.mxu0
    %v2606 = vadd.f32 %v2557, %v2605
    %2607 = vmatmul.bf16.gmra.mxu0 %v144
    %v2608 = vpop.f32.mrf.mxu0
    %v2609 = vadd.f32 %v2560, %v2608
    %v2610 = vpop.f32.mrf.mxu0
    %v2611 = vadd.f32 %v2562, %v2610
    %2612 = vmatmul.bf16.gmra.mxu0 %v147
    %v2613 = vpop.f32.mrf.mxu0
    %v2614 = vadd.f32 %v2565, %v2613
    %v2615 = vpop.f32.mrf.mxu0
    %v2616 = vadd.f32 %v2567, %v2615
    %2617 = vmatmul.bf16.gmra.mxu0 %v150
    %v2618 = vpop.f32.mrf.mxu0
    %v2619 = vadd.f32 %v2570, %v2618
    %v2620 = vpop.f32.mrf.mxu0
    %v2621 = vadd.f32 %v2572, %v2620
    %2622 = vdwg.mxu0
    %2623 = vmatpush.bf16.msra.mxu0 %v1278
    %2624 = vmatpush.bf16.msra.mxu0 %v1269
    %2625 = vmatpush.bf16.msra.mxu0 %v1260
    %2626 = vmatpush.bf16.msra.mxu0 %v1251
    %2627 = vmatpush.bf16.msra.mxu0 %v1242
    %2628 = vmatpush.bf16.msra.mxu0 %v1233
    %2629 = vmatpush.bf16.msra.mxu0 %v1224
    %2630 = vmatpush.bf16.msra.mxu0 %v1215
    %2631 = vmatmul.bf16.gmra.mxu0 %v130
    %v2632 = vpop.f32.mrf.mxu0
    %v2633 = vadd.f32 %v2584, %v2632
    %v2634 = vpop.f32.mrf.mxu0
    %v2635 = vadd.f32 %v2586, %v2634
    %2636 = vmatmul.bf16.gmra.mxu0 %v133
    %v2637 = vpop.f32.mrf.mxu0
    %v2638 = vadd.f32 %v2589, %v2637
    %v2639 = vpop.f32.mrf.mxu0
    %v2640 = vadd.f32 %v2591, %v2639
    %2641 = vmatmul.bf16.gmra.mxu0 %v136
    %v2642 = vpop.f32.mrf.mxu0
    %v2643 = vadd.f32 %v2594, %v2642
    %v2644 = vpop.f32.mrf.mxu0
    %v2645 = vadd.f32 %v2596, %v2644
    %2646 = vmatmul.bf16.gmra.mxu0 %v139
    %v2647 = vpop.f32.mrf.mxu0
    %v2648 = vadd.f32 %v2599, %v2647
    %v2649 = vpop.f32.mrf.mxu0
    %v2650 = vadd.f32 %v2601, %v2649
    %2651 = vmatmul.bf16.gmra.mxu0 %v142
    %v2652 = vpop.f32.mrf.mxu0
    %v2653 = vadd.f32 %v2604, %v2652
    %v2654 = vpop.f32.mrf.mxu0
    %v2655 = vadd.f32 %v2606, %v2654
    %2656 = vmatmul.bf16.gmra.mxu0 %v145
    %v2657 = vpop.f32.mrf.mxu0
    %v2658 = vadd.f32 %v2609, %v2657
    %v2659 = vpop.f32.mrf.mxu0
    %v2660 = vadd.f32 %v2611, %v2659
    %2661 = vmatmul.bf16.gmra.mxu0 %v148
    %v2662 = vpop.f32.mrf.mxu0
    %v2663 = vadd.f32 %v2614, %v2662
    %v2664 = vpop.f32.mrf.mxu0
    %v2665 = vadd.f32 %v2616, %v2664
    %2666 = vmatmul.bf16.gmra.mxu0 %v151
    %v2667 = vpop.f32.mrf.mxu0
    %v2668 = vadd.f32 %v2619, %v2667
    %v2669 = vpop.f32.mrf.mxu0
    %v2670 = vadd.f32 %v2621, %v2669
    %2671 = vdwg.mxu0
    %2672 = vmatpush.bf16.msra.mxu0 %v1135
    %2673 = vmatpush.bf16.msra.mxu0 %v1126
    %2674 = vmatpush.bf16.msra.mxu0 %v1117
    %2675 = vmatpush.bf16.msra.mxu0 %v1108
    %2676 = vmatpush.bf16.msra.mxu0 %v1099
    %2677 = vmatpush.bf16.msra.mxu0 %v1090
    %2678 = vmatpush.bf16.msra.mxu0 %v1081
    %2679 = vmatpush.bf16.msra.mxu0 %v1072
    %2680 = vmatmul.bf16.gmra.mxu0 %v128
    %v2681 = vpop.f32.mrf.mxu0
    %v2682 = vadd.f32 0.0, %v2681
    %v2683 = vpop.f32.mrf.mxu0
    %v2684 = vadd.f32 0.0, %v2683
    %2685 = vmatmul.bf16.gmra.mxu0 %v131
    %v2686 = vpop.f32.mrf.mxu0
    %v2687 = vadd.f32 0.0, %v2686
    %v2688 = vpop.f32.mrf.mxu0
    %v2689 = vadd.f32 0.0, %v2688
    %2690 = vmatmul.bf16.gmra.mxu0 %v134
    %v2691 = vpop.f32.mrf.mxu0
    %v2692 = vadd.f32 0.0, %v2691
    %v2693 = vpop.f32.mrf.mxu0
    %v2694 = vadd.f32 0.0, %v2693
    %2695 = vmatmul.bf16.gmra.mxu0 %v137
    %v2696 = vpop.f32.mrf.mxu0
    %v2697 = vadd.f32 0.0, %v2696
    %v2698 = vpop.f32.mrf.mxu0
    %v2699 = vadd.f32 0.0, %v2698
    %2700 = vmatmul.bf16.gmra.mxu0 %v140
    %v2701 = vpop.f32.mrf.mxu0
    %v2702 = vadd.f32 0.0, %v2701
    %v2703 = vpop.f32.mrf.mxu0
    %v2704 = vadd.f32 0.0, %v2703
    %2705 = vmatmul.bf16.gmra.mxu0 %v143
    %v2706 = vpop.f32.mrf.mxu0
    %v2707 = vadd.f32 0.0, %v2706
    %v2708 = vpop.f32.mrf.mxu0
    %v2709 = vadd.f32 0.0, %v2708
    %2710 = vmatmul.bf16.gmra.mxu0 %v146
    %v2711 = vpop.f32.mrf.mxu0
    %v2712 = vadd.f32 0.0, %v2711
    %v2713 = vpop.f32.mrf.mxu0
    %v2714 = vadd.f32 0.0, %v2713
    %2715 = vmatmul.bf16.gmra.mxu0 %v149
    %v2716 = vpop.f32.mrf.mxu0
    %v2717 = vadd.f32 0.0, %v2716
    %v2718 = vpop.f32.mrf.mxu0
    %v2719 = vadd.f32 0.0, %v2718
    %2720 = vdwg.mxu0
    %2721 = vmatpush.bf16.msra.mxu0 %v1207
    %2722 = vmatpush.bf16.msra.mxu0 %v1198
    %2723 = vmatpush.bf16.msra.mxu0 %v1189
    %2724 = vmatpush.bf16.msra.mxu0 %v1180
    %2725 = vmatpush.bf16.msra.mxu0 %v1171
    %2726 = vmatpush.bf16.msra.mxu0 %v1162
    %2727 = vmatpush.bf16.msra.mxu0 %v1153
    %2728 = vmatpush.bf16.msra.mxu0 %v1144
    %2729 = vmatmul.bf16.gmra.mxu0 %v129
    %v2730 = vpop.f32.mrf.mxu0
    %v2731 = vadd.f32 %v2682, %v2730
    %v2732 = vpop.f32.mrf.mxu0
    %v2733 = vadd.f32 %v2684, %v2732
    %2734 = vmatmul.bf16.gmra.mxu0 %v132
    %v2735 = vpop.f32.mrf.mxu0
    %v2736 = vadd.f32 %v2687, %v2735
    %v2737 = vpop.f32.mrf.mxu0
    %v2738 = vadd.f32 %v2689, %v2737
    %2739 = vmatmul.bf16.gmra.mxu0 %v135
    %v2740 = vpop.f32.mrf.mxu0
    %v2741 = vadd.f32 %v2692, %v2740
    %v2742 = vpop.f32.mrf.mxu0
    %v2743 = vadd.f32 %v2694, %v2742
    %2744 = vmatmul.bf16.gmra.mxu0 %v138
    %v2745 = vpop.f32.mrf.mxu0
    %v2746 = vadd.f32 %v2697, %v2745
    %v2747 = vpop.f32.mrf.mxu0
    %v2748 = vadd.f32 %v2699, %v2747
    %2749 = vmatmul.bf16.gmra.mxu0 %v141
    %v2750 = vpop.f32.mrf.mxu0
    %v2751 = vadd.f32 %v2702, %v2750
    %v2752 = vpop.f32.mrf.mxu0
    %v2753 = vadd.f32 %v2704, %v2752
    %2754 = vmatmul.bf16.gmra.mxu0 %v144
    %v2755 = vpop.f32.mrf.mxu0
    %v2756 = vadd.f32 %v2707, %v2755
    %v2757 = vpop.f32.mrf.mxu0
    %v2758 = vadd.f32 %v2709, %v2757
    %2759 = vmatmul.bf16.gmra.mxu0 %v147
    %v2760 = vpop.f32.mrf.mxu0
    %v2761 = vadd.f32 %v2712, %v2760
    %v2762 = vpop.f32.mrf.mxu0
    %v2763 = vadd.f32 %v2714, %v2762
    %2764 = vmatmul.bf16.gmra.mxu0 %v150
    %v2765 = vpop.f32.mrf.mxu0
    %v2766 = vadd.f32 %v2717, %v2765
    %v2767 = vpop.f32.mrf.mxu0
    %v2768 = vadd.f32 %v2719, %v2767
    %2769 = vdwg.mxu0
    %2770 = vmatpush.bf16.msra.mxu0 %v1279
    %2771 = vmatpush.bf16.msra.mxu0 %v1270
    %2772 = vmatpush.bf16.msra.mxu0 %v1261
    %2773 = vmatpush.bf16.msra.mxu0 %v1252
    %2774 = vmatpush.bf16.msra.mxu0 %v1243
    %2775 = vmatpush.bf16.msra.mxu0 %v1234
    %2776 = vmatpush.bf16.msra.mxu0 %v1225
    %2777 = vmatpush.bf16.msra.mxu0 %v1216
    %2778 = vmatmul.bf16.gmra.mxu0 %v130
    %v2779 = vpop.f32.mrf.mxu0
    %v2780 = vadd.f32 %v2731, %v2779
    %v2781 = vpop.f32.mrf.mxu0
    %v2782 = vadd.f32 %v2733, %v2781
    %2783 = vmatmul.bf16.gmra.mxu0 %v133
    %v2784 = vpop.f32.mrf.mxu0
    %v2785 = vadd.f32 %v2736, %v2784
    %v2786 = vpop.f32.mrf.mxu0
    %v2787 = vadd.f32 %v2738, %v2786
    %2788 = vmatmul.bf16.gmra.mxu0 %v136
    %v2789 = vpop.f32.mrf.mxu0
    %v2790 = vadd.f32 %v2741, %v2789
    %v2791 = vpop.f32.mrf.mxu0
    %v2792 = vadd.f32 %v2743, %v2791
    %2793 = vmatmul.bf16.gmra.mxu0 %v139
    %v2794 = vpop.f32.mrf.mxu0
    %v2795 = vadd.f32 %v2746, %v2794
    %v2796 = vpop.f32.mrf.mxu0
    %v2797 = vadd.f32 %v2748, %v2796
    %2798 = vmatmul.bf16.gmra.mxu0 %v142
    %v2799 = vpop.f32.mrf.mxu0
    %v2800 = vadd.f32 %v2751, %v2799
    %v2801 = vpop.f32.mrf.mxu0
    %v2802 = vadd.f32 %v2753, %v2801
    %2803 = vmatmul.bf16.gmra.mxu0 %v145
    %v2804 = vpop.f32.mrf.mxu0
    %v2805 = vadd.f32 %v2756, %v2804
    %v2806 = vpop.f32.mrf.mxu0
    %v2807 = vadd.f32 %v2758, %v2806
    %2808 = vmatmul.bf16.gmra.mxu0 %v148
    %v2809 = vpop.f32.mrf.mxu0
    %v2810 = vadd.f32 %v2761, %v2809
    %v2811 = vpop.f32.mrf.mxu0
    %v2812 = vadd.f32 %v2763, %v2811
    %2813 = vmatmul.bf16.gmra.mxu0 %v151
    %v2814 = vpop.f32.mrf.mxu0
    %v2815 = vadd.f32 %v2766, %v2814
    %v2816 = vpop.f32.mrf.mxu0
    %v2817 = vadd.f32 %v2768, %v2816
    %2818 = vdwg.mxu0
    %v2819 = vpack.c.bf16 %v1751, %v1604
    %v2820 = vpack.c.bf16 %v2045, %v1898
    %v2821 = vpack.c.bf16 %v2339, %v2192
    %v2822 = vpack.c.bf16 %v2633, %v2486
    %v2823 = vpack.c.bf16 %v2780, %v2780
    %v2824 = vpack.c.bf16 %v1753, %v1606
    %v2825 = vpack.c.bf16 %v2047, %v1900
    %v2826 = vpack.c.bf16 %v2341, %v2194
    %v2827 = vpack.c.bf16 %v2635, %v2488
    %v2828 = vpack.c.bf16 %v2782, %v2782
    %v2829 = vpack.c.bf16 %v1756, %v1609
    %v2830 = vpack.c.bf16 %v2050, %v1903
    %v2831 = vpack.c.bf16 %v2344, %v2197
    %v2832 = vpack.c.bf16 %v2638, %v2491
    %v2833 = vpack.c.bf16 %v2785, %v2785
    %v2834 = vpack.c.bf16 %v1758, %v1611
    %v2835 = vpack.c.bf16 %v2052, %v1905
    %v2836 = vpack.c.bf16 %v2346, %v2199
    %v2837 = vpack.c.bf16 %v2640, %v2493
    %v2838 = vpack.c.bf16 %v2787, %v2787
    %v2839 = vpack.c.bf16 %v1761, %v1614
    %v2840 = vpack.c.bf16 %v2055, %v1908
    %v2841 = vpack.c.bf16 %v2349, %v2202
    %v2842 = vpack.c.bf16 %v2643, %v2496
    %v2843 = vpack.c.bf16 %v2790, %v2790
    %v2844 = vpack.c.bf16 %v1763, %v1616
    %v2845 = vpack.c.bf16 %v2057, %v1910
    %v2846 = vpack.c.bf16 %v2351, %v2204
    %v2847 = vpack.c.bf16 %v2645, %v2498
    %v2848 = vpack.c.bf16 %v2792, %v2792
    %v2849 = vpack.c.bf16 %v1766, %v1619
    %v2850 = vpack.c.bf16 %v2060, %v1913
    %v2851 = vpack.c.bf16 %v2354, %v2207
    %v2852 = vpack.c.bf16 %v2648, %v2501
    %v2853 = vpack.c.bf16 %v2795, %v2795
    %v2854 = vpack.c.bf16 %v1768, %v1621
    %v2855 = vpack.c.bf16 %v2062, %v1915
    %v2856 = vpack.c.bf16 %v2356, %v2209
    %v2857 = vpack.c.bf16 %v2650, %v2503
    %v2858 = vpack.c.bf16 %v2797, %v2797
    %v2859 = vpack.c.bf16 %v1771, %v1624
    %v2860 = vpack.c.bf16 %v2065, %v1918
    %v2861 = vpack.c.bf16 %v2359, %v2212
    %v2862 = vpack.c.bf16 %v2653, %v2506
    %v2863 = vpack.c.bf16 %v2800, %v2800
    %v2864 = vpack.c.bf16 %v1773, %v1626
    %v2865 = vpack.c.bf16 %v2067, %v1920
    %v2866 = vpack.c.bf16 %v2361, %v2214
    %v2867 = vpack.c.bf16 %v2655, %v2508
    %v2868 = vpack.c.bf16 %v2802, %v2802
    %v2869 = vpack.c.bf16 %v1776, %v1629
    %v2870 = vpack.c.bf16 %v2070, %v1923
    %v2871 = vpack.c.bf16 %v2364, %v2217
    %v2872 = vpack.c.bf16 %v2658, %v2511
    %v2873 = vpack.c.bf16 %v2805, %v2805
    %v2874 = vpack.c.bf16 %v1778, %v1631
    %v2875 = vpack.c.bf16 %v2072, %v1925
    %v2876 = vpack.c.bf16 %v2366, %v2219
    %v2877 = vpack.c.bf16 %v2660, %v2513
    %v2878 = vpack.c.bf16 %v2807, %v2807
    %v2879 = vpack.c.bf16 %v1781, %v1634
    %v2880 = vpack.c.bf16 %v2075, %v1928
    %v2881 = vpack.c.bf16 %v2369, %v2222
    %v2882 = vpack.c.bf16 %v2663, %v2516
    %v2883 = vpack.c.bf16 %v2810, %v2810
    %v2884 = vpack.c.bf16 %v1783, %v1636
    %v2885 = vpack.c.bf16 %v2077, %v1930
    %v2886 = vpack.c.bf16 %v2371, %v2224
    %v2887 = vpack.c.bf16 %v2665, %v2518
    %v2888 = vpack.c.bf16 %v2812, %v2812
    %v2889 = vpack.c.bf16 %v1786, %v1639
    %v2890 = vpack.c.bf16 %v2080, %v1933
    %v2891 = vpack.c.bf16 %v2374, %v2227
    %v2892 = vpack.c.bf16 %v2668, %v2521
    %v2893 = vpack.c.bf16 %v2815, %v2815
    %v2894 = vpack.c.bf16 %v1788, %v1641
    %v2895 = vpack.c.bf16 %v2082, %v1935
    %v2896 = vpack.c.bf16 %v2376, %v2229
    %v2897 = vpack.c.bf16 %v2670, %v2523
    %v2898 = vpack.c.bf16 %v2817, %v2817
    %v2899 = vlaneseq
    %v2900 = vshrl.u32 %v2899, 7
    %v2901 = vadd.s32 %v2900, 8
    %v2902 = vadd.s32 %v2900, 16
    %v2903 = vadd.s32 %v2900, 24
    %v2904 = vadd.s32 %v2900, 32
    %v2905 = vadd.s32 %v2900, 40
    %v2906 = vadd.s32 %v2900, 48
    %v2907 = vadd.s32 %v2900, 56
    %v2908 = vlaneseq
    %v2909 = vand.u32 %v2908, 127
    %vm2910 = vcmp.ge.s32.totalorder %v2900, %v2909
    %vm2911 = vcmp.ge.s32.totalorder %v2901, %v2909
    %vm2912 = vcmp.ge.s32.totalorder %v2902, %v2909
    %vm2913 = vcmp.ge.s32.totalorder %v2903, %v2909
    %vm2914 = vcmp.ge.s32.totalorder %v2904, %v2909
    %vm2915 = vcmp.ge.s32.totalorder %v2905, %v2909
    %vm2916 = vcmp.ge.s32.totalorder %v2906, %v2909
    %vm2917 = vcmp.ge.s32.totalorder %v2907, %v2909
    %v2918 = vld [vmem:[#allocation7] sm:$0xff]
    %v2919 = vld [vmem:[#allocation7 + $0x8] sm:$0xf]
    %v2920 = vld [vmem:[#allocation7 + $0xc] sm:$0xff]
    %v2921 = vld [vmem:[#allocation7 + $0x14] sm:$0xf]
    %v2922 = vld [vmem:[#allocation7 + $0x18] sm:$0xff]
    %v2923 = vld [vmem:[#allocation7 + $0x20] sm:$0xf]
    %v2924 = vld [vmem:[#allocation7 + $0x24] sm:$0xff]
    %v2925 = vld [vmem:[#allocation7 + $0x2c] sm:$0xf]
    %v2926 = vld [vmem:[#allocation7 + $0x30] sm:$0xff]
    %v2927 = vld [vmem:[#allocation7 + $0x38] sm:$0xf]
    %v2928 = vld [vmem:[#allocation7 + $0x3c] sm:$0xff]
    %v2929 = vld [vmem:[#allocation7 + $0x44] sm:$0xf]
    %v2930 = vld [vmem:[#allocation7 + $0x48] sm:$0xff]
    %v2931 = vld [vmem:[#allocation7 + $0x50] sm:$0xf]
    %v2932 = vld [vmem:[#allocation7 + $0x54] sm:$0xff]
    %v2933 = vld [vmem:[#allocation7 + $0x5c] sm:$0xf]
    %v2934 = vld [vmem:[#allocation7 + $0x60] sm:$0xff]
    %v2935 = vld [vmem:[#allocation7 + $0x68] sm:$0xf]
    %v2936 = vld [vmem:[#allocation7 + $0x6c] sm:$0xff]
    %v2937 = vld [vmem:[#allocation7 + $0x74] sm:$0xf]
    %v2938 = vld [vmem:[#allocation7 + $0x78] sm:$0xff]
    %v2939 = vld [vmem:[#allocation7 + $0x80] sm:$0xf]
    %v2940 = vld [vmem:[#allocation7 + $0x84] sm:$0xff]
    %v2941 = vld [vmem:[#allocation7 + $0x8c] sm:$0xf]
    %v2942 = vld [vmem:[#allocation7 + $0x90] sm:$0xff]
    %v2943 = vld [vmem:[#allocation7 + $0x98] sm:$0xf]
    %v2944 = vld [vmem:[#allocation7 + $0x9c] sm:$0xff]
    %v2945 = vld [vmem:[#allocation7 + $0xa4] sm:$0xf]
    %v2946 = vld [vmem:[#allocation7 + $0xa8] sm:$0xff]
    %v2947 = vld [vmem:[#allocation7 + $0xb0] sm:$0xf]
    %v2948 = vld [vmem:[#allocation7 + $0xb4] sm:$0xff]
    %v2949 = vld [vmem:[#allocation7 + $0xbc] sm:$0xf]
    %v2950 = vld [vmem:[#allocation7 + $0xc0] sm:$0xff]
    %v2951 = vld [vmem:[#allocation7 + $0xc8] sm:$0xf]
    %v2952 = vld [vmem:[#allocation7 + $0xcc] sm:$0xff]
    %v2953 = vld [vmem:[#allocation7 + $0xd4] sm:$0xf]
    %v2954 = vld [vmem:[#allocation7 + $0xd8] sm:$0xff]
    %v2955 = vld [vmem:[#allocation7 + $0xe0] sm:$0xf]
    %v2956 = vld [vmem:[#allocation7 + $0xe4] sm:$0xff]
    %v2957 = vld [vmem:[#allocation7 + $0xec] sm:$0xf]
    %v2958 = vld [vmem:[#allocation7 + $0xf0] sm:$0xff]
    %v2959 = vld [vmem:[#allocation7 + $0xf8] sm:$0xf]
    %v2960 = vld [vmem:[#allocation7 + $0xfc] sm:$0xff]
    %v2961 = vld [vmem:[#allocation7 + $0x104] sm:$0xf]
    %v2962 = vld [vmem:[#allocation7 + $0x108] sm:$0xff]
    %v2963 = vld [vmem:[#allocation7 + $0x110] sm:$0xf]
    %v2964 = vld [vmem:[#allocation7 + $0x114] sm:$0xff]
    %v2965 = vld [vmem:[#allocation7 + $0x11c] sm:$0xf]
    %v2966 = vld [vmem:[#allocation7 + $0x120] sm:$0xff]
    %v2967 = vld [vmem:[#allocation7 + $0x128] sm:$0xf]
    %v2968 = vld [vmem:[#allocation7 + $0x12c] sm:$0xff]
    %v2969 = vld [vmem:[#allocation7 + $0x134] sm:$0xf]
    %v2970 = vld [vmem:[#allocation7 + $0x138] sm:$0xff]
    %v2971 = vld [vmem:[#allocation7 + $0x140] sm:$0xf]
    %v2972 = vld [vmem:[#allocation7 + $0x144] sm:$0xff]
    %v2973 = vld [vmem:[#allocation7 + $0x14c] sm:$0xf]
    %v2974 = vld [vmem:[#allocation7 + $0x150] sm:$0xff]
    %v2975 = vld [vmem:[#allocation7 + $0x158] sm:$0xf]
    %v2976 = vld [vmem:[#allocation7 + $0x15c] sm:$0xff]
    %v2977 = vld [vmem:[#allocation7 + $0x164] sm:$0xf]
    %v2978 = vld [vmem:[#allocation7 + $0x168] sm:$0xff]
    %v2979 = vld [vmem:[#allocation7 + $0x170] sm:$0xf]
    %v2980 = vld [vmem:[#allocation7 + $0x174] sm:$0xff]
    %v2981 = vld [vmem:[#allocation7 + $0x17c] sm:$0xf]
    %v2982 = vld [vmem:[#allocation7 + $0x180] sm:$0xff]
    %v2983 = vld [vmem:[#allocation7 + $0x188] sm:$0xf]
    %v2984 = vld [vmem:[#allocation7 + $0x18c] sm:$0xff]
    %v2985 = vld [vmem:[#allocation7 + $0x194] sm:$0xf]
    %v2986 = vld [vmem:[#allocation7 + $0x198] sm:$0xff]
    %v2987 = vld [vmem:[#allocation7 + $0x1a0] sm:$0xf]
    %v2988 = vld [vmem:[#allocation7 + $0x1a4] sm:$0xff]
    %v2989 = vld [vmem:[#allocation7 + $0x1ac] sm:$0xf]
    %v2990 = vld [vmem:[#allocation7 + $0x1b0] sm:$0xff]
    %v2991 = vld [vmem:[#allocation7 + $0x1b8] sm:$0xf]
    %v2992 = vld [vmem:[#allocation7 + $0x1bc] sm:$0xff]
    %v2993 = vld [vmem:[#allocation7 + $0x1c4] sm:$0xf]
    %v2994 = vld [vmem:[#allocation7 + $0x1c8] sm:$0xff]
    %v2995 = vld [vmem:[#allocation7 + $0x1d0] sm:$0xf]
    %v2996 = vld [vmem:[#allocation7 + $0x1d4] sm:$0xff]
    %v2997 = vld [vmem:[#allocation7 + $0x1dc] sm:$0xf]
    %v2998 = vld [vmem:[#allocation7 + $0x1e0] sm:$0xff]
    %v2999 = vld [vmem:[#allocation7 + $0x1e8] sm:$0xf]
    %v3000 = vld [vmem:[#allocation7 + $0x1ec] sm:$0xff]
    %v3001 = vld [vmem:[#allocation7 + $0x1f4] sm:$0xf]
    %v3002 = vld [vmem:[#allocation7 + $0x1f8] sm:$0xff]
    %v3003 = vld [vmem:[#allocation7 + $0x200] sm:$0xf]
    %v3004 = vld [vmem:[#allocation7 + $0x204] sm:$0xff]
    %v3005 = vld [vmem:[#allocation7 + $0x20c] sm:$0xf]
    %v3006 = vld [vmem:[#allocation7 + $0x210] sm:$0xff]
    %v3007 = vld [vmem:[#allocation7 + $0x218] sm:$0xf]
    %v3008 = vld [vmem:[#allocation7 + $0x21c] sm:$0xff]
    %v3009 = vld [vmem:[#allocation7 + $0x224] sm:$0xf]
    %v3010 = vld [vmem:[#allocation7 + $0x228] sm:$0xff]
    %v3011 = vld [vmem:[#allocation7 + $0x230] sm:$0xf]
    %v3012 = vld [vmem:[#allocation7 + $0x234] sm:$0xff]
    %v3013 = vld [vmem:[#allocation7 + $0x23c] sm:$0xf]
    %v3014 = vld [vmem:[#allocation8] sm:$0x7]
    %v3023 = vunpack.c.l.b16 %v2819
    %v3024 = vunpack.c.l.b16 %v2824
    %v3025 = vunpack.c.l.b16 %v2829
    %v3026 = vunpack.c.l.b16 %v2834
    %v3027 = vunpack.c.l.b16 %v2839
    %v3028 = vunpack.c.l.b16 %v2844
    %v3029 = vunpack.c.l.b16 %v2849
    %v3030 = vunpack.c.l.b16 %v2854
    %v3031 = vpack.c.b16 %v3024, %v3023
    %v3032 = vpack.c.b16 %v3026, %v3025
    %v3033 = vpack.c.b16 %v3028, %v3027
    %v3034 = vpack.c.b16 %v3030, %v3029
    %v3043 = vunpack.c.h.b16 %v2820
    %v3044 = vunpack.c.h.b16 %v2825
    %v3045 = vunpack.c.h.b16 %v2830
    %v3046 = vunpack.c.h.b16 %v2835
    %v3047 = vunpack.c.h.b16 %v2840
    %v3048 = vunpack.c.h.b16 %v2845
    %v3049 = vunpack.c.h.b16 %v2850
    %v3050 = vunpack.c.h.b16 %v2855
    %v3051 = vpack.c.b16 %v3044, %v3043
    %v3052 = vpack.c.b16 %v3046, %v3045
    %v3053 = vpack.c.b16 %v3048, %v3047
    %v3054 = vpack.c.b16 %v3050, %v3049
    %vm3055 = vcmask 523264
    %v3057 = vsel %vm3055, %v3031, 0
    %v3060 = vsel %vm3055, %v3032, 0
    %v3063 = vsel %vm3055, %v3033, 0
    %v3066 = vsel %vm3055, %v3034, 0
    %v3069 = vsel %vm3055, %v3051, 0
    %v3072 = vsel %vm3055, %v3052, 0
    %v3075 = vsel %vm3055, %v3053, 0
    %v3078 = vsel %vm3055, %v3054, 0
    %3080 = vmatpush.bf16.xpose.msra.mxu0 0
    %3081 = vmatpush.bf16.xpose.msra.mxu0 0
    %3082 = vmatpush.bf16.xpose.msra.mxu0 0
    %3083 = vmatpush.bf16.xpose.msra.mxu0 0
    %3084 = vmatpush.bf16.xpose.msra.mxu0 %v3078
    %3085 = vmatpush.bf16.xpose.msra.mxu0 %v3075
    %3086 = vmatpush.bf16.xpose.msra.mxu0 %v3072
    %3087 = vmatpush.bf16.xpose.msra.mxu0 %v3069
    %3088 = vmatmul.bf16.gmra.mxu0 %v3057
    %v3089 = vpop.f32.mrf.mxu0
    %v3090 = vadd.f32 0.0, %v3089
    %v3091 = vpop.f32.mrf.mxu0
    %v3092 = vadd.f32 0.0, %v3091
    %3093 = vmatmul.bf16.gmra.mxu0 %v3060
    %v3094 = vpop.f32.mrf.mxu0
    %v3095 = vadd.f32 0.0, %v3094
    %v3096 = vpop.f32.mrf.mxu0
    %v3097 = vadd.f32 0.0, %v3096
    %3098 = vmatmul.bf16.gmra.mxu0 %v3063
    %v3099 = vpop.f32.mrf.mxu0
    %v3100 = vadd.f32 0.0, %v3099
    %v3101 = vpop.f32.mrf.mxu0
    %v3102 = vadd.f32 0.0, %v3101
    %3103 = vmatmul.bf16.gmra.mxu0 %v3066
    %v3104 = vpop.f32.mrf.mxu0
    %v3105 = vadd.f32 0.0, %v3104
    %v3106 = vpop.f32.mrf.mxu0
    %v3107 = vadd.f32 0.0, %v3106
    %3108 = vdwg.mxu0
    %v3109 = vmul.f32 %v3090, 0.125
    %v3110 = vmul.f32 %v3092, 0.125
    %v3111 = vmul.f32 %v3095, 0.125
    %v3112 = vmul.f32 %v3097, 0.125
    %v3113 = vmul.f32 %v3100, 0.125
    %v3114 = vmul.f32 %v3102, 0.125
    %v3115 = vmul.f32 %v3105, 0.125
    %v3116 = vmul.f32 %v3107, 0.125
    %v3117 = vsel %vm2910, %v3109, -inf
    %v3118 = vsel %vm2911, %v3110, -inf
    %v3119 = vsel %vm2912, %v3111, -inf
    %v3120 = vsel %vm2913, %v3112, -inf
    %v3121 = vsel %vm2914, %v3113, -inf
    %v3122 = vsel %vm2915, %v3114, -inf
    %v3123 = vsel %vm2916, %v3115, -inf
    %v3124 = vsel %vm2917, %v3116, -inf
    %v3125 = vsel %vm3055, %v3117, -inf
    %3126 = vmax.xlane.f32.xlu0 %v3125
    %v3127 = vpop.xlane.xlu0 %3126
    %v3128 = vsel %vm3055, %v3118, -inf
    %3129 = vmax.xlane.f32.xlu0 %v3128
    %v3130 = vpop.xlane.xlu0 %3129
    %v3131 = vsel %vm3055, %v3119, -inf
    %3132 = vmax.xlane.f32.xlu0 %v3131
    %v3133 = vpop.xlane.xlu0 %3132
    %v3134 = vsel %vm3055, %v3120, -inf
    %3135 = vmax.xlane.f32.xlu0 %v3134
    %v3136 = vpop.xlane.xlu0 %3135
    %v3137 = vsel %vm3055, %v3121, -inf
    %3138 = vmax.xlane.f32.xlu0 %v3137
    %v3139 = vpop.xlane.xlu0 %3138
    %v3140 = vsel %vm3055, %v3122, -inf
    %3141 = vmax.xlane.f32.xlu0 %v3140
    %v3142 = vpop.xlane.xlu0 %3141
    %v3143 = vsel %vm3055, %v3123, -inf
    %3144 = vmax.xlane.f32.xlu0 %v3143
    %v3145 = vpop.xlane.xlu0 %3144
    %v3146 = vsel %vm3055, %v3124, -inf
    %3147 = vmax.xlane.f32.xlu0 %v3146
    %v3148 = vpop.xlane.xlu0 %3147
    %v3149 = vsub.f32 %v3117, %v3127
    %v3150 = vsub.f32 %v3118, %v3130
    %v3151 = vsub.f32 %v3119, %v3133
    %v3152 = vsub.f32 %v3120, %v3136
    %v3153 = vsub.f32 %v3121, %v3139
    %v3154 = vsub.f32 %v3122, %v3142
    %v3155 = vsub.f32 %v3123, %v3145
    %v3156 = vsub.f32 %v3124, %v3148
    %v3157 = vmul.f32 %v3149, 1.442695
    %v3158 = vpow.pop %v3157
    %v3159 = vmul.f32 %v3150, 1.442695
    %v3160 = vpow.pop %v3159
    %v3161 = vmul.f32 %v3151, 1.442695
    %v3162 = vpow.pop %v3161
    %v3163 = vmul.f32 %v3152, 1.442695
    %v3164 = vpow.pop %v3163
    %v3165 = vmul.f32 %v3153, 1.442695
    %v3166 = vpow.pop %v3165
    %v3167 = vmul.f32 %v3154, 1.442695
    %v3168 = vpow.pop %v3167
    %v3169 = vmul.f32 %v3155, 1.442695
    %v3170 = vpow.pop %v3169
    %v3171 = vmul.f32 %v3156, 1.442695
    %v3172 = vpow.pop %v3171
    %v3173 = vsel %vm3055, %v3158, 0.0
    %3174 = vadd.xlane.f32.xlu0 %v3173
    %v3175 = vpop.xlane.xlu0 %3174
    %v3176 = vsel %vm3055, %v3160, 0.0
    %3177 = vadd.xlane.f32.xlu0 %v3176
    %v3178 = vpop.xlane.xlu0 %3177
    %v3179 = vsel %vm3055, %v3162, 0.0
    %3180 = vadd.xlane.f32.xlu0 %v3179
    %v3181 = vpop.xlane.xlu0 %3180
    %v3182 = vsel %vm3055, %v3164, 0.0
    %3183 = vadd.xlane.f32.xlu0 %v3182
    %v3184 = vpop.xlane.xlu0 %3183
    %v3185 = vsel %vm3055, %v3166, 0.0
    %3186 = vadd.xlane.f32.xlu0 %v3185
    %v3187 = vpop.xlane.xlu0 %3186
    %v3188 = vsel %vm3055, %v3168, 0.0
    %3189 = vadd.xlane.f32.xlu0 %v3188
    %v3190 = vpop.xlane.xlu0 %3189
    %v3191 = vsel %vm3055, %v3170, 0.0
    %3192 = vadd.xlane.f32.xlu0 %v3191
    %v3193 = vpop.xlane.xlu0 %3192
    %v3194 = vsel %vm3055, %v3172, 0.0
    %3195 = vadd.xlane.f32.xlu0 %v3194
    %v3196 = vpop.xlane.xlu0 %3195
    %v3197 = vrcp.pop %v3175
    %v3198 = vrcp.pop %v3178
    %v3199 = vrcp.pop %v3181
    %v3200 = vrcp.pop %v3184
    %v3201 = vrcp.pop %v3187
    %v3202 = vrcp.pop %v3190
    %v3203 = vrcp.pop %v3193
    %v3204 = vrcp.pop %v3196
    %v3205 = vmul.f32 %v3158, %v3197
    %v3206 = vmul.f32 %v3160, %v3198
    %v3207 = vmul.f32 %v3162, %v3199
    %v3208 = vmul.f32 %v3164, %v3200
    %v3209 = vmul.f32 %v3166, %v3201
    %v3210 = vmul.f32 %v3168, %v3202
    %v3211 = vmul.f32 %v3170, %v3203
    %v3212 = vmul.f32 %v3172, %v3204
    %v3213 = vpack.c.bf16 %v3206, %v3205
    %v3214 = vpack.c.bf16 %v3208, %v3207
    %v3215 = vpack.c.bf16 %v3210, %v3209
    %v3216 = vpack.c.bf16 %v3212, %v3211
    %v3225 = vunpack.c.l.b16 %v2822
    %v3226 = vunpack.c.l.b16 %v2827
    %v3227 = vunpack.c.l.b16 %v2832
    %v3228 = vunpack.c.l.b16 %v2837
    %v3229 = vunpack.c.l.b16 %v2842
    %v3230 = vunpack.c.l.b16 %v2847
    %v3231 = vunpack.c.l.b16 %v2852
    %v3232 = vunpack.c.l.b16 %v2857
    %v3233 = vpack.c.b16 %v3226, %v3225
    %v3234 = vpack.c.b16 %v3228, %v3227
    %v3235 = vpack.c.b16 %v3230, %v3229
    %v3236 = vpack.c.b16 %v3232, %v3231
    %v3242 = vsel %vm3055, %v3213, 0
    %v3245 = vsel %vm3055, %v3214, 0
    %v3248 = vsel %vm3055, %v3215, 0
    %v3251 = vsel %vm3055, %v3216, 0
    %3253 = vmatpush.bf16.msra.mxu0 0
    %3254 = vmatpush.bf16.msra.mxu0 0
    %3255 = vmatpush.bf16.msra.mxu0 0
    %3256 = vmatpush.bf16.msra.mxu0 0
    %3257 = vmatpush.bf16.msra.mxu0 %v3236
    %3258 = vmatpush.bf16.msra.mxu0 %v3235
    %3259 = vmatpush.bf16.msra.mxu0 %v3234
    %3260 = vmatpush.bf16.msra.mxu0 %v3233
    %3261 = vmatmul.bf16.gmra.mxu0 %v3242
    %v3262 = vpop.f32.mrf.mxu0
    %v3263 = vadd.f32 0.0, %v3262
    %v3264 = vpop.f32.mrf.mxu0
    %v3265 = vadd.f32 0.0, %v3264
    %3266 = vmatmul.bf16.gmra.mxu0 %v3245
    %v3267 = vpop.f32.mrf.mxu0
    %v3268 = vadd.f32 0.0, %v3267
    %v3269 = vpop.f32.mrf.mxu0
    %v3270 = vadd.f32 0.0, %v3269
    %3271 = vmatmul.bf16.gmra.mxu0 %v3248
    %v3272 = vpop.f32.mrf.mxu0
    %v3273 = vadd.f32 0.0, %v3272
    %v3274 = vpop.f32.mrf.mxu0
    %v3275 = vadd.f32 0.0, %v3274
    %3276 = vmatmul.bf16.gmra.mxu0 %v3251
    %v3277 = vpop.f32.mrf.mxu0
    %v3278 = vadd.f32 0.0, %v3277
    %v3279 = vpop.f32.mrf.mxu0
    %v3280 = vadd.f32 0.0, %v3279
    %3281 = vdwg.mxu0
    %v3282 = vpack.c.bf16 %v3265, %v3263
    %v3283 = vpack.c.bf16 %v3270, %v3268
    %v3284 = vpack.c.bf16 %v3275, %v3273
    %v3285 = vpack.c.bf16 %v3280, %v3278
    %3286 = vrot.lane.b32.xlu0 %v3031, 64
    %v3287 = vpop.permute.xlu0 %3286
    %3288 = vrot.lane.b32.xlu0 %v3032, 64
    %v3289 = vpop.permute.xlu0 %3288
    %3290 = vrot.lane.b32.xlu0 %v3033, 64
    %v3291 = vpop.permute.xlu0 %3290
    %3292 = vrot.lane.b32.xlu0 %v3034, 64
    %v3293 = vpop.permute.xlu0 %3292
    %3294 = vrot.lane.b32.xlu0 %v3051, 64
    %v3295 = vpop.permute.xlu0 %3294
    %3296 = vrot.lane.b32.xlu0 %v3052, 64
    %v3297 = vpop.permute.xlu0 %3296
    %3298 = vrot.lane.b32.xlu0 %v3053, 64
    %v3299 = vpop.permute.xlu0 %3298
    %3300 = vrot.lane.b32.xlu0 %v3054, 64
    %v3301 = vpop.permute.xlu0 %3300
    %v3303 = vsel %vm3055, %v3287, 0
    %v3306 = vsel %vm3055, %v3289, 0
    %v3309 = vsel %vm3055, %v3291, 0
    %v3312 = vsel %vm3055, %v3293, 0
    %v3315 = vsel %vm3055, %v3295, 0
    %v3318 = vsel %vm3055, %v3297, 0
    %v3321 = vsel %vm3055, %v3299, 0
    %v3324 = vsel %vm3055, %v3301, 0
    %3326 = vmatpush.bf16.xpose.msra.mxu0 0
    %3327 = vmatpush.bf16.xpose.msra.mxu0 0
    %3328 = vmatpush.bf16.xpose.msra.mxu0 0
    %3329 = vmatpush.bf16.xpose.msra.mxu0 0
    %3330 = vmatpush.bf16.xpose.msra.mxu0 %v3324
    %3331 = vmatpush.bf16.xpose.msra.mxu0 %v3321
    %3332 = vmatpush.bf16.xpose.msra.mxu0 %v3318
    %3333 = vmatpush.bf16.xpose.msra.mxu0 %v3315
    %3334 = vmatmul.bf16.gmra.mxu0 %v3303
    %v3335 = vpop.f32.mrf.mxu0
    %v3336 = vadd.f32 0.0, %v3335
    %v3337 = vpop.f32.mrf.mxu0
    %v3338 = vadd.f32 0.0, %v3337
    %3339 = vmatmul.bf16.gmra.mxu0 %v3306
    %v3340 = vpop.f32.mrf.mxu0
    %v3341 = vadd.f32 0.0, %v3340
    %v3342 = vpop.f32.mrf.mxu0
    %v3343 = vadd.f32 0.0, %v3342
    %3344 = vmatmul.bf16.gmra.mxu0 %v3309
    %v3345 = vpop.f32.mrf.mxu0
    %v3346 = vadd.f32 0.0, %v3345
    %v3347 = vpop.f32.mrf.mxu0
    %v3348 = vadd.f32 0.0, %v3347
    %3349 = vmatmul.bf16.gmra.mxu0 %v3312
    %v3350 = vpop.f32.mrf.mxu0
    %v3351 = vadd.f32 0.0, %v3350
    %v3352 = vpop.f32.mrf.mxu0
    %v3353 = vadd.f32 0.0, %v3352
    %3354 = vdwg.mxu0
    %v3355 = vmul.f32 %v3336, 0.125
    %v3356 = vmul.f32 %v3338, 0.125
    %v3357 = vmul.f32 %v3341, 0.125
    %v3358 = vmul.f32 %v3343, 0.125
    %v3359 = vmul.f32 %v3346, 0.125
    %v3360 = vmul.f32 %v3348, 0.125
    %v3361 = vmul.f32 %v3351, 0.125
    %v3362 = vmul.f32 %v3353, 0.125
    %v3363 = vsel %vm2910, %v3355, -inf
    %v3364 = vsel %vm2911, %v3356, -inf
    %v3365 = vsel %vm2912, %v3357, -inf
    %v3366 = vsel %vm2913, %v3358, -inf
    %v3367 = vsel %vm2914, %v3359, -inf
    %v3368 = vsel %vm2915, %v3360, -inf
    %v3369 = vsel %vm2916, %v3361, -inf
    %v3370 = vsel %vm2917, %v3362, -inf
    %v3371 = vsel %vm3055, %v3363, -inf
    %3372 = vmax.xlane.f32.xlu0 %v3371
    %v3373 = vpop.xlane.xlu0 %3372
    %v3374 = vsel %vm3055, %v3364, -inf
    %3375 = vmax.xlane.f32.xlu0 %v3374
    %v3376 = vpop.xlane.xlu0 %3375
    %v3377 = vsel %vm3055, %v3365, -inf
    %3378 = vmax.xlane.f32.xlu0 %v3377
    %v3379 = vpop.xlane.xlu0 %3378
    %v3380 = vsel %vm3055, %v3366, -inf
    %3381 = vmax.xlane.f32.xlu0 %v3380
    %v3382 = vpop.xlane.xlu0 %3381
    %v3383 = vsel %vm3055, %v3367, -inf
    %3384 = vmax.xlane.f32.xlu0 %v3383
    %v3385 = vpop.xlane.xlu0 %3384
    %v3386 = vsel %vm3055, %v3368, -inf
    %3387 = vmax.xlane.f32.xlu0 %v3386
    %v3388 = vpop.xlane.xlu0 %3387
    %v3389 = vsel %vm3055, %v3369, -inf
    %3390 = vmax.xlane.f32.xlu0 %v3389
    %v3391 = vpop.xlane.xlu0 %3390
    %v3392 = vsel %vm3055, %v3370, -inf
    %3393 = vmax.xlane.f32.xlu0 %v3392
    %v3394 = vpop.xlane.xlu0 %3393
    %v3395 = vsub.f32 %v3363, %v3373
    %v3396 = vsub.f32 %v3364, %v3376
    %v3397 = vsub.f32 %v3365, %v3379
    %v3398 = vsub.f32 %v3366, %v3382
    %v3399 = vsub.f32 %v3367, %v3385
    %v3400 = vsub.f32 %v3368, %v3388
    %v3401 = vsub.f32 %v3369, %v3391
    %v3402 = vsub.f32 %v3370, %v3394
    %v3403 = vmul.f32 %v3395, 1.442695
    %v3404 = vpow.pop %v3403
    %v3405 = vmul.f32 %v3396, 1.442695
    %v3406 = vpow.pop %v3405
    %v3407 = vmul.f32 %v3397, 1.442695
    %v3408 = vpow.pop %v3407
    %v3409 = vmul.f32 %v3398, 1.442695
    %v3410 = vpow.pop %v3409
    %v3411 = vmul.f32 %v3399, 1.442695
    %v3412 = vpow.pop %v3411
    %v3413 = vmul.f32 %v3400, 1.442695
    %v3414 = vpow.pop %v3413
    %v3415 = vmul.f32 %v3401, 1.442695
    %v3416 = vpow.pop %v3415
    %v3417 = vmul.f32 %v3402, 1.442695
    %v3418 = vpow.pop %v3417
    %v3419 = vsel %vm3055, %v3404, 0.0
    %3420 = vadd.xlane.f32.xlu0 %v3419
    %v3421 = vpop.xlane.xlu0 %3420
    %v3422 = vsel %vm3055, %v3406, 0.0
    %3423 = vadd.xlane.f32.xlu0 %v3422
    %v3424 = vpop.xlane.xlu0 %3423
    %v3425 = vsel %vm3055, %v3408, 0.0
    %3426 = vadd.xlane.f32.xlu0 %v3425
    %v3427 = vpop.xlane.xlu0 %3426
    %v3428 = vsel %vm3055, %v3410, 0.0
    %3429 = vadd.xlane.f32.xlu0 %v3428
    %v3430 = vpop.xlane.xlu0 %3429
    %v3431 = vsel %vm3055, %v3412, 0.0
    %3432 = vadd.xlane.f32.xlu0 %v3431
    %v3433 = vpop.xlane.xlu0 %3432
    %v3434 = vsel %vm3055, %v3414, 0.0
    %3435 = vadd.xlane.f32.xlu0 %v3434
    %v3436 = vpop.xlane.xlu0 %3435
    %v3437 = vsel %vm3055, %v3416, 0.0
    %3438 = vadd.xlane.f32.xlu0 %v3437
    %v3439 = vpop.xlane.xlu0 %3438
    %v3440 = vsel %vm3055, %v3418, 0.0
    %3441 = vadd.xlane.f32.xlu0 %v3440
    %v3442 = vpop.xlane.xlu0 %3441
    %v3443 = vrcp.pop %v3421
    %v3444 = vrcp.pop %v3424
    %v3445 = vrcp.pop %v3427
    %v3446 = vrcp.pop %v3430
    %v3447 = vrcp.pop %v3433
    %v3448 = vrcp.pop %v3436
    %v3449 = vrcp.pop %v3439
    %v3450 = vrcp.pop %v3442
    %v3451 = vmul.f32 %v3404, %v3443
    %v3452 = vmul.f32 %v3406, %v3444
    %v3453 = vmul.f32 %v3408, %v3445
    %v3454 = vmul.f32 %v3410, %v3446
    %v3455 = vmul.f32 %v3412, %v3447
    %v3456 = vmul.f32 %v3414, %v3448
    %v3457 = vmul.f32 %v3416, %v3449
    %v3458 = vmul.f32 %v3418, %v3450
    %v3459 = vpack.c.bf16 %v3452, %v3451
    %v3460 = vpack.c.bf16 %v3454, %v3453
    %v3461 = vpack.c.bf16 %v3456, %v3455
    %v3462 = vpack.c.bf16 %v3458, %v3457
    %3463 = vrot.lane.b32.xlu0 %v3233, 64
    %v3464 = vpop.permute.xlu0 %3463
    %3465 = vrot.lane.b32.xlu0 %v3234, 64
    %v3466 = vpop.permute.xlu0 %3465
    %3467 = vrot.lane.b32.xlu0 %v3235, 64
    %v3468 = vpop.permute.xlu0 %3467
    %3469 = vrot.lane.b32.xlu0 %v3236, 64
    %v3470 = vpop.permute.xlu0 %3469
    %v3476 = vsel %vm3055, %v3459, 0
    %v3479 = vsel %vm3055, %v3460, 0
    %v3482 = vsel %vm3055, %v3461, 0
    %v3485 = vsel %vm3055, %v3462, 0
    %3487 = vmatpush.bf16.msra.mxu0 0
    %3488 = vmatpush.bf16.msra.mxu0 0
    %3489 = vmatpush.bf16.msra.mxu0 0
    %3490 = vmatpush.bf16.msra.mxu0 0
    %3491 = vmatpush.bf16.msra.mxu0 %v3470
    %3492 = vmatpush.bf16.msra.mxu0 %v3468
    %3493 = vmatpush.bf16.msra.mxu0 %v3466
    %3494 = vmatpush.bf16.msra.mxu0 %v3464
    %3495 = vmatmul.bf16.gmra.mxu0 %v3476
    %v3496 = vpop.f32.mrf.mxu0
    %v3497 = vadd.f32 0.0, %v3496
    %v3498 = vpop.f32.mrf.mxu0
    %v3499 = vadd.f32 0.0, %v3498
    %3500 = vmatmul.bf16.gmra.mxu0 %v3479
    %v3501 = vpop.f32.mrf.mxu0
    %v3502 = vadd.f32 0.0, %v3501
    %v3503 = vpop.f32.mrf.mxu0
    %v3504 = vadd.f32 0.0, %v3503
    %3505 = vmatmul.bf16.gmra.mxu0 %v3482
    %v3506 = vpop.f32.mrf.mxu0
    %v3507 = vadd.f32 0.0, %v3506
    %v3508 = vpop.f32.mrf.mxu0
    %v3509 = vadd.f32 0.0, %v3508
    %3510 = vmatmul.bf16.gmra.mxu0 %v3485
    %v3511 = vpop.f32.mrf.mxu0
    %v3512 = vadd.f32 0.0, %v3511
    %v3513 = vpop.f32.mrf.mxu0
    %v3514 = vadd.f32 0.0, %v3513
    %3515 = vdwg.mxu0
    %v3516 = vpack.c.bf16 %v3499, %v3497
    %v3517 = vpack.c.bf16 %v3504, %v3502
    %v3518 = vpack.c.bf16 %v3509, %v3507
    %v3519 = vpack.c.bf16 %v3514, %v3512
    %v3536 = vunpack.c.l.b16 %v2934
    %v3537 = vunpack.c.h.b16 %v2934
    %v3538 = vunpack.c.l.b16 %v2935
    %v3539 = vunpack.c.l.b16 %v2936
    %v3540 = vunpack.c.h.b16 %v2936
    %v3541 = vunpack.c.l.b16 %v2937
    %v3542 = vunpack.c.l.b16 %v2938
    %v3543 = vunpack.c.h.b16 %v2938
    %v3544 = vunpack.c.l.b16 %v2939
    %v3545 = vunpack.c.l.b16 %v2940
    %v3546 = vunpack.c.h.b16 %v2940
    %v3547 = vunpack.c.l.b16 %v2941
    %v3548 = vunpack.c.l.b16 %v2942
    %v3549 = vunpack.c.h.b16 %v2942
    %v3550 = vunpack.c.l.b16 %v2943
    %v3551 = vunpack.c.l.b16 %v2944
    %v3552 = vunpack.c.h.b16 %v2944
    %v3553 = vunpack.c.l.b16 %v2945
    %v3554 = vunpack.c.l.b16 %v2946
    %v3555 = vunpack.c.h.b16 %v2946
    %v3556 = vunpack.c.l.b16 %v2947
    %v3557 = vunpack.c.l.b16 %v2948
    %v3558 = vunpack.c.h.b16 %v2948
    %v3559 = vunpack.c.l.b16 %v2949
    %v3560 = vpack.c.b16 %v3539, %v3536
    %v3561 = vpack.c.b16 %v3540, %v3537
    %v3562 = vpack.c.b16 %v3541, %v3538
    %v3563 = vpack.c.b16 %v3545, %v3542
    %v3564 = vpack.c.b16 %v3546, %v3543
    %v3565 = vpack.c.b16 %v3547, %v3544
    %v3566 = vpack.c.b16 %v3551, %v3548
    %v3567 = vpack.c.b16 %v3552, %v3549
    %v3568 = vpack.c.b16 %v3553, %v3550
    %v3569 = vpack.c.b16 %v3557, %v3554
    %v3570 = vpack.c.b16 %v3558, %v3555
    %v3571 = vpack.c.b16 %v3559, %v3556
    %v3585 = vsel %vm3055, %v3516, 0
    %v3588 = vsel %vm3055, %v3517, 0
    %v3591 = vsel %vm3055, %v3518, 0
    %v3594 = vsel %vm3055, %v3519, 0
    %3596 = vmatpush.bf16.msra.mxu0 0
    %3597 = vmatpush.bf16.msra.mxu0 0
    %3598 = vmatpush.bf16.msra.mxu0 0
    %3599 = vmatpush.bf16.msra.mxu0 0
    %3600 = vmatpush.bf16.msra.mxu0 %v3569
    %3601 = vmatpush.bf16.msra.mxu0 %v3566
    %3602 = vmatpush.bf16.msra.mxu0 %v3563
    %3603 = vmatpush.bf16.msra.mxu0 %v3560
    %3604 = vmatmul.bf16.gmra.mxu0 %v3585
    %v3605 = vpop.f32.mrf.mxu0
    %v3606 = vadd.f32 0.0, %v3605
    %v3607 = vpop.f32.mrf.mxu0
    %v3608 = vadd.f32 0.0, %v3607
    %3609 = vmatmul.bf16.gmra.mxu0 %v3588
    %v3610 = vpop.f32.mrf.mxu0
    %v3611 = vadd.f32 0.0, %v3610
    %v3612 = vpop.f32.mrf.mxu0
    %v3613 = vadd.f32 0.0, %v3612
    %3614 = vmatmul.bf16.gmra.mxu0 %v3591
    %v3615 = vpop.f32.mrf.mxu0
    %v3616 = vadd.f32 0.0, %v3615
    %v3617 = vpop.f32.mrf.mxu0
    %v3618 = vadd.f32 0.0, %v3617
    %3619 = vmatmul.bf16.gmra.mxu0 %v3594
    %v3620 = vpop.f32.mrf.mxu0
    %v3621 = vadd.f32 0.0, %v3620
    %v3622 = vpop.f32.mrf.mxu0
    %v3623 = vadd.f32 0.0, %v3622
    %3624 = vdwg.mxu0
    %3625 = vmatpush.bf16.msra.mxu0 0
    %3626 = vmatpush.bf16.msra.mxu0 0
    %3627 = vmatpush.bf16.msra.mxu0 0
    %3628 = vmatpush.bf16.msra.mxu0 0
    %3629 = vmatpush.bf16.msra.mxu0 %v3570
    %3630 = vmatpush.bf16.msra.mxu0 %v3567
    %3631 = vmatpush.bf16.msra.mxu0 %v3564
    %3632 = vmatpush.bf16.msra.mxu0 %v3561
    %3633 = vmatmul.bf16.gmra.mxu0 %v3585
    %v3634 = vpop.f32.mrf.mxu0
    %v3635 = vadd.f32 0.0, %v3634
    %v3636 = vpop.f32.mrf.mxu0
    %v3637 = vadd.f32 0.0, %v3636
    %3638 = vmatmul.bf16.gmra.mxu0 %v3588
    %v3639 = vpop.f32.mrf.mxu0
    %v3640 = vadd.f32 0.0, %v3639
    %v3641 = vpop.f32.mrf.mxu0
    %v3642 = vadd.f32 0.0, %v3641
    %3643 = vmatmul.bf16.gmra.mxu0 %v3591
    %v3644 = vpop.f32.mrf.mxu0
    %v3645 = vadd.f32 0.0, %v3644
    %v3646 = vpop.f32.mrf.mxu0
    %v3647 = vadd.f32 0.0, %v3646
    %3648 = vmatmul.bf16.gmra.mxu0 %v3594
    %v3649 = vpop.f32.mrf.mxu0
    %v3650 = vadd.f32 0.0, %v3649
    %v3651 = vpop.f32.mrf.mxu0
    %v3652 = vadd.f32 0.0, %v3651
    %3653 = vdwg.mxu0
    %3654 = vmatpush.bf16.msra.mxu0 0
    %3655 = vmatpush.bf16.msra.mxu0 0
    %3656 = vmatpush.bf16.msra.mxu0 0
    %3657 = vmatpush.bf16.msra.mxu0 0
    %3658 = vmatpush.bf16.msra.mxu0 %v3571
    %3659 = vmatpush.bf16.msra.mxu0 %v3568
    %3660 = vmatpush.bf16.msra.mxu0 %v3565
    %3661 = vmatpush.bf16.msra.mxu0 %v3562
    %3662 = vmatmul.bf16.gmra.mxu0 %v3585
    %v3663 = vpop.f32.mrf.mxu0
    %v3664 = vadd.f32 0.0, %v3663
    %v3665 = vpop.f32.mrf.mxu0
    %v3666 = vadd.f32 0.0, %v3665
    %3667 = vmatmul.bf16.gmra.mxu0 %v3588
    %v3668 = vpop.f32.mrf.mxu0
    %v3669 = vadd.f32 0.0, %v3668
    %v3670 = vpop.f32.mrf.mxu0
    %v3671 = vadd.f32 0.0, %v3670
    %3672 = vmatmul.bf16.gmra.mxu0 %v3591
    %v3673 = vpop.f32.mrf.mxu0
    %v3674 = vadd.f32 0.0, %v3673
    %v3675 = vpop.f32.mrf.mxu0
    %v3676 = vadd.f32 0.0, %v3675
    %3677 = vmatmul.bf16.gmra.mxu0 %v3594
    %v3678 = vpop.f32.mrf.mxu0
    %v3679 = vadd.f32 0.0, %v3678
    %v3680 = vpop.f32.mrf.mxu0
    %v3681 = vadd.f32 0.0, %v3680
    %3682 = vdwg.mxu0
    %v3699 = vunpack.c.l.b16 %v2918
    %v3700 = vunpack.c.h.b16 %v2918
    %v3701 = vunpack.c.l.b16 %v2919
    %v3702 = vunpack.c.l.b16 %v2920
    %v3703 = vunpack.c.h.b16 %v2920
    %v3704 = vunpack.c.l.b16 %v2921
    %v3705 = vunpack.c.l.b16 %v2922
    %v3706 = vunpack.c.h.b16 %v2922
    %v3707 = vunpack.c.l.b16 %v2923
    %v3708 = vunpack.c.l.b16 %v2924
    %v3709 = vunpack.c.h.b16 %v2924
    %v3710 = vunpack.c.l.b16 %v2925
    %v3711 = vunpack.c.l.b16 %v2926
    %v3712 = vunpack.c.h.b16 %v2926
    %v3713 = vunpack.c.l.b16 %v2927
    %v3714 = vunpack.c.l.b16 %v2928
    %v3715 = vunpack.c.h.b16 %v2928
    %v3716 = vunpack.c.l.b16 %v2929
    %v3717 = vunpack.c.l.b16 %v2930
    %v3718 = vunpack.c.h.b16 %v2930
    %v3719 = vunpack.c.l.b16 %v2931
    %v3720 = vunpack.c.l.b16 %v2932
    %v3721 = vunpack.c.h.b16 %v2932
    %v3722 = vunpack.c.l.b16 %v2933
    %v3723 = vpack.c.b16 %v3702, %v3699
    %v3724 = vpack.c.b16 %v3703, %v3700
    %v3725 = vpack.c.b16 %v3704, %v3701
    %v3726 = vpack.c.b16 %v3708, %v3705
    %v3727 = vpack.c.b16 %v3709, %v3706
    %v3728 = vpack.c.b16 %v3710, %v3707
    %v3729 = vpack.c.b16 %v3714, %v3711
    %v3730 = vpack.c.b16 %v3715, %v3712
    %v3731 = vpack.c.b16 %v3716, %v3713
    %v3732 = vpack.c.b16 %v3720, %v3717
    %v3733 = vpack.c.b16 %v3721, %v3718
    %v3734 = vpack.c.b16 %v3722, %v3719
    %v3748 = vsel %vm3055, %v3282, 0
    %v3751 = vsel %vm3055, %v3283, 0
    %v3754 = vsel %vm3055, %v3284, 0
    %v3757 = vsel %vm3055, %v3285, 0
    %3759 = vmatpush.bf16.msra.mxu0 0
    %3760 = vmatpush.bf16.msra.mxu0 0
    %3761 = vmatpush.bf16.msra.mxu0 0
    %3762 = vmatpush.bf16.msra.mxu0 0
    %3763 = vmatpush.bf16.msra.mxu0 %v3732
    %3764 = vmatpush.bf16.msra.mxu0 %v3729
    %3765 = vmatpush.bf16.msra.mxu0 %v3726
    %3766 = vmatpush.bf16.msra.mxu0 %v3723
    %3767 = vmatmul.bf16.gmra.mxu0 %v3748
    %v3768 = vpop.f32.mrf.mxu0
    %v3769 = vadd.f32 %v3606, %v3768
    %v3770 = vpop.f32.mrf.mxu0
    %v3771 = vadd.f32 %v3608, %v3770
    %3772 = vmatmul.bf16.gmra.mxu0 %v3751
    %v3773 = vpop.f32.mrf.mxu0
    %v3774 = vadd.f32 %v3611, %v3773
    %v3775 = vpop.f32.mrf.mxu0
    %v3776 = vadd.f32 %v3613, %v3775
    %3777 = vmatmul.bf16.gmra.mxu0 %v3754
    %v3778 = vpop.f32.mrf.mxu0
    %v3779 = vadd.f32 %v3616, %v3778
    %v3780 = vpop.f32.mrf.mxu0
    %v3781 = vadd.f32 %v3618, %v3780
    %3782 = vmatmul.bf16.gmra.mxu0 %v3757
    %v3783 = vpop.f32.mrf.mxu0
    %v3784 = vadd.f32 %v3621, %v3783
    %v3785 = vpop.f32.mrf.mxu0
    %v3786 = vadd.f32 %v3623, %v3785
    %3787 = vdwg.mxu0
    %3788 = vmatpush.bf16.msra.mxu0 0
    %3789 = vmatpush.bf16.msra.mxu0 0
    %3790 = vmatpush.bf16.msra.mxu0 0
    %3791 = vmatpush.bf16.msra.mxu0 0
    %3792 = vmatpush.bf16.msra.mxu0 %v3733
    %3793 = vmatpush.bf16.msra.mxu0 %v3730
    %3794 = vmatpush.bf16.msra.mxu0 %v3727
    %3795 = vmatpush.bf16.msra.mxu0 %v3724
    %3796 = vmatmul.bf16.gmra.mxu0 %v3748
    %v3797 = vpop.f32.mrf.mxu0
    %v3798 = vadd.f32 %v3635, %v3797
    %v3799 = vpop.f32.mrf.mxu0
    %v3800 = vadd.f32 %v3637, %v3799
    %3801 = vmatmul.bf16.gmra.mxu0 %v3751
    %v3802 = vpop.f32.mrf.mxu0
    %v3803 = vadd.f32 %v3640, %v3802
    %v3804 = vpop.f32.mrf.mxu0
    %v3805 = vadd.f32 %v3642, %v3804
    %3806 = vmatmul.bf16.gmra.mxu0 %v3754
    %v3807 = vpop.f32.mrf.mxu0
    %v3808 = vadd.f32 %v3645, %v3807
    %v3809 = vpop.f32.mrf.mxu0
    %v3810 = vadd.f32 %v3647, %v3809
    %3811 = vmatmul.bf16.gmra.mxu0 %v3757
    %v3812 = vpop.f32.mrf.mxu0
    %v3813 = vadd.f32 %v3650, %v3812
    %v3814 = vpop.f32.mrf.mxu0
    %v3815 = vadd.f32 %v3652, %v3814
    %3816 = vdwg.mxu0
    %3817 = vmatpush.bf16.msra.mxu0 0
    %3818 = vmatpush.bf16.msra.mxu0 0
    %3819 = vmatpush.bf16.msra.mxu0 0
    %3820 = vmatpush.bf16.msra.mxu0 0
    %3821 = vmatpush.bf16.msra.mxu0 %v3734
    %3822 = vmatpush.bf16.msra.mxu0 %v3731
    %3823 = vmatpush.bf16.msra.mxu0 %v3728
    %3824 = vmatpush.bf16.msra.mxu0 %v3725
    %3825 = vmatmul.bf16.gmra.mxu0 %v3748
    %v3826 = vpop.f32.mrf.mxu0
    %v3827 = vadd.f32 %v3664, %v3826
    %v3828 = vpop.f32.mrf.mxu0
    %v3829 = vadd.f32 %v3666, %v3828
    %3830 = vmatmul.bf16.gmra.mxu0 %v3751
    %v3831 = vpop.f32.mrf.mxu0
    %v3832 = vadd.f32 %v3669, %v3831
    %v3833 = vpop.f32.mrf.mxu0
    %v3834 = vadd.f32 %v3671, %v3833
    %3835 = vmatmul.bf16.gmra.mxu0 %v3754
    %v3836 = vpop.f32.mrf.mxu0
    %v3837 = vadd.f32 %v3674, %v3836
    %v3838 = vpop.f32.mrf.mxu0
    %v3839 = vadd.f32 %v3676, %v3838
    %3840 = vmatmul.bf16.gmra.mxu0 %v3757
    %v3841 = vpop.f32.mrf.mxu0
    %v3842 = vadd.f32 %v3679, %v3841
    %v3843 = vpop.f32.mrf.mxu0
    %v3844 = vadd.f32 %v3681, %v3843
    %3845 = vdwg.mxu0
    %v3846 = vunpack.c.h.b16 %v2819
    %v3847 = vunpack.c.h.b16 %v2824
    %v3848 = vunpack.c.h.b16 %v2829
    %v3849 = vunpack.c.h.b16 %v2834
    %v3850 = vunpack.c.h.b16 %v2839
    %v3851 = vunpack.c.h.b16 %v2844
    %v3852 = vunpack.c.h.b16 %v2849
    %v3853 = vunpack.c.h.b16 %v2854
    %v3854 = vpack.c.b16 %v3847, %v3846
    %v3855 = vpack.c.b16 %v3849, %v3848
    %v3856 = vpack.c.b16 %v3851, %v3850
    %v3857 = vpack.c.b16 %v3853, %v3852
    %v3866 = vunpack.c.l.b16 %v2821
    %v3867 = vunpack.c.l.b16 %v2826
    %v3868 = vunpack.c.l.b16 %v2831
    %v3869 = vunpack.c.l.b16 %v2836
    %v3870 = vunpack.c.l.b16 %v2841
    %v3871 = vunpack.c.l.b16 %v2846
    %v3872 = vunpack.c.l.b16 %v2851
    %v3873 = vunpack.c.l.b16 %v2856
    %v3874 = vpack.c.b16 %v3867, %v3866
    %v3875 = vpack.c.b16 %v3869, %v3868
    %v3876 = vpack.c.b16 %v3871, %v3870
    %v3877 = vpack.c.b16 %v3873, %v3872
    %v3879 = vsel %vm3055, %v3854, 0
    %v3882 = vsel %vm3055, %v3855, 0
    %v3885 = vsel %vm3055, %v3856, 0
    %v3888 = vsel %vm3055, %v3857, 0
    %v3891 = vsel %vm3055, %v3874, 0
    %v3894 = vsel %vm3055, %v3875, 0
    %v3897 = vsel %vm3055, %v3876, 0
    %v3900 = vsel %vm3055, %v3877, 0
    %3902 = vmatpush.bf16.xpose.msra.mxu0 0
    %3903 = vmatpush.bf16.xpose.msra.mxu0 0
    %3904 = vmatpush.bf16.xpose.msra.mxu0 0
    %3905 = vmatpush.bf16.xpose.msra.mxu0 0
    %3906 = vmatpush.bf16.xpose.msra.mxu0 %v3900
    %3907 = vmatpush.bf16.xpose.msra.mxu0 %v3897
    %3908 = vmatpush.bf16.xpose.msra.mxu0 %v3894
    %3909 = vmatpush.bf16.xpose.msra.mxu0 %v3891
    %3910 = vmatmul.bf16.gmra.mxu0 %v3879
    %v3911 = vpop.f32.mrf.mxu0
    %v3912 = vadd.f32 0.0, %v3911
    %v3913 = vpop.f32.mrf.mxu0
    %v3914 = vadd.f32 0.0, %v3913
    %3915 = vmatmul.bf16.gmra.mxu0 %v3882
    %v3916 = vpop.f32.mrf.mxu0
    %v3917 = vadd.f32 0.0, %v3916
    %v3918 = vpop.f32.mrf.mxu0
    %v3919 = vadd.f32 0.0, %v3918
    %3920 = vmatmul.bf16.gmra.mxu0 %v3885
    %v3921 = vpop.f32.mrf.mxu0
    %v3922 = vadd.f32 0.0, %v3921
    %v3923 = vpop.f32.mrf.mxu0
    %v3924 = vadd.f32 0.0, %v3923
    %3925 = vmatmul.bf16.gmra.mxu0 %v3888
    %v3926 = vpop.f32.mrf.mxu0
    %v3927 = vadd.f32 0.0, %v3926
    %v3928 = vpop.f32.mrf.mxu0
    %v3929 = vadd.f32 0.0, %v3928
    %3930 = vdwg.mxu0
    %v3931 = vmul.f32 %v3912, 0.125
    %v3932 = vmul.f32 %v3914, 0.125
    %v3933 = vmul.f32 %v3917, 0.125
    %v3934 = vmul.f32 %v3919, 0.125
    %v3935 = vmul.f32 %v3922, 0.125
    %v3936 = vmul.f32 %v3924, 0.125
    %v3937 = vmul.f32 %v3927, 0.125
    %v3938 = vmul.f32 %v3929, 0.125
    %v3939 = vsel %vm2910, %v3931, -inf
    %v3940 = vsel %vm2911, %v3932, -inf
    %v3941 = vsel %vm2912, %v3933, -inf
    %v3942 = vsel %vm2913, %v3934, -inf
    %v3943 = vsel %vm2914, %v3935, -inf
    %v3944 = vsel %vm2915, %v3936, -inf
    %v3945 = vsel %vm2916, %v3937, -inf
    %v3946 = vsel %vm2917, %v3938, -inf
    %v3947 = vsel %vm3055, %v3939, -inf
    %3948 = vmax.xlane.f32.xlu0 %v3947
    %v3949 = vpop.xlane.xlu0 %3948
    %v3950 = vsel %vm3055, %v3940, -inf
    %3951 = vmax.xlane.f32.xlu0 %v3950
    %v3952 = vpop.xlane.xlu0 %3951
    %v3953 = vsel %vm3055, %v3941, -inf
    %3954 = vmax.xlane.f32.xlu0 %v3953
    %v3955 = vpop.xlane.xlu0 %3954
    %v3956 = vsel %vm3055, %v3942, -inf
    %3957 = vmax.xlane.f32.xlu0 %v3956
    %v3958 = vpop.xlane.xlu0 %3957
    %v3959 = vsel %vm3055, %v3943, -inf
    %3960 = vmax.xlane.f32.xlu0 %v3959
    %v3961 = vpop.xlane.xlu0 %3960
    %v3962 = vsel %vm3055, %v3944, -inf
    %3963 = vmax.xlane.f32.xlu0 %v3962
    %v3964 = vpop.xlane.xlu0 %3963
    %v3965 = vsel %vm3055, %v3945, -inf
    %3966 = vmax.xlane.f32.xlu0 %v3965
    %v3967 = vpop.xlane.xlu0 %3966
    %v3968 = vsel %vm3055, %v3946, -inf
    %3969 = vmax.xlane.f32.xlu0 %v3968
    %v3970 = vpop.xlane.xlu0 %3969
    %v3971 = vsub.f32 %v3939, %v3949
    %v3972 = vsub.f32 %v3940, %v3952
    %v3973 = vsub.f32 %v3941, %v3955
    %v3974 = vsub.f32 %v3942, %v3958
    %v3975 = vsub.f32 %v3943, %v3961
    %v3976 = vsub.f32 %v3944, %v3964
    %v3977 = vsub.f32 %v3945, %v3967
    %v3978 = vsub.f32 %v3946, %v3970
    %v3979 = vmul.f32 %v3971, 1.442695
    %v3980 = vpow.pop %v3979
    %v3981 = vmul.f32 %v3972, 1.442695
    %v3982 = vpow.pop %v3981
    %v3983 = vmul.f32 %v3973, 1.442695
    %v3984 = vpow.pop %v3983
    %v3985 = vmul.f32 %v3974, 1.442695
    %v3986 = vpow.pop %v3985
    %v3987 = vmul.f32 %v3975, 1.442695
    %v3988 = vpow.pop %v3987
    %v3989 = vmul.f32 %v3976, 1.442695
    %v3990 = vpow.pop %v3989
    %v3991 = vmul.f32 %v3977, 1.442695
    %v3992 = vpow.pop %v3991
    %v3993 = vmul.f32 %v3978, 1.442695
    %v3994 = vpow.pop %v3993
    %v3995 = vsel %vm3055, %v3980, 0.0
    %3996 = vadd.xlane.f32.xlu0 %v3995
    %v3997 = vpop.xlane.xlu0 %3996
    %v3998 = vsel %vm3055, %v3982, 0.0
    %3999 = vadd.xlane.f32.xlu0 %v3998
    %v4000 = vpop.xlane.xlu0 %3999
    %v4001 = vsel %vm3055, %v3984, 0.0
    %4002 = vadd.xlane.f32.xlu0 %v4001
    %v4003 = vpop.xlane.xlu0 %4002
    %v4004 = vsel %vm3055, %v3986, 0.0
    %4005 = vadd.xlane.f32.xlu0 %v4004
    %v4006 = vpop.xlane.xlu0 %4005
    %v4007 = vsel %vm3055, %v3988, 0.0
    %4008 = vadd.xlane.f32.xlu0 %v4007
    %v4009 = vpop.xlane.xlu0 %4008
    %v4010 = vsel %vm3055, %v3990, 0.0
    %4011 = vadd.xlane.f32.xlu0 %v4010
    %v4012 = vpop.xlane.xlu0 %4011
    %v4013 = vsel %vm3055, %v3992, 0.0
    %4014 = vadd.xlane.f32.xlu0 %v4013
    %v4015 = vpop.xlane.xlu0 %4014
    %v4016 = vsel %vm3055, %v3994, 0.0
    %4017 = vadd.xlane.f32.xlu0 %v4016
    %v4018 = vpop.xlane.xlu0 %4017
    %v4019 = vrcp.pop %v3997
    %v4020 = vrcp.pop %v4000
    %v4021 = vrcp.pop %v4003
    %v4022 = vrcp.pop %v4006
    %v4023 = vrcp.pop %v4009
    %v4024 = vrcp.pop %v4012
    %v4025 = vrcp.pop %v4015
    %v4026 = vrcp.pop %v4018
    %v4027 = vmul.f32 %v3980, %v4019
    %v4028 = vmul.f32 %v3982, %v4020
    %v4029 = vmul.f32 %v3984, %v4021
    %v4030 = vmul.f32 %v3986, %v4022
    %v4031 = vmul.f32 %v3988, %v4023
    %v4032 = vmul.f32 %v3990, %v4024
    %v4033 = vmul.f32 %v3992, %v4025
    %v4034 = vmul.f32 %v3994, %v4026
    %v4035 = vpack.c.bf16 %v4028, %v4027
    %v4036 = vpack.c.bf16 %v4030, %v4029
    %v4037 = vpack.c.bf16 %v4032, %v4031
    %v4038 = vpack.c.bf16 %v4034, %v4033
    %v4039 = vunpack.c.h.b16 %v2822
    %v4040 = vunpack.c.h.b16 %v2827
    %v4041 = vunpack.c.h.b16 %v2832
    %v4042 = vunpack.c.h.b16 %v2837
    %v4043 = vunpack.c.h.b16 %v2842
    %v4044 = vunpack.c.h.b16 %v2847
    %v4045 = vunpack.c.h.b16 %v2852
    %v4046 = vunpack.c.h.b16 %v2857
    %v4047 = vpack.c.b16 %v4040, %v4039
    %v4048 = vpack.c.b16 %v4042, %v4041
    %v4049 = vpack.c.b16 %v4044, %v4043
    %v4050 = vpack.c.b16 %v4046, %v4045
    %v4056 = vsel %vm3055, %v4035, 0
    %v4059 = vsel %vm3055, %v4036, 0
    %v4062 = vsel %vm3055, %v4037, 0
    %v4065 = vsel %vm3055, %v4038, 0
    %4067 = vmatpush.bf16.msra.mxu0 0
    %4068 = vmatpush.bf16.msra.mxu0 0
    %4069 = vmatpush.bf16.msra.mxu0 0
    %4070 = vmatpush.bf16.msra.mxu0 0
    %4071 = vmatpush.bf16.msra.mxu0 %v4050
    %4072 = vmatpush.bf16.msra.mxu0 %v4049
    %4073 = vmatpush.bf16.msra.mxu0 %v4048
    %4074 = vmatpush.bf16.msra.mxu0 %v4047
    %4075 = vmatmul.bf16.gmra.mxu0 %v4056
    %v4076 = vpop.f32.mrf.mxu0
    %v4077 = vadd.f32 0.0, %v4076
    %v4078 = vpop.f32.mrf.mxu0
    %v4079 = vadd.f32 0.0, %v4078
    %4080 = vmatmul.bf16.gmra.mxu0 %v4059
    %v4081 = vpop.f32.mrf.mxu0
    %v4082 = vadd.f32 0.0, %v4081
    %v4083 = vpop.f32.mrf.mxu0
    %v4084 = vadd.f32 0.0, %v4083
    %4085 = vmatmul.bf16.gmra.mxu0 %v4062
    %v4086 = vpop.f32.mrf.mxu0
    %v4087 = vadd.f32 0.0, %v4086
    %v4088 = vpop.f32.mrf.mxu0
    %v4089 = vadd.f32 0.0, %v4088
    %4090 = vmatmul.bf16.gmra.mxu0 %v4065
    %v4091 = vpop.f32.mrf.mxu0
    %v4092 = vadd.f32 0.0, %v4091
    %v4093 = vpop.f32.mrf.mxu0
    %v4094 = vadd.f32 0.0, %v4093
    %4095 = vdwg.mxu0
    %v4096 = vpack.c.bf16 %v4079, %v4077
    %v4097 = vpack.c.bf16 %v4084, %v4082
    %v4098 = vpack.c.bf16 %v4089, %v4087
    %v4099 = vpack.c.bf16 %v4094, %v4092
    %v4116 = vunpack.c.l.b16 %v2950
    %v4117 = vunpack.c.h.b16 %v2950
    %v4118 = vunpack.c.l.b16 %v2951
    %v4119 = vunpack.c.l.b16 %v2952
    %v4120 = vunpack.c.h.b16 %v2952
    %v4121 = vunpack.c.l.b16 %v2953
    %v4122 = vunpack.c.l.b16 %v2954
    %v4123 = vunpack.c.h.b16 %v2954
    %v4124 = vunpack.c.l.b16 %v2955
    %v4125 = vunpack.c.l.b16 %v2956
    %v4126 = vunpack.c.h.b16 %v2956
    %v4127 = vunpack.c.l.b16 %v2957
    %v4128 = vunpack.c.l.b16 %v2958
    %v4129 = vunpack.c.h.b16 %v2958
    %v4130 = vunpack.c.l.b16 %v2959
    %v4131 = vunpack.c.l.b16 %v2960
    %v4132 = vunpack.c.h.b16 %v2960
    %v4133 = vunpack.c.l.b16 %v2961
    %v4134 = vunpack.c.l.b16 %v2962
    %v4135 = vunpack.c.h.b16 %v2962
    %v4136 = vunpack.c.l.b16 %v2963
    %v4137 = vunpack.c.l.b16 %v2964
    %v4138 = vunpack.c.h.b16 %v2964
    %v4139 = vunpack.c.l.b16 %v2965
    %v4140 = vpack.c.b16 %v4119, %v4116
    %v4141 = vpack.c.b16 %v4120, %v4117
    %v4142 = vpack.c.b16 %v4121, %v4118
    %v4143 = vpack.c.b16 %v4125, %v4122
    %v4144 = vpack.c.b16 %v4126, %v4123
    %v4145 = vpack.c.b16 %v4127, %v4124
    %v4146 = vpack.c.b16 %v4131, %v4128
    %v4147 = vpack.c.b16 %v4132, %v4129
    %v4148 = vpack.c.b16 %v4133, %v4130
    %v4149 = vpack.c.b16 %v4137, %v4134
    %v4150 = vpack.c.b16 %v4138, %v4135
    %v4151 = vpack.c.b16 %v4139, %v4136
    %v4165 = vsel %vm3055, %v4096, 0
    %v4168 = vsel %vm3055, %v4097, 0
    %v4171 = vsel %vm3055, %v4098, 0
    %v4174 = vsel %vm3055, %v4099, 0
    %4176 = vmatpush.bf16.msra.mxu0 0
    %4177 = vmatpush.bf16.msra.mxu0 0
    %4178 = vmatpush.bf16.msra.mxu0 0
    %4179 = vmatpush.bf16.msra.mxu0 0
    %4180 = vmatpush.bf16.msra.mxu0 %v4149
    %4181 = vmatpush.bf16.msra.mxu0 %v4146
    %4182 = vmatpush.bf16.msra.mxu0 %v4143
    %4183 = vmatpush.bf16.msra.mxu0 %v4140
    %4184 = vmatmul.bf16.gmra.mxu0 %v4165
    %v4185 = vpop.f32.mrf.mxu0
    %v4186 = vadd.f32 0.0, %v4185
    %v4187 = vpop.f32.mrf.mxu0
    %v4188 = vadd.f32 0.0, %v4187
    %4189 = vmatmul.bf16.gmra.mxu0 %v4168
    %v4190 = vpop.f32.mrf.mxu0
    %v4191 = vadd.f32 0.0, %v4190
    %v4192 = vpop.f32.mrf.mxu0
    %v4193 = vadd.f32 0.0, %v4192
    %4194 = vmatmul.bf16.gmra.mxu0 %v4171
    %v4195 = vpop.f32.mrf.mxu0
    %v4196 = vadd.f32 0.0, %v4195
    %v4197 = vpop.f32.mrf.mxu0
    %v4198 = vadd.f32 0.0, %v4197
    %4199 = vmatmul.bf16.gmra.mxu0 %v4174
    %v4200 = vpop.f32.mrf.mxu0
    %v4201 = vadd.f32 0.0, %v4200
    %v4202 = vpop.f32.mrf.mxu0
    %v4203 = vadd.f32 0.0, %v4202
    %4204 = vdwg.mxu0
    %4205 = vmatpush.bf16.msra.mxu0 0
    %4206 = vmatpush.bf16.msra.mxu0 0
    %4207 = vmatpush.bf16.msra.mxu0 0
    %4208 = vmatpush.bf16.msra.mxu0 0
    %4209 = vmatpush.bf16.msra.mxu0 %v4150
    %4210 = vmatpush.bf16.msra.mxu0 %v4147
    %4211 = vmatpush.bf16.msra.mxu0 %v4144
    %4212 = vmatpush.bf16.msra.mxu0 %v4141
    %4213 = vmatmul.bf16.gmra.mxu0 %v4165
    %v4214 = vpop.f32.mrf.mxu0
    %v4215 = vadd.f32 0.0, %v4214
    %v4216 = vpop.f32.mrf.mxu0
    %v4217 = vadd.f32 0.0, %v4216
    %4218 = vmatmul.bf16.gmra.mxu0 %v4168
    %v4219 = vpop.f32.mrf.mxu0
    %v4220 = vadd.f32 0.0, %v4219
    %v4221 = vpop.f32.mrf.mxu0
    %v4222 = vadd.f32 0.0, %v4221
    %4223 = vmatmul.bf16.gmra.mxu0 %v4171
    %v4224 = vpop.f32.mrf.mxu0
    %v4225 = vadd.f32 0.0, %v4224
    %v4226 = vpop.f32.mrf.mxu0
    %v4227 = vadd.f32 0.0, %v4226
    %4228 = vmatmul.bf16.gmra.mxu0 %v4174
    %v4229 = vpop.f32.mrf.mxu0
    %v4230 = vadd.f32 0.0, %v4229
    %v4231 = vpop.f32.mrf.mxu0
    %v4232 = vadd.f32 0.0, %v4231
    %4233 = vdwg.mxu0
    %4234 = vmatpush.bf16.msra.mxu0 0
    %4235 = vmatpush.bf16.msra.mxu0 0
    %4236 = vmatpush.bf16.msra.mxu0 0
    %4237 = vmatpush.bf16.msra.mxu0 0
    %4238 = vmatpush.bf16.msra.mxu0 %v4151
    %4239 = vmatpush.bf16.msra.mxu0 %v4148
    %4240 = vmatpush.bf16.msra.mxu0 %v4145
    %4241 = vmatpush.bf16.msra.mxu0 %v4142
    %4242 = vmatmul.bf16.gmra.mxu0 %v4165
    %v4243 = vpop.f32.mrf.mxu0
    %v4244 = vadd.f32 0.0, %v4243
    %v4245 = vpop.f32.mrf.mxu0
    %v4246 = vadd.f32 0.0, %v4245
    %4247 = vmatmul.bf16.gmra.mxu0 %v4168
    %v4248 = vpop.f32.mrf.mxu0
    %v4249 = vadd.f32 0.0, %v4248
    %v4250 = vpop.f32.mrf.mxu0
    %v4251 = vadd.f32 0.0, %v4250
    %4252 = vmatmul.bf16.gmra.mxu0 %v4171
    %v4253 = vpop.f32.mrf.mxu0
    %v4254 = vadd.f32 0.0, %v4253
    %v4255 = vpop.f32.mrf.mxu0
    %v4256 = vadd.f32 0.0, %v4255
    %4257 = vmatmul.bf16.gmra.mxu0 %v4174
    %v4258 = vpop.f32.mrf.mxu0
    %v4259 = vadd.f32 0.0, %v4258
    %v4260 = vpop.f32.mrf.mxu0
    %v4261 = vadd.f32 0.0, %v4260
    %4262 = vdwg.mxu0
    %v4263 = vadd.f32 %v3769, %v4186
    %v4264 = vadd.f32 %v3798, %v4215
    %v4265 = vadd.f32 %v3827, %v4244
    %v4266 = vadd.f32 %v3771, %v4188
    %v4267 = vadd.f32 %v3800, %v4217
    %v4268 = vadd.f32 %v3829, %v4246
    %v4269 = vadd.f32 %v3774, %v4191
    %v4270 = vadd.f32 %v3803, %v4220
    %v4271 = vadd.f32 %v3832, %v4249
    %v4272 = vadd.f32 %v3776, %v4193
    %v4273 = vadd.f32 %v3805, %v4222
    %v4274 = vadd.f32 %v3834, %v4251
    %v4275 = vadd.f32 %v3779, %v4196
    %v4276 = vadd.f32 %v3808, %v4225
    %v4277 = vadd.f32 %v3837, %v4254
    %v4278 = vadd.f32 %v3781, %v4198
    %v4279 = vadd.f32 %v3810, %v4227
    %v4280 = vadd.f32 %v3839, %v4256
    %v4281 = vadd.f32 %v3784, %v4201
    %v4282 = vadd.f32 %v3813, %v4230
    %v4283 = vadd.f32 %v3842, %v4259
    %v4284 = vadd.f32 %v3786, %v4203
    %v4285 = vadd.f32 %v3815, %v4232
    %v4286 = vadd.f32 %v3844, %v4261
    %4287 = vrot.lane.b32.xlu0 %v3854, 64
    %v4288 = vpop.permute.xlu0 %4287
    %4289 = vrot.lane.b32.xlu0 %v3855, 64
    %v4290 = vpop.permute.xlu0 %4289
    %4291 = vrot.lane.b32.xlu0 %v3856, 64
    %v4292 = vpop.permute.xlu0 %4291
    %4293 = vrot.lane.b32.xlu0 %v3857, 64
    %v4294 = vpop.permute.xlu0 %4293
    %4295 = vrot.lane.b32.xlu0 %v3874, 64
    %v4296 = vpop.permute.xlu0 %4295
    %4297 = vrot.lane.b32.xlu0 %v3875, 64
    %v4298 = vpop.permute.xlu0 %4297
    %4299 = vrot.lane.b32.xlu0 %v3876, 64
    %v4300 = vpop.permute.xlu0 %4299
    %4301 = vrot.lane.b32.xlu0 %v3877, 64
    %v4302 = vpop.permute.xlu0 %4301
    %v4304 = vsel %vm3055, %v4288, 0
    %v4307 = vsel %vm3055, %v4290, 0
    %v4310 = vsel %vm3055, %v4292, 0
    %v4313 = vsel %vm3055, %v4294, 0
    %v4316 = vsel %vm3055, %v4296, 0
    %v4319 = vsel %vm3055, %v4298, 0
    %v4322 = vsel %vm3055, %v4300, 0
    %v4325 = vsel %vm3055, %v4302, 0
    %4327 = vmatpush.bf16.xpose.msra.mxu0 0
    %4328 = vmatpush.bf16.xpose.msra.mxu0 0
    %4329 = vmatpush.bf16.xpose.msra.mxu0 0
    %4330 = vmatpush.bf16.xpose.msra.mxu0 0
    %4331 = vmatpush.bf16.xpose.msra.mxu0 %v4325
    %4332 = vmatpush.bf16.xpose.msra.mxu0 %v4322
    %4333 = vmatpush.bf16.xpose.msra.mxu0 %v4319
    %4334 = vmatpush.bf16.xpose.msra.mxu0 %v4316
    %4335 = vmatmul.bf16.gmra.mxu0 %v4304
    %v4336 = vpop.f32.mrf.mxu0
    %v4337 = vadd.f32 0.0, %v4336
    %v4338 = vpop.f32.mrf.mxu0
    %v4339 = vadd.f32 0.0, %v4338
    %4340 = vmatmul.bf16.gmra.mxu0 %v4307
    %v4341 = vpop.f32.mrf.mxu0
    %v4342 = vadd.f32 0.0, %v4341
    %v4343 = vpop.f32.mrf.mxu0
    %v4344 = vadd.f32 0.0, %v4343
    %4345 = vmatmul.bf16.gmra.mxu0 %v4310
    %v4346 = vpop.f32.mrf.mxu0
    %v4347 = vadd.f32 0.0, %v4346
    %v4348 = vpop.f32.mrf.mxu0
    %v4349 = vadd.f32 0.0, %v4348
    %4350 = vmatmul.bf16.gmra.mxu0 %v4313
    %v4351 = vpop.f32.mrf.mxu0
    %v4352 = vadd.f32 0.0, %v4351
    %v4353 = vpop.f32.mrf.mxu0
    %v4354 = vadd.f32 0.0, %v4353
    %4355 = vdwg.mxu0
    %v4356 = vmul.f32 %v4337, 0.125
    %v4357 = vmul.f32 %v4339, 0.125
    %v4358 = vmul.f32 %v4342, 0.125
    %v4359 = vmul.f32 %v4344, 0.125
    %v4360 = vmul.f32 %v4347, 0.125
    %v4361 = vmul.f32 %v4349, 0.125
    %v4362 = vmul.f32 %v4352, 0.125
    %v4363 = vmul.f32 %v4354, 0.125
    %v4364 = vsel %vm2910, %v4356, -inf
    %v4365 = vsel %vm2911, %v4357, -inf
    %v4366 = vsel %vm2912, %v4358, -inf
    %v4367 = vsel %vm2913, %v4359, -inf
    %v4368 = vsel %vm2914, %v4360, -inf
    %v4369 = vsel %vm2915, %v4361, -inf
    %v4370 = vsel %vm2916, %v4362, -inf
    %v4371 = vsel %vm2917, %v4363, -inf
    %v4372 = vsel %vm3055, %v4364, -inf
    %4373 = vmax.xlane.f32.xlu0 %v4372
    %v4374 = vpop.xlane.xlu0 %4373
    %v4375 = vsel %vm3055, %v4365, -inf
    %4376 = vmax.xlane.f32.xlu0 %v4375
    %v4377 = vpop.xlane.xlu0 %4376
    %v4378 = vsel %vm3055, %v4366, -inf
    %4379 = vmax.xlane.f32.xlu0 %v4378
    %v4380 = vpop.xlane.xlu0 %4379
    %v4381 = vsel %vm3055, %v4367, -inf
    %4382 = vmax.xlane.f32.xlu0 %v4381
    %v4383 = vpop.xlane.xlu0 %4382
    %v4384 = vsel %vm3055, %v4368, -inf
    %4385 = vmax.xlane.f32.xlu0 %v4384
    %v4386 = vpop.xlane.xlu0 %4385
    %v4387 = vsel %vm3055, %v4369, -inf
    %4388 = vmax.xlane.f32.xlu0 %v4387
    %v4389 = vpop.xlane.xlu0 %4388
    %v4390 = vsel %vm3055, %v4370, -inf
    %4391 = vmax.xlane.f32.xlu0 %v4390
    %v4392 = vpop.xlane.xlu0 %4391
    %v4393 = vsel %vm3055, %v4371, -inf
    %4394 = vmax.xlane.f32.xlu0 %v4393
    %v4395 = vpop.xlane.xlu0 %4394
    %v4396 = vsub.f32 %v4364, %v4374
    %v4397 = vsub.f32 %v4365, %v4377
    %v4398 = vsub.f32 %v4366, %v4380
    %v4399 = vsub.f32 %v4367, %v4383
    %v4400 = vsub.f32 %v4368, %v4386
    %v4401 = vsub.f32 %v4369, %v4389
    %v4402 = vsub.f32 %v4370, %v4392
    %v4403 = vsub.f32 %v4371, %v4395
    %v4404 = vmul.f32 %v4396, 1.442695
    %v4405 = vpow.pop %v4404
    %v4406 = vmul.f32 %v4397, 1.442695
    %v4407 = vpow.pop %v4406
    %v4408 = vmul.f32 %v4398, 1.442695
    %v4409 = vpow.pop %v4408
    %v4410 = vmul.f32 %v4399, 1.442695
    %v4411 = vpow.pop %v4410
    %v4412 = vmul.f32 %v4400, 1.442695
    %v4413 = vpow.pop %v4412
    %v4414 = vmul.f32 %v4401, 1.442695
    %v4415 = vpow.pop %v4414
    %v4416 = vmul.f32 %v4402, 1.442695
    %v4417 = vpow.pop %v4416
    %v4418 = vmul.f32 %v4403, 1.442695
    %v4419 = vpow.pop %v4418
    %v4420 = vsel %vm3055, %v4405, 0.0
    %4421 = vadd.xlane.f32.xlu0 %v4420
    %v4422 = vpop.xlane.xlu0 %4421
    %v4423 = vsel %vm3055, %v4407, 0.0
    %4424 = vadd.xlane.f32.xlu0 %v4423
    %v4425 = vpop.xlane.xlu0 %4424
    %v4426 = vsel %vm3055, %v4409, 0.0
    %4427 = vadd.xlane.f32.xlu0 %v4426
    %v4428 = vpop.xlane.xlu0 %4427
    %v4429 = vsel %vm3055, %v4411, 0.0
    %4430 = vadd.xlane.f32.xlu0 %v4429
    %v4431 = vpop.xlane.xlu0 %4430
    %v4432 = vsel %vm3055, %v4413, 0.0
    %4433 = vadd.xlane.f32.xlu0 %v4432
    %v4434 = vpop.xlane.xlu0 %4433
    %v4435 = vsel %vm3055, %v4415, 0.0
    %4436 = vadd.xlane.f32.xlu0 %v4435
    %v4437 = vpop.xlane.xlu0 %4436
    %v4438 = vsel %vm3055, %v4417, 0.0
    %4439 = vadd.xlane.f32.xlu0 %v4438
    %v4440 = vpop.xlane.xlu0 %4439
    %v4441 = vsel %vm3055, %v4419, 0.0
    %4442 = vadd.xlane.f32.xlu0 %v4441
    %v4443 = vpop.xlane.xlu0 %4442
    %v4444 = vrcp.pop %v4422
    %v4445 = vrcp.pop %v4425
    %v4446 = vrcp.pop %v4428
    %v4447 = vrcp.pop %v4431
    %v4448 = vrcp.pop %v4434
    %v4449 = vrcp.pop %v4437
    %v4450 = vrcp.pop %v4440
    %v4451 = vrcp.pop %v4443
    %v4452 = vmul.f32 %v4405, %v4444
    %v4453 = vmul.f32 %v4407, %v4445
    %v4454 = vmul.f32 %v4409, %v4446
    %v4455 = vmul.f32 %v4411, %v4447
    %v4456 = vmul.f32 %v4413, %v4448
    %v4457 = vmul.f32 %v4415, %v4449
    %v4458 = vmul.f32 %v4417, %v4450
    %v4459 = vmul.f32 %v4419, %v4451
    %v4460 = vpack.c.bf16 %v4453, %v4452
    %v4461 = vpack.c.bf16 %v4455, %v4454
    %v4462 = vpack.c.bf16 %v4457, %v4456
    %v4463 = vpack.c.bf16 %v4459, %v4458
    %4464 = vrot.lane.b32.xlu0 %v4047, 64
    %v4465 = vpop.permute.xlu0 %4464
    %4466 = vrot.lane.b32.xlu0 %v4048, 64
    %v4467 = vpop.permute.xlu0 %4466
    %4468 = vrot.lane.b32.xlu0 %v4049, 64
    %v4469 = vpop.permute.xlu0 %4468
    %4470 = vrot.lane.b32.xlu0 %v4050, 64
    %v4471 = vpop.permute.xlu0 %4470
    %v4477 = vsel %vm3055, %v4460, 0
    %v4480 = vsel %vm3055, %v4461, 0
    %v4483 = vsel %vm3055, %v4462, 0
    %v4486 = vsel %vm3055, %v4463, 0
    %4488 = vmatpush.bf16.msra.mxu0 0
    %4489 = vmatpush.bf16.msra.mxu0 0
    %4490 = vmatpush.bf16.msra.mxu0 0
    %4491 = vmatpush.bf16.msra.mxu0 0
    %4492 = vmatpush.bf16.msra.mxu0 %v4471
    %4493 = vmatpush.bf16.msra.mxu0 %v4469
    %4494 = vmatpush.bf16.msra.mxu0 %v4467
    %4495 = vmatpush.bf16.msra.mxu0 %v4465
    %4496 = vmatmul.bf16.gmra.mxu0 %v4477
    %v4497 = vpop.f32.mrf.mxu0
    %v4498 = vadd.f32 0.0, %v4497
    %v4499 = vpop.f32.mrf.mxu0
    %v4500 = vadd.f32 0.0, %v4499
    %4501 = vmatmul.bf16.gmra.mxu0 %v4480
    %v4502 = vpop.f32.mrf.mxu0
    %v4503 = vadd.f32 0.0, %v4502
    %v4504 = vpop.f32.mrf.mxu0
    %v4505 = vadd.f32 0.0, %v4504
    %4506 = vmatmul.bf16.gmra.mxu0 %v4483
    %v4507 = vpop.f32.mrf.mxu0
    %v4508 = vadd.f32 0.0, %v4507
    %v4509 = vpop.f32.mrf.mxu0
    %v4510 = vadd.f32 0.0, %v4509
    %4511 = vmatmul.bf16.gmra.mxu0 %v4486
    %v4512 = vpop.f32.mrf.mxu0
    %v4513 = vadd.f32 0.0, %v4512
    %v4514 = vpop.f32.mrf.mxu0
    %v4515 = vadd.f32 0.0, %v4514
    %4516 = vdwg.mxu0
    %v4517 = vpack.c.bf16 %v4500, %v4498
    %v4518 = vpack.c.bf16 %v4505, %v4503
    %v4519 = vpack.c.bf16 %v4510, %v4508
    %v4520 = vpack.c.bf16 %v4515, %v4513
    %v4537 = vunpack.c.l.b16 %v2966
    %v4538 = vunpack.c.h.b16 %v2966
    %v4539 = vunpack.c.l.b16 %v2967
    %v4540 = vunpack.c.l.b16 %v2968
    %v4541 = vunpack.c.h.b16 %v2968
    %v4542 = vunpack.c.l.b16 %v2969
    %v4543 = vunpack.c.l.b16 %v2970
    %v4544 = vunpack.c.h.b16 %v2970
    %v4545 = vunpack.c.l.b16 %v2971
    %v4546 = vunpack.c.l.b16 %v2972
    %v4547 = vunpack.c.h.b16 %v2972
    %v4548 = vunpack.c.l.b16 %v2973
    %v4549 = vunpack.c.l.b16 %v2974
    %v4550 = vunpack.c.h.b16 %v2974
    %v4551 = vunpack.c.l.b16 %v2975
    %v4552 = vunpack.c.l.b16 %v2976
    %v4553 = vunpack.c.h.b16 %v2976
    %v4554 = vunpack.c.l.b16 %v2977
    %v4555 = vunpack.c.l.b16 %v2978
    %v4556 = vunpack.c.h.b16 %v2978
    %v4557 = vunpack.c.l.b16 %v2979
    %v4558 = vunpack.c.l.b16 %v2980
    %v4559 = vunpack.c.h.b16 %v2980
    %v4560 = vunpack.c.l.b16 %v2981
    %v4561 = vpack.c.b16 %v4540, %v4537
    %v4562 = vpack.c.b16 %v4541, %v4538
    %v4563 = vpack.c.b16 %v4542, %v4539
    %v4564 = vpack.c.b16 %v4546, %v4543
    %v4565 = vpack.c.b16 %v4547, %v4544
    %v4566 = vpack.c.b16 %v4548, %v4545
    %v4567 = vpack.c.b16 %v4552, %v4549
    %v4568 = vpack.c.b16 %v4553, %v4550
    %v4569 = vpack.c.b16 %v4554, %v4551
    %v4570 = vpack.c.b16 %v4558, %v4555
    %v4571 = vpack.c.b16 %v4559, %v4556
    %v4572 = vpack.c.b16 %v4560, %v4557
    %v4586 = vsel %vm3055, %v4517, 0
    %v4589 = vsel %vm3055, %v4518, 0
    %v4592 = vsel %vm3055, %v4519, 0
    %v4595 = vsel %vm3055, %v4520, 0
    %4597 = vmatpush.bf16.msra.mxu0 0
    %4598 = vmatpush.bf16.msra.mxu0 0
    %4599 = vmatpush.bf16.msra.mxu0 0
    %4600 = vmatpush.bf16.msra.mxu0 0
    %4601 = vmatpush.bf16.msra.mxu0 %v4570
    %4602 = vmatpush.bf16.msra.mxu0 %v4567
    %4603 = vmatpush.bf16.msra.mxu0 %v4564
    %4604 = vmatpush.bf16.msra.mxu0 %v4561
    %4605 = vmatmul.bf16.gmra.mxu0 %v4586
    %v4606 = vpop.f32.mrf.mxu0
    %v4607 = vadd.f32 0.0, %v4606
    %v4608 = vpop.f32.mrf.mxu0
    %v4609 = vadd.f32 0.0, %v4608
    %4610 = vmatmul.bf16.gmra.mxu0 %v4589
    %v4611 = vpop.f32.mrf.mxu0
    %v4612 = vadd.f32 0.0, %v4611
    %v4613 = vpop.f32.mrf.mxu0
    %v4614 = vadd.f32 0.0, %v4613
    %4615 = vmatmul.bf16.gmra.mxu0 %v4592
    %v4616 = vpop.f32.mrf.mxu0
    %v4617 = vadd.f32 0.0, %v4616
    %v4618 = vpop.f32.mrf.mxu0
    %v4619 = vadd.f32 0.0, %v4618
    %4620 = vmatmul.bf16.gmra.mxu0 %v4595
    %v4621 = vpop.f32.mrf.mxu0
    %v4622 = vadd.f32 0.0, %v4621
    %v4623 = vpop.f32.mrf.mxu0
    %v4624 = vadd.f32 0.0, %v4623
    %4625 = vdwg.mxu0
    %4626 = vmatpush.bf16.msra.mxu0 0
    %4627 = vmatpush.bf16.msra.mxu0 0
    %4628 = vmatpush.bf16.msra.mxu0 0
    %4629 = vmatpush.bf16.msra.mxu0 0
    %4630 = vmatpush.bf16.msra.mxu0 %v4571
    %4631 = vmatpush.bf16.msra.mxu0 %v4568
    %4632 = vmatpush.bf16.msra.mxu0 %v4565
    %4633 = vmatpush.bf16.msra.mxu0 %v4562
    %4634 = vmatmul.bf16.gmra.mxu0 %v4586
    %v4635 = vpop.f32.mrf.mxu0
    %v4636 = vadd.f32 0.0, %v4635
    %v4637 = vpop.f32.mrf.mxu0
    %v4638 = vadd.f32 0.0, %v4637
    %4639 = vmatmul.bf16.gmra.mxu0 %v4589
    %v4640 = vpop.f32.mrf.mxu0
    %v4641 = vadd.f32 0.0, %v4640
    %v4642 = vpop.f32.mrf.mxu0
    %v4643 = vadd.f32 0.0, %v4642
    %4644 = vmatmul.bf16.gmra.mxu0 %v4592
    %v4645 = vpop.f32.mrf.mxu0
    %v4646 = vadd.f32 0.0, %v4645
    %v4647 = vpop.f32.mrf.mxu0
    %v4648 = vadd.f32 0.0, %v4647
    %4649 = vmatmul.bf16.gmra.mxu0 %v4595
    %v4650 = vpop.f32.mrf.mxu0
    %v4651 = vadd.f32 0.0, %v4650
    %v4652 = vpop.f32.mrf.mxu0
    %v4653 = vadd.f32 0.0, %v4652
    %4654 = vdwg.mxu0
    %4655 = vmatpush.bf16.msra.mxu0 0
    %4656 = vmatpush.bf16.msra.mxu0 0
    %4657 = vmatpush.bf16.msra.mxu0 0
    %4658 = vmatpush.bf16.msra.mxu0 0
    %4659 = vmatpush.bf16.msra.mxu0 %v4572
    %4660 = vmatpush.bf16.msra.mxu0 %v4569
    %4661 = vmatpush.bf16.msra.mxu0 %v4566
    %4662 = vmatpush.bf16.msra.mxu0 %v4563
    %4663 = vmatmul.bf16.gmra.mxu0 %v4586
    %v4664 = vpop.f32.mrf.mxu0
    %v4665 = vadd.f32 0.0, %v4664
    %v4666 = vpop.f32.mrf.mxu0
    %v4667 = vadd.f32 0.0, %v4666
    %4668 = vmatmul.bf16.gmra.mxu0 %v4589
    %v4669 = vpop.f32.mrf.mxu0
    %v4670 = vadd.f32 0.0, %v4669
    %v4671 = vpop.f32.mrf.mxu0
    %v4672 = vadd.f32 0.0, %v4671
    %4673 = vmatmul.bf16.gmra.mxu0 %v4592
    %v4674 = vpop.f32.mrf.mxu0
    %v4675 = vadd.f32 0.0, %v4674
    %v4676 = vpop.f32.mrf.mxu0
    %v4677 = vadd.f32 0.0, %v4676
    %4678 = vmatmul.bf16.gmra.mxu0 %v4595
    %v4679 = vpop.f32.mrf.mxu0
    %v4680 = vadd.f32 0.0, %v4679
    %v4681 = vpop.f32.mrf.mxu0
    %v4682 = vadd.f32 0.0, %v4681
    %4683 = vdwg.mxu0
    %v4684 = vadd.f32 %v4263, %v4607
    %v4685 = vadd.f32 %v4264, %v4636
    %v4686 = vadd.f32 %v4265, %v4665
    %v4687 = vadd.f32 %v4266, %v4609
    %v4688 = vadd.f32 %v4267, %v4638
    %v4689 = vadd.f32 %v4268, %v4667
    %v4690 = vadd.f32 %v4269, %v4612
    %v4691 = vadd.f32 %v4270, %v4641
    %v4692 = vadd.f32 %v4271, %v4670
    %v4693 = vadd.f32 %v4272, %v4614
    %v4694 = vadd.f32 %v4273, %v4643
    %v4695 = vadd.f32 %v4274, %v4672
    %v4696 = vadd.f32 %v4275, %v4617
    %v4697 = vadd.f32 %v4276, %v4646
    %v4698 = vadd.f32 %v4277, %v4675
    %v4699 = vadd.f32 %v4278, %v4619
    %v4700 = vadd.f32 %v4279, %v4648
    %v4701 = vadd.f32 %v4280, %v4677
    %v4702 = vadd.f32 %v4281, %v4622
    %v4703 = vadd.f32 %v4282, %v4651
    %v4704 = vadd.f32 %v4283, %v4680
    %v4705 = vadd.f32 %v4284, %v4624
    %v4706 = vadd.f32 %v4285, %v4653
    %v4707 = vadd.f32 %v4286, %v4682
    %v4708 = vunpack.c.l.b16 %v2820
    %v4709 = vunpack.c.l.b16 %v2825
    %v4710 = vunpack.c.l.b16 %v2830
    %v4711 = vunpack.c.l.b16 %v2835
    %v4712 = vunpack.c.l.b16 %v2840
    %v4713 = vunpack.c.l.b16 %v2845
    %v4714 = vunpack.c.l.b16 %v2850
    %v4715 = vunpack.c.l.b16 %v2855
    %v4716 = vpack.c.b16 %v4709, %v4708
    %v4717 = vpack.c.b16 %v4711, %v4710
    %v4718 = vpack.c.b16 %v4713, %v4712
    %v4719 = vpack.c.b16 %v4715, %v4714
    %v4720 = vunpack.c.h.b16 %v2821
    %v4721 = vunpack.c.h.b16 %v2826
    %v4722 = vunpack.c.h.b16 %v2831
    %v4723 = vunpack.c.h.b16 %v2836
    %v4724 = vunpack.c.h.b16 %v2841
    %v4725 = vunpack.c.h.b16 %v2846
    %v4726 = vunpack.c.h.b16 %v2851
    %v4727 = vunpack.c.h.b16 %v2856
    %v4728 = vpack.c.b16 %v4721, %v4720
    %v4729 = vpack.c.b16 %v4723, %v4722
    %v4730 = vpack.c.b16 %v4725, %v4724
    %v4731 = vpack.c.b16 %v4727, %v4726
    %v4733 = vsel %vm3055, %v4716, 0
    %v4736 = vsel %vm3055, %v4717, 0
    %v4739 = vsel %vm3055, %v4718, 0
    %v4742 = vsel %vm3055, %v4719, 0
    %v4745 = vsel %vm3055, %v4728, 0
    %v4748 = vsel %vm3055, %v4729, 0
    %v4751 = vsel %vm3055, %v4730, 0
    %v4754 = vsel %vm3055, %v4731, 0
    %4756 = vmatpush.bf16.xpose.msra.mxu0 0
    %4757 = vmatpush.bf16.xpose.msra.mxu0 0
    %4758 = vmatpush.bf16.xpose.msra.mxu0 0
    %4759 = vmatpush.bf16.xpose.msra.mxu0 0
    %4760 = vmatpush.bf16.xpose.msra.mxu0 %v4754
    %4761 = vmatpush.bf16.xpose.msra.mxu0 %v4751
    %4762 = vmatpush.bf16.xpose.msra.mxu0 %v4748
    %4763 = vmatpush.bf16.xpose.msra.mxu0 %v4745
    %4764 = vmatmul.bf16.gmra.mxu0 %v4733
    %v4765 = vpop.f32.mrf.mxu0
    %v4766 = vadd.f32 0.0, %v4765
    %v4767 = vpop.f32.mrf.mxu0
    %v4768 = vadd.f32 0.0, %v4767
    %4769 = vmatmul.bf16.gmra.mxu0 %v4736
    %v4770 = vpop.f32.mrf.mxu0
    %v4771 = vadd.f32 0.0, %v4770
    %v4772 = vpop.f32.mrf.mxu0
    %v4773 = vadd.f32 0.0, %v4772
    %4774 = vmatmul.bf16.gmra.mxu0 %v4739
    %v4775 = vpop.f32.mrf.mxu0
    %v4776 = vadd.f32 0.0, %v4775
    %v4777 = vpop.f32.mrf.mxu0
    %v4778 = vadd.f32 0.0, %v4777
    %4779 = vmatmul.bf16.gmra.mxu0 %v4742
    %v4780 = vpop.f32.mrf.mxu0
    %v4781 = vadd.f32 0.0, %v4780
    %v4782 = vpop.f32.mrf.mxu0
    %v4783 = vadd.f32 0.0, %v4782
    %4784 = vdwg.mxu0
    %v4785 = vmul.f32 %v4766, 0.125
    %v4786 = vmul.f32 %v4768, 0.125
    %v4787 = vmul.f32 %v4771, 0.125
    %v4788 = vmul.f32 %v4773, 0.125
    %v4789 = vmul.f32 %v4776, 0.125
    %v4790 = vmul.f32 %v4778, 0.125
    %v4791 = vmul.f32 %v4781, 0.125
    %v4792 = vmul.f32 %v4783, 0.125
    %v4793 = vsel %vm2910, %v4785, -inf
    %v4794 = vsel %vm2911, %v4786, -inf
    %v4795 = vsel %vm2912, %v4787, -inf
    %v4796 = vsel %vm2913, %v4788, -inf
    %v4797 = vsel %vm2914, %v4789, -inf
    %v4798 = vsel %vm2915, %v4790, -inf
    %v4799 = vsel %vm2916, %v4791, -inf
    %v4800 = vsel %vm2917, %v4792, -inf
    %v4801 = vsel %vm3055, %v4793, -inf
    %4802 = vmax.xlane.f32.xlu0 %v4801
    %v4803 = vpop.xlane.xlu0 %4802
    %v4804 = vsel %vm3055, %v4794, -inf
    %4805 = vmax.xlane.f32.xlu0 %v4804
    %v4806 = vpop.xlane.xlu0 %4805
    %v4807 = vsel %vm3055, %v4795, -inf
    %4808 = vmax.xlane.f32.xlu0 %v4807
    %v4809 = vpop.xlane.xlu0 %4808
    %v4810 = vsel %vm3055, %v4796, -inf
    %4811 = vmax.xlane.f32.xlu0 %v4810
    %v4812 = vpop.xlane.xlu0 %4811
    %v4813 = vsel %vm3055, %v4797, -inf
    %4814 = vmax.xlane.f32.xlu0 %v4813
    %v4815 = vpop.xlane.xlu0 %4814
    %v4816 = vsel %vm3055, %v4798, -inf
    %4817 = vmax.xlane.f32.xlu0 %v4816
    %v4818 = vpop.xlane.xlu0 %4817
    %v4819 = vsel %vm3055, %v4799, -inf
    %4820 = vmax.xlane.f32.xlu0 %v4819
    %v4821 = vpop.xlane.xlu0 %4820
    %v4822 = vsel %vm3055, %v4800, -inf
    %4823 = vmax.xlane.f32.xlu0 %v4822
    %v4824 = vpop.xlane.xlu0 %4823
    %v4825 = vsub.f32 %v4793, %v4803
    %v4826 = vsub.f32 %v4794, %v4806
    %v4827 = vsub.f32 %v4795, %v4809
    %v4828 = vsub.f32 %v4796, %v4812
    %v4829 = vsub.f32 %v4797, %v4815
    %v4830 = vsub.f32 %v4798, %v4818
    %v4831 = vsub.f32 %v4799, %v4821
    %v4832 = vsub.f32 %v4800, %v4824
    %v4833 = vmul.f32 %v4825, 1.442695
    %v4834 = vpow.pop %v4833
    %v4835 = vmul.f32 %v4826, 1.442695
    %v4836 = vpow.pop %v4835
    %v4837 = vmul.f32 %v4827, 1.442695
    %v4838 = vpow.pop %v4837
    %v4839 = vmul.f32 %v4828, 1.442695
    %v4840 = vpow.pop %v4839
    %v4841 = vmul.f32 %v4829, 1.442695
    %v4842 = vpow.pop %v4841
    %v4843 = vmul.f32 %v4830, 1.442695
    %v4844 = vpow.pop %v4843
    %v4845 = vmul.f32 %v4831, 1.442695
    %v4846 = vpow.pop %v4845
    %v4847 = vmul.f32 %v4832, 1.442695
    %v4848 = vpow.pop %v4847
    %v4849 = vsel %vm3055, %v4834, 0.0
    %4850 = vadd.xlane.f32.xlu0 %v4849
    %v4851 = vpop.xlane.xlu0 %4850
    %v4852 = vsel %vm3055, %v4836, 0.0
    %4853 = vadd.xlane.f32.xlu0 %v4852
    %v4854 = vpop.xlane.xlu0 %4853
    %v4855 = vsel %vm3055, %v4838, 0.0
    %4856 = vadd.xlane.f32.xlu0 %v4855
    %v4857 = vpop.xlane.xlu0 %4856
    %v4858 = vsel %vm3055, %v4840, 0.0
    %4859 = vadd.xlane.f32.xlu0 %v4858
    %v4860 = vpop.xlane.xlu0 %4859
    %v4861 = vsel %vm3055, %v4842, 0.0
    %4862 = vadd.xlane.f32.xlu0 %v4861
    %v4863 = vpop.xlane.xlu0 %4862
    %v4864 = vsel %vm3055, %v4844, 0.0
    %4865 = vadd.xlane.f32.xlu0 %v4864
    %v4866 = vpop.xlane.xlu0 %4865
    %v4867 = vsel %vm3055, %v4846, 0.0
    %4868 = vadd.xlane.f32.xlu0 %v4867
    %v4869 = vpop.xlane.xlu0 %4868
    %v4870 = vsel %vm3055, %v4848, 0.0
    %4871 = vadd.xlane.f32.xlu0 %v4870
    %v4872 = vpop.xlane.xlu0 %4871
    %v4873 = vrcp.pop %v4851
    %v4874 = vrcp.pop %v4854
    %v4875 = vrcp.pop %v4857
    %v4876 = vrcp.pop %v4860
    %v4877 = vrcp.pop %v4863
    %v4878 = vrcp.pop %v4866
    %v4879 = vrcp.pop %v4869
    %v4880 = vrcp.pop %v4872
    %v4881 = vmul.f32 %v4834, %v4873
    %v4882 = vmul.f32 %v4836, %v4874
    %v4883 = vmul.f32 %v4838, %v4875
    %v4884 = vmul.f32 %v4840, %v4876
    %v4885 = vmul.f32 %v4842, %v4877
    %v4886 = vmul.f32 %v4844, %v4878
    %v4887 = vmul.f32 %v4846, %v4879
    %v4888 = vmul.f32 %v4848, %v4880
    %v4889 = vpack.c.bf16 %v4882, %v4881
    %v4890 = vpack.c.bf16 %v4884, %v4883
    %v4891 = vpack.c.bf16 %v4886, %v4885
    %v4892 = vpack.c.bf16 %v4888, %v4887
    %v4901 = vunpack.c.l.b16 %v2823
    %v4902 = vunpack.c.l.b16 %v2828
    %v4903 = vunpack.c.l.b16 %v2833
    %v4904 = vunpack.c.l.b16 %v2838
    %v4905 = vunpack.c.l.b16 %v2843
    %v4906 = vunpack.c.l.b16 %v2848
    %v4907 = vunpack.c.l.b16 %v2853
    %v4908 = vunpack.c.l.b16 %v2858
    %v4909 = vpack.c.b16 %v4902, %v4901
    %v4910 = vpack.c.b16 %v4904, %v4903
    %v4911 = vpack.c.b16 %v4906, %v4905
    %v4912 = vpack.c.b16 %v4908, %v4907
    %v4918 = vsel %vm3055, %v4889, 0
    %v4921 = vsel %vm3055, %v4890, 0
    %v4924 = vsel %vm3055, %v4891, 0
    %v4927 = vsel %vm3055, %v4892, 0
    %4929 = vmatpush.bf16.msra.mxu0 0
    %4930 = vmatpush.bf16.msra.mxu0 0
    %4931 = vmatpush.bf16.msra.mxu0 0
    %4932 = vmatpush.bf16.msra.mxu0 0
    %4933 = vmatpush.bf16.msra.mxu0 %v4912
    %4934 = vmatpush.bf16.msra.mxu0 %v4911
    %4935 = vmatpush.bf16.msra.mxu0 %v4910
    %4936 = vmatpush.bf16.msra.mxu0 %v4909
    %4937 = vmatmul.bf16.gmra.mxu0 %v4918
    %v4938 = vpop.f32.mrf.mxu0
    %v4939 = vadd.f32 0.0, %v4938
    %v4940 = vpop.f32.mrf.mxu0
    %v4941 = vadd.f32 0.0, %v4940
    %4942 = vmatmul.bf16.gmra.mxu0 %v4921
    %v4943 = vpop.f32.mrf.mxu0
    %v4944 = vadd.f32 0.0, %v4943
    %v4945 = vpop.f32.mrf.mxu0
    %v4946 = vadd.f32 0.0, %v4945
    %4947 = vmatmul.bf16.gmra.mxu0 %v4924
    %v4948 = vpop.f32.mrf.mxu0
    %v4949 = vadd.f32 0.0, %v4948
    %v4950 = vpop.f32.mrf.mxu0
    %v4951 = vadd.f32 0.0, %v4950
    %4952 = vmatmul.bf16.gmra.mxu0 %v4927
    %v4953 = vpop.f32.mrf.mxu0
    %v4954 = vadd.f32 0.0, %v4953
    %v4955 = vpop.f32.mrf.mxu0
    %v4956 = vadd.f32 0.0, %v4955
    %4957 = vdwg.mxu0
    %v4958 = vpack.c.bf16 %v4941, %v4939
    %v4959 = vpack.c.bf16 %v4946, %v4944
    %v4960 = vpack.c.bf16 %v4951, %v4949
    %v4961 = vpack.c.bf16 %v4956, %v4954
    %v4978 = vunpack.c.l.b16 %v2982
    %v4979 = vunpack.c.h.b16 %v2982
    %v4980 = vunpack.c.l.b16 %v2983
    %v4981 = vunpack.c.l.b16 %v2984
    %v4982 = vunpack.c.h.b16 %v2984
    %v4983 = vunpack.c.l.b16 %v2985
    %v4984 = vunpack.c.l.b16 %v2986
    %v4985 = vunpack.c.h.b16 %v2986
    %v4986 = vunpack.c.l.b16 %v2987
    %v4987 = vunpack.c.l.b16 %v2988
    %v4988 = vunpack.c.h.b16 %v2988
    %v4989 = vunpack.c.l.b16 %v2989
    %v4990 = vunpack.c.l.b16 %v2990
    %v4991 = vunpack.c.h.b16 %v2990
    %v4992 = vunpack.c.l.b16 %v2991
    %v4993 = vunpack.c.l.b16 %v2992
    %v4994 = vunpack.c.h.b16 %v2992
    %v4995 = vunpack.c.l.b16 %v2993
    %v4996 = vunpack.c.l.b16 %v2994
    %v4997 = vunpack.c.h.b16 %v2994
    %v4998 = vunpack.c.l.b16 %v2995
    %v4999 = vunpack.c.l.b16 %v2996
    %v5000 = vunpack.c.h.b16 %v2996
    %v5001 = vunpack.c.l.b16 %v2997
    %v5002 = vpack.c.b16 %v4981, %v4978
    %v5003 = vpack.c.b16 %v4982, %v4979
    %v5004 = vpack.c.b16 %v4983, %v4980
    %v5005 = vpack.c.b16 %v4987, %v4984
    %v5006 = vpack.c.b16 %v4988, %v4985
    %v5007 = vpack.c.b16 %v4989, %v4986
    %v5008 = vpack.c.b16 %v4993, %v4990
    %v5009 = vpack.c.b16 %v4994, %v4991
    %v5010 = vpack.c.b16 %v4995, %v4992
    %v5011 = vpack.c.b16 %v4999, %v4996
    %v5012 = vpack.c.b16 %v5000, %v4997
    %v5013 = vpack.c.b16 %v5001, %v4998
    %v5027 = vsel %vm3055, %v4958, 0
    %v5030 = vsel %vm3055, %v4959, 0
    %v5033 = vsel %vm3055, %v4960, 0
    %v5036 = vsel %vm3055, %v4961, 0
    %5038 = vmatpush.bf16.msra.mxu0 0
    %5039 = vmatpush.bf16.msra.mxu0 0
    %5040 = vmatpush.bf16.msra.mxu0 0
    %5041 = vmatpush.bf16.msra.mxu0 0
    %5042 = vmatpush.bf16.msra.mxu0 %v5011
    %5043 = vmatpush.bf16.msra.mxu0 %v5008
    %5044 = vmatpush.bf16.msra.mxu0 %v5005
    %5045 = vmatpush.bf16.msra.mxu0 %v5002
    %5046 = vmatmul.bf16.gmra.mxu0 %v5027
    %v5047 = vpop.f32.mrf.mxu0
    %v5048 = vadd.f32 0.0, %v5047
    %v5049 = vpop.f32.mrf.mxu0
    %v5050 = vadd.f32 0.0, %v5049
    %5051 = vmatmul.bf16.gmra.mxu0 %v5030
    %v5052 = vpop.f32.mrf.mxu0
    %v5053 = vadd.f32 0.0, %v5052
    %v5054 = vpop.f32.mrf.mxu0
    %v5055 = vadd.f32 0.0, %v5054
    %5056 = vmatmul.bf16.gmra.mxu0 %v5033
    %v5057 = vpop.f32.mrf.mxu0
    %v5058 = vadd.f32 0.0, %v5057
    %v5059 = vpop.f32.mrf.mxu0
    %v5060 = vadd.f32 0.0, %v5059
    %5061 = vmatmul.bf16.gmra.mxu0 %v5036
    %v5062 = vpop.f32.mrf.mxu0
    %v5063 = vadd.f32 0.0, %v5062
    %v5064 = vpop.f32.mrf.mxu0
    %v5065 = vadd.f32 0.0, %v5064
    %5066 = vdwg.mxu0
    %5067 = vmatpush.bf16.msra.mxu0 0
    %5068 = vmatpush.bf16.msra.mxu0 0
    %5069 = vmatpush.bf16.msra.mxu0 0
    %5070 = vmatpush.bf16.msra.mxu0 0
    %5071 = vmatpush.bf16.msra.mxu0 %v5012
    %5072 = vmatpush.bf16.msra.mxu0 %v5009
    %5073 = vmatpush.bf16.msra.mxu0 %v5006
    %5074 = vmatpush.bf16.msra.mxu0 %v5003
    %5075 = vmatmul.bf16.gmra.mxu0 %v5027
    %v5076 = vpop.f32.mrf.mxu0
    %v5077 = vadd.f32 0.0, %v5076
    %v5078 = vpop.f32.mrf.mxu0
    %v5079 = vadd.f32 0.0, %v5078
    %5080 = vmatmul.bf16.gmra.mxu0 %v5030
    %v5081 = vpop.f32.mrf.mxu0
    %v5082 = vadd.f32 0.0, %v5081
    %v5083 = vpop.f32.mrf.mxu0
    %v5084 = vadd.f32 0.0, %v5083
    %5085 = vmatmul.bf16.gmra.mxu0 %v5033
    %v5086 = vpop.f32.mrf.mxu0
    %v5087 = vadd.f32 0.0, %v5086
    %v5088 = vpop.f32.mrf.mxu0
    %v5089 = vadd.f32 0.0, %v5088
    %5090 = vmatmul.bf16.gmra.mxu0 %v5036
    %v5091 = vpop.f32.mrf.mxu0
    %v5092 = vadd.f32 0.0, %v5091
    %v5093 = vpop.f32.mrf.mxu0
    %v5094 = vadd.f32 0.0, %v5093
    %5095 = vdwg.mxu0
    %5096 = vmatpush.bf16.msra.mxu0 0
    %5097 = vmatpush.bf16.msra.mxu0 0
    %5098 = vmatpush.bf16.msra.mxu0 0
    %5099 = vmatpush.bf16.msra.mxu0 0
    %5100 = vmatpush.bf16.msra.mxu0 %v5013
    %5101 = vmatpush.bf16.msra.mxu0 %v5010
    %5102 = vmatpush.bf16.msra.mxu0 %v5007
    %5103 = vmatpush.bf16.msra.mxu0 %v5004
    %5104 = vmatmul.bf16.gmra.mxu0 %v5027
    %v5105 = vpop.f32.mrf.mxu0
    %v5106 = vadd.f32 0.0, %v5105
    %v5107 = vpop.f32.mrf.mxu0
    %v5108 = vadd.f32 0.0, %v5107
    %5109 = vmatmul.bf16.gmra.mxu0 %v5030
    %v5110 = vpop.f32.mrf.mxu0
    %v5111 = vadd.f32 0.0, %v5110
    %v5112 = vpop.f32.mrf.mxu0
    %v5113 = vadd.f32 0.0, %v5112
    %5114 = vmatmul.bf16.gmra.mxu0 %v5033
    %v5115 = vpop.f32.mrf.mxu0
    %v5116 = vadd.f32 0.0, %v5115
    %v5117 = vpop.f32.mrf.mxu0
    %v5118 = vadd.f32 0.0, %v5117
    %5119 = vmatmul.bf16.gmra.mxu0 %v5036
    %v5120 = vpop.f32.mrf.mxu0
    %v5121 = vadd.f32 0.0, %v5120
    %v5122 = vpop.f32.mrf.mxu0
    %v5123 = vadd.f32 0.0, %v5122
    %5124 = vdwg.mxu0
    %v5125 = vadd.f32 %v4684, %v5048
    %v5126 = vadd.f32 %v4685, %v5077
    %v5127 = vadd.f32 %v4686, %v5106
    %v5128 = vadd.f32 %v4687, %v5050
    %v5129 = vadd.f32 %v4688, %v5079
    %v5130 = vadd.f32 %v4689, %v5108
    %v5131 = vadd.f32 %v4690, %v5053
    %v5132 = vadd.f32 %v4691, %v5082
    %v5133 = vadd.f32 %v4692, %v5111
    %v5134 = vadd.f32 %v4693, %v5055
    %v5135 = vadd.f32 %v4694, %v5084
    %v5136 = vadd.f32 %v4695, %v5113
    %v5137 = vadd.f32 %v4696, %v5058
    %v5138 = vadd.f32 %v4697, %v5087
    %v5139 = vadd.f32 %v4698, %v5116
    %v5140 = vadd.f32 %v4699, %v5060
    %v5141 = vadd.f32 %v4700, %v5089
    %v5142 = vadd.f32 %v4701, %v5118
    %v5143 = vadd.f32 %v4702, %v5063
    %v5144 = vadd.f32 %v4703, %v5092
    %v5145 = vadd.f32 %v4704, %v5121
    %v5146 = vadd.f32 %v4705, %v5065
    %v5147 = vadd.f32 %v4706, %v5094
    %v5148 = vadd.f32 %v4707, %v5123
    %5149 = vrot.lane.b32.xlu0 %v4716, 64
    %v5150 = vpop.permute.xlu0 %5149
    %5151 = vrot.lane.b32.xlu0 %v4717, 64
    %v5152 = vpop.permute.xlu0 %5151
    %5153 = vrot.lane.b32.xlu0 %v4718, 64
    %v5154 = vpop.permute.xlu0 %5153
    %5155 = vrot.lane.b32.xlu0 %v4719, 64
    %v5156 = vpop.permute.xlu0 %5155
    %5157 = vrot.lane.b32.xlu0 %v4728, 64
    %v5158 = vpop.permute.xlu0 %5157
    %5159 = vrot.lane.b32.xlu0 %v4729, 64
    %v5160 = vpop.permute.xlu0 %5159
    %5161 = vrot.lane.b32.xlu0 %v4730, 64
    %v5162 = vpop.permute.xlu0 %5161
    %5163 = vrot.lane.b32.xlu0 %v4731, 64
    %v5164 = vpop.permute.xlu0 %5163
    %v5166 = vsel %vm3055, %v5150, 0
    %v5169 = vsel %vm3055, %v5152, 0
    %v5172 = vsel %vm3055, %v5154, 0
    %v5175 = vsel %vm3055, %v5156, 0
    %v5178 = vsel %vm3055, %v5158, 0
    %v5181 = vsel %vm3055, %v5160, 0
    %v5184 = vsel %vm3055, %v5162, 0
    %v5187 = vsel %vm3055, %v5164, 0
    %5189 = vmatpush.bf16.xpose.msra.mxu0 0
    %5190 = vmatpush.bf16.xpose.msra.mxu0 0
    %5191 = vmatpush.bf16.xpose.msra.mxu0 0
    %5192 = vmatpush.bf16.xpose.msra.mxu0 0
    %5193 = vmatpush.bf16.xpose.msra.mxu0 %v5187
    %5194 = vmatpush.bf16.xpose.msra.mxu0 %v5184
    %5195 = vmatpush.bf16.xpose.msra.mxu0 %v5181
    %5196 = vmatpush.bf16.xpose.msra.mxu0 %v5178
    %5197 = vmatmul.bf16.gmra.mxu0 %v5166
    %v5198 = vpop.f32.mrf.mxu0
    %v5199 = vadd.f32 0.0, %v5198
    %v5200 = vpop.f32.mrf.mxu0
    %v5201 = vadd.f32 0.0, %v5200
    %5202 = vmatmul.bf16.gmra.mxu0 %v5169
    %v5203 = vpop.f32.mrf.mxu0
    %v5204 = vadd.f32 0.0, %v5203
    %v5205 = vpop.f32.mrf.mxu0
    %v5206 = vadd.f32 0.0, %v5205
    %5207 = vmatmul.bf16.gmra.mxu0 %v5172
    %v5208 = vpop.f32.mrf.mxu0
    %v5209 = vadd.f32 0.0, %v5208
    %v5210 = vpop.f32.mrf.mxu0
    %v5211 = vadd.f32 0.0, %v5210
    %5212 = vmatmul.bf16.gmra.mxu0 %v5175
    %v5213 = vpop.f32.mrf.mxu0
    %v5214 = vadd.f32 0.0, %v5213
    %v5215 = vpop.f32.mrf.mxu0
    %v5216 = vadd.f32 0.0, %v5215
    %5217 = vdwg.mxu0
    %v5218 = vmul.f32 %v5199, 0.125
    %v5219 = vmul.f32 %v5201, 0.125
    %v5220 = vmul.f32 %v5204, 0.125
    %v5221 = vmul.f32 %v5206, 0.125
    %v5222 = vmul.f32 %v5209, 0.125
    %v5223 = vmul.f32 %v5211, 0.125
    %v5224 = vmul.f32 %v5214, 0.125
    %v5225 = vmul.f32 %v5216, 0.125
    %v5226 = vsel %vm2910, %v5218, -inf
    %v5227 = vsel %vm2911, %v5219, -inf
    %v5228 = vsel %vm2912, %v5220, -inf
    %v5229 = vsel %vm2913, %v5221, -inf
    %v5230 = vsel %vm2914, %v5222, -inf
    %v5231 = vsel %vm2915, %v5223, -inf
    %v5232 = vsel %vm2916, %v5224, -inf
    %v5233 = vsel %vm2917, %v5225, -inf
    %v5234 = vsel %vm3055, %v5226, -inf
    %5235 = vmax.xlane.f32.xlu0 %v5234
    %v5236 = vpop.xlane.xlu0 %5235
    %v5237 = vsel %vm3055, %v5227, -inf
    %5238 = vmax.xlane.f32.xlu0 %v5237
    %v5239 = vpop.xlane.xlu0 %5238
    %v5240 = vsel %vm3055, %v5228, -inf
    %5241 = vmax.xlane.f32.xlu0 %v5240
    %v5242 = vpop.xlane.xlu0 %5241
    %v5243 = vsel %vm3055, %v5229, -inf
    %5244 = vmax.xlane.f32.xlu0 %v5243
    %v5245 = vpop.xlane.xlu0 %5244
    %v5246 = vsel %vm3055, %v5230, -inf
    %5247 = vmax.xlane.f32.xlu0 %v5246
    %v5248 = vpop.xlane.xlu0 %5247
    %v5249 = vsel %vm3055, %v5231, -inf
    %5250 = vmax.xlane.f32.xlu0 %v5249
    %v5251 = vpop.xlane.xlu0 %5250
    %v5252 = vsel %vm3055, %v5232, -inf
    %5253 = vmax.xlane.f32.xlu0 %v5252
    %v5254 = vpop.xlane.xlu0 %5253
    %v5255 = vsel %vm3055, %v5233, -inf
    %5256 = vmax.xlane.f32.xlu0 %v5255
    %v5257 = vpop.xlane.xlu0 %5256
    %v5258 = vsub.f32 %v5226, %v5236
    %v5259 = vsub.f32 %v5227, %v5239
    %v5260 = vsub.f32 %v5228, %v5242
    %v5261 = vsub.f32 %v5229, %v5245
    %v5262 = vsub.f32 %v5230, %v5248
    %v5263 = vsub.f32 %v5231, %v5251
    %v5264 = vsub.f32 %v5232, %v5254
    %v5265 = vsub.f32 %v5233, %v5257
    %v5266 = vmul.f32 %v5258, 1.442695
    %v5267 = vpow.pop %v5266
    %v5268 = vmul.f32 %v5259, 1.442695
    %v5269 = vpow.pop %v5268
    %v5270 = vmul.f32 %v5260, 1.442695
    %v5271 = vpow.pop %v5270
    %v5272 = vmul.f32 %v5261, 1.442695
    %v5273 = vpow.pop %v5272
    %v5274 = vmul.f32 %v5262, 1.442695
    %v5275 = vpow.pop %v5274
    %v5276 = vmul.f32 %v5263, 1.442695
    %v5277 = vpow.pop %v5276
    %v5278 = vmul.f32 %v5264, 1.442695
    %v5279 = vpow.pop %v5278
    %v5280 = vmul.f32 %v5265, 1.442695
    %v5281 = vpow.pop %v5280
    %v5282 = vsel %vm3055, %v5267, 0.0
    %5283 = vadd.xlane.f32.xlu0 %v5282
    %v5284 = vpop.xlane.xlu0 %5283
    %v5285 = vsel %vm3055, %v5269, 0.0
    %5286 = vadd.xlane.f32.xlu0 %v5285
    %v5287 = vpop.xlane.xlu0 %5286
    %v5288 = vsel %vm3055, %v5271, 0.0
    %5289 = vadd.xlane.f32.xlu0 %v5288
    %v5290 = vpop.xlane.xlu0 %5289
    %v5291 = vsel %vm3055, %v5273, 0.0
    %5292 = vadd.xlane.f32.xlu0 %v5291
    %v5293 = vpop.xlane.xlu0 %5292
    %v5294 = vsel %vm3055, %v5275, 0.0
    %5295 = vadd.xlane.f32.xlu0 %v5294
    %v5296 = vpop.xlane.xlu0 %5295
    %v5297 = vsel %vm3055, %v5277, 0.0
    %5298 = vadd.xlane.f32.xlu0 %v5297
    %v5299 = vpop.xlane.xlu0 %5298
    %v5300 = vsel %vm3055, %v5279, 0.0
    %5301 = vadd.xlane.f32.xlu0 %v5300
    %v5302 = vpop.xlane.xlu0 %5301
    %v5303 = vsel %vm3055, %v5281, 0.0
    %5304 = vadd.xlane.f32.xlu0 %v5303
    %v5305 = vpop.xlane.xlu0 %5304
    %v5306 = vrcp.pop %v5284
    %v5307 = vrcp.pop %v5287
    %v5308 = vrcp.pop %v5290
    %v5309 = vrcp.pop %v5293
    %v5310 = vrcp.pop %v5296
    %v5311 = vrcp.pop %v5299
    %v5312 = vrcp.pop %v5302
    %v5313 = vrcp.pop %v5305
    %v5314 = vmul.f32 %v5267, %v5306
    %v5315 = vmul.f32 %v5269, %v5307
    %v5316 = vmul.f32 %v5271, %v5308
    %v5317 = vmul.f32 %v5273, %v5309
    %v5318 = vmul.f32 %v5275, %v5310
    %v5319 = vmul.f32 %v5277, %v5311
    %v5320 = vmul.f32 %v5279, %v5312
    %v5321 = vmul.f32 %v5281, %v5313
    %v5322 = vpack.c.bf16 %v5315, %v5314
    %v5323 = vpack.c.bf16 %v5317, %v5316
    %v5324 = vpack.c.bf16 %v5319, %v5318
    %v5325 = vpack.c.bf16 %v5321, %v5320
    %5326 = vrot.lane.b32.xlu0 %v4909, 64
    %v5327 = vpop.permute.xlu0 %5326
    %5328 = vrot.lane.b32.xlu0 %v4910, 64
    %v5329 = vpop.permute.xlu0 %5328
    %5330 = vrot.lane.b32.xlu0 %v4911, 64
    %v5331 = vpop.permute.xlu0 %5330
    %5332 = vrot.lane.b32.xlu0 %v4912, 64
    %v5333 = vpop.permute.xlu0 %5332
    %v5339 = vsel %vm3055, %v5322, 0
    %v5342 = vsel %vm3055, %v5323, 0
    %v5345 = vsel %vm3055, %v5324, 0
    %v5348 = vsel %vm3055, %v5325, 0
    %5350 = vmatpush.bf16.msra.mxu0 0
    %5351 = vmatpush.bf16.msra.mxu0 0
    %5352 = vmatpush.bf16.msra.mxu0 0
    %5353 = vmatpush.bf16.msra.mxu0 0
    %5354 = vmatpush.bf16.msra.mxu0 %v5333
    %5355 = vmatpush.bf16.msra.mxu0 %v5331
    %5356 = vmatpush.bf16.msra.mxu0 %v5329
    %5357 = vmatpush.bf16.msra.mxu0 %v5327
    %5358 = vmatmul.bf16.gmra.mxu0 %v5339
    %v5359 = vpop.f32.mrf.mxu0
    %v5360 = vadd.f32 0.0, %v5359
    %v5361 = vpop.f32.mrf.mxu0
    %v5362 = vadd.f32 0.0, %v5361
    %5363 = vmatmul.bf16.gmra.mxu0 %v5342
    %v5364 = vpop.f32.mrf.mxu0
    %v5365 = vadd.f32 0.0, %v5364
    %v5366 = vpop.f32.mrf.mxu0
    %v5367 = vadd.f32 0.0, %v5366
    %5368 = vmatmul.bf16.gmra.mxu0 %v5345
    %v5369 = vpop.f32.mrf.mxu0
    %v5370 = vadd.f32 0.0, %v5369
    %v5371 = vpop.f32.mrf.mxu0
    %v5372 = vadd.f32 0.0, %v5371
    %5373 = vmatmul.bf16.gmra.mxu0 %v5348
    %v5374 = vpop.f32.mrf.mxu0
    %v5375 = vadd.f32 0.0, %v5374
    %v5376 = vpop.f32.mrf.mxu0
    %v5377 = vadd.f32 0.0, %v5376
    %5378 = vdwg.mxu0
    %v5379 = vpack.c.bf16 %v5362, %v5360
    %v5380 = vpack.c.bf16 %v5367, %v5365
    %v5381 = vpack.c.bf16 %v5372, %v5370
    %v5382 = vpack.c.bf16 %v5377, %v5375
    %v5399 = vunpack.c.l.b16 %v2998
    %v5400 = vunpack.c.h.b16 %v2998
    %v5401 = vunpack.c.l.b16 %v2999
    %v5402 = vunpack.c.l.b16 %v3000
    %v5403 = vunpack.c.h.b16 %v3000
    %v5404 = vunpack.c.l.b16 %v3001
    %v5405 = vunpack.c.l.b16 %v3002
    %v5406 = vunpack.c.h.b16 %v3002
    %v5407 = vunpack.c.l.b16 %v3003
    %v5408 = vunpack.c.l.b16 %v3004
    %v5409 = vunpack.c.h.b16 %v3004
    %v5410 = vunpack.c.l.b16 %v3005
    %v5411 = vunpack.c.l.b16 %v3006
    %v5412 = vunpack.c.h.b16 %v3006
    %v5413 = vunpack.c.l.b16 %v3007
    %v5414 = vunpack.c.l.b16 %v3008
    %v5415 = vunpack.c.h.b16 %v3008
    %v5416 = vunpack.c.l.b16 %v3009
    %v5417 = vunpack.c.l.b16 %v3010
    %v5418 = vunpack.c.h.b16 %v3010
    %v5419 = vunpack.c.l.b16 %v3011
    %v5420 = vunpack.c.l.b16 %v3012
    %v5421 = vunpack.c.h.b16 %v3012
    %v5422 = vunpack.c.l.b16 %v3013
    %v5423 = vpack.c.b16 %v5402, %v5399
    %v5424 = vpack.c.b16 %v5403, %v5400
    %v5425 = vpack.c.b16 %v5404, %v5401
    %v5426 = vpack.c.b16 %v5408, %v5405
    %v5427 = vpack.c.b16 %v5409, %v5406
    %v5428 = vpack.c.b16 %v5410, %v5407
    %v5429 = vpack.c.b16 %v5414, %v5411
    %v5430 = vpack.c.b16 %v5415, %v5412
    %v5431 = vpack.c.b16 %v5416, %v5413
    %v5432 = vpack.c.b16 %v5420, %v5417
    %v5433 = vpack.c.b16 %v5421, %v5418
    %v5434 = vpack.c.b16 %v5422, %v5419
    %v5448 = vsel %vm3055, %v5379, 0
    %v5451 = vsel %vm3055, %v5380, 0
    %v5454 = vsel %vm3055, %v5381, 0
    %v5457 = vsel %vm3055, %v5382, 0
    %5459 = vmatpush.bf16.msra.mxu0 0
    %5460 = vmatpush.bf16.msra.mxu0 0
    %5461 = vmatpush.bf16.msra.mxu0 0
    %5462 = vmatpush.bf16.msra.mxu0 0
    %5463 = vmatpush.bf16.msra.mxu0 %v5432
    %5464 = vmatpush.bf16.msra.mxu0 %v5429
    %5465 = vmatpush.bf16.msra.mxu0 %v5426
    %5466 = vmatpush.bf16.msra.mxu0 %v5423
    %5467 = vmatmul.bf16.gmra.mxu0 %v5448
    %v5468 = vpop.f32.mrf.mxu0
    %v5469 = vadd.f32 0.0, %v5468
    %v5470 = vpop.f32.mrf.mxu0
    %v5471 = vadd.f32 0.0, %v5470
    %5472 = vmatmul.bf16.gmra.mxu0 %v5451
    %v5473 = vpop.f32.mrf.mxu0
    %v5474 = vadd.f32 0.0, %v5473
    %v5475 = vpop.f32.mrf.mxu0
    %v5476 = vadd.f32 0.0, %v5475
    %5477 = vmatmul.bf16.gmra.mxu0 %v5454
    %v5478 = vpop.f32.mrf.mxu0
    %v5479 = vadd.f32 0.0, %v5478
    %v5480 = vpop.f32.mrf.mxu0
    %v5481 = vadd.f32 0.0, %v5480
    %5482 = vmatmul.bf16.gmra.mxu0 %v5457
    %v5483 = vpop.f32.mrf.mxu0
    %v5484 = vadd.f32 0.0, %v5483
    %v5485 = vpop.f32.mrf.mxu0
    %v5486 = vadd.f32 0.0, %v5485
    %5487 = vdwg.mxu0
    %5488 = vmatpush.bf16.msra.mxu0 0
    %5489 = vmatpush.bf16.msra.mxu0 0
    %5490 = vmatpush.bf16.msra.mxu0 0
    %5491 = vmatpush.bf16.msra.mxu0 0
    %5492 = vmatpush.bf16.msra.mxu0 %v5433
    %5493 = vmatpush.bf16.msra.mxu0 %v5430
    %5494 = vmatpush.bf16.msra.mxu0 %v5427
    %5495 = vmatpush.bf16.msra.mxu0 %v5424
    %5496 = vmatmul.bf16.gmra.mxu0 %v5448
    %v5497 = vpop.f32.mrf.mxu0
    %v5498 = vadd.f32 0.0, %v5497
    %v5499 = vpop.f32.mrf.mxu0
    %v5500 = vadd.f32 0.0, %v5499
    %5501 = vmatmul.bf16.gmra.mxu0 %v5451
    %v5502 = vpop.f32.mrf.mxu0
    %v5503 = vadd.f32 0.0, %v5502
    %v5504 = vpop.f32.mrf.mxu0
    %v5505 = vadd.f32 0.0, %v5504
    %5506 = vmatmul.bf16.gmra.mxu0 %v5454
    %v5507 = vpop.f32.mrf.mxu0
    %v5508 = vadd.f32 0.0, %v5507
    %v5509 = vpop.f32.mrf.mxu0
    %v5510 = vadd.f32 0.0, %v5509
    %5511 = vmatmul.bf16.gmra.mxu0 %v5457
    %v5512 = vpop.f32.mrf.mxu0
    %v5513 = vadd.f32 0.0, %v5512
    %v5514 = vpop.f32.mrf.mxu0
    %v5515 = vadd.f32 0.0, %v5514
    %5516 = vdwg.mxu0
    %5517 = vmatpush.bf16.msra.mxu0 0
    %5518 = vmatpush.bf16.msra.mxu0 0
    %5519 = vmatpush.bf16.msra.mxu0 0
    %5520 = vmatpush.bf16.msra.mxu0 0
    %5521 = vmatpush.bf16.msra.mxu0 %v5434
    %5522 = vmatpush.bf16.msra.mxu0 %v5431
    %5523 = vmatpush.bf16.msra.mxu0 %v5428
    %5524 = vmatpush.bf16.msra.mxu0 %v5425
    %5525 = vmatmul.bf16.gmra.mxu0 %v5448
    %v5526 = vpop.f32.mrf.mxu0
    %v5527 = vadd.f32 0.0, %v5526
    %v5528 = vpop.f32.mrf.mxu0
    %v5529 = vadd.f32 0.0, %v5528
    %5530 = vmatmul.bf16.gmra.mxu0 %v5451
    %v5531 = vpop.f32.mrf.mxu0
    %v5532 = vadd.f32 0.0, %v5531
    %v5533 = vpop.f32.mrf.mxu0
    %v5534 = vadd.f32 0.0, %v5533
    %5535 = vmatmul.bf16.gmra.mxu0 %v5454
    %v5536 = vpop.f32.mrf.mxu0
    %v5537 = vadd.f32 0.0, %v5536
    %v5538 = vpop.f32.mrf.mxu0
    %v5539 = vadd.f32 0.0, %v5538
    %5540 = vmatmul.bf16.gmra.mxu0 %v5457
    %v5541 = vpop.f32.mrf.mxu0
    %v5542 = vadd.f32 0.0, %v5541
    %v5543 = vpop.f32.mrf.mxu0
    %v5544 = vadd.f32 0.0, %v5543
    %5545 = vdwg.mxu0
    %v5546 = vadd.f32 %v5125, %v5469
    %v5547 = vadd.f32 %v5126, %v5498
    %v5548 = vadd.f32 %v5127, %v5527
    %v5549 = vadd.f32 %v5128, %v5471
    %v5550 = vadd.f32 %v5129, %v5500
    %v5551 = vadd.f32 %v5130, %v5529
    %v5552 = vadd.f32 %v5131, %v5474
    %v5553 = vadd.f32 %v5132, %v5503
    %v5554 = vadd.f32 %v5133, %v5532
    %v5555 = vadd.f32 %v5134, %v5476
    %v5556 = vadd.f32 %v5135, %v5505
    %v5557 = vadd.f32 %v5136, %v5534
    %v5558 = vadd.f32 %v5137, %v5479
    %v5559 = vadd.f32 %v5138, %v5508
    %v5560 = vadd.f32 %v5139, %v5537
    %v5561 = vadd.f32 %v5140, %v5481
    %v5562 = vadd.f32 %v5141, %v5510
    %v5563 = vadd.f32 %v5142, %v5539
    %v5564 = vadd.f32 %v5143, %v5484
    %v5565 = vadd.f32 %v5144, %v5513
    %v5566 = vadd.f32 %v5145, %v5542
    %v5567 = vadd.f32 %v5146, %v5486
    %v5568 = vadd.f32 %v5147, %v5515
    %v5569 = vadd.f32 %v5148, %v5544
    %v5571 = vperm.slane %v3014, 0
    %v5572 = vperm.slane %v3014, 1
    %v5573 = vperm.slane %v3014, 2
    %v5577 = vadd.f32 %v5546, %v5571
    %v5578 = vadd.f32 %v5547, %v5572
    %v5579 = vadd.f32 %v5548, %v5573
    %v5580 = vadd.f32 %v5549, %v5571
    %v5581 = vadd.f32 %v5550, %v5572
    %v5582 = vadd.f32 %v5551, %v5573
    %v5583 = vadd.f32 %v5552, %v5571
    %v5584 = vadd.f32 %v5553, %v5572
    %v5585 = vadd.f32 %v5554, %v5573
    %v5586 = vadd.f32 %v5555, %v5571
    %v5587 = vadd.f32 %v5556, %v5572
    %v5588 = vadd.f32 %v5557, %v5573
    %v5589 = vadd.f32 %v5558, %v5571
    %v5590 = vadd.f32 %v5559, %v5572
    %v5591 = vadd.f32 %v5560, %v5573
    %v5592 = vadd.f32 %v5561, %v5571
    %v5593 = vadd.f32 %v5562, %v5572
    %v5594 = vadd.f32 %v5563, %v5573
    %v5595 = vadd.f32 %v5564, %v5571
    %v5596 = vadd.f32 %v5565, %v5572
    %v5597 = vadd.f32 %v5566, %v5573
    %v5598 = vadd.f32 %v5567, %v5571
    %v5599 = vadd.f32 %v5568, %v5572
    %v5600 = vadd.f32 %v5569, %v5573
    %5601 = vst [vmem:[#allocation10] sm:$0xff] %v5577
    %5602 = vst [vmem:[#allocation10 + $0x8] sm:$0xff] %v5578
    %5603 = vst [vmem:[#allocation10 + $0x10] sm:$0xff] %v5579
    %5604 = vst [vmem:[#allocation10 + $0x18] sm:$0xff] %v5580
    %5605 = vst [vmem:[#allocation10 + $0x20] sm:$0xff] %v5581
    %5606 = vst [vmem:[#allocation10 + $0x28] sm:$0xff] %v5582
    %5607 = vst [vmem:[#allocation10 + $0x30] sm:$0xff] %v5583
    %5608 = vst [vmem:[#allocation10 + $0x38] sm:$0xff] %v5584
    %5609 = vst [vmem:[#allocation10 + $0x40] sm:$0xff] %v5585
    %5610 = vst [vmem:[#allocation10 + $0x48] sm:$0xff] %v5586
    %5611 = vst [vmem:[#allocation10 + $0x50] sm:$0xff] %v5587
    %5612 = vst [vmem:[#allocation10 + $0x58] sm:$0xff] %v5588
    %5613 = vst [vmem:[#allocation10 + $0x60] sm:$0xff] %v5589
    %5614 = vst [vmem:[#allocation10 + $0x68] sm:$0xff] %v5590
    %5615 = vst [vmem:[#allocation10 + $0x70] sm:$0xff] %v5591
    %5616 = vst [vmem:[#allocation10 + $0x78] sm:$0xff] %v5592
    %5617 = vst [vmem:[#allocation10 + $0x80] sm:$0xff] %v5593
    %5618 = vst [vmem:[#allocation10 + $0x88] sm:$0xff] %v5594
    %5619 = vst [vmem:[#allocation10 + $0x90] sm:$0xff] %v5595
    %5620 = vst [vmem:[#allocation10 + $0x98] sm:$0xff] %v5596
    %5621 = vst [vmem:[#allocation10 + $0xa0] sm:$0xff] %v5597
    %5622 = vst [vmem:[#allocation10 + $0xa8] sm:$0xff] %v5598
    %5623 = vst [vmem:[#allocation10 + $0xb0] sm:$0xff] %v5599
    %5624 = vst [vmem:[#allocation10 + $0xb8] sm:$0xff] %v5600
    %v5633 = vunpack.c.l.b16 %v2859
    %v5634 = vunpack.c.l.b16 %v2864
    %v5635 = vunpack.c.l.b16 %v2869
    %v5636 = vunpack.c.l.b16 %v2874
    %v5637 = vunpack.c.l.b16 %v2879
    %v5638 = vunpack.c.l.b16 %v2884
    %v5639 = vunpack.c.l.b16 %v2889
    %v5640 = vunpack.c.l.b16 %v2894
    %v5641 = vpack.c.b16 %v5634, %v5633
    %v5642 = vpack.c.b16 %v5636, %v5635
    %v5643 = vpack.c.b16 %v5638, %v5637
    %v5644 = vpack.c.b16 %v5640, %v5639
    %v5653 = vunpack.c.h.b16 %v2860
    %v5654 = vunpack.c.h.b16 %v2865
    %v5655 = vunpack.c.h.b16 %v2870
    %v5656 = vunpack.c.h.b16 %v2875
    %v5657 = vunpack.c.h.b16 %v2880
    %v5658 = vunpack.c.h.b16 %v2885
    %v5659 = vunpack.c.h.b16 %v2890
    %v5660 = vunpack.c.h.b16 %v2895
    %v5661 = vpack.c.b16 %v5654, %v5653
    %v5662 = vpack.c.b16 %v5656, %v5655
    %v5663 = vpack.c.b16 %v5658, %v5657
    %v5664 = vpack.c.b16 %v5660, %v5659
    %v5666 = vsel %vm3055, %v5641, 0
    %v5669 = vsel %vm3055, %v5642, 0
    %v5672 = vsel %vm3055, %v5643, 0
    %v5675 = vsel %vm3055, %v5644, 0
    %v5678 = vsel %vm3055, %v5661, 0
    %v5681 = vsel %vm3055, %v5662, 0
    %v5684 = vsel %vm3055, %v5663, 0
    %v5687 = vsel %vm3055, %v5664, 0
    %5689 = vmatpush.bf16.xpose.msra.mxu0 0
    %5690 = vmatpush.bf16.xpose.msra.mxu0 0
    %5691 = vmatpush.bf16.xpose.msra.mxu0 0
    %5692 = vmatpush.bf16.xpose.msra.mxu0 0
    %5693 = vmatpush.bf16.xpose.msra.mxu0 %v5687
    %5694 = vmatpush.bf16.xpose.msra.mxu0 %v5684
    %5695 = vmatpush.bf16.xpose.msra.mxu0 %v5681
    %5696 = vmatpush.bf16.xpose.msra.mxu0 %v5678
    %5697 = vmatmul.bf16.gmra.mxu0 %v5666
    %v5698 = vpop.f32.mrf.mxu0
    %v5699 = vadd.f32 0.0, %v5698
    %v5700 = vpop.f32.mrf.mxu0
    %v5701 = vadd.f32 0.0, %v5700
    %5702 = vmatmul.bf16.gmra.mxu0 %v5669
    %v5703 = vpop.f32.mrf.mxu0
    %v5704 = vadd.f32 0.0, %v5703
    %v5705 = vpop.f32.mrf.mxu0
    %v5706 = vadd.f32 0.0, %v5705
    %5707 = vmatmul.bf16.gmra.mxu0 %v5672
    %v5708 = vpop.f32.mrf.mxu0
    %v5709 = vadd.f32 0.0, %v5708
    %v5710 = vpop.f32.mrf.mxu0
    %v5711 = vadd.f32 0.0, %v5710
    %5712 = vmatmul.bf16.gmra.mxu0 %v5675
    %v5713 = vpop.f32.mrf.mxu0
    %v5714 = vadd.f32 0.0, %v5713
    %v5715 = vpop.f32.mrf.mxu0
    %v5716 = vadd.f32 0.0, %v5715
    %5717 = vdwg.mxu0
    %v5718 = vmul.f32 %v5699, 0.125
    %v5719 = vmul.f32 %v5701, 0.125
    %v5720 = vmul.f32 %v5704, 0.125
    %v5721 = vmul.f32 %v5706, 0.125
    %v5722 = vmul.f32 %v5709, 0.125
    %v5723 = vmul.f32 %v5711, 0.125
    %v5724 = vmul.f32 %v5714, 0.125
    %v5725 = vmul.f32 %v5716, 0.125
    %v5726 = vsel %vm2910, %v5718, -inf
    %v5727 = vsel %vm2911, %v5719, -inf
    %v5728 = vsel %vm2912, %v5720, -inf
    %v5729 = vsel %vm2913, %v5721, -inf
    %v5730 = vsel %vm2914, %v5722, -inf
    %v5731 = vsel %vm2915, %v5723, -inf
    %v5732 = vsel %vm2916, %v5724, -inf
    %v5733 = vsel %vm2917, %v5725, -inf
    %v5734 = vsel %vm3055, %v5726, -inf
    %5735 = vmax.xlane.f32.xlu0 %v5734
    %v5736 = vpop.xlane.xlu0 %5735
    %v5737 = vsel %vm3055, %v5727, -inf
    %5738 = vmax.xlane.f32.xlu0 %v5737
    %v5739 = vpop.xlane.xlu0 %5738
    %v5740 = vsel %vm3055, %v5728, -inf
    %5741 = vmax.xlane.f32.xlu0 %v5740
    %v5742 = vpop.xlane.xlu0 %5741
    %v5743 = vsel %vm3055, %v5729, -inf
    %5744 = vmax.xlane.f32.xlu0 %v5743
    %v5745 = vpop.xlane.xlu0 %5744
    %v5746 = vsel %vm3055, %v5730, -inf
    %5747 = vmax.xlane.f32.xlu0 %v5746
    %v5748 = vpop.xlane.xlu0 %5747
    %v5749 = vsel %vm3055, %v5731, -inf
    %5750 = vmax.xlane.f32.xlu0 %v5749
    %v5751 = vpop.xlane.xlu0 %5750
    %v5752 = vsel %vm3055, %v5732, -inf
    %5753 = vmax.xlane.f32.xlu0 %v5752
    %v5754 = vpop.xlane.xlu0 %5753
    %v5755 = vsel %vm3055, %v5733, -inf
    %5756 = vmax.xlane.f32.xlu0 %v5755
    %v5757 = vpop.xlane.xlu0 %5756
    %v5758 = vsub.f32 %v5726, %v5736
    %v5759 = vsub.f32 %v5727, %v5739
    %v5760 = vsub.f32 %v5728, %v5742
    %v5761 = vsub.f32 %v5729, %v5745
    %v5762 = vsub.f32 %v5730, %v5748
    %v5763 = vsub.f32 %v5731, %v5751
    %v5764 = vsub.f32 %v5732, %v5754
    %v5765 = vsub.f32 %v5733, %v5757
    %v5766 = vmul.f32 %v5758, 1.442695
    %v5767 = vpow.pop %v5766
    %v5768 = vmul.f32 %v5759, 1.442695
    %v5769 = vpow.pop %v5768
    %v5770 = vmul.f32 %v5760, 1.442695
    %v5771 = vpow.pop %v5770
    %v5772 = vmul.f32 %v5761, 1.442695
    %v5773 = vpow.pop %v5772
    %v5774 = vmul.f32 %v5762, 1.442695
    %v5775 = vpow.pop %v5774
    %v5776 = vmul.f32 %v5763, 1.442695
    %v5777 = vpow.pop %v5776
    %v5778 = vmul.f32 %v5764, 1.442695
    %v5779 = vpow.pop %v5778
    %v5780 = vmul.f32 %v5765, 1.442695
    %v5781 = vpow.pop %v5780
    %v5782 = vsel %vm3055, %v5767, 0.0
    %5783 = vadd.xlane.f32.xlu0 %v5782
    %v5784 = vpop.xlane.xlu0 %5783
    %v5785 = vsel %vm3055, %v5769, 0.0
    %5786 = vadd.xlane.f32.xlu0 %v5785
    %v5787 = vpop.xlane.xlu0 %5786
    %v5788 = vsel %vm3055, %v5771, 0.0
    %5789 = vadd.xlane.f32.xlu0 %v5788
    %v5790 = vpop.xlane.xlu0 %5789
    %v5791 = vsel %vm3055, %v5773, 0.0
    %5792 = vadd.xlane.f32.xlu0 %v5791
    %v5793 = vpop.xlane.xlu0 %5792
    %v5794 = vsel %vm3055, %v5775, 0.0
    %5795 = vadd.xlane.f32.xlu0 %v5794
    %v5796 = vpop.xlane.xlu0 %5795
    %v5797 = vsel %vm3055, %v5777, 0.0
    %5798 = vadd.xlane.f32.xlu0 %v5797
    %v5799 = vpop.xlane.xlu0 %5798
    %v5800 = vsel %vm3055, %v5779, 0.0
    %5801 = vadd.xlane.f32.xlu0 %v5800
    %v5802 = vpop.xlane.xlu0 %5801
    %v5803 = vsel %vm3055, %v5781, 0.0
    %5804 = vadd.xlane.f32.xlu0 %v5803
    %v5805 = vpop.xlane.xlu0 %5804
    %v5806 = vrcp.pop %v5784
    %v5807 = vrcp.pop %v5787
    %v5808 = vrcp.pop %v5790
    %v5809 = vrcp.pop %v5793
    %v5810 = vrcp.pop %v5796
    %v5811 = vrcp.pop %v5799
    %v5812 = vrcp.pop %v5802
    %v5813 = vrcp.pop %v5805
    %v5814 = vmul.f32 %v5767, %v5806
    %v5815 = vmul.f32 %v5769, %v5807
    %v5816 = vmul.f32 %v5771, %v5808
    %v5817 = vmul.f32 %v5773, %v5809
    %v5818 = vmul.f32 %v5775, %v5810
    %v5819 = vmul.f32 %v5777, %v5811
    %v5820 = vmul.f32 %v5779, %v5812
    %v5821 = vmul.f32 %v5781, %v5813
    %v5822 = vpack.c.bf16 %v5815, %v5814
    %v5823 = vpack.c.bf16 %v5817, %v5816
    %v5824 = vpack.c.bf16 %v5819, %v5818
    %v5825 = vpack.c.bf16 %v5821, %v5820
    %v5834 = vunpack.c.l.b16 %v2862
    %v5835 = vunpack.c.l.b16 %v2867
    %v5836 = vunpack.c.l.b16 %v2872
    %v5837 = vunpack.c.l.b16 %v2877
    %v5838 = vunpack.c.l.b16 %v2882
    %v5839 = vunpack.c.l.b16 %v2887
    %v5840 = vunpack.c.l.b16 %v2892
    %v5841 = vunpack.c.l.b16 %v2897
    %v5842 = vpack.c.b16 %v5835, %v5834
    %v5843 = vpack.c.b16 %v5837, %v5836
    %v5844 = vpack.c.b16 %v5839, %v5838
    %v5845 = vpack.c.b16 %v5841, %v5840
    %v5851 = vsel %vm3055, %v5822, 0
    %v5854 = vsel %vm3055, %v5823, 0
    %v5857 = vsel %vm3055, %v5824, 0
    %v5860 = vsel %vm3055, %v5825, 0
    %5862 = vmatpush.bf16.msra.mxu0 0
    %5863 = vmatpush.bf16.msra.mxu0 0
    %5864 = vmatpush.bf16.msra.mxu0 0
    %5865 = vmatpush.bf16.msra.mxu0 0
    %5866 = vmatpush.bf16.msra.mxu0 %v5845
    %5867 = vmatpush.bf16.msra.mxu0 %v5844
    %5868 = vmatpush.bf16.msra.mxu0 %v5843
    %5869 = vmatpush.bf16.msra.mxu0 %v5842
    %5870 = vmatmul.bf16.gmra.mxu0 %v5851
    %v5871 = vpop.f32.mrf.mxu0
    %v5872 = vadd.f32 0.0, %v5871
    %v5873 = vpop.f32.mrf.mxu0
    %v5874 = vadd.f32 0.0, %v5873
    %5875 = vmatmul.bf16.gmra.mxu0 %v5854
    %v5876 = vpop.f32.mrf.mxu0
    %v5877 = vadd.f32 0.0, %v5876
    %v5878 = vpop.f32.mrf.mxu0
    %v5879 = vadd.f32 0.0, %v5878
    %5880 = vmatmul.bf16.gmra.mxu0 %v5857
    %v5881 = vpop.f32.mrf.mxu0
    %v5882 = vadd.f32 0.0, %v5881
    %v5883 = vpop.f32.mrf.mxu0
    %v5884 = vadd.f32 0.0, %v5883
    %5885 = vmatmul.bf16.gmra.mxu0 %v5860
    %v5886 = vpop.f32.mrf.mxu0
    %v5887 = vadd.f32 0.0, %v5886
    %v5888 = vpop.f32.mrf.mxu0
    %v5889 = vadd.f32 0.0, %v5888
    %5890 = vdwg.mxu0
    %v5891 = vpack.c.bf16 %v5874, %v5872
    %v5892 = vpack.c.bf16 %v5879, %v5877
    %v5893 = vpack.c.bf16 %v5884, %v5882
    %v5894 = vpack.c.bf16 %v5889, %v5887
    %5895 = vrot.lane.b32.xlu0 %v5641, 64
    %v5896 = vpop.permute.xlu0 %5895
    %5897 = vrot.lane.b32.xlu0 %v5642, 64
    %v5898 = vpop.permute.xlu0 %5897
    %5899 = vrot.lane.b32.xlu0 %v5643, 64
    %v5900 = vpop.permute.xlu0 %5899
    %5901 = vrot.lane.b32.xlu0 %v5644, 64
    %v5902 = vpop.permute.xlu0 %5901
    %5903 = vrot.lane.b32.xlu0 %v5661, 64
    %v5904 = vpop.permute.xlu0 %5903
    %5905 = vrot.lane.b32.xlu0 %v5662, 64
    %v5906 = vpop.permute.xlu0 %5905
    %5907 = vrot.lane.b32.xlu0 %v5663, 64
    %v5908 = vpop.permute.xlu0 %5907
    %5909 = vrot.lane.b32.xlu0 %v5664, 64
    %v5910 = vpop.permute.xlu0 %5909
    %v5912 = vsel %vm3055, %v5896, 0
    %v5915 = vsel %vm3055, %v5898, 0
    %v5918 = vsel %vm3055, %v5900, 0
    %v5921 = vsel %vm3055, %v5902, 0
    %v5924 = vsel %vm3055, %v5904, 0
    %v5927 = vsel %vm3055, %v5906, 0
    %v5930 = vsel %vm3055, %v5908, 0
    %v5933 = vsel %vm3055, %v5910, 0
    %5935 = vmatpush.bf16.xpose.msra.mxu0 0
    %5936 = vmatpush.bf16.xpose.msra.mxu0 0
    %5937 = vmatpush.bf16.xpose.msra.mxu0 0
    %5938 = vmatpush.bf16.xpose.msra.mxu0 0
    %5939 = vmatpush.bf16.xpose.msra.mxu0 %v5933
    %5940 = vmatpush.bf16.xpose.msra.mxu0 %v5930
    %5941 = vmatpush.bf16.xpose.msra.mxu0 %v5927
    %5942 = vmatpush.bf16.xpose.msra.mxu0 %v5924
    %5943 = vmatmul.bf16.gmra.mxu0 %v5912
    %v5944 = vpop.f32.mrf.mxu0
    %v5945 = vadd.f32 0.0, %v5944
    %v5946 = vpop.f32.mrf.mxu0
    %v5947 = vadd.f32 0.0, %v5946
    %5948 = vmatmul.bf16.gmra.mxu0 %v5915
    %v5949 = vpop.f32.mrf.mxu0
    %v5950 = vadd.f32 0.0, %v5949
    %v5951 = vpop.f32.mrf.mxu0
    %v5952 = vadd.f32 0.0, %v5951
    %5953 = vmatmul.bf16.gmra.mxu0 %v5918
    %v5954 = vpop.f32.mrf.mxu0
    %v5955 = vadd.f32 0.0, %v5954
    %v5956 = vpop.f32.mrf.mxu0
    %v5957 = vadd.f32 0.0, %v5956
    %5958 = vmatmul.bf16.gmra.mxu0 %v5921
    %v5959 = vpop.f32.mrf.mxu0
    %v5960 = vadd.f32 0.0, %v5959
    %v5961 = vpop.f32.mrf.mxu0
    %v5962 = vadd.f32 0.0, %v5961
    %5963 = vdwg.mxu0
    %v5964 = vmul.f32 %v5945, 0.125
    %v5965 = vmul.f32 %v5947, 0.125
    %v5966 = vmul.f32 %v5950, 0.125
    %v5967 = vmul.f32 %v5952, 0.125
    %v5968 = vmul.f32 %v5955, 0.125
    %v5969 = vmul.f32 %v5957, 0.125
    %v5970 = vmul.f32 %v5960, 0.125
    %v5971 = vmul.f32 %v5962, 0.125
    %v5972 = vsel %vm2910, %v5964, -inf
    %v5973 = vsel %vm2911, %v5965, -inf
    %v5974 = vsel %vm2912, %v5966, -inf
    %v5975 = vsel %vm2913, %v5967, -inf
    %v5976 = vsel %vm2914, %v5968, -inf
    %v5977 = vsel %vm2915, %v5969, -inf
    %v5978 = vsel %vm2916, %v5970, -inf
    %v5979 = vsel %vm2917, %v5971, -inf
    %v5980 = vsel %vm3055, %v5972, -inf
    %5981 = vmax.xlane.f32.xlu0 %v5980
    %v5982 = vpop.xlane.xlu0 %5981
    %v5983 = vsel %vm3055, %v5973, -inf
    %5984 = vmax.xlane.f32.xlu0 %v5983
    %v5985 = vpop.xlane.xlu0 %5984
    %v5986 = vsel %vm3055, %v5974, -inf
    %5987 = vmax.xlane.f32.xlu0 %v5986
    %v5988 = vpop.xlane.xlu0 %5987
    %v5989 = vsel %vm3055, %v5975, -inf
    %5990 = vmax.xlane.f32.xlu0 %v5989
    %v5991 = vpop.xlane.xlu0 %5990
    %v5992 = vsel %vm3055, %v5976, -inf
    %5993 = vmax.xlane.f32.xlu0 %v5992
    %v5994 = vpop.xlane.xlu0 %5993
    %v5995 = vsel %vm3055, %v5977, -inf
    %5996 = vmax.xlane.f32.xlu0 %v5995
    %v5997 = vpop.xlane.xlu0 %5996
    %v5998 = vsel %vm3055, %v5978, -inf
    %5999 = vmax.xlane.f32.xlu0 %v5998
    %v6000 = vpop.xlane.xlu0 %5999
    %v6001 = vsel %vm3055, %v5979, -inf
    %6002 = vmax.xlane.f32.xlu0 %v6001
    %v6003 = vpop.xlane.xlu0 %6002
    %v6004 = vsub.f32 %v5972, %v5982
    %v6005 = vsub.f32 %v5973, %v5985
    %v6006 = vsub.f32 %v5974, %v5988
    %v6007 = vsub.f32 %v5975, %v5991
    %v6008 = vsub.f32 %v5976, %v5994
    %v6009 = vsub.f32 %v5977, %v5997
    %v6010 = vsub.f32 %v5978, %v6000
    %v6011 = vsub.f32 %v5979, %v6003
    %v6012 = vmul.f32 %v6004, 1.442695
    %v6013 = vpow.pop %v6012
    %v6014 = vmul.f32 %v6005, 1.442695
    %v6015 = vpow.pop %v6014
    %v6016 = vmul.f32 %v6006, 1.442695
    %v6017 = vpow.pop %v6016
    %v6018 = vmul.f32 %v6007, 1.442695
    %v6019 = vpow.pop %v6018
    %v6020 = vmul.f32 %v6008, 1.442695
    %v6021 = vpow.pop %v6020
    %v6022 = vmul.f32 %v6009, 1.442695
    %v6023 = vpow.pop %v6022
    %v6024 = vmul.f32 %v6010, 1.442695
    %v6025 = vpow.pop %v6024
    %v6026 = vmul.f32 %v6011, 1.442695
    %v6027 = vpow.pop %v6026
    %v6028 = vsel %vm3055, %v6013, 0.0
    %6029 = vadd.xlane.f32.xlu0 %v6028
    %v6030 = vpop.xlane.xlu0 %6029
    %v6031 = vsel %vm3055, %v6015, 0.0
    %6032 = vadd.xlane.f32.xlu0 %v6031
    %v6033 = vpop.xlane.xlu0 %6032
    %v6034 = vsel %vm3055, %v6017, 0.0
    %6035 = vadd.xlane.f32.xlu0 %v6034
    %v6036 = vpop.xlane.xlu0 %6035
    %v6037 = vsel %vm3055, %v6019, 0.0
    %6038 = vadd.xlane.f32.xlu0 %v6037
    %v6039 = vpop.xlane.xlu0 %6038
    %v6040 = vsel %vm3055, %v6021, 0.0
    %6041 = vadd.xlane.f32.xlu0 %v6040
    %v6042 = vpop.xlane.xlu0 %6041
    %v6043 = vsel %vm3055, %v6023, 0.0
    %6044 = vadd.xlane.f32.xlu0 %v6043
    %v6045 = vpop.xlane.xlu0 %6044
    %v6046 = vsel %vm3055, %v6025, 0.0
    %6047 = vadd.xlane.f32.xlu0 %v6046
    %v6048 = vpop.xlane.xlu0 %6047
    %v6049 = vsel %vm3055, %v6027, 0.0
    %6050 = vadd.xlane.f32.xlu0 %v6049
    %v6051 = vpop.xlane.xlu0 %6050
    %v6052 = vrcp.pop %v6030
    %v6053 = vrcp.pop %v6033
    %v6054 = vrcp.pop %v6036
    %v6055 = vrcp.pop %v6039
    %v6056 = vrcp.pop %v6042
    %v6057 = vrcp.pop %v6045
    %v6058 = vrcp.pop %v6048
    %v6059 = vrcp.pop %v6051
    %v6060 = vmul.f32 %v6013, %v6052
    %v6061 = vmul.f32 %v6015, %v6053
    %v6062 = vmul.f32 %v6017, %v6054
    %v6063 = vmul.f32 %v6019, %v6055
    %v6064 = vmul.f32 %v6021, %v6056
    %v6065 = vmul.f32 %v6023, %v6057
    %v6066 = vmul.f32 %v6025, %v6058
    %v6067 = vmul.f32 %v6027, %v6059
    %v6068 = vpack.c.bf16 %v6061, %v6060
    %v6069 = vpack.c.bf16 %v6063, %v6062
    %v6070 = vpack.c.bf16 %v6065, %v6064
    %v6071 = vpack.c.bf16 %v6067, %v6066
    %6072 = vrot.lane.b32.xlu0 %v5842, 64
    %v6073 = vpop.permute.xlu0 %6072
    %6074 = vrot.lane.b32.xlu0 %v5843, 64
    %v6075 = vpop.permute.xlu0 %6074
    %6076 = vrot.lane.b32.xlu0 %v5844, 64
    %v6077 = vpop.permute.xlu0 %6076
    %6078 = vrot.lane.b32.xlu0 %v5845, 64
    %v6079 = vpop.permute.xlu0 %6078
    %v6085 = vsel %vm3055, %v6068, 0
    %v6088 = vsel %vm3055, %v6069, 0
    %v6091 = vsel %vm3055, %v6070, 0
    %v6094 = vsel %vm3055, %v6071, 0
    %6096 = vmatpush.bf16.msra.mxu0 0
    %6097 = vmatpush.bf16.msra.mxu0 0
    %6098 = vmatpush.bf16.msra.mxu0 0
    %6099 = vmatpush.bf16.msra.mxu0 0
    %6100 = vmatpush.bf16.msra.mxu0 %v6079
    %6101 = vmatpush.bf16.msra.mxu0 %v6077
    %6102 = vmatpush.bf16.msra.mxu0 %v6075
    %6103 = vmatpush.bf16.msra.mxu0 %v6073
    %6104 = vmatmul.bf16.gmra.mxu0 %v6085
    %v6105 = vpop.f32.mrf.mxu0
    %v6106 = vadd.f32 0.0, %v6105
    %v6107 = vpop.f32.mrf.mxu0
    %v6108 = vadd.f32 0.0, %v6107
    %6109 = vmatmul.bf16.gmra.mxu0 %v6088
    %v6110 = vpop.f32.mrf.mxu0
    %v6111 = vadd.f32 0.0, %v6110
    %v6112 = vpop.f32.mrf.mxu0
    %v6113 = vadd.f32 0.0, %v6112
    %6114 = vmatmul.bf16.gmra.mxu0 %v6091
    %v6115 = vpop.f32.mrf.mxu0
    %v6116 = vadd.f32 0.0, %v6115
    %v6117 = vpop.f32.mrf.mxu0
    %v6118 = vadd.f32 0.0, %v6117
    %6119 = vmatmul.bf16.gmra.mxu0 %v6094
    %v6120 = vpop.f32.mrf.mxu0
    %v6121 = vadd.f32 0.0, %v6120
    %v6122 = vpop.f32.mrf.mxu0
    %v6123 = vadd.f32 0.0, %v6122
    %6124 = vdwg.mxu0
    %v6125 = vpack.c.bf16 %v6108, %v6106
    %v6126 = vpack.c.bf16 %v6113, %v6111
    %v6127 = vpack.c.bf16 %v6118, %v6116
    %v6128 = vpack.c.bf16 %v6123, %v6121
    %v6130 = vsel %vm3055, %v6125, 0
    %v6133 = vsel %vm3055, %v6126, 0
    %v6136 = vsel %vm3055, %v6127, 0
    %v6139 = vsel %vm3055, %v6128, 0
    %6141 = vmatpush.bf16.msra.mxu0 0
    %6142 = vmatpush.bf16.msra.mxu0 0
    %6143 = vmatpush.bf16.msra.mxu0 0
    %6144 = vmatpush.bf16.msra.mxu0 0
    %6145 = vmatpush.bf16.msra.mxu0 %v3569
    %6146 = vmatpush.bf16.msra.mxu0 %v3566
    %6147 = vmatpush.bf16.msra.mxu0 %v3563
    %6148 = vmatpush.bf16.msra.mxu0 %v3560
    %6149 = vmatmul.bf16.gmra.mxu0 %v6130
    %v6150 = vpop.f32.mrf.mxu0
    %v6151 = vadd.f32 0.0, %v6150
    %v6152 = vpop.f32.mrf.mxu0
    %v6153 = vadd.f32 0.0, %v6152
    %6154 = vmatmul.bf16.gmra.mxu0 %v6133
    %v6155 = vpop.f32.mrf.mxu0
    %v6156 = vadd.f32 0.0, %v6155
    %v6157 = vpop.f32.mrf.mxu0
    %v6158 = vadd.f32 0.0, %v6157
    %6159 = vmatmul.bf16.gmra.mxu0 %v6136
    %v6160 = vpop.f32.mrf.mxu0
    %v6161 = vadd.f32 0.0, %v6160
    %v6162 = vpop.f32.mrf.mxu0
    %v6163 = vadd.f32 0.0, %v6162
    %6164 = vmatmul.bf16.gmra.mxu0 %v6139
    %v6165 = vpop.f32.mrf.mxu0
    %v6166 = vadd.f32 0.0, %v6165
    %v6167 = vpop.f32.mrf.mxu0
    %v6168 = vadd.f32 0.0, %v6167
    %6169 = vdwg.mxu0
    %6170 = vmatpush.bf16.msra.mxu0 0
    %6171 = vmatpush.bf16.msra.mxu0 0
    %6172 = vmatpush.bf16.msra.mxu0 0
    %6173 = vmatpush.bf16.msra.mxu0 0
    %6174 = vmatpush.bf16.msra.mxu0 %v3570
    %6175 = vmatpush.bf16.msra.mxu0 %v3567
    %6176 = vmatpush.bf16.msra.mxu0 %v3564
    %6177 = vmatpush.bf16.msra.mxu0 %v3561
    %6178 = vmatmul.bf16.gmra.mxu0 %v6130
    %v6179 = vpop.f32.mrf.mxu0
    %v6180 = vadd.f32 0.0, %v6179
    %v6181 = vpop.f32.mrf.mxu0
    %v6182 = vadd.f32 0.0, %v6181
    %6183 = vmatmul.bf16.gmra.mxu0 %v6133
    %v6184 = vpop.f32.mrf.mxu0
    %v6185 = vadd.f32 0.0, %v6184
    %v6186 = vpop.f32.mrf.mxu0
    %v6187 = vadd.f32 0.0, %v6186
    %6188 = vmatmul.bf16.gmra.mxu0 %v6136
    %v6189 = vpop.f32.mrf.mxu0
    %v6190 = vadd.f32 0.0, %v6189
    %v6191 = vpop.f32.mrf.mxu0
    %v6192 = vadd.f32 0.0, %v6191
    %6193 = vmatmul.bf16.gmra.mxu0 %v6139
    %v6194 = vpop.f32.mrf.mxu0
    %v6195 = vadd.f32 0.0, %v6194
    %v6196 = vpop.f32.mrf.mxu0
    %v6197 = vadd.f32 0.0, %v6196
    %6198 = vdwg.mxu0
    %6199 = vmatpush.bf16.msra.mxu0 0
    %6200 = vmatpush.bf16.msra.mxu0 0
    %6201 = vmatpush.bf16.msra.mxu0 0
    %6202 = vmatpush.bf16.msra.mxu0 0
    %6203 = vmatpush.bf16.msra.mxu0 %v3571
    %6204 = vmatpush.bf16.msra.mxu0 %v3568
    %6205 = vmatpush.bf16.msra.mxu0 %v3565
    %6206 = vmatpush.bf16.msra.mxu0 %v3562
    %6207 = vmatmul.bf16.gmra.mxu0 %v6130
    %v6208 = vpop.f32.mrf.mxu0
    %v6209 = vadd.f32 0.0, %v6208
    %v6210 = vpop.f32.mrf.mxu0
    %v6211 = vadd.f32 0.0, %v6210
    %6212 = vmatmul.bf16.gmra.mxu0 %v6133
    %v6213 = vpop.f32.mrf.mxu0
    %v6214 = vadd.f32 0.0, %v6213
    %v6215 = vpop.f32.mrf.mxu0
    %v6216 = vadd.f32 0.0, %v6215
    %6217 = vmatmul.bf16.gmra.mxu0 %v6136
    %v6218 = vpop.f32.mrf.mxu0
    %v6219 = vadd.f32 0.0, %v6218
    %v6220 = vpop.f32.mrf.mxu0
    %v6221 = vadd.f32 0.0, %v6220
    %6222 = vmatmul.bf16.gmra.mxu0 %v6139
    %v6223 = vpop.f32.mrf.mxu0
    %v6224 = vadd.f32 0.0, %v6223
    %v6225 = vpop.f32.mrf.mxu0
    %v6226 = vadd.f32 0.0, %v6225
    %6227 = vdwg.mxu0
    %v6229 = vsel %vm3055, %v5891, 0
    %v6232 = vsel %vm3055, %v5892, 0
    %v6235 = vsel %vm3055, %v5893, 0
    %v6238 = vsel %vm3055, %v5894, 0
    %6240 = vmatpush.bf16.msra.mxu0 0
    %6241 = vmatpush.bf16.msra.mxu0 0
    %6242 = vmatpush.bf16.msra.mxu0 0
    %6243 = vmatpush.bf16.msra.mxu0 0
    %6244 = vmatpush.bf16.msra.mxu0 %v3732
    %6245 = vmatpush.bf16.msra.mxu0 %v3729
    %6246 = vmatpush.bf16.msra.mxu0 %v3726
    %6247 = vmatpush.bf16.msra.mxu0 %v3723
    %6248 = vmatmul.bf16.gmra.mxu0 %v6229
    %v6249 = vpop.f32.mrf.mxu0
    %v6250 = vadd.f32 %v6151, %v6249
    %v6251 = vpop.f32.mrf.mxu0
    %v6252 = vadd.f32 %v6153, %v6251
    %6253 = vmatmul.bf16.gmra.mxu0 %v6232
    %v6254 = vpop.f32.mrf.mxu0
    %v6255 = vadd.f32 %v6156, %v6254
    %v6256 = vpop.f32.mrf.mxu0
    %v6257 = vadd.f32 %v6158, %v6256
    %6258 = vmatmul.bf16.gmra.mxu0 %v6235
    %v6259 = vpop.f32.mrf.mxu0
    %v6260 = vadd.f32 %v6161, %v6259
    %v6261 = vpop.f32.mrf.mxu0
    %v6262 = vadd.f32 %v6163, %v6261
    %6263 = vmatmul.bf16.gmra.mxu0 %v6238
    %v6264 = vpop.f32.mrf.mxu0
    %v6265 = vadd.f32 %v6166, %v6264
    %v6266 = vpop.f32.mrf.mxu0
    %v6267 = vadd.f32 %v6168, %v6266
    %6268 = vdwg.mxu0
    %6269 = vmatpush.bf16.msra.mxu0 0
    %6270 = vmatpush.bf16.msra.mxu0 0
    %6271 = vmatpush.bf16.msra.mxu0 0
    %6272 = vmatpush.bf16.msra.mxu0 0
    %6273 = vmatpush.bf16.msra.mxu0 %v3733
    %6274 = vmatpush.bf16.msra.mxu0 %v3730
    %6275 = vmatpush.bf16.msra.mxu0 %v3727
    %6276 = vmatpush.bf16.msra.mxu0 %v3724
    %6277 = vmatmul.bf16.gmra.mxu0 %v6229
    %v6278 = vpop.f32.mrf.mxu0
    %v6279 = vadd.f32 %v6180, %v6278
    %v6280 = vpop.f32.mrf.mxu0
    %v6281 = vadd.f32 %v6182, %v6280
    %6282 = vmatmul.bf16.gmra.mxu0 %v6232
    %v6283 = vpop.f32.mrf.mxu0
    %v6284 = vadd.f32 %v6185, %v6283
    %v6285 = vpop.f32.mrf.mxu0
    %v6286 = vadd.f32 %v6187, %v6285
    %6287 = vmatmul.bf16.gmra.mxu0 %v6235
    %v6288 = vpop.f32.mrf.mxu0
    %v6289 = vadd.f32 %v6190, %v6288
    %v6290 = vpop.f32.mrf.mxu0
    %v6291 = vadd.f32 %v6192, %v6290
    %6292 = vmatmul.bf16.gmra.mxu0 %v6238
    %v6293 = vpop.f32.mrf.mxu0
    %v6294 = vadd.f32 %v6195, %v6293
    %v6295 = vpop.f32.mrf.mxu0
    %v6296 = vadd.f32 %v6197, %v6295
    %6297 = vdwg.mxu0
    %6298 = vmatpush.bf16.msra.mxu0 0
    %6299 = vmatpush.bf16.msra.mxu0 0
    %6300 = vmatpush.bf16.msra.mxu0 0
    %6301 = vmatpush.bf16.msra.mxu0 0
    %6302 = vmatpush.bf16.msra.mxu0 %v3734
    %6303 = vmatpush.bf16.msra.mxu0 %v3731
    %6304 = vmatpush.bf16.msra.mxu0 %v3728
    %6305 = vmatpush.bf16.msra.mxu0 %v3725
    %6306 = vmatmul.bf16.gmra.mxu0 %v6229
    %v6307 = vpop.f32.mrf.mxu0
    %v6308 = vadd.f32 %v6209, %v6307
    %v6309 = vpop.f32.mrf.mxu0
    %v6310 = vadd.f32 %v6211, %v6309
    %6311 = vmatmul.bf16.gmra.mxu0 %v6232
    %v6312 = vpop.f32.mrf.mxu0
    %v6313 = vadd.f32 %v6214, %v6312
    %v6314 = vpop.f32.mrf.mxu0
    %v6315 = vadd.f32 %v6216, %v6314
    %6316 = vmatmul.bf16.gmra.mxu0 %v6235
    %v6317 = vpop.f32.mrf.mxu0
    %v6318 = vadd.f32 %v6219, %v6317
    %v6319 = vpop.f32.mrf.mxu0
    %v6320 = vadd.f32 %v6221, %v6319
    %6321 = vmatmul.bf16.gmra.mxu0 %v6238
    %v6322 = vpop.f32.mrf.mxu0
    %v6323 = vadd.f32 %v6224, %v6322
    %v6324 = vpop.f32.mrf.mxu0
    %v6325 = vadd.f32 %v6226, %v6324
    %6326 = vdwg.mxu0
    %v6327 = vunpack.c.h.b16 %v2859
    %v6328 = vunpack.c.h.b16 %v2864
    %v6329 = vunpack.c.h.b16 %v2869
    %v6330 = vunpack.c.h.b16 %v2874
    %v6331 = vunpack.c.h.b16 %v2879
    %v6332 = vunpack.c.h.b16 %v2884
    %v6333 = vunpack.c.h.b16 %v2889
    %v6334 = vunpack.c.h.b16 %v2894
    %v6335 = vpack.c.b16 %v6328, %v6327
    %v6336 = vpack.c.b16 %v6330, %v6329
    %v6337 = vpack.c.b16 %v6332, %v6331
    %v6338 = vpack.c.b16 %v6334, %v6333
    %v6347 = vunpack.c.l.b16 %v2861
    %v6348 = vunpack.c.l.b16 %v2866
    %v6349 = vunpack.c.l.b16 %v2871
    %v6350 = vunpack.c.l.b16 %v2876
    %v6351 = vunpack.c.l.b16 %v2881
    %v6352 = vunpack.c.l.b16 %v2886
    %v6353 = vunpack.c.l.b16 %v2891
    %v6354 = vunpack.c.l.b16 %v2896
    %v6355 = vpack.c.b16 %v6348, %v6347
    %v6356 = vpack.c.b16 %v6350, %v6349
    %v6357 = vpack.c.b16 %v6352, %v6351
    %v6358 = vpack.c.b16 %v6354, %v6353
    %v6360 = vsel %vm3055, %v6335, 0
    %v6363 = vsel %vm3055, %v6336, 0
    %v6366 = vsel %vm3055, %v6337, 0
    %v6369 = vsel %vm3055, %v6338, 0
    %v6372 = vsel %vm3055, %v6355, 0
    %v6375 = vsel %vm3055, %v6356, 0
    %v6378 = vsel %vm3055, %v6357, 0
    %v6381 = vsel %vm3055, %v6358, 0
    %6383 = vmatpush.bf16.xpose.msra.mxu0 0
    %6384 = vmatpush.bf16.xpose.msra.mxu0 0
    %6385 = vmatpush.bf16.xpose.msra.mxu0 0
    %6386 = vmatpush.bf16.xpose.msra.mxu0 0
    %6387 = vmatpush.bf16.xpose.msra.mxu0 %v6381
    %6388 = vmatpush.bf16.xpose.msra.mxu0 %v6378
    %6389 = vmatpush.bf16.xpose.msra.mxu0 %v6375
    %6390 = vmatpush.bf16.xpose.msra.mxu0 %v6372
    %6391 = vmatmul.bf16.gmra.mxu0 %v6360
    %v6392 = vpop.f32.mrf.mxu0
    %v6393 = vadd.f32 0.0, %v6392
    %v6394 = vpop.f32.mrf.mxu0
    %v6395 = vadd.f32 0.0, %v6394
    %6396 = vmatmul.bf16.gmra.mxu0 %v6363
    %v6397 = vpop.f32.mrf.mxu0
    %v6398 = vadd.f32 0.0, %v6397
    %v6399 = vpop.f32.mrf.mxu0
    %v6400 = vadd.f32 0.0, %v6399
    %6401 = vmatmul.bf16.gmra.mxu0 %v6366
    %v6402 = vpop.f32.mrf.mxu0
    %v6403 = vadd.f32 0.0, %v6402
    %v6404 = vpop.f32.mrf.mxu0
    %v6405 = vadd.f32 0.0, %v6404
    %6406 = vmatmul.bf16.gmra.mxu0 %v6369
    %v6407 = vpop.f32.mrf.mxu0
    %v6408 = vadd.f32 0.0, %v6407
    %v6409 = vpop.f32.mrf.mxu0
    %v6410 = vadd.f32 0.0, %v6409
    %6411 = vdwg.mxu0
    %v6412 = vmul.f32 %v6393, 0.125
    %v6413 = vmul.f32 %v6395, 0.125
    %v6414 = vmul.f32 %v6398, 0.125
    %v6415 = vmul.f32 %v6400, 0.125
    %v6416 = vmul.f32 %v6403, 0.125
    %v6417 = vmul.f32 %v6405, 0.125
    %v6418 = vmul.f32 %v6408, 0.125
    %v6419 = vmul.f32 %v6410, 0.125
    %v6420 = vsel %vm2910, %v6412, -inf
    %v6421 = vsel %vm2911, %v6413, -inf
    %v6422 = vsel %vm2912, %v6414, -inf
    %v6423 = vsel %vm2913, %v6415, -inf
    %v6424 = vsel %vm2914, %v6416, -inf
    %v6425 = vsel %vm2915, %v6417, -inf
    %v6426 = vsel %vm2916, %v6418, -inf
    %v6427 = vsel %vm2917, %v6419, -inf
    %v6428 = vsel %vm3055, %v6420, -inf
    %6429 = vmax.xlane.f32.xlu0 %v6428
    %v6430 = vpop.xlane.xlu0 %6429
    %v6431 = vsel %vm3055, %v6421, -inf
    %6432 = vmax.xlane.f32.xlu0 %v6431
    %v6433 = vpop.xlane.xlu0 %6432
    %v6434 = vsel %vm3055, %v6422, -inf
    %6435 = vmax.xlane.f32.xlu0 %v6434
    %v6436 = vpop.xlane.xlu0 %6435
    %v6437 = vsel %vm3055, %v6423, -inf
    %6438 = vmax.xlane.f32.xlu0 %v6437
    %v6439 = vpop.xlane.xlu0 %6438
    %v6440 = vsel %vm3055, %v6424, -inf
    %6441 = vmax.xlane.f32.xlu0 %v6440
    %v6442 = vpop.xlane.xlu0 %6441
    %v6443 = vsel %vm3055, %v6425, -inf
    %6444 = vmax.xlane.f32.xlu0 %v6443
    %v6445 = vpop.xlane.xlu0 %6444
    %v6446 = vsel %vm3055, %v6426, -inf
    %6447 = vmax.xlane.f32.xlu0 %v6446
    %v6448 = vpop.xlane.xlu0 %6447
    %v6449 = vsel %vm3055, %v6427, -inf
    %6450 = vmax.xlane.f32.xlu0 %v6449
    %v6451 = vpop.xlane.xlu0 %6450
    %v6452 = vsub.f32 %v6420, %v6430
    %v6453 = vsub.f32 %v6421, %v6433
    %v6454 = vsub.f32 %v6422, %v6436
    %v6455 = vsub.f32 %v6423, %v6439
    %v6456 = vsub.f32 %v6424, %v6442
    %v6457 = vsub.f32 %v6425, %v6445
    %v6458 = vsub.f32 %v6426, %v6448
    %v6459 = vsub.f32 %v6427, %v6451
    %v6460 = vmul.f32 %v6452, 1.442695
    %v6461 = vpow.pop %v6460
    %v6462 = vmul.f32 %v6453, 1.442695
    %v6463 = vpow.pop %v6462
    %v6464 = vmul.f32 %v6454, 1.442695
    %v6465 = vpow.pop %v6464
    %v6466 = vmul.f32 %v6455, 1.442695
    %v6467 = vpow.pop %v6466
    %v6468 = vmul.f32 %v6456, 1.442695
    %v6469 = vpow.pop %v6468
    %v6470 = vmul.f32 %v6457, 1.442695
    %v6471 = vpow.pop %v6470
    %v6472 = vmul.f32 %v6458, 1.442695
    %v6473 = vpow.pop %v6472
    %v6474 = vmul.f32 %v6459, 1.442695
    %v6475 = vpow.pop %v6474
    %v6476 = vsel %vm3055, %v6461, 0.0
    %6477 = vadd.xlane.f32.xlu0 %v6476
    %v6478 = vpop.xlane.xlu0 %6477
    %v6479 = vsel %vm3055, %v6463, 0.0
    %6480 = vadd.xlane.f32.xlu0 %v6479
    %v6481 = vpop.xlane.xlu0 %6480
    %v6482 = vsel %vm3055, %v6465, 0.0
    %6483 = vadd.xlane.f32.xlu0 %v6482
    %v6484 = vpop.xlane.xlu0 %6483
    %v6485 = vsel %vm3055, %v6467, 0.0
    %6486 = vadd.xlane.f32.xlu0 %v6485
    %v6487 = vpop.xlane.xlu0 %6486
    %v6488 = vsel %vm3055, %v6469, 0.0
    %6489 = vadd.xlane.f32.xlu0 %v6488
    %v6490 = vpop.xlane.xlu0 %6489
    %v6491 = vsel %vm3055, %v6471, 0.0
    %6492 = vadd.xlane.f32.xlu0 %v6491
    %v6493 = vpop.xlane.xlu0 %6492
    %v6494 = vsel %vm3055, %v6473, 0.0
    %6495 = vadd.xlane.f32.xlu0 %v6494
    %v6496 = vpop.xlane.xlu0 %6495
    %v6497 = vsel %vm3055, %v6475, 0.0
    %6498 = vadd.xlane.f32.xlu0 %v6497
    %v6499 = vpop.xlane.xlu0 %6498
    %v6500 = vrcp.pop %v6478
    %v6501 = vrcp.pop %v6481
    %v6502 = vrcp.pop %v6484
    %v6503 = vrcp.pop %v6487
    %v6504 = vrcp.pop %v6490
    %v6505 = vrcp.pop %v6493
    %v6506 = vrcp.pop %v6496
    %v6507 = vrcp.pop %v6499
    %v6508 = vmul.f32 %v6461, %v6500
    %v6509 = vmul.f32 %v6463, %v6501
    %v6510 = vmul.f32 %v6465, %v6502
    %v6511 = vmul.f32 %v6467, %v6503
    %v6512 = vmul.f32 %v6469, %v6504
    %v6513 = vmul.f32 %v6471, %v6505
    %v6514 = vmul.f32 %v6473, %v6506
    %v6515 = vmul.f32 %v6475, %v6507
    %v6516 = vpack.c.bf16 %v6509, %v6508
    %v6517 = vpack.c.bf16 %v6511, %v6510
    %v6518 = vpack.c.bf16 %v6513, %v6512
    %v6519 = vpack.c.bf16 %v6515, %v6514
    %v6520 = vunpack.c.h.b16 %v2862
    %v6521 = vunpack.c.h.b16 %v2867
    %v6522 = vunpack.c.h.b16 %v2872
    %v6523 = vunpack.c.h.b16 %v2877
    %v6524 = vunpack.c.h.b16 %v2882
    %v6525 = vunpack.c.h.b16 %v2887
    %v6526 = vunpack.c.h.b16 %v2892
    %v6527 = vunpack.c.h.b16 %v2897
    %v6528 = vpack.c.b16 %v6521, %v6520
    %v6529 = vpack.c.b16 %v6523, %v6522
    %v6530 = vpack.c.b16 %v6525, %v6524
    %v6531 = vpack.c.b16 %v6527, %v6526
    %v6537 = vsel %vm3055, %v6516, 0
    %v6540 = vsel %vm3055, %v6517, 0
    %v6543 = vsel %vm3055, %v6518, 0
    %v6546 = vsel %vm3055, %v6519, 0
    %6548 = vmatpush.bf16.msra.mxu0 0
    %6549 = vmatpush.bf16.msra.mxu0 0
    %6550 = vmatpush.bf16.msra.mxu0 0
    %6551 = vmatpush.bf16.msra.mxu0 0
    %6552 = vmatpush.bf16.msra.mxu0 %v6531
    %6553 = vmatpush.bf16.msra.mxu0 %v6530
    %6554 = vmatpush.bf16.msra.mxu0 %v6529
    %6555 = vmatpush.bf16.msra.mxu0 %v6528
    %6556 = vmatmul.bf16.gmra.mxu0 %v6537
    %v6557 = vpop.f32.mrf.mxu0
    %v6558 = vadd.f32 0.0, %v6557
    %v6559 = vpop.f32.mrf.mxu0
    %v6560 = vadd.f32 0.0, %v6559
    %6561 = vmatmul.bf16.gmra.mxu0 %v6540
    %v6562 = vpop.f32.mrf.mxu0
    %v6563 = vadd.f32 0.0, %v6562
    %v6564 = vpop.f32.mrf.mxu0
    %v6565 = vadd.f32 0.0, %v6564
    %6566 = vmatmul.bf16.gmra.mxu0 %v6543
    %v6567 = vpop.f32.mrf.mxu0
    %v6568 = vadd.f32 0.0, %v6567
    %v6569 = vpop.f32.mrf.mxu0
    %v6570 = vadd.f32 0.0, %v6569
    %6571 = vmatmul.bf16.gmra.mxu0 %v6546
    %v6572 = vpop.f32.mrf.mxu0
    %v6573 = vadd.f32 0.0, %v6572
    %v6574 = vpop.f32.mrf.mxu0
    %v6575 = vadd.f32 0.0, %v6574
    %6576 = vdwg.mxu0
    %v6577 = vpack.c.bf16 %v6560, %v6558
    %v6578 = vpack.c.bf16 %v6565, %v6563
    %v6579 = vpack.c.bf16 %v6570, %v6568
    %v6580 = vpack.c.bf16 %v6575, %v6573
    %v6582 = vsel %vm3055, %v6577, 0
    %v6585 = vsel %vm3055, %v6578, 0
    %v6588 = vsel %vm3055, %v6579, 0
    %v6591 = vsel %vm3055, %v6580, 0
    %6593 = vmatpush.bf16.msra.mxu0 0
    %6594 = vmatpush.bf16.msra.mxu0 0
    %6595 = vmatpush.bf16.msra.mxu0 0
    %6596 = vmatpush.bf16.msra.mxu0 0
    %6597 = vmatpush.bf16.msra.mxu0 %v4149
    %6598 = vmatpush.bf16.msra.mxu0 %v4146
    %6599 = vmatpush.bf16.msra.mxu0 %v4143
    %6600 = vmatpush.bf16.msra.mxu0 %v4140
    %6601 = vmatmul.bf16.gmra.mxu0 %v6582
    %v6602 = vpop.f32.mrf.mxu0
    %v6603 = vadd.f32 0.0, %v6602
    %v6604 = vpop.f32.mrf.mxu0
    %v6605 = vadd.f32 0.0, %v6604
    %6606 = vmatmul.bf16.gmra.mxu0 %v6585
    %v6607 = vpop.f32.mrf.mxu0
    %v6608 = vadd.f32 0.0, %v6607
    %v6609 = vpop.f32.mrf.mxu0
    %v6610 = vadd.f32 0.0, %v6609
    %6611 = vmatmul.bf16.gmra.mxu0 %v6588
    %v6612 = vpop.f32.mrf.mxu0
    %v6613 = vadd.f32 0.0, %v6612
    %v6614 = vpop.f32.mrf.mxu0
    %v6615 = vadd.f32 0.0, %v6614
    %6616 = vmatmul.bf16.gmra.mxu0 %v6591
    %v6617 = vpop.f32.mrf.mxu0
    %v6618 = vadd.f32 0.0, %v6617
    %v6619 = vpop.f32.mrf.mxu0
    %v6620 = vadd.f32 0.0, %v6619
    %6621 = vdwg.mxu0
    %6622 = vmatpush.bf16.msra.mxu0 0
    %6623 = vmatpush.bf16.msra.mxu0 0
    %6624 = vmatpush.bf16.msra.mxu0 0
    %6625 = vmatpush.bf16.msra.mxu0 0
    %6626 = vmatpush.bf16.msra.mxu0 %v4150
    %6627 = vmatpush.bf16.msra.mxu0 %v4147
    %6628 = vmatpush.bf16.msra.mxu0 %v4144
    %6629 = vmatpush.bf16.msra.mxu0 %v4141
    %6630 = vmatmul.bf16.gmra.mxu0 %v6582
    %v6631 = vpop.f32.mrf.mxu0
    %v6632 = vadd.f32 0.0, %v6631
    %v6633 = vpop.f32.mrf.mxu0
    %v6634 = vadd.f32 0.0, %v6633
    %6635 = vmatmul.bf16.gmra.mxu0 %v6585
    %v6636 = vpop.f32.mrf.mxu0
    %v6637 = vadd.f32 0.0, %v6636
    %v6638 = vpop.f32.mrf.mxu0
    %v6639 = vadd.f32 0.0, %v6638
    %6640 = vmatmul.bf16.gmra.mxu0 %v6588
    %v6641 = vpop.f32.mrf.mxu0
    %v6642 = vadd.f32 0.0, %v6641
    %v6643 = vpop.f32.mrf.mxu0
    %v6644 = vadd.f32 0.0, %v6643
    %6645 = vmatmul.bf16.gmra.mxu0 %v6591
    %v6646 = vpop.f32.mrf.mxu0
    %v6647 = vadd.f32 0.0, %v6646
    %v6648 = vpop.f32.mrf.mxu0
    %v6649 = vadd.f32 0.0, %v6648
    %6650 = vdwg.mxu0
    %6651 = vmatpush.bf16.msra.mxu0 0
    %6652 = vmatpush.bf16.msra.mxu0 0
    %6653 = vmatpush.bf16.msra.mxu0 0
    %6654 = vmatpush.bf16.msra.mxu0 0
    %6655 = vmatpush.bf16.msra.mxu0 %v4151
    %6656 = vmatpush.bf16.msra.mxu0 %v4148
    %6657 = vmatpush.bf16.msra.mxu0 %v4145
    %6658 = vmatpush.bf16.msra.mxu0 %v4142
    %6659 = vmatmul.bf16.gmra.mxu0 %v6582
    %v6660 = vpop.f32.mrf.mxu0
    %v6661 = vadd.f32 0.0, %v6660
    %v6662 = vpop.f32.mrf.mxu0
    %v6663 = vadd.f32 0.0, %v6662
    %6664 = vmatmul.bf16.gmra.mxu0 %v6585
    %v6665 = vpop.f32.mrf.mxu0
    %v6666 = vadd.f32 0.0, %v6665
    %v6667 = vpop.f32.mrf.mxu0
    %v6668 = vadd.f32 0.0, %v6667
    %6669 = vmatmul.bf16.gmra.mxu0 %v6588
    %v6670 = vpop.f32.mrf.mxu0
    %v6671 = vadd.f32 0.0, %v6670
    %v6672 = vpop.f32.mrf.mxu0
    %v6673 = vadd.f32 0.0, %v6672
    %6674 = vmatmul.bf16.gmra.mxu0 %v6591
    %v6675 = vpop.f32.mrf.mxu0
    %v6676 = vadd.f32 0.0, %v6675
    %v6677 = vpop.f32.mrf.mxu0
    %v6678 = vadd.f32 0.0, %v6677
    %6679 = vdwg.mxu0
    %v6680 = vadd.f32 %v6250, %v6603
    %v6681 = vadd.f32 %v6279, %v6632
    %v6682 = vadd.f32 %v6308, %v6661
    %v6683 = vadd.f32 %v6252, %v6605
    %v6684 = vadd.f32 %v6281, %v6634
    %v6685 = vadd.f32 %v6310, %v6663
    %v6686 = vadd.f32 %v6255, %v6608
    %v6687 = vadd.f32 %v6284, %v6637
    %v6688 = vadd.f32 %v6313, %v6666
    %v6689 = vadd.f32 %v6257, %v6610
    %v6690 = vadd.f32 %v6286, %v6639
    %v6691 = vadd.f32 %v6315, %v6668
    %v6692 = vadd.f32 %v6260, %v6613
    %v6693 = vadd.f32 %v6289, %v6642
    %v6694 = vadd.f32 %v6318, %v6671
    %v6695 = vadd.f32 %v6262, %v6615
    %v6696 = vadd.f32 %v6291, %v6644
    %v6697 = vadd.f32 %v6320, %v6673
    %v6698 = vadd.f32 %v6265, %v6618
    %v6699 = vadd.f32 %v6294, %v6647
    %v6700 = vadd.f32 %v6323, %v6676
    %v6701 = vadd.f32 %v6267, %v6620
    %v6702 = vadd.f32 %v6296, %v6649
    %v6703 = vadd.f32 %v6325, %v6678
    %6704 = vrot.lane.b32.xlu0 %v6335, 64
    %v6705 = vpop.permute.xlu0 %6704
    %6706 = vrot.lane.b32.xlu0 %v6336, 64
    %v6707 = vpop.permute.xlu0 %6706
    %6708 = vrot.lane.b32.xlu0 %v6337, 64
    %v6709 = vpop.permute.xlu0 %6708
    %6710 = vrot.lane.b32.xlu0 %v6338, 64
    %v6711 = vpop.permute.xlu0 %6710
    %6712 = vrot.lane.b32.xlu0 %v6355, 64
    %v6713 = vpop.permute.xlu0 %6712
    %6714 = vrot.lane.b32.xlu0 %v6356, 64
    %v6715 = vpop.permute.xlu0 %6714
    %6716 = vrot.lane.b32.xlu0 %v6357, 64
    %v6717 = vpop.permute.xlu0 %6716
    %6718 = vrot.lane.b32.xlu0 %v6358, 64
    %v6719 = vpop.permute.xlu0 %6718
    %v6721 = vsel %vm3055, %v6705, 0
    %v6724 = vsel %vm3055, %v6707, 0
    %v6727 = vsel %vm3055, %v6709, 0
    %v6730 = vsel %vm3055, %v6711, 0
    %v6733 = vsel %vm3055, %v6713, 0
    %v6736 = vsel %vm3055, %v6715, 0
    %v6739 = vsel %vm3055, %v6717, 0
    %v6742 = vsel %vm3055, %v6719, 0
    %6744 = vmatpush.bf16.xpose.msra.mxu0 0
    %6745 = vmatpush.bf16.xpose.msra.mxu0 0
    %6746 = vmatpush.bf16.xpose.msra.mxu0 0
    %6747 = vmatpush.bf16.xpose.msra.mxu0 0
    %6748 = vmatpush.bf16.xpose.msra.mxu0 %v6742
    %6749 = vmatpush.bf16.xpose.msra.mxu0 %v6739
    %6750 = vmatpush.bf16.xpose.msra.mxu0 %v6736
    %6751 = vmatpush.bf16.xpose.msra.mxu0 %v6733
    %6752 = vmatmul.bf16.gmra.mxu0 %v6721
    %v6753 = vpop.f32.mrf.mxu0
    %v6754 = vadd.f32 0.0, %v6753
    %v6755 = vpop.f32.mrf.mxu0
    %v6756 = vadd.f32 0.0, %v6755
    %6757 = vmatmul.bf16.gmra.mxu0 %v6724
    %v6758 = vpop.f32.mrf.mxu0
    %v6759 = vadd.f32 0.0, %v6758
    %v6760 = vpop.f32.mrf.mxu0
    %v6761 = vadd.f32 0.0, %v6760
    %6762 = vmatmul.bf16.gmra.mxu0 %v6727
    %v6763 = vpop.f32.mrf.mxu0
    %v6764 = vadd.f32 0.0, %v6763
    %v6765 = vpop.f32.mrf.mxu0
    %v6766 = vadd.f32 0.0, %v6765
    %6767 = vmatmul.bf16.gmra.mxu0 %v6730
    %v6768 = vpop.f32.mrf.mxu0
    %v6769 = vadd.f32 0.0, %v6768
    %v6770 = vpop.f32.mrf.mxu0
    %v6771 = vadd.f32 0.0, %v6770
    %6772 = vdwg.mxu0
    %v6773 = vmul.f32 %v6754, 0.125
    %v6774 = vmul.f32 %v6756, 0.125
    %v6775 = vmul.f32 %v6759, 0.125
    %v6776 = vmul.f32 %v6761, 0.125
    %v6777 = vmul.f32 %v6764, 0.125
    %v6778 = vmul.f32 %v6766, 0.125
    %v6779 = vmul.f32 %v6769, 0.125
    %v6780 = vmul.f32 %v6771, 0.125
    %v6781 = vsel %vm2910, %v6773, -inf
    %v6782 = vsel %vm2911, %v6774, -inf
    %v6783 = vsel %vm2912, %v6775, -inf
    %v6784 = vsel %vm2913, %v6776, -inf
    %v6785 = vsel %vm2914, %v6777, -inf
    %v6786 = vsel %vm2915, %v6778, -inf
    %v6787 = vsel %vm2916, %v6779, -inf
    %v6788 = vsel %vm2917, %v6780, -inf
    %v6789 = vsel %vm3055, %v6781, -inf
    %6790 = vmax.xlane.f32.xlu0 %v6789
    %v6791 = vpop.xlane.xlu0 %6790
    %v6792 = vsel %vm3055, %v6782, -inf
    %6793 = vmax.xlane.f32.xlu0 %v6792
    %v6794 = vpop.xlane.xlu0 %6793
    %v6795 = vsel %vm3055, %v6783, -inf
    %6796 = vmax.xlane.f32.xlu0 %v6795
    %v6797 = vpop.xlane.xlu0 %6796
    %v6798 = vsel %vm3055, %v6784, -inf
    %6799 = vmax.xlane.f32.xlu0 %v6798
    %v6800 = vpop.xlane.xlu0 %6799
    %v6801 = vsel %vm3055, %v6785, -inf
    %6802 = vmax.xlane.f32.xlu0 %v6801
    %v6803 = vpop.xlane.xlu0 %6802
    %v6804 = vsel %vm3055, %v6786, -inf
    %6805 = vmax.xlane.f32.xlu0 %v6804
    %v6806 = vpop.xlane.xlu0 %6805
    %v6807 = vsel %vm3055, %v6787, -inf
    %6808 = vmax.xlane.f32.xlu0 %v6807
    %v6809 = vpop.xlane.xlu0 %6808
    %v6810 = vsel %vm3055, %v6788, -inf
    %6811 = vmax.xlane.f32.xlu0 %v6810
    %v6812 = vpop.xlane.xlu0 %6811
    %v6813 = vsub.f32 %v6781, %v6791
    %v6814 = vsub.f32 %v6782, %v6794
    %v6815 = vsub.f32 %v6783, %v6797
    %v6816 = vsub.f32 %v6784, %v6800
    %v6817 = vsub.f32 %v6785, %v6803
    %v6818 = vsub.f32 %v6786, %v6806
    %v6819 = vsub.f32 %v6787, %v6809
    %v6820 = vsub.f32 %v6788, %v6812
    %v6821 = vmul.f32 %v6813, 1.442695
    %v6822 = vpow.pop %v6821
    %v6823 = vmul.f32 %v6814, 1.442695
    %v6824 = vpow.pop %v6823
    %v6825 = vmul.f32 %v6815, 1.442695
    %v6826 = vpow.pop %v6825
    %v6827 = vmul.f32 %v6816, 1.442695
    %v6828 = vpow.pop %v6827
    %v6829 = vmul.f32 %v6817, 1.442695
    %v6830 = vpow.pop %v6829
    %v6831 = vmul.f32 %v6818, 1.442695
    %v6832 = vpow.pop %v6831
    %v6833 = vmul.f32 %v6819, 1.442695
    %v6834 = vpow.pop %v6833
    %v6835 = vmul.f32 %v6820, 1.442695
    %v6836 = vpow.pop %v6835
    %v6837 = vsel %vm3055, %v6822, 0.0
    %6838 = vadd.xlane.f32.xlu0 %v6837
    %v6839 = vpop.xlane.xlu0 %6838
    %v6840 = vsel %vm3055, %v6824, 0.0
    %6841 = vadd.xlane.f32.xlu0 %v6840
    %v6842 = vpop.xlane.xlu0 %6841
    %v6843 = vsel %vm3055, %v6826, 0.0
    %6844 = vadd.xlane.f32.xlu0 %v6843
    %v6845 = vpop.xlane.xlu0 %6844
    %v6846 = vsel %vm3055, %v6828, 0.0
    %6847 = vadd.xlane.f32.xlu0 %v6846
    %v6848 = vpop.xlane.xlu0 %6847
    %v6849 = vsel %vm3055, %v6830, 0.0
    %6850 = vadd.xlane.f32.xlu0 %v6849
    %v6851 = vpop.xlane.xlu0 %6850
    %v6852 = vsel %vm3055, %v6832, 0.0
    %6853 = vadd.xlane.f32.xlu0 %v6852
    %v6854 = vpop.xlane.xlu0 %6853
    %v6855 = vsel %vm3055, %v6834, 0.0
    %6856 = vadd.xlane.f32.xlu0 %v6855
    %v6857 = vpop.xlane.xlu0 %6856
    %v6858 = vsel %vm3055, %v6836, 0.0
    %6859 = vadd.xlane.f32.xlu0 %v6858
    %v6860 = vpop.xlane.xlu0 %6859
    %v6861 = vrcp.pop %v6839
    %v6862 = vrcp.pop %v6842
    %v6863 = vrcp.pop %v6845
    %v6864 = vrcp.pop %v6848
    %v6865 = vrcp.pop %v6851
    %v6866 = vrcp.pop %v6854
    %v6867 = vrcp.pop %v6857
    %v6868 = vrcp.pop %v6860
    %v6869 = vmul.f32 %v6822, %v6861
    %v6870 = vmul.f32 %v6824, %v6862
    %v6871 = vmul.f32 %v6826, %v6863
    %v6872 = vmul.f32 %v6828, %v6864
    %v6873 = vmul.f32 %v6830, %v6865
    %v6874 = vmul.f32 %v6832, %v6866
    %v6875 = vmul.f32 %v6834, %v6867
    %v6876 = vmul.f32 %v6836, %v6868
    %v6877 = vpack.c.bf16 %v6870, %v6869
    %v6878 = vpack.c.bf16 %v6872, %v6871
    %v6879 = vpack.c.bf16 %v6874, %v6873
    %v6880 = vpack.c.bf16 %v6876, %v6875
    %6881 = vrot.lane.b32.xlu0 %v6528, 64
    %v6882 = vpop.permute.xlu0 %6881
    %6883 = vrot.lane.b32.xlu0 %v6529, 64
    %v6884 = vpop.permute.xlu0 %6883
    %6885 = vrot.lane.b32.xlu0 %v6530, 64
    %v6886 = vpop.permute.xlu0 %6885
    %6887 = vrot.lane.b32.xlu0 %v6531, 64
    %v6888 = vpop.permute.xlu0 %6887
    %v6894 = vsel %vm3055, %v6877, 0
    %v6897 = vsel %vm3055, %v6878, 0
    %v6900 = vsel %vm3055, %v6879, 0
    %v6903 = vsel %vm3055, %v6880, 0
    %6905 = vmatpush.bf16.msra.mxu0 0
    %6906 = vmatpush.bf16.msra.mxu0 0
    %6907 = vmatpush.bf16.msra.mxu0 0
    %6908 = vmatpush.bf16.msra.mxu0 0
    %6909 = vmatpush.bf16.msra.mxu0 %v6888
    %6910 = vmatpush.bf16.msra.mxu0 %v6886
    %6911 = vmatpush.bf16.msra.mxu0 %v6884
    %6912 = vmatpush.bf16.msra.mxu0 %v6882
    %6913 = vmatmul.bf16.gmra.mxu0 %v6894
    %v6914 = vpop.f32.mrf.mxu0
    %v6915 = vadd.f32 0.0, %v6914
    %v6916 = vpop.f32.mrf.mxu0
    %v6917 = vadd.f32 0.0, %v6916
    %6918 = vmatmul.bf16.gmra.mxu0 %v6897
    %v6919 = vpop.f32.mrf.mxu0
    %v6920 = vadd.f32 0.0, %v6919
    %v6921 = vpop.f32.mrf.mxu0
    %v6922 = vadd.f32 0.0, %v6921
    %6923 = vmatmul.bf16.gmra.mxu0 %v6900
    %v6924 = vpop.f32.mrf.mxu0
    %v6925 = vadd.f32 0.0, %v6924
    %v6926 = vpop.f32.mrf.mxu0
    %v6927 = vadd.f32 0.0, %v6926
    %6928 = vmatmul.bf16.gmra.mxu0 %v6903
    %v6929 = vpop.f32.mrf.mxu0
    %v6930 = vadd.f32 0.0, %v6929
    %v6931 = vpop.f32.mrf.mxu0
    %v6932 = vadd.f32 0.0, %v6931
    %6933 = vdwg.mxu0
    %v6934 = vpack.c.bf16 %v6917, %v6915
    %v6935 = vpack.c.bf16 %v6922, %v6920
    %v6936 = vpack.c.bf16 %v6927, %v6925
    %v6937 = vpack.c.bf16 %v6932, %v6930
    %v6939 = vsel %vm3055, %v6934, 0
    %v6942 = vsel %vm3055, %v6935, 0
    %v6945 = vsel %vm3055, %v6936, 0
    %v6948 = vsel %vm3055, %v6937, 0
    %6950 = vmatpush.bf16.msra.mxu0 0
    %6951 = vmatpush.bf16.msra.mxu0 0
    %6952 = vmatpush.bf16.msra.mxu0 0
    %6953 = vmatpush.bf16.msra.mxu0 0
    %6954 = vmatpush.bf16.msra.mxu0 %v4570
    %6955 = vmatpush.bf16.msra.mxu0 %v4567
    %6956 = vmatpush.bf16.msra.mxu0 %v4564
    %6957 = vmatpush.bf16.msra.mxu0 %v4561
    %6958 = vmatmul.bf16.gmra.mxu0 %v6939
    %v6959 = vpop.f32.mrf.mxu0
    %v6960 = vadd.f32 0.0, %v6959
    %v6961 = vpop.f32.mrf.mxu0
    %v6962 = vadd.f32 0.0, %v6961
    %6963 = vmatmul.bf16.gmra.mxu0 %v6942
    %v6964 = vpop.f32.mrf.mxu0
    %v6965 = vadd.f32 0.0, %v6964
    %v6966 = vpop.f32.mrf.mxu0
    %v6967 = vadd.f32 0.0, %v6966
    %6968 = vmatmul.bf16.gmra.mxu0 %v6945
    %v6969 = vpop.f32.mrf.mxu0
    %v6970 = vadd.f32 0.0, %v6969
    %v6971 = vpop.f32.mrf.mxu0
    %v6972 = vadd.f32 0.0, %v6971
    %6973 = vmatmul.bf16.gmra.mxu0 %v6948
    %v6974 = vpop.f32.mrf.mxu0
    %v6975 = vadd.f32 0.0, %v6974
    %v6976 = vpop.f32.mrf.mxu0
    %v6977 = vadd.f32 0.0, %v6976
    %6978 = vdwg.mxu0
    %6979 = vmatpush.bf16.msra.mxu0 0
    %6980 = vmatpush.bf16.msra.mxu0 0
    %6981 = vmatpush.bf16.msra.mxu0 0
    %6982 = vmatpush.bf16.msra.mxu0 0
    %6983 = vmatpush.bf16.msra.mxu0 %v4571
    %6984 = vmatpush.bf16.msra.mxu0 %v4568
    %6985 = vmatpush.bf16.msra.mxu0 %v4565
    %6986 = vmatpush.bf16.msra.mxu0 %v4562
    %6987 = vmatmul.bf16.gmra.mxu0 %v6939
    %v6988 = vpop.f32.mrf.mxu0
    %v6989 = vadd.f32 0.0, %v6988
    %v6990 = vpop.f32.mrf.mxu0
    %v6991 = vadd.f32 0.0, %v6990
    %6992 = vmatmul.bf16.gmra.mxu0 %v6942
    %v6993 = vpop.f32.mrf.mxu0
    %v6994 = vadd.f32 0.0, %v6993
    %v6995 = vpop.f32.mrf.mxu0
    %v6996 = vadd.f32 0.0, %v6995
    %6997 = vmatmul.bf16.gmra.mxu0 %v6945
    %v6998 = vpop.f32.mrf.mxu0
    %v6999 = vadd.f32 0.0, %v6998
    %v7000 = vpop.f32.mrf.mxu0
    %v7001 = vadd.f32 0.0, %v7000
    %7002 = vmatmul.bf16.gmra.mxu0 %v6948
    %v7003 = vpop.f32.mrf.mxu0
    %v7004 = vadd.f32 0.0, %v7003
    %v7005 = vpop.f32.mrf.mxu0
    %v7006 = vadd.f32 0.0, %v7005
    %7007 = vdwg.mxu0
    %7008 = vmatpush.bf16.msra.mxu0 0
    %7009 = vmatpush.bf16.msra.mxu0 0
    %7010 = vmatpush.bf16.msra.mxu0 0
    %7011 = vmatpush.bf16.msra.mxu0 0
    %7012 = vmatpush.bf16.msra.mxu0 %v4572
    %7013 = vmatpush.bf16.msra.mxu0 %v4569
    %7014 = vmatpush.bf16.msra.mxu0 %v4566
    %7015 = vmatpush.bf16.msra.mxu0 %v4563
    %7016 = vmatmul.bf16.gmra.mxu0 %v6939
    %v7017 = vpop.f32.mrf.mxu0
    %v7018 = vadd.f32 0.0, %v7017
    %v7019 = vpop.f32.mrf.mxu0
    %v7020 = vadd.f32 0.0, %v7019
    %7021 = vmatmul.bf16.gmra.mxu0 %v6942
    %v7022 = vpop.f32.mrf.mxu0
    %v7023 = vadd.f32 0.0, %v7022
    %v7024 = vpop.f32.mrf.mxu0
    %v7025 = vadd.f32 0.0, %v7024
    %7026 = vmatmul.bf16.gmra.mxu0 %v6945
    %v7027 = vpop.f32.mrf.mxu0
    %v7028 = vadd.f32 0.0, %v7027
    %v7029 = vpop.f32.mrf.mxu0
    %v7030 = vadd.f32 0.0, %v7029
    %7031 = vmatmul.bf16.gmra.mxu0 %v6948
    %v7032 = vpop.f32.mrf.mxu0
    %v7033 = vadd.f32 0.0, %v7032
    %v7034 = vpop.f32.mrf.mxu0
    %v7035 = vadd.f32 0.0, %v7034
    %7036 = vdwg.mxu0
    %v7037 = vadd.f32 %v6680, %v6960
    %v7038 = vadd.f32 %v6681, %v6989
    %v7039 = vadd.f32 %v6682, %v7018
    %v7040 = vadd.f32 %v6683, %v6962
    %v7041 = vadd.f32 %v6684, %v6991
    %v7042 = vadd.f32 %v6685, %v7020
    %v7043 = vadd.f32 %v6686, %v6965
    %v7044 = vadd.f32 %v6687, %v6994
    %v7045 = vadd.f32 %v6688, %v7023
    %v7046 = vadd.f32 %v6689, %v6967
    %v7047 = vadd.f32 %v6690, %v6996
    %v7048 = vadd.f32 %v6691, %v7025
    %v7049 = vadd.f32 %v6692, %v6970
    %v7050 = vadd.f32 %v6693, %v6999
    %v7051 = vadd.f32 %v6694, %v7028
    %v7052 = vadd.f32 %v6695, %v6972
    %v7053 = vadd.f32 %v6696, %v7001
    %v7054 = vadd.f32 %v6697, %v7030
    %v7055 = vadd.f32 %v6698, %v6975
    %v7056 = vadd.f32 %v6699, %v7004
    %v7057 = vadd.f32 %v6700, %v7033
    %v7058 = vadd.f32 %v6701, %v6977
    %v7059 = vadd.f32 %v6702, %v7006
    %v7060 = vadd.f32 %v6703, %v7035
    %v7061 = vunpack.c.l.b16 %v2860
    %v7062 = vunpack.c.l.b16 %v2865
    %v7063 = vunpack.c.l.b16 %v2870
    %v7064 = vunpack.c.l.b16 %v2875
    %v7065 = vunpack.c.l.b16 %v2880
    %v7066 = vunpack.c.l.b16 %v2885
    %v7067 = vunpack.c.l.b16 %v2890
    %v7068 = vunpack.c.l.b16 %v2895
    %v7069 = vpack.c.b16 %v7062, %v7061
    %v7070 = vpack.c.b16 %v7064, %v7063
    %v7071 = vpack.c.b16 %v7066, %v7065
    %v7072 = vpack.c.b16 %v7068, %v7067
    %v7073 = vunpack.c.h.b16 %v2861
    %v7074 = vunpack.c.h.b16 %v2866
    %v7075 = vunpack.c.h.b16 %v2871
    %v7076 = vunpack.c.h.b16 %v2876
    %v7077 = vunpack.c.h.b16 %v2881
    %v7078 = vunpack.c.h.b16 %v2886
    %v7079 = vunpack.c.h.b16 %v2891
    %v7080 = vunpack.c.h.b16 %v2896
    %v7081 = vpack.c.b16 %v7074, %v7073
    %v7082 = vpack.c.b16 %v7076, %v7075
    %v7083 = vpack.c.b16 %v7078, %v7077
    %v7084 = vpack.c.b16 %v7080, %v7079
    %v7086 = vsel %vm3055, %v7069, 0
    %v7089 = vsel %vm3055, %v7070, 0
    %v7092 = vsel %vm3055, %v7071, 0
    %v7095 = vsel %vm3055, %v7072, 0
    %v7098 = vsel %vm3055, %v7081, 0
    %v7101 = vsel %vm3055, %v7082, 0
    %v7104 = vsel %vm3055, %v7083, 0
    %v7107 = vsel %vm3055, %v7084, 0
    %7109 = vmatpush.bf16.xpose.msra.mxu0 0
    %7110 = vmatpush.bf16.xpose.msra.mxu0 0
    %7111 = vmatpush.bf16.xpose.msra.mxu0 0
    %7112 = vmatpush.bf16.xpose.msra.mxu0 0
    %7113 = vmatpush.bf16.xpose.msra.mxu0 %v7107
    %7114 = vmatpush.bf16.xpose.msra.mxu0 %v7104
    %7115 = vmatpush.bf16.xpose.msra.mxu0 %v7101
    %7116 = vmatpush.bf16.xpose.msra.mxu0 %v7098
    %7117 = vmatmul.bf16.gmra.mxu0 %v7086
    %v7118 = vpop.f32.mrf.mxu0
    %v7119 = vadd.f32 0.0, %v7118
    %v7120 = vpop.f32.mrf.mxu0
    %v7121 = vadd.f32 0.0, %v7120
    %7122 = vmatmul.bf16.gmra.mxu0 %v7089
    %v7123 = vpop.f32.mrf.mxu0
    %v7124 = vadd.f32 0.0, %v7123
    %v7125 = vpop.f32.mrf.mxu0
    %v7126 = vadd.f32 0.0, %v7125
    %7127 = vmatmul.bf16.gmra.mxu0 %v7092
    %v7128 = vpop.f32.mrf.mxu0
    %v7129 = vadd.f32 0.0, %v7128
    %v7130 = vpop.f32.mrf.mxu0
    %v7131 = vadd.f32 0.0, %v7130
    %7132 = vmatmul.bf16.gmra.mxu0 %v7095
    %v7133 = vpop.f32.mrf.mxu0
    %v7134 = vadd.f32 0.0, %v7133
    %v7135 = vpop.f32.mrf.mxu0
    %v7136 = vadd.f32 0.0, %v7135
    %7137 = vdwg.mxu0
    %v7138 = vmul.f32 %v7119, 0.125
    %v7139 = vmul.f32 %v7121, 0.125
    %v7140 = vmul.f32 %v7124, 0.125
    %v7141 = vmul.f32 %v7126, 0.125
    %v7142 = vmul.f32 %v7129, 0.125
    %v7143 = vmul.f32 %v7131, 0.125
    %v7144 = vmul.f32 %v7134, 0.125
    %v7145 = vmul.f32 %v7136, 0.125
    %v7146 = vsel %vm2910, %v7138, -inf
    %v7147 = vsel %vm2911, %v7139, -inf
    %v7148 = vsel %vm2912, %v7140, -inf
    %v7149 = vsel %vm2913, %v7141, -inf
    %v7150 = vsel %vm2914, %v7142, -inf
    %v7151 = vsel %vm2915, %v7143, -inf
    %v7152 = vsel %vm2916, %v7144, -inf
    %v7153 = vsel %vm2917, %v7145, -inf
    %v7154 = vsel %vm3055, %v7146, -inf
    %7155 = vmax.xlane.f32.xlu0 %v7154
    %v7156 = vpop.xlane.xlu0 %7155
    %v7157 = vsel %vm3055, %v7147, -inf
    %7158 = vmax.xlane.f32.xlu0 %v7157
    %v7159 = vpop.xlane.xlu0 %7158
    %v7160 = vsel %vm3055, %v7148, -inf
    %7161 = vmax.xlane.f32.xlu0 %v7160
    %v7162 = vpop.xlane.xlu0 %7161
    %v7163 = vsel %vm3055, %v7149, -inf
    %7164 = vmax.xlane.f32.xlu0 %v7163
    %v7165 = vpop.xlane.xlu0 %7164
    %v7166 = vsel %vm3055, %v7150, -inf
    %7167 = vmax.xlane.f32.xlu0 %v7166
    %v7168 = vpop.xlane.xlu0 %7167
    %v7169 = vsel %vm3055, %v7151, -inf
    %7170 = vmax.xlane.f32.xlu0 %v7169
    %v7171 = vpop.xlane.xlu0 %7170
    %v7172 = vsel %vm3055, %v7152, -inf
    %7173 = vmax.xlane.f32.xlu0 %v7172
    %v7174 = vpop.xlane.xlu0 %7173
    %v7175 = vsel %vm3055, %v7153, -inf
    %7176 = vmax.xlane.f32.xlu0 %v7175
    %v7177 = vpop.xlane.xlu0 %7176
    %v7178 = vsub.f32 %v7146, %v7156
    %v7179 = vsub.f32 %v7147, %v7159
    %v7180 = vsub.f32 %v7148, %v7162
    %v7181 = vsub.f32 %v7149, %v7165
    %v7182 = vsub.f32 %v7150, %v7168
    %v7183 = vsub.f32 %v7151, %v7171
    %v7184 = vsub.f32 %v7152, %v7174
    %v7185 = vsub.f32 %v7153, %v7177
    %v7186 = vmul.f32 %v7178, 1.442695
    %v7187 = vpow.pop %v7186
    %v7188 = vmul.f32 %v7179, 1.442695
    %v7189 = vpow.pop %v7188
    %v7190 = vmul.f32 %v7180, 1.442695
    %v7191 = vpow.pop %v7190
    %v7192 = vmul.f32 %v7181, 1.442695
    %v7193 = vpow.pop %v7192
    %v7194 = vmul.f32 %v7182, 1.442695
    %v7195 = vpow.pop %v7194
    %v7196 = vmul.f32 %v7183, 1.442695
    %v7197 = vpow.pop %v7196
    %v7198 = vmul.f32 %v7184, 1.442695
    %v7199 = vpow.pop %v7198
    %v7200 = vmul.f32 %v7185, 1.442695
    %v7201 = vpow.pop %v7200
    %v7202 = vsel %vm3055, %v7187, 0.0
    %7203 = vadd.xlane.f32.xlu0 %v7202
    %v7204 = vpop.xlane.xlu0 %7203
    %v7205 = vsel %vm3055, %v7189, 0.0
    %7206 = vadd.xlane.f32.xlu0 %v7205
    %v7207 = vpop.xlane.xlu0 %7206
    %v7208 = vsel %vm3055, %v7191, 0.0
    %7209 = vadd.xlane.f32.xlu0 %v7208
    %v7210 = vpop.xlane.xlu0 %7209
    %v7211 = vsel %vm3055, %v7193, 0.0
    %7212 = vadd.xlane.f32.xlu0 %v7211
    %v7213 = vpop.xlane.xlu0 %7212
    %v7214 = vsel %vm3055, %v7195, 0.0
    %7215 = vadd.xlane.f32.xlu0 %v7214
    %v7216 = vpop.xlane.xlu0 %7215
    %v7217 = vsel %vm3055, %v7197, 0.0
    %7218 = vadd.xlane.f32.xlu0 %v7217
    %v7219 = vpop.xlane.xlu0 %7218
    %v7220 = vsel %vm3055, %v7199, 0.0
    %7221 = vadd.xlane.f32.xlu0 %v7220
    %v7222 = vpop.xlane.xlu0 %7221
    %v7223 = vsel %vm3055, %v7201, 0.0
    %7224 = vadd.xlane.f32.xlu0 %v7223
    %v7225 = vpop.xlane.xlu0 %7224
    %v7226 = vrcp.pop %v7204
    %v7227 = vrcp.pop %v7207
    %v7228 = vrcp.pop %v7210
    %v7229 = vrcp.pop %v7213
    %v7230 = vrcp.pop %v7216
    %v7231 = vrcp.pop %v7219
    %v7232 = vrcp.pop %v7222
    %v7233 = vrcp.pop %v7225
    %v7234 = vmul.f32 %v7187, %v7226
    %v7235 = vmul.f32 %v7189, %v7227
    %v7236 = vmul.f32 %v7191, %v7228
    %v7237 = vmul.f32 %v7193, %v7229
    %v7238 = vmul.f32 %v7195, %v7230
    %v7239 = vmul.f32 %v7197, %v7231
    %v7240 = vmul.f32 %v7199, %v7232
    %v7241 = vmul.f32 %v7201, %v7233
    %v7242 = vpack.c.bf16 %v7235, %v7234
    %v7243 = vpack.c.bf16 %v7237, %v7236
    %v7244 = vpack.c.bf16 %v7239, %v7238
    %v7245 = vpack.c.bf16 %v7241, %v7240
    %v7254 = vunpack.c.l.b16 %v2863
    %v7255 = vunpack.c.l.b16 %v2868
    %v7256 = vunpack.c.l.b16 %v2873
    %v7257 = vunpack.c.l.b16 %v2878
    %v7258 = vunpack.c.l.b16 %v2883
    %v7259 = vunpack.c.l.b16 %v2888
    %v7260 = vunpack.c.l.b16 %v2893
    %v7261 = vunpack.c.l.b16 %v2898
    %v7262 = vpack.c.b16 %v7255, %v7254
    %v7263 = vpack.c.b16 %v7257, %v7256
    %v7264 = vpack.c.b16 %v7259, %v7258
    %v7265 = vpack.c.b16 %v7261, %v7260
    %v7271 = vsel %vm3055, %v7242, 0
    %v7274 = vsel %vm3055, %v7243, 0
    %v7277 = vsel %vm3055, %v7244, 0
    %v7280 = vsel %vm3055, %v7245, 0
    %7282 = vmatpush.bf16.msra.mxu0 0
    %7283 = vmatpush.bf16.msra.mxu0 0
    %7284 = vmatpush.bf16.msra.mxu0 0
    %7285 = vmatpush.bf16.msra.mxu0 0
    %7286 = vmatpush.bf16.msra.mxu0 %v7265
    %7287 = vmatpush.bf16.msra.mxu0 %v7264
    %7288 = vmatpush.bf16.msra.mxu0 %v7263
    %7289 = vmatpush.bf16.msra.mxu0 %v7262
    %7290 = vmatmul.bf16.gmra.mxu0 %v7271
    %v7291 = vpop.f32.mrf.mxu0
    %v7292 = vadd.f32 0.0, %v7291
    %v7293 = vpop.f32.mrf.mxu0
    %v7294 = vadd.f32 0.0, %v7293
    %7295 = vmatmul.bf16.gmra.mxu0 %v7274
    %v7296 = vpop.f32.mrf.mxu0
    %v7297 = vadd.f32 0.0, %v7296
    %v7298 = vpop.f32.mrf.mxu0
    %v7299 = vadd.f32 0.0, %v7298
    %7300 = vmatmul.bf16.gmra.mxu0 %v7277
    %v7301 = vpop.f32.mrf.mxu0
    %v7302 = vadd.f32 0.0, %v7301
    %v7303 = vpop.f32.mrf.mxu0
    %v7304 = vadd.f32 0.0, %v7303
    %7305 = vmatmul.bf16.gmra.mxu0 %v7280
    %v7306 = vpop.f32.mrf.mxu0
    %v7307 = vadd.f32 0.0, %v7306
    %v7308 = vpop.f32.mrf.mxu0
    %v7309 = vadd.f32 0.0, %v7308
    %7310 = vdwg.mxu0
    %v7311 = vpack.c.bf16 %v7294, %v7292
    %v7312 = vpack.c.bf16 %v7299, %v7297
    %v7313 = vpack.c.bf16 %v7304, %v7302
    %v7314 = vpack.c.bf16 %v7309, %v7307
    %v7316 = vsel %vm3055, %v7311, 0
    %v7319 = vsel %vm3055, %v7312, 0
    %v7322 = vsel %vm3055, %v7313, 0
    %v7325 = vsel %vm3055, %v7314, 0
    %7327 = vmatpush.bf16.msra.mxu0 0
    %7328 = vmatpush.bf16.msra.mxu0 0
    %7329 = vmatpush.bf16.msra.mxu0 0
    %7330 = vmatpush.bf16.msra.mxu0 0
    %7331 = vmatpush.bf16.msra.mxu0 %v5011
    %7332 = vmatpush.bf16.msra.mxu0 %v5008
    %7333 = vmatpush.bf16.msra.mxu0 %v5005
    %7334 = vmatpush.bf16.msra.mxu0 %v5002
    %7335 = vmatmul.bf16.gmra.mxu0 %v7316
    %v7336 = vpop.f32.mrf.mxu0
    %v7337 = vadd.f32 0.0, %v7336
    %v7338 = vpop.f32.mrf.mxu0
    %v7339 = vadd.f32 0.0, %v7338
    %7340 = vmatmul.bf16.gmra.mxu0 %v7319
    %v7341 = vpop.f32.mrf.mxu0
    %v7342 = vadd.f32 0.0, %v7341
    %v7343 = vpop.f32.mrf.mxu0
    %v7344 = vadd.f32 0.0, %v7343
    %7345 = vmatmul.bf16.gmra.mxu0 %v7322
    %v7346 = vpop.f32.mrf.mxu0
    %v7347 = vadd.f32 0.0, %v7346
    %v7348 = vpop.f32.mrf.mxu0
    %v7349 = vadd.f32 0.0, %v7348
    %7350 = vmatmul.bf16.gmra.mxu0 %v7325
    %v7351 = vpop.f32.mrf.mxu0
    %v7352 = vadd.f32 0.0, %v7351
    %v7353 = vpop.f32.mrf.mxu0
    %v7354 = vadd.f32 0.0, %v7353
    %7355 = vdwg.mxu0
    %7356 = vmatpush.bf16.msra.mxu0 0
    %7357 = vmatpush.bf16.msra.mxu0 0
    %7358 = vmatpush.bf16.msra.mxu0 0
    %7359 = vmatpush.bf16.msra.mxu0 0
    %7360 = vmatpush.bf16.msra.mxu0 %v5012
    %7361 = vmatpush.bf16.msra.mxu0 %v5009
    %7362 = vmatpush.bf16.msra.mxu0 %v5006
    %7363 = vmatpush.bf16.msra.mxu0 %v5003
    %7364 = vmatmul.bf16.gmra.mxu0 %v7316
    %v7365 = vpop.f32.mrf.mxu0
    %v7366 = vadd.f32 0.0, %v7365
    %v7367 = vpop.f32.mrf.mxu0
    %v7368 = vadd.f32 0.0, %v7367
    %7369 = vmatmul.bf16.gmra.mxu0 %v7319
    %v7370 = vpop.f32.mrf.mxu0
    %v7371 = vadd.f32 0.0, %v7370
    %v7372 = vpop.f32.mrf.mxu0
    %v7373 = vadd.f32 0.0, %v7372
    %7374 = vmatmul.bf16.gmra.mxu0 %v7322
    %v7375 = vpop.f32.mrf.mxu0
    %v7376 = vadd.f32 0.0, %v7375
    %v7377 = vpop.f32.mrf.mxu0
    %v7378 = vadd.f32 0.0, %v7377
    %7379 = vmatmul.bf16.gmra.mxu0 %v7325
    %v7380 = vpop.f32.mrf.mxu0
    %v7381 = vadd.f32 0.0, %v7380
    %v7382 = vpop.f32.mrf.mxu0
    %v7383 = vadd.f32 0.0, %v7382
    %7384 = vdwg.mxu0
    %7385 = vmatpush.bf16.msra.mxu0 0
    %7386 = vmatpush.bf16.msra.mxu0 0
    %7387 = vmatpush.bf16.msra.mxu0 0
    %7388 = vmatpush.bf16.msra.mxu0 0
    %7389 = vmatpush.bf16.msra.mxu0 %v5013
    %7390 = vmatpush.bf16.msra.mxu0 %v5010
    %7391 = vmatpush.bf16.msra.mxu0 %v5007
    %7392 = vmatpush.bf16.msra.mxu0 %v5004
    %7393 = vmatmul.bf16.gmra.mxu0 %v7316
    %v7394 = vpop.f32.mrf.mxu0
    %v7395 = vadd.f32 0.0, %v7394
    %v7396 = vpop.f32.mrf.mxu0
    %v7397 = vadd.f32 0.0, %v7396
    %7398 = vmatmul.bf16.gmra.mxu0 %v7319
    %v7399 = vpop.f32.mrf.mxu0
    %v7400 = vadd.f32 0.0, %v7399
    %v7401 = vpop.f32.mrf.mxu0
    %v7402 = vadd.f32 0.0, %v7401
    %7403 = vmatmul.bf16.gmra.mxu0 %v7322
    %v7404 = vpop.f32.mrf.mxu0
    %v7405 = vadd.f32 0.0, %v7404
    %v7406 = vpop.f32.mrf.mxu0
    %v7407 = vadd.f32 0.0, %v7406
    %7408 = vmatmul.bf16.gmra.mxu0 %v7325
    %v7409 = vpop.f32.mrf.mxu0
    %v7410 = vadd.f32 0.0, %v7409
    %v7411 = vpop.f32.mrf.mxu0
    %v7412 = vadd.f32 0.0, %v7411
    %7413 = vdwg.mxu0
    %v7414 = vadd.f32 %v7037, %v7337
    %v7415 = vadd.f32 %v7038, %v7366
    %v7416 = vadd.f32 %v7039, %v7395
    %v7417 = vadd.f32 %v7040, %v7339
    %v7418 = vadd.f32 %v7041, %v7368
    %v7419 = vadd.f32 %v7042, %v7397
    %v7420 = vadd.f32 %v7043, %v7342
    %v7421 = vadd.f32 %v7044, %v7371
    %v7422 = vadd.f32 %v7045, %v7400
    %v7423 = vadd.f32 %v7046, %v7344
    %v7424 = vadd.f32 %v7047, %v7373
    %v7425 = vadd.f32 %v7048, %v7402
    %v7426 = vadd.f32 %v7049, %v7347
    %v7427 = vadd.f32 %v7050, %v7376
    %v7428 = vadd.f32 %v7051, %v7405
    %v7429 = vadd.f32 %v7052, %v7349
    %v7430 = vadd.f32 %v7053, %v7378
    %v7431 = vadd.f32 %v7054, %v7407
    %v7432 = vadd.f32 %v7055, %v7352
    %v7433 = vadd.f32 %v7056, %v7381
    %v7434 = vadd.f32 %v7057, %v7410
    %v7435 = vadd.f32 %v7058, %v7354
    %v7436 = vadd.f32 %v7059, %v7383
    %v7437 = vadd.f32 %v7060, %v7412
    %7438 = vrot.lane.b32.xlu0 %v7069, 64
    %v7439 = vpop.permute.xlu0 %7438
    %7440 = vrot.lane.b32.xlu0 %v7070, 64
    %v7441 = vpop.permute.xlu0 %7440
    %7442 = vrot.lane.b32.xlu0 %v7071, 64
    %v7443 = vpop.permute.xlu0 %7442
    %7444 = vrot.lane.b32.xlu0 %v7072, 64
    %v7445 = vpop.permute.xlu0 %7444
    %7446 = vrot.lane.b32.xlu0 %v7081, 64
    %v7447 = vpop.permute.xlu0 %7446
    %7448 = vrot.lane.b32.xlu0 %v7082, 64
    %v7449 = vpop.permute.xlu0 %7448
    %7450 = vrot.lane.b32.xlu0 %v7083, 64
    %v7451 = vpop.permute.xlu0 %7450
    %7452 = vrot.lane.b32.xlu0 %v7084, 64
    %v7453 = vpop.permute.xlu0 %7452
    %v7455 = vsel %vm3055, %v7439, 0
    %v7458 = vsel %vm3055, %v7441, 0
    %v7461 = vsel %vm3055, %v7443, 0
    %v7464 = vsel %vm3055, %v7445, 0
    %v7467 = vsel %vm3055, %v7447, 0
    %v7470 = vsel %vm3055, %v7449, 0
    %v7473 = vsel %vm3055, %v7451, 0
    %v7476 = vsel %vm3055, %v7453, 0
    %7478 = vmatpush.bf16.xpose.msra.mxu0 0
    %7479 = vmatpush.bf16.xpose.msra.mxu0 0
    %7480 = vmatpush.bf16.xpose.msra.mxu0 0
    %7481 = vmatpush.bf16.xpose.msra.mxu0 0
    %7482 = vmatpush.bf16.xpose.msra.mxu0 %v7476
    %7483 = vmatpush.bf16.xpose.msra.mxu0 %v7473
    %7484 = vmatpush.bf16.xpose.msra.mxu0 %v7470
    %7485 = vmatpush.bf16.xpose.msra.mxu0 %v7467
    %7486 = vmatmul.bf16.gmra.mxu0 %v7455
    %v7487 = vpop.f32.mrf.mxu0
    %v7488 = vadd.f32 0.0, %v7487
    %v7489 = vpop.f32.mrf.mxu0
    %v7490 = vadd.f32 0.0, %v7489
    %7491 = vmatmul.bf16.gmra.mxu0 %v7458
    %v7492 = vpop.f32.mrf.mxu0
    %v7493 = vadd.f32 0.0, %v7492
    %v7494 = vpop.f32.mrf.mxu0
    %v7495 = vadd.f32 0.0, %v7494
    %7496 = vmatmul.bf16.gmra.mxu0 %v7461
    %v7497 = vpop.f32.mrf.mxu0
    %v7498 = vadd.f32 0.0, %v7497
    %v7499 = vpop.f32.mrf.mxu0
    %v7500 = vadd.f32 0.0, %v7499
    %7501 = vmatmul.bf16.gmra.mxu0 %v7464
    %v7502 = vpop.f32.mrf.mxu0
    %v7503 = vadd.f32 0.0, %v7502
    %v7504 = vpop.f32.mrf.mxu0
    %v7505 = vadd.f32 0.0, %v7504
    %7506 = vdwg.mxu0
    %v7507 = vmul.f32 %v7488, 0.125
    %v7508 = vmul.f32 %v7490, 0.125
    %v7509 = vmul.f32 %v7493, 0.125
    %v7510 = vmul.f32 %v7495, 0.125
    %v7511 = vmul.f32 %v7498, 0.125
    %v7512 = vmul.f32 %v7500, 0.125
    %v7513 = vmul.f32 %v7503, 0.125
    %v7514 = vmul.f32 %v7505, 0.125
    %v7515 = vsel %vm2910, %v7507, -inf
    %v7516 = vsel %vm2911, %v7508, -inf
    %v7517 = vsel %vm2912, %v7509, -inf
    %v7518 = vsel %vm2913, %v7510, -inf
    %v7519 = vsel %vm2914, %v7511, -inf
    %v7520 = vsel %vm2915, %v7512, -inf
    %v7521 = vsel %vm2916, %v7513, -inf
    %v7522 = vsel %vm2917, %v7514, -inf
    %v7523 = vsel %vm3055, %v7515, -inf
    %7524 = vmax.xlane.f32.xlu0 %v7523
    %v7525 = vpop.xlane.xlu0 %7524
    %v7526 = vsel %vm3055, %v7516, -inf
    %7527 = vmax.xlane.f32.xlu0 %v7526
    %v7528 = vpop.xlane.xlu0 %7527
    %v7529 = vsel %vm3055, %v7517, -inf
    %7530 = vmax.xlane.f32.xlu0 %v7529
    %v7531 = vpop.xlane.xlu0 %7530
    %v7532 = vsel %vm3055, %v7518, -inf
    %7533 = vmax.xlane.f32.xlu0 %v7532
    %v7534 = vpop.xlane.xlu0 %7533
    %v7535 = vsel %vm3055, %v7519, -inf
    %7536 = vmax.xlane.f32.xlu0 %v7535
    %v7537 = vpop.xlane.xlu0 %7536
    %v7538 = vsel %vm3055, %v7520, -inf
    %7539 = vmax.xlane.f32.xlu0 %v7538
    %v7540 = vpop.xlane.xlu0 %7539
    %v7541 = vsel %vm3055, %v7521, -inf
    %7542 = vmax.xlane.f32.xlu0 %v7541
    %v7543 = vpop.xlane.xlu0 %7542
    %v7544 = vsel %vm3055, %v7522, -inf
    %7545 = vmax.xlane.f32.xlu0 %v7544
    %v7546 = vpop.xlane.xlu0 %7545
    %v7547 = vsub.f32 %v7515, %v7525
    %v7548 = vsub.f32 %v7516, %v7528
    %v7549 = vsub.f32 %v7517, %v7531
    %v7550 = vsub.f32 %v7518, %v7534
    %v7551 = vsub.f32 %v7519, %v7537
    %v7552 = vsub.f32 %v7520, %v7540
    %v7553 = vsub.f32 %v7521, %v7543
    %v7554 = vsub.f32 %v7522, %v7546
    %v7555 = vmul.f32 %v7547, 1.442695
    %v7556 = vpow.pop %v7555
    %v7557 = vmul.f32 %v7548, 1.442695
    %v7558 = vpow.pop %v7557
    %v7559 = vmul.f32 %v7549, 1.442695
    %v7560 = vpow.pop %v7559
    %v7561 = vmul.f32 %v7550, 1.442695
    %v7562 = vpow.pop %v7561
    %v7563 = vmul.f32 %v7551, 1.442695
    %v7564 = vpow.pop %v7563
    %v7565 = vmul.f32 %v7552, 1.442695
    %v7566 = vpow.pop %v7565
    %v7567 = vmul.f32 %v7553, 1.442695
    %v7568 = vpow.pop %v7567
    %v7569 = vmul.f32 %v7554, 1.442695
    %v7570 = vpow.pop %v7569
    %v7571 = vsel %vm3055, %v7556, 0.0
    %7572 = vadd.xlane.f32.xlu0 %v7571
    %v7573 = vpop.xlane.xlu0 %7572
    %v7574 = vsel %vm3055, %v7558, 0.0
    %7575 = vadd.xlane.f32.xlu0 %v7574
    %v7576 = vpop.xlane.xlu0 %7575
    %v7577 = vsel %vm3055, %v7560, 0.0
    %7578 = vadd.xlane.f32.xlu0 %v7577
    %v7579 = vpop.xlane.xlu0 %7578
    %v7580 = vsel %vm3055, %v7562, 0.0
    %7581 = vadd.xlane.f32.xlu0 %v7580
    %v7582 = vpop.xlane.xlu0 %7581
    %v7583 = vsel %vm3055, %v7564, 0.0
    %7584 = vadd.xlane.f32.xlu0 %v7583
    %v7585 = vpop.xlane.xlu0 %7584
    %v7586 = vsel %vm3055, %v7566, 0.0
    %7587 = vadd.xlane.f32.xlu0 %v7586
    %v7588 = vpop.xlane.xlu0 %7587
    %v7589 = vsel %vm3055, %v7568, 0.0
    %7590 = vadd.xlane.f32.xlu0 %v7589
    %v7591 = vpop.xlane.xlu0 %7590
    %v7592 = vsel %vm3055, %v7570, 0.0
    %7593 = vadd.xlane.f32.xlu0 %v7592
    %v7594 = vpop.xlane.xlu0 %7593
    %v7595 = vrcp.pop %v7573
    %v7596 = vrcp.pop %v7576
    %v7597 = vrcp.pop %v7579
    %v7598 = vrcp.pop %v7582
    %v7599 = vrcp.pop %v7585
    %v7600 = vrcp.pop %v7588
    %v7601 = vrcp.pop %v7591
    %v7602 = vrcp.pop %v7594
    %v7603 = vmul.f32 %v7556, %v7595
    %v7604 = vmul.f32 %v7558, %v7596
    %v7605 = vmul.f32 %v7560, %v7597
    %v7606 = vmul.f32 %v7562, %v7598
    %v7607 = vmul.f32 %v7564, %v7599
    %v7608 = vmul.f32 %v7566, %v7600
    %v7609 = vmul.f32 %v7568, %v7601
    %v7610 = vmul.f32 %v7570, %v7602
    %v7611 = vpack.c.bf16 %v7604, %v7603
    %v7612 = vpack.c.bf16 %v7606, %v7605
    %v7613 = vpack.c.bf16 %v7608, %v7607
    %v7614 = vpack.c.bf16 %v7610, %v7609
    %7615 = vrot.lane.b32.xlu0 %v7262, 64
    %v7616 = vpop.permute.xlu0 %7615
    %7617 = vrot.lane.b32.xlu0 %v7263, 64
    %v7618 = vpop.permute.xlu0 %7617
    %7619 = vrot.lane.b32.xlu0 %v7264, 64
    %v7620 = vpop.permute.xlu0 %7619
    %7621 = vrot.lane.b32.xlu0 %v7265, 64
    %v7622 = vpop.permute.xlu0 %7621
    %v7628 = vsel %vm3055, %v7611, 0
    %v7631 = vsel %vm3055, %v7612, 0
    %v7634 = vsel %vm3055, %v7613, 0
    %v7637 = vsel %vm3055, %v7614, 0
    %7639 = vmatpush.bf16.msra.mxu0 0
    %7640 = vmatpush.bf16.msra.mxu0 0
    %7641 = vmatpush.bf16.msra.mxu0 0
    %7642 = vmatpush.bf16.msra.mxu0 0
    %7643 = vmatpush.bf16.msra.mxu0 %v7622
    %7644 = vmatpush.bf16.msra.mxu0 %v7620
    %7645 = vmatpush.bf16.msra.mxu0 %v7618
    %7646 = vmatpush.bf16.msra.mxu0 %v7616
    %7647 = vmatmul.bf16.gmra.mxu0 %v7628
    %v7648 = vpop.f32.mrf.mxu0
    %v7649 = vadd.f32 0.0, %v7648
    %v7650 = vpop.f32.mrf.mxu0
    %v7651 = vadd.f32 0.0, %v7650
    %7652 = vmatmul.bf16.gmra.mxu0 %v7631
    %v7653 = vpop.f32.mrf.mxu0
    %v7654 = vadd.f32 0.0, %v7653
    %v7655 = vpop.f32.mrf.mxu0
    %v7656 = vadd.f32 0.0, %v7655
    %7657 = vmatmul.bf16.gmra.mxu0 %v7634
    %v7658 = vpop.f32.mrf.mxu0
    %v7659 = vadd.f32 0.0, %v7658
    %v7660 = vpop.f32.mrf.mxu0
    %v7661 = vadd.f32 0.0, %v7660
    %7662 = vmatmul.bf16.gmra.mxu0 %v7637
    %v7663 = vpop.f32.mrf.mxu0
    %v7664 = vadd.f32 0.0, %v7663
    %v7665 = vpop.f32.mrf.mxu0
    %v7666 = vadd.f32 0.0, %v7665
    %7667 = vdwg.mxu0
    %v7668 = vpack.c.bf16 %v7651, %v7649
    %v7669 = vpack.c.bf16 %v7656, %v7654
    %v7670 = vpack.c.bf16 %v7661, %v7659
    %v7671 = vpack.c.bf16 %v7666, %v7664
    %v7673 = vsel %vm3055, %v7668, 0
    %v7676 = vsel %vm3055, %v7669, 0
    %v7679 = vsel %vm3055, %v7670, 0
    %v7682 = vsel %vm3055, %v7671, 0
    %7684 = vmatpush.bf16.msra.mxu0 0
    %7685 = vmatpush.bf16.msra.mxu0 0
    %7686 = vmatpush.bf16.msra.mxu0 0
    %7687 = vmatpush.bf16.msra.mxu0 0
    %7688 = vmatpush.bf16.msra.mxu0 %v5432
    %7689 = vmatpush.bf16.msra.mxu0 %v5429
    %7690 = vmatpush.bf16.msra.mxu0 %v5426
    %7691 = vmatpush.bf16.msra.mxu0 %v5423
    %7692 = vmatmul.bf16.gmra.mxu0 %v7673
    %v7693 = vpop.f32.mrf.mxu0
    %v7694 = vadd.f32 0.0, %v7693
    %v7695 = vpop.f32.mrf.mxu0
    %v7696 = vadd.f32 0.0, %v7695
    %7697 = vmatmul.bf16.gmra.mxu0 %v7676
    %v7698 = vpop.f32.mrf.mxu0
    %v7699 = vadd.f32 0.0, %v7698
    %v7700 = vpop.f32.mrf.mxu0
    %v7701 = vadd.f32 0.0, %v7700
    %7702 = vmatmul.bf16.gmra.mxu0 %v7679
    %v7703 = vpop.f32.mrf.mxu0
    %v7704 = vadd.f32 0.0, %v7703
    %v7705 = vpop.f32.mrf.mxu0
    %v7706 = vadd.f32 0.0, %v7705
    %7707 = vmatmul.bf16.gmra.mxu0 %v7682
    %v7708 = vpop.f32.mrf.mxu0
    %v7709 = vadd.f32 0.0, %v7708
    %v7710 = vpop.f32.mrf.mxu0
    %v7711 = vadd.f32 0.0, %v7710
    %7712 = vdwg.mxu0
    %7713 = vmatpush.bf16.msra.mxu0 0
    %7714 = vmatpush.bf16.msra.mxu0 0
    %7715 = vmatpush.bf16.msra.mxu0 0
    %7716 = vmatpush.bf16.msra.mxu0 0
    %7717 = vmatpush.bf16.msra.mxu0 %v5433
    %7718 = vmatpush.bf16.msra.mxu0 %v5430
    %7719 = vmatpush.bf16.msra.mxu0 %v5427
    %7720 = vmatpush.bf16.msra.mxu0 %v5424
    %7721 = vmatmul.bf16.gmra.mxu0 %v7673
    %v7722 = vpop.f32.mrf.mxu0
    %v7723 = vadd.f32 0.0, %v7722
    %v7724 = vpop.f32.mrf.mxu0
    %v7725 = vadd.f32 0.0, %v7724
    %7726 = vmatmul.bf16.gmra.mxu0 %v7676
    %v7727 = vpop.f32.mrf.mxu0
    %v7728 = vadd.f32 0.0, %v7727
    %v7729 = vpop.f32.mrf.mxu0
    %v7730 = vadd.f32 0.0, %v7729
    %7731 = vmatmul.bf16.gmra.mxu0 %v7679
    %v7732 = vpop.f32.mrf.mxu0
    %v7733 = vadd.f32 0.0, %v7732
    %v7734 = vpop.f32.mrf.mxu0
    %v7735 = vadd.f32 0.0, %v7734
    %7736 = vmatmul.bf16.gmra.mxu0 %v7682
    %v7737 = vpop.f32.mrf.mxu0
    %v7738 = vadd.f32 0.0, %v7737
    %v7739 = vpop.f32.mrf.mxu0
    %v7740 = vadd.f32 0.0, %v7739
    %7741 = vdwg.mxu0
    %7742 = vmatpush.bf16.msra.mxu0 0
    %7743 = vmatpush.bf16.msra.mxu0 0
    %7744 = vmatpush.bf16.msra.mxu0 0
    %7745 = vmatpush.bf16.msra.mxu0 0
    %7746 = vmatpush.bf16.msra.mxu0 %v5434
    %7747 = vmatpush.bf16.msra.mxu0 %v5431
    %7748 = vmatpush.bf16.msra.mxu0 %v5428
    %7749 = vmatpush.bf16.msra.mxu0 %v5425
    %7750 = vmatmul.bf16.gmra.mxu0 %v7673
    %v7751 = vpop.f32.mrf.mxu0
    %v7752 = vadd.f32 0.0, %v7751
    %v7753 = vpop.f32.mrf.mxu0
    %v7754 = vadd.f32 0.0, %v7753
    %7755 = vmatmul.bf16.gmra.mxu0 %v7676
    %v7756 = vpop.f32.mrf.mxu0
    %v7757 = vadd.f32 0.0, %v7756
    %v7758 = vpop.f32.mrf.mxu0
    %v7759 = vadd.f32 0.0, %v7758
    %7760 = vmatmul.bf16.gmra.mxu0 %v7679
    %v7761 = vpop.f32.mrf.mxu0
    %v7762 = vadd.f32 0.0, %v7761
    %v7763 = vpop.f32.mrf.mxu0
    %v7764 = vadd.f32 0.0, %v7763
    %7765 = vmatmul.bf16.gmra.mxu0 %v7682
    %v7766 = vpop.f32.mrf.mxu0
    %v7767 = vadd.f32 0.0, %v7766
    %v7768 = vpop.f32.mrf.mxu0
    %v7769 = vadd.f32 0.0, %v7768
    %7770 = vdwg.mxu0
    %v7771 = vadd.f32 %v7414, %v7694
    %v7772 = vadd.f32 %v7415, %v7723
    %v7773 = vadd.f32 %v7416, %v7752
    %v7774 = vadd.f32 %v7417, %v7696
    %v7775 = vadd.f32 %v7418, %v7725
    %v7776 = vadd.f32 %v7419, %v7754
    %v7777 = vadd.f32 %v7420, %v7699
    %v7778 = vadd.f32 %v7421, %v7728
    %v7779 = vadd.f32 %v7422, %v7757
    %v7780 = vadd.f32 %v7423, %v7701
    %v7781 = vadd.f32 %v7424, %v7730
    %v7782 = vadd.f32 %v7425, %v7759
    %v7783 = vadd.f32 %v7426, %v7704
    %v7784 = vadd.f32 %v7427, %v7733
    %v7785 = vadd.f32 %v7428, %v7762
    %v7786 = vadd.f32 %v7429, %v7706
    %v7787 = vadd.f32 %v7430, %v7735
    %v7788 = vadd.f32 %v7431, %v7764
    %v7789 = vadd.f32 %v7432, %v7709
    %v7790 = vadd.f32 %v7433, %v7738
    %v7791 = vadd.f32 %v7434, %v7767
    %v7792 = vadd.f32 %v7435, %v7711
    %v7793 = vadd.f32 %v7436, %v7740
    %v7794 = vadd.f32 %v7437, %v7769
    %v7795 = vadd.f32 %v7771, %v5571
    %v7796 = vadd.f32 %v7772, %v5572
    %v7797 = vadd.f32 %v7773, %v5573
    %v7798 = vadd.f32 %v7774, %v5571
    %v7799 = vadd.f32 %v7775, %v5572
    %v7800 = vadd.f32 %v7776, %v5573
    %v7801 = vadd.f32 %v7777, %v5571
    %v7802 = vadd.f32 %v7778, %v5572
    %v7803 = vadd.f32 %v7779, %v5573
    %v7804 = vadd.f32 %v7780, %v5571
    %v7805 = vadd.f32 %v7781, %v5572
    %v7806 = vadd.f32 %v7782, %v5573
    %v7807 = vadd.f32 %v7783, %v5571
    %v7808 = vadd.f32 %v7784, %v5572
    %v7809 = vadd.f32 %v7785, %v5573
    %v7810 = vadd.f32 %v7786, %v5571
    %v7811 = vadd.f32 %v7787, %v5572
    %v7812 = vadd.f32 %v7788, %v5573
    %v7813 = vadd.f32 %v7789, %v5571
    %v7814 = vadd.f32 %v7790, %v5572
    %v7815 = vadd.f32 %v7791, %v5573
    %v7816 = vadd.f32 %v7792, %v5571
    %v7817 = vadd.f32 %v7793, %v5572
    %v7818 = vadd.f32 %v7794, %v5573
    %7819 = vst [vmem:[#allocation10 + $0xc0] sm:$0xff] %v7795
    %7820 = vst [vmem:[#allocation10 + $0xc8] sm:$0xff] %v7796
    %7821 = vst [vmem:[#allocation10 + $0xd0] sm:$0xff] %v7797
    %7822 = vst [vmem:[#allocation10 + $0xd8] sm:$0xff] %v7798
    %7823 = vst [vmem:[#allocation10 + $0xe0] sm:$0xff] %v7799
    %7824 = vst [vmem:[#allocation10 + $0xe8] sm:$0xff] %v7800
    %7825 = vst [vmem:[#allocation10 + $0xf0] sm:$0xff] %v7801
    %7826 = vst [vmem:[#allocation10 + $0xf8] sm:$0xff] %v7802
    %7827 = vst [vmem:[#allocation10 + $0x100] sm:$0xff] %v7803
    %7828 = vst [vmem:[#allocation10 + $0x108] sm:$0xff] %v7804
    %7829 = vst [vmem:[#allocation10 + $0x110] sm:$0xff] %v7805
    %7830 = vst [vmem:[#allocation10 + $0x118] sm:$0xff] %v7806
    %7831 = vst [vmem:[#allocation10 + $0x120] sm:$0xff] %v7807
    %7832 = vst [vmem:[#allocation10 + $0x128] sm:$0xff] %v7808
    %7833 = vst [vmem:[#allocation10 + $0x130] sm:$0xff] %v7809
    %7834 = vst [vmem:[#allocation10 + $0x138] sm:$0xff] %v7810
    %7835 = vst [vmem:[#allocation10 + $0x140] sm:$0xff] %v7811
    %7836 = vst [vmem:[#allocation10 + $0x148] sm:$0xff] %v7812
    %7837 = vst [vmem:[#allocation10 + $0x150] sm:$0xff] %v7813
    %7838 = vst [vmem:[#allocation10 + $0x158] sm:$0xff] %v7814
    %7839 = vst [vmem:[#allocation10 + $0x160] sm:$0xff] %v7815
    %7840 = vst [vmem:[#allocation10 + $0x168] sm:$0xff] %v7816
    %7841 = vst [vmem:[#allocation10 + $0x170] sm:$0xff] %v7817
    %7842 = vst [vmem:[#allocation10 + $0x178] sm:$0xff] %v7818
    // Predicated region
    $region34: #{tpu_custom_call.1} parent=1 // pred_check
      _
    $region35: #{tpu_custom_call.1} parent=1 // pred_check_branch
      %7844 = sbr.rel (0) target = $region37
    $region36: #{tpu_custom_call.1} parent=1 // pred_region
      %7846 = vsyncadd [#allocation4], 0
      %s7847 = sshll.u32 [#allocation10], 4
      %s7848 = int_to_ptr.vmem [resolvable:$true] %s7847
      %s7849 = sshll.u32 %s4, 4
      %s7850 = int_to_ptr.hbm [resolvable:$true] %s7849
      %7855 = dma.vmem_to_hbm [thread:$0]  %s7848, 6144, %s7850, [#allocation4], 384, 384, 24
    $region37: #{tpu_custom_call.1} parent=1 // pred_fallthru
      _
    // Predicated region
    $region38: #{tpu_custom_call.1} parent=1 // pred_check
      _
    $region39: #{tpu_custom_call.1} parent=1 // pred_check_branch
      %7857 = sbr.rel (0) target = $region41
    $region40: #{tpu_custom_call.1} parent=1 // pred_region
      %7859 = dma.done [#allocation4], 6144
    $region41: #{tpu_custom_call.1} parent=1 // pred_fallthru
      _
    %7860 = vsyncpa [#allocation3], 1
    %7861 = vsyncpa [#allocation6], 1
    %7862 = vsyncpa [#allocation9], 1
    %7863 = vsyncpa [#allocation4], 1

</llo_original>
